<compile_context>
chip_gen: v7x
topology: tpu7x:2x2x1
jax: 0.10.0
libtpu: 0.0.40
codegen_flags: <defaults>
</compile_context>

<pallas_src>
import functools

import jax
import jax.numpy as jnp
from jax.experimental import pallas as pl
from jax.experimental.pallas import tpu as pltpu

# ----------------------------- config ---------------------------------------
TM = 128          # max row tile (MXU-filling, ~0.35us/step amortized)
H = 32            # hidden_dim
VOCAB = 33
D_DESIGN = 64     # input_design_dim
D_ESM = 48        # input_esm_dim
D_STRUCT = 128    # small stand-in for input_struct_dim (default 3072)
D_ESMIF = 64      # small stand-in for input_esmif_dim (default 512)
D_EDGE = 416 + 16 + 16   # = 448, fixed by EdgeEmbed
NUM_LAYERS = 2
MSA_N = 1
TAIL_W = 128      # packed tail output slab width (33+33+32+1=99 -> pad to 128)

# megacore sharding of the row grid axis (helps v7x, harmless on v5e/v6e)
_CP = pltpu.CompilerParams(dimension_semantics=("parallel",))
# TODO(synk): at real dims (StructProj 3072->512, ESMIF 512) raise vmem_limit_bytes
#   (v5e's default scoped limit is ~16 MiB) and single-buffer the constant-index
#   weight BlockSpecs (pipeline_mode=pl.Buffered(1)) to fit v7x's 64 MiB VMEM;
#   stand-in dims fit the defaults so neither is set here.


# ----------------------------- small helpers ---------------------------------
def _round_up(n, m):
    return ((n + m - 1) // m) * m


def _tile_rows(n, tm):
    """Pick an 8-aligned row tile <= tm and the padded row count."""
    tm_eff = min(tm, _round_up(max(n, 1), 8))
    return tm_eff, _round_up(n, tm_eff)


def _pad_rows_to(x, npad):
    n = x.shape[0]
    if npad == n:
        return x
    return jnp.pad(x, ((0, npad - n), (0, 0)))


def _full_spec(a):
    # weights / biases / LN params are 2-D full blocks, constant across the grid
    return pl.BlockSpec(a.shape, lambda i: (0, 0))


def _row_spec(tm, d):
    return pl.BlockSpec((tm, d), lambda i: (i, 0))


# ----------------------------- in-kernel helpers -----------------------------
def _sigmoid(x):
    return 1.0 / (1.0 + jnp.exp(-x))


def _k_mlp3(x, w1, b1, w2, b2, w3, b3):
    """3-layer MLP body (bf16 matmul operands, f32 accumulation)."""
    h = jnp.dot(x.astype(jnp.bfloat16), w1[...],
                preferred_element_type=jnp.float32) + b1[...]
    h = jnp.maximum(h, 0.0)
    h = jnp.dot(h.astype(jnp.bfloat16), w2[...],
                preferred_element_type=jnp.float32) + b2[...]
    h = jnp.maximum(h, 0.0)
    return jnp.dot(h.astype(jnp.bfloat16), w3[...],
                   preferred_element_type=jnp.float32) + b3[...]


def _k_mlp3_scalar(x, w1, b1, w2, b2, w3, b3):
    """3-layer MLP whose input feature dim is 1 (broadcast first layer)."""
    h = jnp.maximum(x * w1[...].astype(jnp.float32) + b1[...], 0.0)
    h = jnp.maximum(
        jnp.dot(h.astype(jnp.bfloat16), w2[...],
                preferred_element_type=jnp.float32) + b2[...], 0.0)
    return jnp.dot(h.astype(jnp.bfloat16), w3[...],
                   preferred_element_type=jnp.float32) + b3[...]


def _k_layer_norm(x, g_ref, b_ref, eps=1e-5):
    mu = jnp.mean(x, axis=-1, keepdims=True)
    var = jnp.mean((x - mu) ** 2, axis=-1, keepdims=True)
    return (x - mu) / jnp.sqrt(var + eps) * g_ref[...] + b_ref[...]


# ----------------------------- Pallas kernels --------------------------------
def _mlp3_kernel(x_ref, w1, b1, w2, b2, w3, b3, o_ref):
    o_ref[...] = _k_mlp3(x_ref[...], w1, b1, w2, b2, w3, b3).astype(o_ref.dtype)


def _fuse_kernel(*refs):
    """Fused per-token embedding pipeline: 4 projection MLPs + embedding adds +
    2 confidence-gate MLPs + weighted sum, all resident in VMEM."""
    design, esmf, structf, esmiff, demb, eemb, dconf, econf = refs[:8]
    o_ref = refs[-1]
    wts = refs[8:-1]
    dp, ep, sp, ip, dc, ec = (wts[0:6], wts[6:12], wts[12:18],
                              wts[18:24], wts[24:30], wts[30:36])
    gnn = _k_mlp3(design[...], *dp) + demb[...]
    esmv = _k_mlp3(esmf[...], *ep) + eemb[...]
    gearnet = _k_mlp3(structf[...], *sp)
    esmif_v = _k_mlp3(esmiff[...], *ip)
    conf = _sigmoid(_k_mlp3_scalar(dconf[...], *dc))   # DesignConf (Sigmoid in ref)
    esm_conf = _k_mlp3_scalar(econf[...], *ec)         # ESMConf (no Sigmoid in ref)
    o_ref[...] = gnn * conf + esmv * esm_conf + gearnet + esmif_v


def _gnn_node_kernel(hv_ref, hd_ref, he_ref,
                     a_s, a_b, w_cat1, b1, w2, b2, w3, b3,
                     g1, be1, f1, fb1, f2, fb2, f3, fb3, g2, be2,
                     o_ref, *, K, Hd):
    """Fused node update.  Per neighbor: ONE MXU push computes both the attention
    logit and the message first layer ((tm,2H) x (2H,H+1), logit = column H);
    then softmax over K, weighted sum, residual/LN, FFN, residual/LN."""
    hv = hv_ref[...]                                   # (tm, H)  f32
    tm = hv.shape[0]
    hd = hd_ref[...].astype(jnp.bfloat16)              # (tm, K*H) lane-dense block
    he = he_ref[...].astype(jnp.bfloat16)              # (tm, K*H) lane-dense block

    # hoisted loop invariants (JAX does not CSE broadcast_in_dim)
    base = jnp.dot(hv.astype(jnp.bfloat16), a_s[...],
                   preferred_element_type=jnp.float32) + a_b[...]   # (tm, 1)
    w1v = w_cat1[...]
    w2v, w3v = w2[...], w3[...]
    b1b = jnp.broadcast_to(b1[...], (tm, Hd))
    b2b = jnp.broadcast_to(b2[...], (tm, Hd))
    b3b = jnp.broadcast_to(b3[...], (tm, Hd))

    logits, msgs = [], []
    for k in range(K):
        ek = he[:, k * Hd:(k + 1) * Hd]
        dk = hd[:, k * Hd:(k + 1) * Hd]
        cat = jnp.concatenate([ek, dk], axis=-1)                      # (tm, 2H) bf16
        fused = jnp.dot(cat, w1v, preferred_element_type=jnp.float32)  # (tm, H+1)
        lk = fused[:, Hd:Hd + 1] + base
        m = jnp.maximum(fused[:, :Hd] + b1b, 0.0)
        m = jnp.maximum(
            jnp.dot(m.astype(jnp.bfloat16), w2v,
                    preferred_element_type=jnp.float32) + b2b, 0.0)
        m = jnp.dot(m.astype(jnp.bfloat16), w3v,
                    preferred_element_type=jnp.float32) + b3b
        logits.append(lk)
        msgs.append(m)

    mx = logits[0]
    for k in range(1, K):
        mx = jnp.maximum(mx, logits[k])
    exps = [jnp.exp(l - mx) for l in logits]
    den = exps[0]
    for k in range(1, K):
        den = den + exps[k]
    dh = msgs[0] * exps[0]
    for k in range(1, K):
        dh = dh + msgs[k] * exps[k]
    dh = dh * pl.reciprocal(den, approx=True)

    x = _k_layer_norm(hv + dh, g1, be1)
    f = jnp.maximum(
        jnp.dot(x.astype(jnp.bfloat16), f1[...],
                preferred_element_type=jnp.float32) + fb1[...], 0.0)
    f = jnp.maximum(
        jnp.dot(f.astype(jnp.bfloat16), f2[...],
                preferred_element_type=jnp.float32) + fb2[...], 0.0)
    f = jnp.dot(f.astype(jnp.bfloat16), f3[...],
                preferred_element_type=jnp.float32) + fb3[...]
    o_ref[...] = _k_layer_norm(x + f, g2, be2)


def _gnn_edge_kernel(hs_ref, he_ref, hd_ref,
                     we1, eb1, we2, eb2, we3, eb3, ge, bee, o_ref):
    """Fused edge update: [h_src || h_E || h_dst] -> ONE stacked (3H,H) first-layer
    push -> ReLU -> 2 more layers -> residual + LayerNorm."""
    he = he_ref[...]
    cat = jnp.concatenate([hs_ref[...], he, hd_ref[...]],
                          axis=-1).astype(jnp.bfloat16)               # (tm, 3H)
    m = jnp.dot(cat, we1[...], preferred_element_type=jnp.float32) + eb1[...]
    m = jnp.maximum(m, 0.0)
    m = jnp.maximum(
        jnp.dot(m.astype(jnp.bfloat16), we2[...],
                preferred_element_type=jnp.float32) + eb2[...], 0.0)
    m = jnp.dot(m.astype(jnp.bfloat16), we3[...],
                preferred_element_type=jnp.float32) + eb3[...]
    o_ref[...] = _k_layer_norm(he + m, ge, bee)


def _tail_kernel(hv_ref, ie_ref, oc_ref,
                 ro_w, ro_b,
                 m1_w1, m1_b1, m1_w2, m1_b2, m1_w3, m1_b3,
                 m2_w1, m2_b1, m2_w2, m2_b2, m2_w3, m2_b3,
                 o_ref):
    """Fused readout tail: ReadOut -> softmax/max -> MLP1/MLP2 sigmoid gates ->
    gated blend -> ReadOut -> softmax/max.  All outputs packed into one
    lane-dense (tm, 128) slab: [logits(33) | probs(33) | h_V2(32) | conf(1) | 0s]."""
    hv = hv_ref[...]
    ie = ie_ref[...]
    oc = oc_ref[...]
    tm = hv.shape[0]

    def readout(x):
        return jnp.dot(x.astype(jnp.bfloat16), ro_w[...],
                       preferred_element_type=jnp.float32) + ro_b[...]

    def softmax(l):
        m = jnp.max(l, axis=-1, keepdims=True)
        e = jnp.exp(l - m)
        return e / jnp.sum(e, axis=-1, keepdims=True)

    p1 = softmax(readout(hv))
    conf1 = jnp.max(p1, axis=-1, keepdims=True)
    g1 = _sigmoid(_k_mlp3_scalar(conf1 - oc, m1_w1, m1_b1, m1_w2, m1_b2, m1_w3, m1_b3))
    g2 = _sigmoid(_k_mlp3_scalar(oc - conf1, m2_w1, m2_b1, m2_w2, m2_b2, m2_w3, m2_b3))
    hv2 = hv * g1 + ie * g2
    logits2 = readout(hv2)
    p2 = softmax(logits2)
    conf2 = jnp.max(p2, axis=-1, keepdims=True)
    pad_w = o_ref.shape[-1] - (2 * VOCAB + hv2.shape[-1] + 1)
    pad = jnp.zeros((tm, pad_w), jnp.float32)
    o_ref[...] = jnp.concatenate([logits2, p2, hv2, conf2, pad], axis=-1)


# ----------------------------- wrappers --------------------------------------
def mlp3(x, params_, tm=TM):
    """Row-tiled 3-layer MLP (used for EdgeEmbed).  Input cast to bf16 at the
    HBM boundary (it is cast for the matmul anyway)."""
    w1, b1, w2, b2, w3, b3 = params_
    x = x.astype(jnp.bfloat16)
    n, din = x.shape
    tm_eff, npad = _tile_rows(n, tm)
    xp = _pad_rows_to(x, npad)
    dout = w3.shape[1]
    out = pl.pallas_call(
        _mlp3_kernel,
        out_shape=jax.ShapeDtypeStruct((npad, dout), jnp.float32),
        grid=(npad // tm_eff,),
        in_specs=[_row_spec(tm_eff, din)] + [_full_spec(w) for w in params_],
        out_specs=_row_spec(tm_eff, dout),
        compiler_params=_CP,
    )(xp, *params_)
    return out[:n]


def fuse_embeddings(params, feats, tm=TM):
    """feats = (design_f, esm_f, struct_f, esmif_f, demb, eemb, dconf, econf)."""
    n = feats[0].shape[0]
    tm_eff, npad = _tile_rows(n, tm)
    # cast the big projection inputs to bf16 before padding (halves HBM + pad bytes)
    feats = tuple(a.astype(jnp.bfloat16) for a in feats[:4]) + tuple(feats[4:])
    pads = [_pad_rows_to(a, npad) for a in feats]
    weights = (params["DesignProj"] + params["ESMProj"] + params["StructProj"]
               + params["ESMIFProj"] + params["DesignConf"] + params["ESMConf"])
    out = pl.pallas_call(
        _fuse_kernel,
        out_shape=jax.ShapeDtypeStruct((npad, H), jnp.float32),
        grid=(npad // tm_eff,),
        in_specs=[_row_spec(tm_eff, a.shape[1]) for a in pads]
                 + [_full_spec(w) for w in weights],
        out_specs=_row_spec(tm_eff, H),
        compiler_params=_CP,
    )(*pads, *weights)
    return out[:n]


def tail_readout(h_V, inputs_embeds, old_conf, params, tm=TM):
    n, Hd = h_V.shape
    tm_eff, npad = _tile_rows(n, tm)
    hvp = _pad_rows_to(h_V, npad)
    iep = _pad_rows_to(inputs_embeds, npad)
    ocp = _pad_rows_to(old_conf, npad)
    weights = params["ReadOut"] + params["MLP1"] + params["MLP2"]
    slab = pl.pallas_call(
        _tail_kernel,
        out_shape=jax.ShapeDtypeStruct((npad, TAIL_W), jnp.float32),
        grid=(npad // tm_eff,),
        in_specs=[_row_spec(tm_eff, Hd), _row_spec(tm_eff, Hd), _row_spec(tm_eff, 1)]
                 + [_full_spec(w) for w in weights],
        out_specs=_row_spec(tm_eff, TAIL_W),
        compiler_params=_CP,
    )(hvp, iep, ocp, *weights)[:n]
    logits = slab[:, :VOCAB]
    probs = slab[:, VOCAB:2 * VOCAB]
    hv2 = slab[:, 2 * VOCAB:2 * VOCAB + Hd]
    conf = slab[:, 2 * VOCAB + Hd:2 * VOCAB + Hd + 1]
    return logits, probs, hv2, conf


# ----------------------------- plain-JAX glue --------------------------------
def segment_mean(x, seg, num_seg):
    s = jax.ops.segment_sum(x, seg, num_segments=num_seg)
    c = jax.ops.segment_sum(jnp.ones((x.shape[0], 1), x.dtype), seg,
                            num_segments=num_seg)
    return s / jnp.maximum(c, 1.0)


def _ctx_gate(c, ctx_params):
    """Tiny [B,H] context-gate MLP; cheaper as plain XLA than a pallas launch."""
    w1, b1, w2, b2, w3, b3 = ctx_params
    h = jnp.maximum(c @ w1.astype(jnp.float32) + b1, 0.0)
    h = jnp.maximum(h @ w2.astype(jnp.float32) + b2, 0.0)
    return jax.nn.sigmoid(h @ w3.astype(jnp.float32) + b3)


# TODO(synk): exact GeneralGNN (PiFold AttMLP/EdgeMLP) source is not part of the
# provided module; this is a representative attention-MLP message-passing layer
# (neighbor attention + FFN + edge update + batch-context gating).  The attention
# softmax assumes E_idx is sorted by source node with exactly K neighbors each.
# TODO(synk): for production K~30, restructure messages as an edge-row-tiled kernel
# (or fori_loop over (tm, K*H) slices) instead of the fully unrolled K loop.
def gnn_layer(h_V, h_E, src, dst, batch_id, lp, num_batches, K, tm=TM):
    N, Hd = h_V.shape
    E = h_E.shape[0]

    # ---- fused node update: lane-dense (N, K*H) neighbor blocks ----
    hd_cat = jnp.take(h_V, dst, axis=0).reshape(N, K * Hd)   # h_V[dst] per slot
    he_cat = h_E.reshape(N, K * Hd)                          # h_E per slot
    tm_n, npad = _tile_rows(N, tm)
    hvp = _pad_rows_to(h_V, npad)
    hdp = _pad_rows_to(hd_cat, npad)
    hep = _pad_rows_to(he_cat, npad)
    node_w = lp["node"]
    h_V_mid = pl.pallas_call(
        functools.partial(_gnn_node_kernel, K=K, Hd=Hd),
        out_shape=jax.ShapeDtypeStruct((npad, Hd), jnp.float32),
        grid=(npad // tm_n,),
        in_specs=[_row_spec(tm_n, Hd), _row_spec(tm_n, K * Hd),
                  _row_spec(tm_n, K * Hd)]
                 + [_full_spec(w) for w in node_w],
        out_specs=_row_spec(tm_n, Hd),
        compiler_params=_CP,
    )(hvp, hdp, hep, *node_w)[:N]

    # ---- fused edge update (uses updated nodes) ----
    # TODO(synk): gathers of h_V_mid by src/dst could be folded into the edge kernel
    # via PrefetchScalarGridSpec index_maps to skip the (E,H) HBM intermediates.
    hs_e = jnp.take(h_V_mid, src, axis=0)
    hd_e = jnp.take(h_V_mid, dst, axis=0)
    tm_e, epad = _tile_rows(E, tm)
    hs_p = _pad_rows_to(hs_e, epad)
    hd_p = _pad_rows_to(hd_e, epad)
    he_p = _pad_rows_to(h_E, epad)
    edge_w = lp["edge"]
    h_E_new = pl.pallas_call(
        _gnn_edge_kernel,
        out_shape=jax.ShapeDtypeStruct((epad, Hd), jnp.float32),
        grid=(epad // tm_e,),
        in_specs=[_row_spec(tm_e, Hd)] * 3 + [_full_spec(w) for w in edge_w],
        out_specs=_row_spec(tm_e, Hd),
        compiler_params=_CP,
    )(hs_p, he_p, hd_p, *edge_w)[:E]

    # ---- batch-context gating (global reduction; tiny [B, H] op, plain XLA) ----
    c = segment_mean(h_V_mid, batch_id, num_batches)
    gate = _ctx_gate(c, lp["ctx"])
    h_V_out = h_V_mid * gate[batch_id]
    return h_V_out, h_E_new


# ----------------------------- parameters ------------------------------------
def _init_linear(key, din, dout):
    w = (jax.random.normal(key, (din, dout), jnp.float32)
         / jnp.sqrt(din)).astype(jnp.bfloat16)
    b = jnp.zeros((1, dout), jnp.float32)
    return (w, b)


def _init_mlp3(key, dims):
    ks = jax.random.split(key, 3)
    params_ = []
    for k, din, dout in zip(ks, dims[:-1], dims[1:]):
        w, b = _init_linear(k, din, dout)
        params_ += [w, b]
    return tuple(params_)


def _init_layer(key, Hd):
    ks = iter(jax.random.split(key, 32))

    def w(din, dout):
        return (jax.random.normal(next(ks), (din, dout), jnp.float32)
                / jnp.sqrt(din)).astype(jnp.bfloat16)

    def b(dout):
        return jnp.zeros((1, dout), jnp.float32)

    def ln():
        return (jnp.ones((1, Hd), jnp.float32), jnp.zeros((1, Hd), jnp.float32))

    # node: a_s (H,1) logit base weight; a_b scalar bias; stacked (2H, H+1) weight
    # whose first H columns are [w1e; w1d] (message layer 1) and whose last column
    # is [a_e; a_d] (attention logit); then message layers 2/3, LN, FFN, LN.
    node = (w(Hd, 1),
            jnp.zeros((1, 1), jnp.float32),
            w(2 * Hd, Hd + 1),
            b(Hd),
            w(Hd, Hd), b(Hd), w(Hd, Hd), b(Hd),
            *ln(),
            w(Hd, 4 * Hd), b(4 * Hd), w(4 * Hd, Hd), b(Hd), w(Hd, Hd), b(Hd),
            *ln())
    # edge: stacked (3H, H) first layer over [h_src, h_E, h_dst], then 2 layers + LN
    edge = (w(3 * Hd, Hd), b(Hd), w(Hd, Hd), b(Hd), w(Hd, Hd), b(Hd), *ln())
    ctx = _init_mlp3(next(ks), (Hd, Hd, Hd, Hd))
    return {"node": node, "edge": edge, "ctx": ctx}


def init_params(key):
    ks = iter(jax.random.split(key, 64))
    p = {}
    # ESM word-embedding tables (pad_token_id = 1 row zeroed); gathered with jnp.take.
    p["DesignEmbed"] = (jax.random.normal(next(ks), (VOCAB, H)) * 0.02).at[1].set(0.0)
    p["ESMEmbed"] = (jax.random.normal(next(ks), (VOCAB, H)) * 0.02).at[1].set(0.0)
    p["EdgeEmbed"] = _init_mlp3(next(ks), (D_EDGE, 512, H, H))
    p["DesignConf"] = _init_mlp3(next(ks), (1, 128, 128, 1))
    p["ESMConf"] = _init_mlp3(next(ks), (1, 128, 128, 1))
    p["DesignProj"] = _init_mlp3(next(ks), (D_DESIGN, 512, H, H))
    p["ESMProj"] = _init_mlp3(next(ks), (D_ESM, 512, H, H))
    p["StructProj"] = _init_mlp3(next(ks), (D_STRUCT, 512, H, H))
    p["ESMIFProj"] = _init_mlp3(next(ks), (D_ESMIF, 512, H, H))
    p["ReadOut"] = _init_linear(next(ks), H, VOCAB)
    p["MLP1"] = _init_mlp3(next(ks), (1, 512, H, 1))
    p["MLP2"] = _init_mlp3(next(ks), (1, 512, H, 1))
    p["encoder_layers"] = [_init_layer(jax.random.fold_in(key, 1000 + i), H)
                           for i in range(NUM_LAYERS)]
    return p


# ----------------------------- forward ---------------------------------------
@functools.partial(jax.jit, static_argnames=("B", "Nmax", "K", "msa_n"))
def _forward_core(params, sel, token_index, h_E_raw, E_idx, batch_id,
                  *, B, Nmax, K, msa_n):
    (design_f, design_conf, design_ids,
     esm_f, esm_conf, esm_ids, struct_f, esmif_f) = sel
    N = design_f.shape[0]

    inputs_embeds = 0.0
    for i in range(msa_n):
        # EsmEmbeddings (token_dropout=False, rotary, no pre-LN) == word lookup.
        demb = jnp.take(params["DesignEmbed"], design_ids, axis=0)
        eemb = jnp.take(params["ESMEmbed"], esm_ids[i], axis=0)
        feats = (design_f, esm_f[i], struct_f[i], esmif_f,
                 demb, eemb, design_conf, esm_conf[i])
        inputs_embeds = inputs_embeds + fuse_embeddings(params, feats)

    h_V = inputs_embeds
    h_E = mlp3(h_E_raw, params["EdgeEmbed"])                  # [E, H]
    src, dst = E_idx[0], E_idx[1]
    for lp in params["encoder_layers"]:
        h_V, h_E = gnn_layer(h_V, h_E, src, dst, batch_id, lp, B, K)

    logits, probs, h_V2, conf = tail_readout(h_V, inputs_embeds, design_conf, params)
    pred_id = jnp.argmax(probs, axis=-1).astype(jnp.int32)

    # masked_scatter_ of per-token logits back into [B, Nmax, VOCAB]
    new_logits = jnp.zeros((B * Nmax, VOCAB), jnp.float32).at[token_index].set(logits)
    log_probs = jax.nn.log_softmax(new_logits.reshape(B, Nmax, VOCAB), axis=-1)

    # to_matrix: pad per-batch sequences.
    # TODO(synk): reference pads to the max per-batch length and does a tokenizer
    # decode/re-encode round-trip; here we pad to Nmax (static) and return raw ids.
    lengths = jax.ops.segment_sum(jnp.ones_like(batch_id), batch_id, num_segments=B)
    starts = jnp.concatenate([jnp.zeros((1,), lengths.dtype),
                              jnp.cumsum(lengths)[:-1]])
    pos = jnp.arange(N, dtype=batch_id.dtype) - starts[batch_id]
    maxL = Nmax
    seqs_ids = jnp.zeros((B, maxL), jnp.int32).at[batch_id, pos].set(pred_id)
    seqs_mask = jnp.zeros((B, maxL), jnp.int32).at[batch_id, pos].set(1)
    confs_mat = jnp.zeros((B, maxL), jnp.float32).at[batch_id, pos].set(conf[:, 0])
    embeds_mat = jnp.zeros((B, maxL, H), jnp.float32).at[batch_id, pos].set(h_V2)
    probs_mat = jnp.full((B, maxL, VOCAB), 1.0 / VOCAB,
                         jnp.float32).at[batch_id, pos].set(probs)

    return {
        "pred_ids": seqs_ids,
        "confs": confs_mat,
        "embeds": embeds_mat,
        "probs": probs_mat,
        "attention_mask": seqs_mask,
        "h_E": h_E_raw,
        "E_idx": E_idx,
        "batch_id": batch_id,
        "log_probs": log_probs,
    }


def gnn_tuning_forward(params, batch, msa_n=MSA_N):
    # host-side masked select (data-dependent shapes stay outside the jitted core)
    mask = batch["attention_mask"].astype(bool)
    B, Nmax = mask.shape
    design = batch["pretrain_design"]
    esm_msa = batch["pretrain_esm_msa"]
    struct = batch["pretrain_struct"]
    esmif = batch["pretrain_esmif"]
    msel_feat = lambda x: x[mask]
    msel_id = lambda x: x[mask]

    sel = (msel_feat(design["embeds"]),
           msel_id(design["confs"]).reshape(-1, 1),
           msel_id(design["pred_ids"]),
           [msel_feat(e) for e in esm_msa["embeds"]],
           [msel_id(c).reshape(-1, 1) for c in esm_msa["confs"]],
           [msel_id(p) for p in esm_msa["pred_ids"]],
           [msel_feat(s) for s in struct["embeds"]],
           msel_feat(esmif["embeds"]))
    token_index = jnp.nonzero(mask.reshape(-1))[0]
    N = int(token_index.shape[0])
    E = int(batch["E_idx"].shape[1])
    K = E // N
    return _forward_core(params, sel, token_index, batch["h_E"], batch["E_idx"],
                         batch["batch_id"], B=int(B), Nmax=int(Nmax), K=K,
                         msa_n=msa_n)


# ----------------------------- main ------------------------------------------
if __name__ == "__main__":
    key = jax.random.PRNGKey(0)
    B, Nmax, K = 2, 8, 4
    lengths = [8, 6]
    mask = jnp.array([[1] * 8, [1] * 6 + [0] * 2], jnp.int32)
    batch_id = jnp.array([0] * 8 + [1] * 6, jnp.int32)
    N = int(batch_id.shape[0])

    # K-regular neighbor graph within each batch element (sorted by source node)
    src = jnp.repeat(jnp.arange(N, dtype=jnp.int32), K)
    dst_parts, off = [], 0
    for b, L in enumerate(lengths):
        kb = jax.random.fold_in(key, 100 + b)
        dst_parts.append(off + jax.random.randint(kb, (L * K,), 0, L, jnp.int32))
        off += L
    dst = jnp.concatenate(dst_parts)
    E_idx = jnp.stack([src, dst])
    E = N * K

    ks = jax.random.split(key, 16)
    batch = {
        "pretrain_design": {
            "embeds": jax.random.normal(ks[0], (B, Nmax, D_DESIGN), jnp.float32),
            "confs": jax.nn.sigmoid(jax.random.normal(ks[1], (B, Nmax), jnp.float32)),
            "pred_ids": jax.random.randint(ks[2], (B, Nmax), 4, 29, jnp.int32),
        },
        "pretrain_esm_msa": {
            "embeds": [jax.random.normal(ks[3], (B, Nmax, D_ESM), jnp.float32)],
            "confs": [jax.nn.sigmoid(jax.random.normal(ks[4], (B, Nmax), jnp.float32))],
            "pred_ids": [jax.random.randint(ks[5], (B, Nmax), 4, 29, jnp.int32)],
        },
        "pretrain_struct": {
            "embeds": [jax.random.normal(ks[6], (B, Nmax, D_STRUCT), jnp.float32)],
        },
        "pretrain_esmif": {
            "embeds": jax.random.normal(ks[7], (B, Nmax, D_ESMIF), jnp.float32),
        },
        "h_E": jax.random.normal(ks[8], (E, D_EDGE), jnp.float32),
        "E_idx": E_idx,
        "attention_mask": mask,
        "batch_id": batch_id,
    }

    params = init_params(jax.random.PRNGKey(42))
    out = gnn_tuning_forward(params, batch)
    jax.block_until_ready(out)
    assert out["log_probs"].shape == (B, Nmax, VOCAB)
    assert out["embeds"].shape == (B, Nmax, H)
    assert out["probs"].shape == (B, Nmax, VOCAB)
    print("KERNEL_OK")
</pallas_src>

<mosaic_0001>
module attributes {stable_mosaic.version = 11 : i64} {
  func.func @_fuse_kernel(%arg0: i32, %arg1: memref<16x64xbf16, #tpu.memory_space<vmem>>, %arg2: memref<16x48xbf16, #tpu.memory_space<vmem>>, %arg3: memref<16x128xbf16, #tpu.memory_space<vmem>>, %arg4: memref<16x64xbf16, #tpu.memory_space<vmem>>, %arg5: memref<16x32xf32, #tpu.memory_space<vmem>>, %arg6: memref<16x32xf32, #tpu.memory_space<vmem>>, %arg7: memref<16x1xf32, #tpu.memory_space<vmem>>, %arg8: memref<16x1xf32, #tpu.memory_space<vmem>>, %arg9: memref<64x512xbf16, #tpu.memory_space<vmem>>, %arg10: memref<1x512xf32, #tpu.memory_space<vmem>>, %arg11: memref<512x32xbf16, #tpu.memory_space<vmem>>, %arg12: memref<1x32xf32, #tpu.memory_space<vmem>>, %arg13: memref<32x32xbf16, #tpu.memory_space<vmem>>, %arg14: memref<1x32xf32, #tpu.memory_space<vmem>>, %arg15: memref<48x512xbf16, #tpu.memory_space<vmem>>, %arg16: memref<1x512xf32, #tpu.memory_space<vmem>>, %arg17: memref<512x32xbf16, #tpu.memory_space<vmem>>, %arg18: memref<1x32xf32, #tpu.memory_space<vmem>>, %arg19: memref<32x32xbf16, #tpu.memory_space<vmem>>, %arg20: memref<1x32xf32, #tpu.memory_space<vmem>>, %arg21: memref<128x512xbf16, #tpu.memory_space<vmem>>, %arg22: memref<1x512xf32, #tpu.memory_space<vmem>>, %arg23: memref<512x32xbf16, #tpu.memory_space<vmem>>, %arg24: memref<1x32xf32, #tpu.memory_space<vmem>>, %arg25: memref<32x32xbf16, #tpu.memory_space<vmem>>, %arg26: memref<1x32xf32, #tpu.memory_space<vmem>>, %arg27: memref<64x512xbf16, #tpu.memory_space<vmem>>, %arg28: memref<1x512xf32, #tpu.memory_space<vmem>>, %arg29: memref<512x32xbf16, #tpu.memory_space<vmem>>, %arg30: memref<1x32xf32, #tpu.memory_space<vmem>>, %arg31: memref<32x32xbf16, #tpu.memory_space<vmem>>, %arg32: memref<1x32xf32, #tpu.memory_space<vmem>>, %arg33: memref<1x128xbf16, #tpu.memory_space<vmem>>, %arg34: memref<1x128xf32, #tpu.memory_space<vmem>>, %arg35: memref<128x128xbf16, #tpu.memory_space<vmem>>, %arg36: memref<1x128xf32, #tpu.memory_space<vmem>>, %arg37: memref<128x1xbf16, #tpu.memory_space<vmem>>, %arg38: memref<1x1xf32, #tpu.memory_space<vmem>>, %arg39: memref<1x128xbf16, #tpu.memory_space<vmem>>, %arg40: memref<1x128xf32, #tpu.memory_space<vmem>>, %arg41: memref<128x128xbf16, #tpu.memory_space<vmem>>, %arg42: memref<1x128xf32, #tpu.memory_space<vmem>>, %arg43: memref<128x1xbf16, #tpu.memory_space<vmem>>, %arg44: memref<1x1xf32, #tpu.memory_space<vmem>>, %arg45: memref<16x32xf32, #tpu.memory_space<vmem>>) attributes {dimension_semantics = [#tpu.dimension_semantics<parallel>], iteration_bounds = array<i64: 1>, scalar_prefetch = 0 : i64, scratch_operands = 0 : i64, tpu.core_type = #tpu.core_type<tc>, window_params = [{transform_indices = @transform_0, window_bounds = array<i64: 16, 64>}, {transform_indices = @transform_1, window_bounds = array<i64: 16, 48>}, {transform_indices = @transform_2, window_bounds = array<i64: 16, 128>}, {transform_indices = @transform_3, window_bounds = array<i64: 16, 64>}, {transform_indices = @transform_4, window_bounds = array<i64: 16, 32>}, {transform_indices = @transform_5, window_bounds = array<i64: 16, 32>}, {transform_indices = @transform_6, window_bounds = array<i64: 16, 1>}, {transform_indices = @transform_7, window_bounds = array<i64: 16, 1>}, {pipeline_mode = #tpu.pipeline_mode<synchronous>, transform_indices = @transform_8, window_bounds = array<i64: 64, 512>}, {pipeline_mode = #tpu.pipeline_mode<synchronous>, transform_indices = @transform_9, window_bounds = array<i64: 1, 512>}, {pipeline_mode = #tpu.pipeline_mode<synchronous>, transform_indices = @transform_10, window_bounds = array<i64: 512, 32>}, {pipeline_mode = #tpu.pipeline_mode<synchronous>, transform_indices = @transform_11, window_bounds = array<i64: 1, 32>}, {pipeline_mode = #tpu.pipeline_mode<synchronous>, transform_indices = @transform_12, window_bounds = array<i64: 32, 32>}, {pipeline_mode = #tpu.pipeline_mode<synchronous>, transform_indices = @transform_13, window_bounds = array<i64: 1, 32>}, {pipeline_mode = #tpu.pipeline_mode<synchronous>, transform_indices = @transform_14, window_bounds = array<i64: 48, 512>}, {pipeline_mode = #tpu.pipeline_mode<synchronous>, transform_indices = @transform_15, window_bounds = array<i64: 1, 512>}, {pipeline_mode = #tpu.pipeline_mode<synchronous>, transform_indices = @transform_16, window_bounds = array<i64: 512, 32>}, {pipeline_mode = #tpu.pipeline_mode<synchronous>, transform_indices = @transform_17, window_bounds = array<i64: 1, 32>}, {pipeline_mode = #tpu.pipeline_mode<synchronous>, transform_indices = @transform_18, window_bounds = array<i64: 32, 32>}, {pipeline_mode = #tpu.pipeline_mode<synchronous>, transform_indices = @transform_19, window_bounds = array<i64: 1, 32>}, {pipeline_mode = #tpu.pipeline_mode<synchronous>, transform_indices = @transform_20, window_bounds = array<i64: 128, 512>}, {pipeline_mode = #tpu.pipeline_mode<synchronous>, transform_indices = @transform_21, window_bounds = array<i64: 1, 512>}, {pipeline_mode = #tpu.pipeline_mode<synchronous>, transform_indices = @transform_22, window_bounds = array<i64: 512, 32>}, {pipeline_mode = #tpu.pipeline_mode<synchronous>, transform_indices = @transform_23, window_bounds = array<i64: 1, 32>}, {pipeline_mode = #tpu.pipeline_mode<synchronous>, transform_indices = @transform_24, window_bounds = array<i64: 32, 32>}, {pipeline_mode = #tpu.pipeline_mode<synchronous>, transform_indices = @transform_25, window_bounds = array<i64: 1, 32>}, {pipeline_mode = #tpu.pipeline_mode<synchronous>, transform_indices = @transform_26, window_bounds = array<i64: 64, 512>}, {pipeline_mode = #tpu.pipeline_mode<synchronous>, transform_indices = @transform_27, window_bounds = array<i64: 1, 512>}, {pipeline_mode = #tpu.pipeline_mode<synchronous>, transform_indices = @transform_28, window_bounds = array<i64: 512, 32>}, {pipeline_mode = #tpu.pipeline_mode<synchronous>, transform_indices = @transform_29, window_bounds = array<i64: 1, 32>}, {pipeline_mode = #tpu.pipeline_mode<synchronous>, transform_indices = @transform_30, window_bounds = array<i64: 32, 32>}, {pipeline_mode = #tpu.pipeline_mode<synchronous>, transform_indices = @transform_31, window_bounds = array<i64: 1, 32>}, {pipeline_mode = #tpu.pipeline_mode<synchronous>, transform_indices = @transform_32, window_bounds = array<i64: 1, 128>}, {pipeline_mode = #tpu.pipeline_mode<synchronous>, transform_indices = @transform_33, window_bounds = array<i64: 1, 128>}, {pipeline_mode = #tpu.pipeline_mode<synchronous>, transform_indices = @transform_34, window_bounds = array<i64: 128, 128>}, {pipeline_mode = #tpu.pipeline_mode<synchronous>, transform_indices = @transform_35, window_bounds = array<i64: 1, 128>}, {pipeline_mode = #tpu.pipeline_mode<synchronous>, transform_indices = @transform_36, window_bounds = array<i64: 128, 1>}, {pipeline_mode = #tpu.pipeline_mode<synchronous>, transform_indices = @transform_37, window_bounds = array<i64: 1, 1>}, {pipeline_mode = #tpu.pipeline_mode<synchronous>, transform_indices = @transform_38, window_bounds = array<i64: 1, 128>}, {pipeline_mode = #tpu.pipeline_mode<synchronous>, transform_indices = @transform_39, window_bounds = array<i64: 1, 128>}, {pipeline_mode = #tpu.pipeline_mode<synchronous>, transform_indices = @transform_40, window_bounds = array<i64: 128, 128>}, {pipeline_mode = #tpu.pipeline_mode<synchronous>, transform_indices = @transform_41, window_bounds = array<i64: 1, 128>}, {pipeline_mode = #tpu.pipeline_mode<synchronous>, transform_indices = @transform_42, window_bounds = array<i64: 128, 1>}, {pipeline_mode = #tpu.pipeline_mode<synchronous>, transform_indices = @transform_43, window_bounds = array<i64: 1, 1>}, {transform_indices = @transform_44, window_bounds = array<i64: 16, 32>}]} {
    %c0 = arith.constant 0 : index
    %c0_0 = arith.constant 0 : index
    %0 = vector.load %arg1[%c0, %c0_0] : memref<16x64xbf16, #tpu.memory_space<vmem>>, vector<16x64xbf16>
    %c0_1 = arith.constant 0 : index
    %c0_2 = arith.constant 0 : index
    %1 = vector.load %arg9[%c0_1, %c0_2] : memref<64x512xbf16, #tpu.memory_space<vmem>>, vector<64x512xbf16>
    %cst = arith.constant dense<0.000000e+00> : vector<16x512xf32>
    %2 = tpu.matmul %0, %1, %cst {dimension_numbers = #tpu.dot_dimension_numbers<[1], [0], [0], [1], [0, 0, 1, 1], [], []>} : vector<16x64xbf16>, vector<64x512xbf16>, vector<16x512xf32> -> vector<16x512xf32>
    %c0_3 = arith.constant 0 : index
    %c0_4 = arith.constant 0 : index
    %3 = vector.load %arg10[%c0_3, %c0_4] : memref<1x512xf32, #tpu.memory_space<vmem>>, vector<1x512xf32>
    %4 = vector.broadcast %3 : vector<1x512xf32> to vector<16x512xf32>
    %5 = arith.addf %2, %4 : vector<16x512xf32>
    %cst_5 = arith.constant 0.000000e+00 : f32
    %6 = vector.broadcast %cst_5 : f32 to vector<16x512xf32>
    %7 = arith.maximumf %5, %6 : vector<16x512xf32>
    %8 = arith.truncf %7 : vector<16x512xf32> to vector<16x512xbf16>
    %c0_6 = arith.constant 0 : index
    %c0_7 = arith.constant 0 : index
    %9 = vector.load %arg11[%c0_6, %c0_7] : memref<512x32xbf16, #tpu.memory_space<vmem>>, vector<512x32xbf16>
    %cst_8 = arith.constant dense<0.000000e+00> : vector<16x32xf32>
    %10 = tpu.matmul %8, %9, %cst_8 {dimension_numbers = #tpu.dot_dimension_numbers<[1], [0], [0], [1], [0, 0, 1, 1], [], []>} : vector<16x512xbf16>, vector<512x32xbf16>, vector<16x32xf32> -> vector<16x32xf32>
    %c0_9 = arith.constant 0 : index
    %c0_10 = arith.constant 0 : index
    %11 = vector.load %arg12[%c0_9, %c0_10] : memref<1x32xf32, #tpu.memory_space<vmem>>, vector<1x32xf32>
    %12 = vector.broadcast %11 : vector<1x32xf32> to vector<16x32xf32>
    %13 = arith.addf %10, %12 : vector<16x32xf32>
    %cst_11 = arith.constant 0.000000e+00 : f32
    %14 = vector.broadcast %cst_11 : f32 to vector<16x32xf32>
    %15 = arith.maximumf %13, %14 : vector<16x32xf32>
    %16 = arith.truncf %15 : vector<16x32xf32> to vector<16x32xbf16>
    %c0_12 = arith.constant 0 : index
    %c0_13 = arith.constant 0 : index
    %17 = vector.load %arg13[%c0_12, %c0_13] : memref<32x32xbf16, #tpu.memory_space<vmem>>, vector<32x32xbf16>
    %cst_14 = arith.constant dense<0.000000e+00> : vector<16x32xf32>
    %18 = tpu.matmul %16, %17, %cst_14 {dimension_numbers = #tpu.dot_dimension_numbers<[1], [0], [0], [1], [0, 0, 1, 1], [], []>} : vector<16x32xbf16>, vector<32x32xbf16>, vector<16x32xf32> -> vector<16x32xf32>
    %c0_15 = arith.constant 0 : index
    %c0_16 = arith.constant 0 : index
    %19 = vector.load %arg14[%c0_15, %c0_16] : memref<1x32xf32, #tpu.memory_space<vmem>>, vector<1x32xf32>
    %20 = vector.broadcast %19 : vector<1x32xf32> to vector<16x32xf32>
    %21 = arith.addf %18, %20 : vector<16x32xf32>
    %c0_17 = arith.constant 0 : index
    %c0_18 = arith.constant 0 : index
    %22 = vector.load %arg5[%c0_17, %c0_18] : memref<16x32xf32, #tpu.memory_space<vmem>>, vector<16x32xf32>
    %23 = arith.addf %21, %22 : vector<16x32xf32>
    %c0_19 = arith.constant 0 : index
    %c0_20 = arith.constant 0 : index
    %24 = vector.load %arg2[%c0_19, %c0_20] : memref<16x48xbf16, #tpu.memory_space<vmem>>, vector<16x48xbf16>
    %c0_21 = arith.constant 0 : index
    %c0_22 = arith.constant 0 : index
    %25 = vector.load %arg15[%c0_21, %c0_22] : memref<48x512xbf16, #tpu.memory_space<vmem>>, vector<48x512xbf16>
    %cst_23 = arith.constant dense<0.000000e+00> : vector<16x512xf32>
    %26 = tpu.matmul %24, %25, %cst_23 {dimension_numbers = #tpu.dot_dimension_numbers<[1], [0], [0], [1], [0, 0, 1, 1], [], []>} : vector<16x48xbf16>, vector<48x512xbf16>, vector<16x512xf32> -> vector<16x512xf32>
    %c0_24 = arith.constant 0 : index
    %c0_25 = arith.constant 0 : index
    %27 = vector.load %arg16[%c0_24, %c0_25] : memref<1x512xf32, #tpu.memory_space<vmem>>, vector<1x512xf32>
    %28 = vector.broadcast %27 : vector<1x512xf32> to vector<16x512xf32>
    %29 = arith.addf %26, %28 : vector<16x512xf32>
    %cst_26 = arith.constant 0.000000e+00 : f32
    %30 = vector.broadcast %cst_26 : f32 to vector<16x512xf32>
    %31 = arith.maximumf %29, %30 : vector<16x512xf32>
    %32 = arith.truncf %31 : vector<16x512xf32> to vector<16x512xbf16>
    %c0_27 = arith.constant 0 : index
    %c0_28 = arith.constant 0 : index
    %33 = vector.load %arg17[%c0_27, %c0_28] : memref<512x32xbf16, #tpu.memory_space<vmem>>, vector<512x32xbf16>
    %cst_29 = arith.constant dense<0.000000e+00> : vector<16x32xf32>
    %34 = tpu.matmul %32, %33, %cst_29 {dimension_numbers = #tpu.dot_dimension_numbers<[1], [0], [0], [1], [0, 0, 1, 1], [], []>} : vector<16x512xbf16>, vector<512x32xbf16>, vector<16x32xf32> -> vector<16x32xf32>
    %c0_30 = arith.constant 0 : index
    %c0_31 = arith.constant 0 : index
    %35 = vector.load %arg18[%c0_30, %c0_31] : memref<1x32xf32, #tpu.memory_space<vmem>>, vector<1x32xf32>
    %36 = vector.broadcast %35 : vector<1x32xf32> to vector<16x32xf32>
    %37 = arith.addf %34, %36 : vector<16x32xf32>
    %cst_32 = arith.constant 0.000000e+00 : f32
    %38 = vector.broadcast %cst_32 : f32 to vector<16x32xf32>
    %39 = arith.maximumf %37, %38 : vector<16x32xf32>
    %40 = arith.truncf %39 : vector<16x32xf32> to vector<16x32xbf16>
    %c0_33 = arith.constant 0 : index
    %c0_34 = arith.constant 0 : index
    %41 = vector.load %arg19[%c0_33, %c0_34] : memref<32x32xbf16, #tpu.memory_space<vmem>>, vector<32x32xbf16>
    %cst_35 = arith.constant dense<0.000000e+00> : vector<16x32xf32>
    %42 = tpu.matmul %40, %41, %cst_35 {dimension_numbers = #tpu.dot_dimension_numbers<[1], [0], [0], [1], [0, 0, 1, 1], [], []>} : vector<16x32xbf16>, vector<32x32xbf16>, vector<16x32xf32> -> vector<16x32xf32>
    %c0_36 = arith.constant 0 : index
    %c0_37 = arith.constant 0 : index
    %43 = vector.load %arg20[%c0_36, %c0_37] : memref<1x32xf32, #tpu.memory_space<vmem>>, vector<1x32xf32>
    %44 = vector.broadcast %43 : vector<1x32xf32> to vector<16x32xf32>
    %45 = arith.addf %42, %44 : vector<16x32xf32>
    %c0_38 = arith.constant 0 : index
    %c0_39 = arith.constant 0 : index
    %46 = vector.load %arg6[%c0_38, %c0_39] : memref<16x32xf32, #tpu.memory_space<vmem>>, vector<16x32xf32>
    %47 = arith.addf %45, %46 : vector<16x32xf32>
    %c0_40 = arith.constant 0 : index
    %c0_41 = arith.constant 0 : index
    %48 = vector.load %arg3[%c0_40, %c0_41] : memref<16x128xbf16, #tpu.memory_space<vmem>>, vector<16x128xbf16>
    %c0_42 = arith.constant 0 : index
    %c0_43 = arith.constant 0 : index
    %49 = vector.load %arg21[%c0_42, %c0_43] : memref<128x512xbf16, #tpu.memory_space<vmem>>, vector<128x512xbf16>
    %cst_44 = arith.constant dense<0.000000e+00> : vector<16x512xf32>
    %50 = tpu.matmul %48, %49, %cst_44 {dimension_numbers = #tpu.dot_dimension_numbers<[1], [0], [0], [1], [0, 0, 1, 1], [], []>} : vector<16x128xbf16>, vector<128x512xbf16>, vector<16x512xf32> -> vector<16x512xf32>
    %c0_45 = arith.constant 0 : index
    %c0_46 = arith.constant 0 : index
    %51 = vector.load %arg22[%c0_45, %c0_46] : memref<1x512xf32, #tpu.memory_space<vmem>>, vector<1x512xf32>
    %52 = vector.broadcast %51 : vector<1x512xf32> to vector<16x512xf32>
    %53 = arith.addf %50, %52 : vector<16x512xf32>
    %cst_47 = arith.constant 0.000000e+00 : f32
    %54 = vector.broadcast %cst_47 : f32 to vector<16x512xf32>
    %55 = arith.maximumf %53, %54 : vector<16x512xf32>
    %56 = arith.truncf %55 : vector<16x512xf32> to vector<16x512xbf16>
    %c0_48 = arith.constant 0 : index
    %c0_49 = arith.constant 0 : index
    %57 = vector.load %arg23[%c0_48, %c0_49] : memref<512x32xbf16, #tpu.memory_space<vmem>>, vector<512x32xbf16>
    %cst_50 = arith.constant dense<0.000000e+00> : vector<16x32xf32>
    %58 = tpu.matmul %56, %57, %cst_50 {dimension_numbers = #tpu.dot_dimension_numbers<[1], [0], [0], [1], [0, 0, 1, 1], [], []>} : vector<16x512xbf16>, vector<512x32xbf16>, vector<16x32xf32> -> vector<16x32xf32>
    %c0_51 = arith.constant 0 : index
    %c0_52 = arith.constant 0 : index
    %59 = vector.load %arg24[%c0_51, %c0_52] : memref<1x32xf32, #tpu.memory_space<vmem>>, vector<1x32xf32>
    %60 = vector.broadcast %59 : vector<1x32xf32> to vector<16x32xf32>
    %61 = arith.addf %58, %60 : vector<16x32xf32>
    %cst_53 = arith.constant 0.000000e+00 : f32
    %62 = vector.broadcast %cst_53 : f32 to vector<16x32xf32>
    %63 = arith.maximumf %61, %62 : vector<16x32xf32>
    %64 = arith.truncf %63 : vector<16x32xf32> to vector<16x32xbf16>
    %c0_54 = arith.constant 0 : index
    %c0_55 = arith.constant 0 : index
    %65 = vector.load %arg25[%c0_54, %c0_55] : memref<32x32xbf16, #tpu.memory_space<vmem>>, vector<32x32xbf16>
    %cst_56 = arith.constant dense<0.000000e+00> : vector<16x32xf32>
    %66 = tpu.matmul %64, %65, %cst_56 {dimension_numbers = #tpu.dot_dimension_numbers<[1], [0], [0], [1], [0, 0, 1, 1], [], []>} : vector<16x32xbf16>, vector<32x32xbf16>, vector<16x32xf32> -> vector<16x32xf32>
    %c0_57 = arith.constant 0 : index
    %c0_58 = arith.constant 0 : index
    %67 = vector.load %arg26[%c0_57, %c0_58] : memref<1x32xf32, #tpu.memory_space<vmem>>, vector<1x32xf32>
    %68 = vector.broadcast %67 : vector<1x32xf32> to vector<16x32xf32>
    %69 = arith.addf %66, %68 : vector<16x32xf32>
    %c0_59 = arith.constant 0 : index
    %c0_60 = arith.constant 0 : index
    %70 = vector.load %arg4[%c0_59, %c0_60] : memref<16x64xbf16, #tpu.memory_space<vmem>>, vector<16x64xbf16>
    %c0_61 = arith.constant 0 : index
    %c0_62 = arith.constant 0 : index
    %71 = vector.load %arg27[%c0_61, %c0_62] : memref<64x512xbf16, #tpu.memory_space<vmem>>, vector<64x512xbf16>
    %cst_63 = arith.constant dense<0.000000e+00> : vector<16x512xf32>
    %72 = tpu.matmul %70, %71, %cst_63 {dimension_numbers = #tpu.dot_dimension_numbers<[1], [0], [0], [1], [0, 0, 1, 1], [], []>} : vector<16x64xbf16>, vector<64x512xbf16>, vector<16x512xf32> -> vector<16x512xf32>
    %c0_64 = arith.constant 0 : index
    %c0_65 = arith.constant 0 : index
    %73 = vector.load %arg28[%c0_64, %c0_65] : memref<1x512xf32, #tpu.memory_space<vmem>>, vector<1x512xf32>
    %74 = vector.broadcast %73 : vector<1x512xf32> to vector<16x512xf32>
    %75 = arith.addf %72, %74 : vector<16x512xf32>
    %cst_66 = arith.constant 0.000000e+00 : f32
    %76 = vector.broadcast %cst_66 : f32 to vector<16x512xf32>
    %77 = arith.maximumf %75, %76 : vector<16x512xf32>
    %78 = arith.truncf %77 : vector<16x512xf32> to vector<16x512xbf16>
    %c0_67 = arith.constant 0 : index
    %c0_68 = arith.constant 0 : index
    %79 = vector.load %arg29[%c0_67, %c0_68] : memref<512x32xbf16, #tpu.memory_space<vmem>>, vector<512x32xbf16>
    %cst_69 = arith.constant dense<0.000000e+00> : vector<16x32xf32>
    %80 = tpu.matmul %78, %79, %cst_69 {dimension_numbers = #tpu.dot_dimension_numbers<[1], [0], [0], [1], [0, 0, 1, 1], [], []>} : vector<16x512xbf16>, vector<512x32xbf16>, vector<16x32xf32> -> vector<16x32xf32>
    %c0_70 = arith.constant 0 : index
    %c0_71 = arith.constant 0 : index
    %81 = vector.load %arg30[%c0_70, %c0_71] : memref<1x32xf32, #tpu.memory_space<vmem>>, vector<1x32xf32>
    %82 = vector.broadcast %81 : vector<1x32xf32> to vector<16x32xf32>
    %83 = arith.addf %80, %82 : vector<16x32xf32>
    %cst_72 = arith.constant 0.000000e+00 : f32
    %84 = vector.broadcast %cst_72 : f32 to vector<16x32xf32>
    %85 = arith.maximumf %83, %84 : vector<16x32xf32>
    %86 = arith.truncf %85 : vector<16x32xf32> to vector<16x32xbf16>
    %c0_73 = arith.constant 0 : index
    %c0_74 = arith.constant 0 : index
    %87 = vector.load %arg31[%c0_73, %c0_74] : memref<32x32xbf16, #tpu.memory_space<vmem>>, vector<32x32xbf16>
    %cst_75 = arith.constant dense<0.000000e+00> : vector<16x32xf32>
    %88 = tpu.matmul %86, %87, %cst_75 {dimension_numbers = #tpu.dot_dimension_numbers<[1], [0], [0], [1], [0, 0, 1, 1], [], []>} : vector<16x32xbf16>, vector<32x32xbf16>, vector<16x32xf32> -> vector<16x32xf32>
    %c0_76 = arith.constant 0 : index
    %c0_77 = arith.constant 0 : index
    %89 = vector.load %arg32[%c0_76, %c0_77] : memref<1x32xf32, #tpu.memory_space<vmem>>, vector<1x32xf32>
    %90 = vector.broadcast %89 : vector<1x32xf32> to vector<16x32xf32>
    %91 = arith.addf %88, %90 : vector<16x32xf32>
    %c0_78 = arith.constant 0 : index
    %c0_79 = arith.constant 0 : index
    %92 = vector.load %arg7[%c0_78, %c0_79] : memref<16x1xf32, #tpu.memory_space<vmem>>, vector<16x1xf32>
    %c0_80 = arith.constant 0 : index
    %c0_81 = arith.constant 0 : index
    %93 = vector.load %arg33[%c0_80, %c0_81] : memref<1x128xbf16, #tpu.memory_space<vmem>>, vector<1x128xbf16>
    %94 = arith.extf %93 : vector<1x128xbf16> to vector<1x128xf32>
    %95 = vector.broadcast %92 : vector<16x1xf32> to vector<16x128xf32>
    %96 = vector.broadcast %94 : vector<1x128xf32> to vector<16x128xf32>
    %97 = arith.mulf %95, %96 : vector<16x128xf32>
    %c0_82 = arith.constant 0 : index
    %c0_83 = arith.constant 0 : index
    %98 = vector.load %arg34[%c0_82, %c0_83] : memref<1x128xf32, #tpu.memory_space<vmem>>, vector<1x128xf32>
    %99 = vector.broadcast %98 : vector<1x128xf32> to vector<16x128xf32>
    %100 = arith.addf %97, %99 : vector<16x128xf32>
    %cst_84 = arith.constant 0.000000e+00 : f32
    %101 = vector.broadcast %cst_84 : f32 to vector<16x128xf32>
    %102 = arith.maximumf %100, %101 : vector<16x128xf32>
    %103 = arith.truncf %102 : vector<16x128xf32> to vector<16x128xbf16>
    %c0_85 = arith.constant 0 : index
    %c0_86 = arith.constant 0 : index
    %104 = vector.load %arg35[%c0_85, %c0_86] : memref<128x128xbf16, #tpu.memory_space<vmem>>, vector<128x128xbf16>
    %cst_87 = arith.constant dense<0.000000e+00> : vector<16x128xf32>
    %105 = tpu.matmul %103, %104, %cst_87 {dimension_numbers = #tpu.dot_dimension_numbers<[1], [0], [0], [1], [0, 0, 1, 1], [], []>} : vector<16x128xbf16>, vector<128x128xbf16>, vector<16x128xf32> -> vector<16x128xf32>
    %c0_88 = arith.constant 0 : index
    %c0_89 = arith.constant 0 : index
    %106 = vector.load %arg36[%c0_88, %c0_89] : memref<1x128xf32, #tpu.memory_space<vmem>>, vector<1x128xf32>
    %107 = vector.broadcast %106 : vector<1x128xf32> to vector<16x128xf32>
    %108 = arith.addf %105, %107 : vector<16x128xf32>
    %cst_90 = arith.constant 0.000000e+00 : f32
    %109 = vector.broadcast %cst_90 : f32 to vector<16x128xf32>
    %110 = arith.maximumf %108, %109 : vector<16x128xf32>
    %111 = arith.truncf %110 : vector<16x128xf32> to vector<16x128xbf16>
    %c0_91 = arith.constant 0 : index
    %c0_92 = arith.constant 0 : index
    %112 = vector.load %arg37[%c0_91, %c0_92] : memref<128x1xbf16, #tpu.memory_space<vmem>>, vector<128x1xbf16>
    %cst_93 = arith.constant dense<0.000000e+00> : vector<16x1xf32>
    %113 = tpu.matmul %111, %112, %cst_93 {dimension_numbers = #tpu.dot_dimension_numbers<[1], [0], [0], [1], [0, 0, 1, 1], [], []>} : vector<16x128xbf16>, vector<128x1xbf16>, vector<16x1xf32> -> vector<16x1xf32>
    %c0_94 = arith.constant 0 : index
    %c0_95 = arith.constant 0 : index
    %114 = vector.load %arg38[%c0_94, %c0_95] : memref<1x1xf32, #tpu.memory_space<vmem>>, vector<1x1xf32>
    %115 = vector.broadcast %114 : vector<1x1xf32> to vector<16x1xf32>
    %116 = arith.addf %113, %115 : vector<16x1xf32>
    %cst_96 = arith.constant 0.000000e+00 : f32
    %117 = vector.broadcast %cst_96 : f32 to vector<16x1xf32>
    %118 = arith.subf %117, %116 : vector<16x1xf32>
    %119 = math.exp %118 : vector<16x1xf32>
    %cst_97 = arith.constant 1.000000e+00 : f32
    %120 = vector.broadcast %cst_97 : f32 to vector<16x1xf32>
    %121 = arith.addf %120, %119 : vector<16x1xf32>
    %cst_98 = arith.constant 1.000000e+00 : f32
    %122 = vector.broadcast %cst_98 : f32 to vector<16x1xf32>
    %123 = arith.divf %122, %121 : vector<16x1xf32>
    %c0_99 = arith.constant 0 : index
    %c0_100 = arith.constant 0 : index
    %124 = vector.load %arg8[%c0_99, %c0_100] : memref<16x1xf32, #tpu.memory_space<vmem>>, vector<16x1xf32>
    %c0_101 = arith.constant 0 : index
    %c0_102 = arith.constant 0 : index
    %125 = vector.load %arg39[%c0_101, %c0_102] : memref<1x128xbf16, #tpu.memory_space<vmem>>, vector<1x128xbf16>
    %126 = arith.extf %125 : vector<1x128xbf16> to vector<1x128xf32>
    %127 = vector.broadcast %124 : vector<16x1xf32> to vector<16x128xf32>
    %128 = vector.broadcast %126 : vector<1x128xf32> to vector<16x128xf32>
    %129 = arith.mulf %127, %128 : vector<16x128xf32>
    %c0_103 = arith.constant 0 : index
    %c0_104 = arith.constant 0 : index
    %130 = vector.load %arg40[%c0_103, %c0_104] : memref<1x128xf32, #tpu.memory_space<vmem>>, vector<1x128xf32>
    %131 = vector.broadcast %130 : vector<1x128xf32> to vector<16x128xf32>
    %132 = arith.addf %129, %131 : vector<16x128xf32>
    %cst_105 = arith.constant 0.000000e+00 : f32
    %133 = vector.broadcast %cst_105 : f32 to vector<16x128xf32>
    %134 = arith.maximumf %132, %133 : vector<16x128xf32>
    %135 = arith.truncf %134 : vector<16x128xf32> to vector<16x128xbf16>
    %c0_106 = arith.constant 0 : index
    %c0_107 = arith.constant 0 : index
    %136 = vector.load %arg41[%c0_106, %c0_107] : memref<128x128xbf16, #tpu.memory_space<vmem>>, vector<128x128xbf16>
    %cst_108 = arith.constant dense<0.000000e+00> : vector<16x128xf32>
    %137 = tpu.matmul %135, %136, %cst_108 {dimension_numbers = #tpu.dot_dimension_numbers<[1], [0], [0], [1], [0, 0, 1, 1], [], []>} : vector<16x128xbf16>, vector<128x128xbf16>, vector<16x128xf32> -> vector<16x128xf32>
    %c0_109 = arith.constant 0 : index
    %c0_110 = arith.constant 0 : index
    %138 = vector.load %arg42[%c0_109, %c0_110] : memref<1x128xf32, #tpu.memory_space<vmem>>, vector<1x128xf32>
    %139 = vector.broadcast %138 : vector<1x128xf32> to vector<16x128xf32>
    %140 = arith.addf %137, %139 : vector<16x128xf32>
    %cst_111 = arith.constant 0.000000e+00 : f32
    %141 = vector.broadcast %cst_111 : f32 to vector<16x128xf32>
    %142 = arith.maximumf %140, %141 : vector<16x128xf32>
    %143 = arith.truncf %142 : vector<16x128xf32> to vector<16x128xbf16>
    %c0_112 = arith.constant 0 : index
    %c0_113 = arith.constant 0 : index
    %144 = vector.load %arg43[%c0_112, %c0_113] : memref<128x1xbf16, #tpu.memory_space<vmem>>, vector<128x1xbf16>
    %cst_114 = arith.constant dense<0.000000e+00> : vector<16x1xf32>
    %145 = tpu.matmul %143, %144, %cst_114 {dimension_numbers = #tpu.dot_dimension_numbers<[1], [0], [0], [1], [0, 0, 1, 1], [], []>} : vector<16x128xbf16>, vector<128x1xbf16>, vector<16x1xf32> -> vector<16x1xf32>
    %c0_115 = arith.constant 0 : index
    %c0_116 = arith.constant 0 : index
    %146 = vector.load %arg44[%c0_115, %c0_116] : memref<1x1xf32, #tpu.memory_space<vmem>>, vector<1x1xf32>
    %147 = vector.broadcast %146 : vector<1x1xf32> to vector<16x1xf32>
    %148 = arith.addf %145, %147 : vector<16x1xf32>
    %149 = vector.broadcast %123 : vector<16x1xf32> to vector<16x32xf32>
    %150 = arith.mulf %23, %149 : vector<16x32xf32>
    %151 = vector.broadcast %148 : vector<16x1xf32> to vector<16x32xf32>
    %152 = arith.mulf %47, %151 : vector<16x32xf32>
    %153 = arith.addf %150, %152 : vector<16x32xf32>
    %154 = arith.addf %153, %69 : vector<16x32xf32>
    %155 = arith.addf %154, %91 : vector<16x32xf32>
    %c0_117 = arith.constant 0 : index
    %c0_118 = arith.constant 0 : index
    %156 = vector.load %arg45[%c0_117, %c0_118] : memref<16x32xf32, #tpu.memory_space<vmem>>, vector<16x32xf32>
    tpu.vector_store %arg45[%c0_117, %c0_118], %155 {strides = array<i32>} : memref<16x32xf32, #tpu.memory_space<vmem>>, vector<16x32xf32>,
    return
  }
  func.func @transform_0(%arg0: i32) -> (i32, i32) {
    %c0_i32 = arith.constant 0 : i32
    %c0_i32_0 = arith.constant 0 : i32
    return %arg0, %c0_i32 : i32, i32
  }
  func.func @transform_1(%arg0: i32) -> (i32, i32) {
    %c0_i32 = arith.constant 0 : i32
    %c0_i32_0 = arith.constant 0 : i32
    return %arg0, %c0_i32 : i32, i32
  }
  func.func @transform_2(%arg0: i32) -> (i32, i32) {
    %c0_i32 = arith.constant 0 : i32
    %c0_i32_0 = arith.constant 0 : i32
    return %arg0, %c0_i32 : i32, i32
  }
  func.func @transform_3(%arg0: i32) -> (i32, i32) {
    %c0_i32 = arith.constant 0 : i32
    %c0_i32_0 = arith.constant 0 : i32
    return %arg0, %c0_i32 : i32, i32
  }
  func.func @transform_4(%arg0: i32) -> (i32, i32) {
    %c0_i32 = arith.constant 0 : i32
    %c0_i32_0 = arith.constant 0 : i32
    return %arg0, %c0_i32 : i32, i32
  }
  func.func @transform_5(%arg0: i32) -> (i32, i32) {
    %c0_i32 = arith.constant 0 : i32
    %c0_i32_0 = arith.constant 0 : i32
    return %arg0, %c0_i32 : i32, i32
  }
  func.func @transform_6(%arg0: i32) -> (i32, i32) {
    %c0_i32 = arith.constant 0 : i32
    %c0_i32_0 = arith.constant 0 : i32
    return %arg0, %c0_i32 : i32, i32
  }
  func.func @transform_7(%arg0: i32) -> (i32, i32) {
    %c0_i32 = arith.constant 0 : i32
    %c0_i32_0 = arith.constant 0 : i32
    return %arg0, %c0_i32 : i32, i32
  }
  func.func @transform_8(%arg0: i32) -> (i32, i32) {
    %c0_i32 = arith.constant 0 : i32
    %c0_i32_0 = arith.constant 0 : i32
    %c0_i32_1 = arith.constant 0 : i32
    return %c0_i32, %c0_i32_0 : i32, i32
  }
  func.func @transform_9(%arg0: i32) -> (i32, i32) {
    %c0_i32 = arith.constant 0 : i32
    %c0_i32_0 = arith.constant 0 : i32
    %c0_i32_1 = arith.constant 0 : i32
    return %c0_i32, %c0_i32_0 : i32, i32
  }
  func.func @transform_10(%arg0: i32) -> (i32, i32) {
    %c0_i32 = arith.constant 0 : i32
    %c0_i32_0 = arith.constant 0 : i32
    %c0_i32_1 = arith.constant 0 : i32
    return %c0_i32, %c0_i32_0 : i32, i32
  }
  func.func @transform_11(%arg0: i32) -> (i32, i32) {
    %c0_i32 = arith.constant 0 : i32
    %c0_i32_0 = arith.constant 0 : i32
    %c0_i32_1 = arith.constant 0 : i32
    return %c0_i32, %c0_i32_0 : i32, i32
  }
  func.func @transform_12(%arg0: i32) -> (i32, i32) {
    %c0_i32 = arith.constant 0 : i32
    %c0_i32_0 = arith.constant 0 : i32
    %c0_i32_1 = arith.constant 0 : i32
    return %c0_i32, %c0_i32_0 : i32, i32
  }
  func.func @transform_13(%arg0: i32) -> (i32, i32) {
    %c0_i32 = arith.constant 0 : i32
    %c0_i32_0 = arith.constant 0 : i32
    %c0_i32_1 = arith.constant 0 : i32
    return %c0_i32, %c0_i32_0 : i32, i32
  }
  func.func @transform_14(%arg0: i32) -> (i32, i32) {
    %c0_i32 = arith.constant 0 : i32
    %c0_i32_0 = arith.constant 0 : i32
    %c0_i32_1 = arith.constant 0 : i32
    return %c0_i32, %c0_i32_0 : i32, i32
  }
  func.func @transform_15(%arg0: i32) -> (i32, i32) {
    %c0_i32 = arith.constant 0 : i32
    %c0_i32_0 = arith.constant 0 : i32
    %c0_i32_1 = arith.constant 0 : i32
    return %c0_i32, %c0_i32_0 : i32, i32
  }
  func.func @transform_16(%arg0: i32) -> (i32, i32) {
    %c0_i32 = arith.constant 0 : i32
    %c0_i32_0 = arith.constant 0 : i32
    %c0_i32_1 = arith.constant 0 : i32
    return %c0_i32, %c0_i32_0 : i32, i32
  }
  func.func @transform_17(%arg0: i32) -> (i32, i32) {
    %c0_i32 = arith.constant 0 : i32
    %c0_i32_0 = arith.constant 0 : i32
    %c0_i32_1 = arith.constant 0 : i32
    return %c0_i32, %c0_i32_0 : i32, i32
  }
  func.func @transform_18(%arg0: i32) -> (i32, i32) {
    %c0_i32 = arith.constant 0 : i32
    %c0_i32_0 = arith.constant 0 : i32
    %c0_i32_1 = arith.constant 0 : i32
    return %c0_i32, %c0_i32_0 : i32, i32
  }
  func.func @transform_19(%arg0: i32) -> (i32, i32) {
    %c0_i32 = arith.constant 0 : i32
    %c0_i32_0 = arith.constant 0 : i32
    %c0_i32_1 = arith.constant 0 : i32
    return %c0_i32, %c0_i32_0 : i32, i32
  }
  func.func @transform_20(%arg0: i32) -> (i32, i32) {
    %c0_i32 = arith.constant 0 : i32
    %c0_i32_0 = arith.constant 0 : i32
    %c0_i32_1 = arith.constant 0 : i32
    return %c0_i32, %c0_i32_0 : i32, i32
  }
  func.func @transform_21(%arg0: i32) -> (i32, i32) {
    %c0_i32 = arith.constant 0 : i32
    %c0_i32_0 = arith.constant 0 : i32
    %c0_i32_1 = arith.constant 0 : i32
    return %c0_i32, %c0_i32_0 : i32, i32
  }
  func.func @transform_22(%arg0: i32) -> (i32, i32) {
    %c0_i32 = arith.constant 0 : i32
    %c0_i32_0 = arith.constant 0 : i32
    %c0_i32_1 = arith.constant 0 : i32
    return %c0_i32, %c0_i32_0 : i32, i32
  }
  func.func @transform_23(%arg0: i32) -> (i32, i32) {
    %c0_i32 = arith.constant 0 : i32
    %c0_i32_0 = arith.constant 0 : i32
    %c0_i32_1 = arith.constant 0 : i32
    return %c0_i32, %c0_i32_0 : i32, i32
  }
  func.func @transform_24(%arg0: i32) -> (i32, i32) {
    %c0_i32 = arith.constant 0 : i32
    %c0_i32_0 = arith.constant 0 : i32
    %c0_i32_1 = arith.constant 0 : i32
    return %c0_i32, %c0_i32_0 : i32, i32
  }
  func.func @transform_25(%arg0: i32) -> (i32, i32) {
    %c0_i32 = arith.constant 0 : i32
    %c0_i32_0 = arith.constant 0 : i32
    %c0_i32_1 = arith.constant 0 : i32
    return %c0_i32, %c0_i32_0 : i32, i32
  }
  func.func @transform_26(%arg0: i32) -> (i32, i32) {
    %c0_i32 = arith.constant 0 : i32
    %c0_i32_0 = arith.constant 0 : i32
    %c0_i32_1 = arith.constant 0 : i32
    return %c0_i32, %c0_i32_0 : i32, i32
  }
  func.func @transform_27(%arg0: i32) -> (i32, i32) {
    %c0_i32 = arith.constant 0 : i32
    %c0_i32_0 = arith.constant 0 : i32
    %c0_i32_1 = arith.constant 0 : i32
    return %c0_i32, %c0_i32_0 : i32, i32
  }
  func.func @transform_28(%arg0: i32) -> (i32, i32) {
    %c0_i32 = arith.constant 0 : i32
    %c0_i32_0 = arith.constant 0 : i32
    %c0_i32_1 = arith.constant 0 : i32
    return %c0_i32, %c0_i32_0 : i32, i32
  }
  func.func @transform_29(%arg0: i32) -> (i32, i32) {
    %c0_i32 = arith.constant 0 : i32
    %c0_i32_0 = arith.constant 0 : i32
    %c0_i32_1 = arith.constant 0 : i32
    return %c0_i32, %c0_i32_0 : i32, i32
  }
  func.func @transform_30(%arg0: i32) -> (i32, i32) {
    %c0_i32 = arith.constant 0 : i32
    %c0_i32_0 = arith.constant 0 : i32
    %c0_i32_1 = arith.constant 0 : i32
    return %c0_i32, %c0_i32_0 : i32, i32
  }
  func.func @transform_31(%arg0: i32) -> (i32, i32) {
    %c0_i32 = arith.constant 0 : i32
    %c0_i32_0 = arith.constant 0 : i32
    %c0_i32_1 = arith.constant 0 : i32
    return %c0_i32, %c0_i32_0 : i32, i32
  }
  func.func @transform_32(%arg0: i32) -> (i32, i32) {
    %c0_i32 = arith.constant 0 : i32
    %c0_i32_0 = arith.constant 0 : i32
    %c0_i32_1 = arith.constant 0 : i32
    return %c0_i32, %c0_i32_0 : i32, i32
  }
  func.func @transform_33(%arg0: i32) -> (i32, i32) {
    %c0_i32 = arith.constant 0 : i32
    %c0_i32_0 = arith.constant 0 : i32
    %c0_i32_1 = arith.constant 0 : i32
    return %c0_i32, %c0_i32_0 : i32, i32
  }
  func.func @transform_34(%arg0: i32) -> (i32, i32) {
    %c0_i32 = arith.constant 0 : i32
    %c0_i32_0 = arith.constant 0 : i32
    %c0_i32_1 = arith.constant 0 : i32
    return %c0_i32, %c0_i32_0 : i32, i32
  }
  func.func @transform_35(%arg0: i32) -> (i32, i32) {
    %c0_i32 = arith.constant 0 : i32
    %c0_i32_0 = arith.constant 0 : i32
    %c0_i32_1 = arith.constant 0 : i32
    return %c0_i32, %c0_i32_0 : i32, i32
  }
  func.func @transform_36(%arg0: i32) -> (i32, i32) {
    %c0_i32 = arith.constant 0 : i32
    %c0_i32_0 = arith.constant 0 : i32
    %c0_i32_1 = arith.constant 0 : i32
    return %c0_i32, %c0_i32_0 : i32, i32
  }
  func.func @transform_37(%arg0: i32) -> (i32, i32) {
    %c0_i32 = arith.constant 0 : i32
    %c0_i32_0 = arith.constant 0 : i32
    %c0_i32_1 = arith.constant 0 : i32
    return %c0_i32, %c0_i32_0 : i32, i32
  }
  func.func @transform_38(%arg0: i32) -> (i32, i32) {
    %c0_i32 = arith.constant 0 : i32
    %c0_i32_0 = arith.constant 0 : i32
    %c0_i32_1 = arith.constant 0 : i32
    return %c0_i32, %c0_i32_0 : i32, i32
  }
  func.func @transform_39(%arg0: i32) -> (i32, i32) {
    %c0_i32 = arith.constant 0 : i32
    %c0_i32_0 = arith.constant 0 : i32
    %c0_i32_1 = arith.constant 0 : i32
    return %c0_i32, %c0_i32_0 : i32, i32
  }
  func.func @transform_40(%arg0: i32) -> (i32, i32) {
    %c0_i32 = arith.constant 0 : i32
    %c0_i32_0 = arith.constant 0 : i32
    %c0_i32_1 = arith.constant 0 : i32
    return %c0_i32, %c0_i32_0 : i32, i32
  }
  func.func @transform_41(%arg0: i32) -> (i32, i32) {
    %c0_i32 = arith.constant 0 : i32
    %c0_i32_0 = arith.constant 0 : i32
    %c0_i32_1 = arith.constant 0 : i32
    return %c0_i32, %c0_i32_0 : i32, i32
  }
  func.func @transform_42(%arg0: i32) -> (i32, i32) {
    %c0_i32 = arith.constant 0 : i32
    %c0_i32_0 = arith.constant 0 : i32
    %c0_i32_1 = arith.constant 0 : i32
    return %c0_i32, %c0_i32_0 : i32, i32
  }
  func.func @transform_43(%arg0: i32) -> (i32, i32) {
    %c0_i32 = arith.constant 0 : i32
    %c0_i32_0 = arith.constant 0 : i32
    %c0_i32_1 = arith.constant 0 : i32
    return %c0_i32, %c0_i32_0 : i32, i32
  }
  func.func @transform_44(%arg0: i32) -> (i32, i32) {
    %c0_i32 = arith.constant 0 : i32
    %c0_i32_0 = arith.constant 0 : i32
    return %arg0, %c0_i32 : i32, i32
  }
}

module attributes {stable_mosaic.version = 11 : i64} {
  func.func @_mlp3_kernel(%arg0: i32, %arg1: memref<56x448xbf16, #tpu.memory_space<vmem>>, %arg2: memref<448x512xbf16, #tpu.memory_space<vmem>>, %arg3: memref<1x512xf32, #tpu.memory_space<vmem>>, %arg4: memref<512x32xbf16, #tpu.memory_space<vmem>>, %arg5: memref<1x32xf32, #tpu.memory_space<vmem>>, %arg6: memref<32x32xbf16, #tpu.memory_space<vmem>>, %arg7: memref<1x32xf32, #tpu.memory_space<vmem>>, %arg8: memref<56x32xf32, #tpu.memory_space<vmem>>) attributes {dimension_semantics = [#tpu.dimension_semantics<parallel>], iteration_bounds = array<i64: 1>, scalar_prefetch = 0 : i64, scratch_operands = 0 : i64, tpu.core_type = #tpu.core_type<tc>, window_params = [{transform_indices = @transform_0, window_bounds = array<i64: 56, 448>}, {pipeline_mode = #tpu.pipeline_mode<synchronous>, transform_indices = @transform_1, window_bounds = array<i64: 448, 512>}, {pipeline_mode = #tpu.pipeline_mode<synchronous>, transform_indices = @transform_2, window_bounds = array<i64: 1, 512>}, {pipeline_mode = #tpu.pipeline_mode<synchronous>, transform_indices = @transform_3, window_bounds = array<i64: 512, 32>}, {pipeline_mode = #tpu.pipeline_mode<synchronous>, transform_indices = @transform_4, window_bounds = array<i64: 1, 32>}, {pipeline_mode = #tpu.pipeline_mode<synchronous>, transform_indices = @transform_5, window_bounds = array<i64: 32, 32>}, {pipeline_mode = #tpu.pipeline_mode<synchronous>, transform_indices = @transform_6, window_bounds = array<i64: 1, 32>}, {transform_indices = @transform_7, window_bounds = array<i64: 56, 32>}]} {
    %c0 = arith.constant 0 : index
    %c0_0 = arith.constant 0 : index
    %0 = vector.load %arg1[%c0, %c0_0] : memref<56x448xbf16, #tpu.memory_space<vmem>>, vector<56x448xbf16>
    %c0_1 = arith.constant 0 : index
    %c0_2 = arith.constant 0 : index
    %1 = vector.load %arg2[%c0_1, %c0_2] : memref<448x512xbf16, #tpu.memory_space<vmem>>, vector<448x512xbf16>
    %cst = arith.constant dense<0.000000e+00> : vector<56x512xf32>
    %2 = tpu.matmul %0, %1, %cst {dimension_numbers = #tpu.dot_dimension_numbers<[1], [0], [0], [1], [0, 0, 1, 1], [], []>} : vector<56x448xbf16>, vector<448x512xbf16>, vector<56x512xf32> -> vector<56x512xf32>
    %c0_3 = arith.constant 0 : index
    %c0_4 = arith.constant 0 : index
    %3 = vector.load %arg3[%c0_3, %c0_4] : memref<1x512xf32, #tpu.memory_space<vmem>>, vector<1x512xf32>
    %4 = vector.broadcast %3 : vector<1x512xf32> to vector<56x512xf32>
    %5 = arith.addf %2, %4 : vector<56x512xf32>
    %cst_5 = arith.constant 0.000000e+00 : f32
    %6 = vector.broadcast %cst_5 : f32 to vector<56x512xf32>
    %7 = arith.maximumf %5, %6 : vector<56x512xf32>
    %8 = arith.truncf %7 : vector<56x512xf32> to vector<56x512xbf16>
    %c0_6 = arith.constant 0 : index
    %c0_7 = arith.constant 0 : index
    %9 = vector.load %arg4[%c0_6, %c0_7] : memref<512x32xbf16, #tpu.memory_space<vmem>>, vector<512x32xbf16>
    %cst_8 = arith.constant dense<0.000000e+00> : vector<56x32xf32>
    %10 = tpu.matmul %8, %9, %cst_8 {dimension_numbers = #tpu.dot_dimension_numbers<[1], [0], [0], [1], [0, 0, 1, 1], [], []>} : vector<56x512xbf16>, vector<512x32xbf16>, vector<56x32xf32> -> vector<56x32xf32>
    %c0_9 = arith.constant 0 : index
    %c0_10 = arith.constant 0 : index
    %11 = vector.load %arg5[%c0_9, %c0_10] : memref<1x32xf32, #tpu.memory_space<vmem>>, vector<1x32xf32>
    %12 = vector.broadcast %11 : vector<1x32xf32> to vector<56x32xf32>
    %13 = arith.addf %10, %12 : vector<56x32xf32>
    %cst_11 = arith.constant 0.000000e+00 : f32
    %14 = vector.broadcast %cst_11 : f32 to vector<56x32xf32>
    %15 = arith.maximumf %13, %14 : vector<56x32xf32>
    %16 = arith.truncf %15 : vector<56x32xf32> to vector<56x32xbf16>
    %c0_12 = arith.constant 0 : index
    %c0_13 = arith.constant 0 : index
    %17 = vector.load %arg6[%c0_12, %c0_13] : memref<32x32xbf16, #tpu.memory_space<vmem>>, vector<32x32xbf16>
    %cst_14 = arith.constant dense<0.000000e+00> : vector<56x32xf32>
    %18 = tpu.matmul %16, %17, %cst_14 {dimension_numbers = #tpu.dot_dimension_numbers<[1], [0], [0], [1], [0, 0, 1, 1], [], []>} : vector<56x32xbf16>, vector<32x32xbf16>, vector<56x32xf32> -> vector<56x32xf32>
    %c0_15 = arith.constant 0 : index
    %c0_16 = arith.constant 0 : index
    %19 = vector.load %arg7[%c0_15, %c0_16] : memref<1x32xf32, #tpu.memory_space<vmem>>, vector<1x32xf32>
    %20 = vector.broadcast %19 : vector<1x32xf32> to vector<56x32xf32>
    %21 = arith.addf %18, %20 : vector<56x32xf32>
    %c0_17 = arith.constant 0 : index
    %c0_18 = arith.constant 0 : index
    %22 = vector.load %arg8[%c0_17, %c0_18] : memref<56x32xf32, #tpu.memory_space<vmem>>, vector<56x32xf32>
    tpu.vector_store %arg8[%c0_17, %c0_18], %21 {strides = array<i32>} : memref<56x32xf32, #tpu.memory_space<vmem>>, vector<56x32xf32>,
    return
  }
  func.func @transform_0(%arg0: i32) -> (i32, i32) {
    %c0_i32 = arith.constant 0 : i32
    %c0_i32_0 = arith.constant 0 : i32
    return %arg0, %c0_i32 : i32, i32
  }
  func.func @transform_1(%arg0: i32) -> (i32, i32) {
    %c0_i32 = arith.constant 0 : i32
    %c0_i32_0 = arith.constant 0 : i32
    %c0_i32_1 = arith.constant 0 : i32
    return %c0_i32, %c0_i32_0 : i32, i32
  }
  func.func @transform_2(%arg0: i32) -> (i32, i32) {
    %c0_i32 = arith.constant 0 : i32
    %c0_i32_0 = arith.constant 0 : i32
    %c0_i32_1 = arith.constant 0 : i32
    return %c0_i32, %c0_i32_0 : i32, i32
  }
  func.func @transform_3(%arg0: i32) -> (i32, i32) {
    %c0_i32 = arith.constant 0 : i32
    %c0_i32_0 = arith.constant 0 : i32
    %c0_i32_1 = arith.constant 0 : i32
    return %c0_i32, %c0_i32_0 : i32, i32
  }
  func.func @transform_4(%arg0: i32) -> (i32, i32) {
    %c0_i32 = arith.constant 0 : i32
    %c0_i32_0 = arith.constant 0 : i32
    %c0_i32_1 = arith.constant 0 : i32
    return %c0_i32, %c0_i32_0 : i32, i32
  }
  func.func @transform_5(%arg0: i32) -> (i32, i32) {
    %c0_i32 = arith.constant 0 : i32
    %c0_i32_0 = arith.constant 0 : i32
    %c0_i32_1 = arith.constant 0 : i32
    return %c0_i32, %c0_i32_0 : i32, i32
  }
  func.func @transform_6(%arg0: i32) -> (i32, i32) {
    %c0_i32 = arith.constant 0 : i32
    %c0_i32_0 = arith.constant 0 : i32
    %c0_i32_1 = arith.constant 0 : i32
    return %c0_i32, %c0_i32_0 : i32, i32
  }
  func.func @transform_7(%arg0: i32) -> (i32, i32) {
    %c0_i32 = arith.constant 0 : i32
    %c0_i32_0 = arith.constant 0 : i32
    return %arg0, %c0_i32 : i32, i32
  }
}

module attributes {stable_mosaic.version = 11 : i64} {
  func.func @_gnn_node_kernel(%arg0: i32, %arg1: memref<16x32xf32, #tpu.memory_space<vmem>>, %arg2: memref<16x128xf32, #tpu.memory_space<vmem>>, %arg3: memref<16x128xf32, #tpu.memory_space<vmem>>, %arg4: memref<32x1xbf16, #tpu.memory_space<vmem>>, %arg5: memref<1x1xf32, #tpu.memory_space<vmem>>, %arg6: memref<64x33xbf16, #tpu.memory_space<vmem>>, %arg7: memref<1x32xf32, #tpu.memory_space<vmem>>, %arg8: memref<32x32xbf16, #tpu.memory_space<vmem>>, %arg9: memref<1x32xf32, #tpu.memory_space<vmem>>, %arg10: memref<32x32xbf16, #tpu.memory_space<vmem>>, %arg11: memref<1x32xf32, #tpu.memory_space<vmem>>, %arg12: memref<1x32xf32, #tpu.memory_space<vmem>>, %arg13: memref<1x32xf32, #tpu.memory_space<vmem>>, %arg14: memref<32x128xbf16, #tpu.memory_space<vmem>>, %arg15: memref<1x128xf32, #tpu.memory_space<vmem>>, %arg16: memref<128x32xbf16, #tpu.memory_space<vmem>>, %arg17: memref<1x32xf32, #tpu.memory_space<vmem>>, %arg18: memref<32x32xbf16, #tpu.memory_space<vmem>>, %arg19: memref<1x32xf32, #tpu.memory_space<vmem>>, %arg20: memref<1x32xf32, #tpu.memory_space<vmem>>, %arg21: memref<1x32xf32, #tpu.memory_space<vmem>>, %arg22: memref<16x32xf32, #tpu.memory_space<vmem>>) attributes {dimension_semantics = [#tpu.dimension_semantics<parallel>], iteration_bounds = array<i64: 1>, scalar_prefetch = 0 : i64, scratch_operands = 0 : i64, tpu.core_type = #tpu.core_type<tc>, window_params = [{transform_indices = @transform_0, window_bounds = array<i64: 16, 32>}, {transform_indices = @transform_1, window_bounds = array<i64: 16, 128>}, {transform_indices = @transform_2, window_bounds = array<i64: 16, 128>}, {pipeline_mode = #tpu.pipeline_mode<synchronous>, transform_indices = @transform_3, window_bounds = array<i64: 32, 1>}, {pipeline_mode = #tpu.pipeline_mode<synchronous>, transform_indices = @transform_4, window_bounds = array<i64: 1, 1>}, {pipeline_mode = #tpu.pipeline_mode<synchronous>, transform_indices = @transform_5, window_bounds = array<i64: 64, 33>}, {pipeline_mode = #tpu.pipeline_mode<synchronous>, transform_indices = @transform_6, window_bounds = array<i64: 1, 32>}, {pipeline_mode = #tpu.pipeline_mode<synchronous>, transform_indices = @transform_7, window_bounds = array<i64: 32, 32>}, {pipeline_mode = #tpu.pipeline_mode<synchronous>, transform_indices = @transform_8, window_bounds = array<i64: 1, 32>}, {pipeline_mode = #tpu.pipeline_mode<synchronous>, transform_indices = @transform_9, window_bounds = array<i64: 32, 32>}, {pipeline_mode = #tpu.pipeline_mode<synchronous>, transform_indices = @transform_10, window_bounds = array<i64: 1, 32>}, {pipeline_mode = #tpu.pipeline_mode<synchronous>, transform_indices = @transform_11, window_bounds = array<i64: 1, 32>}, {pipeline_mode = #tpu.pipeline_mode<synchronous>, transform_indices = @transform_12, window_bounds = array<i64: 1, 32>}, {pipeline_mode = #tpu.pipeline_mode<synchronous>, transform_indices = @transform_13, window_bounds = array<i64: 32, 128>}, {pipeline_mode = #tpu.pipeline_mode<synchronous>, transform_indices = @transform_14, window_bounds = array<i64: 1, 128>}, {pipeline_mode = #tpu.pipeline_mode<synchronous>, transform_indices = @transform_15, window_bounds = array<i64: 128, 32>}, {pipeline_mode = #tpu.pipeline_mode<synchronous>, transform_indices = @transform_16, window_bounds = array<i64: 1, 32>}, {pipeline_mode = #tpu.pipeline_mode<synchronous>, transform_indices = @transform_17, window_bounds = array<i64: 32, 32>}, {pipeline_mode = #tpu.pipeline_mode<synchronous>, transform_indices = @transform_18, window_bounds = array<i64: 1, 32>}, {pipeline_mode = #tpu.pipeline_mode<synchronous>, transform_indices = @transform_19, window_bounds = array<i64: 1, 32>}, {pipeline_mode = #tpu.pipeline_mode<synchronous>, transform_indices = @transform_20, window_bounds = array<i64: 1, 32>}, {transform_indices = @transform_21, window_bounds = array<i64: 16, 32>}]} {
    %c0 = arith.constant 0 : index
    %c0_0 = arith.constant 0 : index
    %0 = vector.load %arg1[%c0, %c0_0] : memref<16x32xf32, #tpu.memory_space<vmem>>, vector<16x32xf32>
    %c0_1 = arith.constant 0 : index
    %c0_2 = arith.constant 0 : index
    %1 = vector.load %arg2[%c0_1, %c0_2] : memref<16x128xf32, #tpu.memory_space<vmem>>, vector<16x128xf32>
    %2 = arith.truncf %1 : vector<16x128xf32> to vector<16x128xbf16>
    %c0_3 = arith.constant 0 : index
    %c0_4 = arith.constant 0 : index
    %3 = vector.load %arg3[%c0_3, %c0_4] : memref<16x128xf32, #tpu.memory_space<vmem>>, vector<16x128xf32>
    %4 = arith.truncf %3 : vector<16x128xf32> to vector<16x128xbf16>
    %5 = arith.truncf %0 : vector<16x32xf32> to vector<16x32xbf16>
    %c0_5 = arith.constant 0 : index
    %c0_6 = arith.constant 0 : index
    %6 = vector.load %arg4[%c0_5, %c0_6] : memref<32x1xbf16, #tpu.memory_space<vmem>>, vector<32x1xbf16>
    %cst = arith.constant dense<0.000000e+00> : vector<16x1xf32>
    %7 = tpu.matmul %5, %6, %cst {dimension_numbers = #tpu.dot_dimension_numbers<[1], [0], [0], [1], [0, 0, 1, 1], [], []>} : vector<16x32xbf16>, vector<32x1xbf16>, vector<16x1xf32> -> vector<16x1xf32>
    %c0_7 = arith.constant 0 : index
    %c0_8 = arith.constant 0 : index
    %8 = vector.load %arg5[%c0_7, %c0_8] : memref<1x1xf32, #tpu.memory_space<vmem>>, vector<1x1xf32>
    %9 = vector.broadcast %8 : vector<1x1xf32> to vector<16x1xf32>
    %10 = arith.addf %7, %9 : vector<16x1xf32>
    %c0_9 = arith.constant 0 : index
    %c0_10 = arith.constant 0 : index
    %11 = vector.load %arg6[%c0_9, %c0_10] : memref<64x33xbf16, #tpu.memory_space<vmem>>, vector<64x33xbf16>
    %c0_11 = arith.constant 0 : index
    %c0_12 = arith.constant 0 : index
    %12 = vector.load %arg8[%c0_11, %c0_12] : memref<32x32xbf16, #tpu.memory_space<vmem>>, vector<32x32xbf16>
    %c0_13 = arith.constant 0 : index
    %c0_14 = arith.constant 0 : index
    %13 = vector.load %arg10[%c0_13, %c0_14] : memref<32x32xbf16, #tpu.memory_space<vmem>>, vector<32x32xbf16>
    %c0_15 = arith.constant 0 : index
    %c0_16 = arith.constant 0 : index
    %14 = vector.load %arg7[%c0_15, %c0_16] : memref<1x32xf32, #tpu.memory_space<vmem>>, vector<1x32xf32>
    %15 = vector.shape_cast %14 : vector<1x32xf32> to vector<1x32xf32>
    %16 = vector.broadcast %15 : vector<1x32xf32> to vector<16x32xf32>
    %c0_17 = arith.constant 0 : index
    %c0_18 = arith.constant 0 : index
    %17 = vector.load %arg9[%c0_17, %c0_18] : memref<1x32xf32, #tpu.memory_space<vmem>>, vector<1x32xf32>
    %18 = vector.shape_cast %17 : vector<1x32xf32> to vector<1x32xf32>
    %19 = vector.broadcast %18 : vector<1x32xf32> to vector<16x32xf32>
    %c0_19 = arith.constant 0 : index
    %c0_20 = arith.constant 0 : index
    %20 = vector.load %arg11[%c0_19, %c0_20] : memref<1x32xf32, #tpu.memory_space<vmem>>, vector<1x32xf32>
    %21 = vector.shape_cast %20 : vector<1x32xf32> to vector<1x32xf32>
    %22 = vector.broadcast %21 : vector<1x32xf32> to vector<16x32xf32>
    %23 = vector.extract_strided_slice %4 {offsets = [0, 0], sizes = [16, 32], strides = [1, 1]} : vector<16x128xbf16> to vector<16x32xbf16>
    %24 = vector.extract_strided_slice %2 {offsets = [0, 0], sizes = [16, 32], strides = [1, 1]} : vector<16x128xbf16> to vector<16x32xbf16>
    %25 = tpu.concatenate %23, %24 in 1 : vector<16x32xbf16>, vector<16x32xbf16> -> vector<16x64xbf16>
    %cst_21 = arith.constant dense<0.000000e+00> : vector<16x33xf32>
    %26 = tpu.matmul %25, %11, %cst_21 {dimension_numbers = #tpu.dot_dimension_numbers<[1], [0], [0], [1], [0, 0, 1, 1], [], []>} : vector<16x64xbf16>, vector<64x33xbf16>, vector<16x33xf32> -> vector<16x33xf32>
    %27 = vector.extract_strided_slice %26 {offsets = [0, 32], sizes = [16, 1], strides = [1, 1]} : vector<16x33xf32> to vector<16x1xf32>
    %28 = arith.addf %27, %10 : vector<16x1xf32>
    %29 = vector.extract_strided_slice %26 {offsets = [0, 0], sizes = [16, 32], strides = [1, 1]} : vector<16x33xf32> to vector<16x32xf32>
    %30 = arith.addf %29, %16 : vector<16x32xf32>
    %cst_22 = arith.constant 0.000000e+00 : f32
    %31 = vector.broadcast %cst_22 : f32 to vector<16x32xf32>
    %32 = arith.maximumf %30, %31 : vector<16x32xf32>
    %33 = arith.truncf %32 : vector<16x32xf32> to vector<16x32xbf16>
    %cst_23 = arith.constant dense<0.000000e+00> : vector<16x32xf32>
    %34 = tpu.matmul %33, %12, %cst_23 {dimension_numbers = #tpu.dot_dimension_numbers<[1], [0], [0], [1], [0, 0, 1, 1], [], []>} : vector<16x32xbf16>, vector<32x32xbf16>, vector<16x32xf32> -> vector<16x32xf32>
    %35 = arith.addf %34, %19 : vector<16x32xf32>
    %cst_24 = arith.constant 0.000000e+00 : f32
    %36 = vector.broadcast %cst_24 : f32 to vector<16x32xf32>
    %37 = arith.maximumf %35, %36 : vector<16x32xf32>
    %38 = arith.truncf %37 : vector<16x32xf32> to vector<16x32xbf16>
    %cst_25 = arith.constant dense<0.000000e+00> : vector<16x32xf32>
    %39 = tpu.matmul %38, %13, %cst_25 {dimension_numbers = #tpu.dot_dimension_numbers<[1], [0], [0], [1], [0, 0, 1, 1], [], []>} : vector<16x32xbf16>, vector<32x32xbf16>, vector<16x32xf32> -> vector<16x32xf32>
    %40 = arith.addf %39, %22 : vector<16x32xf32>
    %41 = vector.extract_strided_slice %4 {offsets = [0, 32], sizes = [16, 32], strides = [1, 1]} : vector<16x128xbf16> to vector<16x32xbf16>
    %42 = vector.extract_strided_slice %2 {offsets = [0, 32], sizes = [16, 32], strides = [1, 1]} : vector<16x128xbf16> to vector<16x32xbf16>
    %43 = tpu.concatenate %41, %42 in 1 : vector<16x32xbf16>, vector<16x32xbf16> -> vector<16x64xbf16>
    %cst_26 = arith.constant dense<0.000000e+00> : vector<16x33xf32>
    %44 = tpu.matmul %43, %11, %cst_26 {dimension_numbers = #tpu.dot_dimension_numbers<[1], [0], [0], [1], [0, 0, 1, 1], [], []>} : vector<16x64xbf16>, vector<64x33xbf16>, vector<16x33xf32> -> vector<16x33xf32>
    %45 = vector.extract_strided_slice %44 {offsets = [0, 32], sizes = [16, 1], strides = [1, 1]} : vector<16x33xf32> to vector<16x1xf32>
    %46 = arith.addf %45, %10 : vector<16x1xf32>
    %47 = vector.extract_strided_slice %44 {offsets = [0, 0], sizes = [16, 32], strides = [1, 1]} : vector<16x33xf32> to vector<16x32xf32>
    %48 = arith.addf %47, %16 : vector<16x32xf32>
    %cst_27 = arith.constant 0.000000e+00 : f32
    %49 = vector.broadcast %cst_27 : f32 to vector<16x32xf32>
    %50 = arith.maximumf %48, %49 : vector<16x32xf32>
    %51 = arith.truncf %50 : vector<16x32xf32> to vector<16x32xbf16>
    %cst_28 = arith.constant dense<0.000000e+00> : vector<16x32xf32>
    %52 = tpu.matmul %51, %12, %cst_28 {dimension_numbers = #tpu.dot_dimension_numbers<[1], [0], [0], [1], [0, 0, 1, 1], [], []>} : vector<16x32xbf16>, vector<32x32xbf16>, vector<16x32xf32> -> vector<16x32xf32>
    %53 = arith.addf %52, %19 : vector<16x32xf32>
    %cst_29 = arith.constant 0.000000e+00 : f32
    %54 = vector.broadcast %cst_29 : f32 to vector<16x32xf32>
    %55 = arith.maximumf %53, %54 : vector<16x32xf32>
    %56 = arith.truncf %55 : vector<16x32xf32> to vector<16x32xbf16>
    %cst_30 = arith.constant dense<0.000000e+00> : vector<16x32xf32>
    %57 = tpu.matmul %56, %13, %cst_30 {dimension_numbers = #tpu.dot_dimension_numbers<[1], [0], [0], [1], [0, 0, 1, 1], [], []>} : vector<16x32xbf16>, vector<32x32xbf16>, vector<16x32xf32> -> vector<16x32xf32>
    %58 = arith.addf %57, %22 : vector<16x32xf32>
    %59 = vector.extract_strided_slice %4 {offsets = [0, 64], sizes = [16, 32], strides = [1, 1]} : vector<16x128xbf16> to vector<16x32xbf16>
    %60 = vector.extract_strided_slice %2 {offsets = [0, 64], sizes = [16, 32], strides = [1, 1]} : vector<16x128xbf16> to vector<16x32xbf16>
    %61 = tpu.concatenate %59, %60 in 1 : vector<16x32xbf16>, vector<16x32xbf16> -> vector<16x64xbf16>
    %cst_31 = arith.constant dense<0.000000e+00> : vector<16x33xf32>
    %62 = tpu.matmul %61, %11, %cst_31 {dimension_numbers = #tpu.dot_dimension_numbers<[1], [0], [0], [1], [0, 0, 1, 1], [], []>} : vector<16x64xbf16>, vector<64x33xbf16>, vector<16x33xf32> -> vector<16x33xf32>
    %63 = vector.extract_strided_slice %62 {offsets = [0, 32], sizes = [16, 1], strides = [1, 1]} : vector<16x33xf32> to vector<16x1xf32>
    %64 = arith.addf %63, %10 : vector<16x1xf32>
    %65 = vector.extract_strided_slice %62 {offsets = [0, 0], sizes = [16, 32], strides = [1, 1]} : vector<16x33xf32> to vector<16x32xf32>
    %66 = arith.addf %65, %16 : vector<16x32xf32>
    %cst_32 = arith.constant 0.000000e+00 : f32
    %67 = vector.broadcast %cst_32 : f32 to vector<16x32xf32>
    %68 = arith.maximumf %66, %67 : vector<16x32xf32>
    %69 = arith.truncf %68 : vector<16x32xf32> to vector<16x32xbf16>
    %cst_33 = arith.constant dense<0.000000e+00> : vector<16x32xf32>
    %70 = tpu.matmul %69, %12, %cst_33 {dimension_numbers = #tpu.dot_dimension_numbers<[1], [0], [0], [1], [0, 0, 1, 1], [], []>} : vector<16x32xbf16>, vector<32x32xbf16>, vector<16x32xf32> -> vector<16x32xf32>
    %71 = arith.addf %70, %19 : vector<16x32xf32>
    %cst_34 = arith.constant 0.000000e+00 : f32
    %72 = vector.broadcast %cst_34 : f32 to vector<16x32xf32>
    %73 = arith.maximumf %71, %72 : vector<16x32xf32>
    %74 = arith.truncf %73 : vector<16x32xf32> to vector<16x32xbf16>
    %cst_35 = arith.constant dense<0.000000e+00> : vector<16x32xf32>
    %75 = tpu.matmul %74, %13, %cst_35 {dimension_numbers = #tpu.dot_dimension_numbers<[1], [0], [0], [1], [0, 0, 1, 1], [], []>} : vector<16x32xbf16>, vector<32x32xbf16>, vector<16x32xf32> -> vector<16x32xf32>
    %76 = arith.addf %75, %22 : vector<16x32xf32>
    %77 = vector.extract_strided_slice %4 {offsets = [0, 96], sizes = [16, 32], strides = [1, 1]} : vector<16x128xbf16> to vector<16x32xbf16>
    %78 = vector.extract_strided_slice %2 {offsets = [0, 96], sizes = [16, 32], strides = [1, 1]} : vector<16x128xbf16> to vector<16x32xbf16>
    %79 = tpu.concatenate %77, %78 in 1 : vector<16x32xbf16>, vector<16x32xbf16> -> vector<16x64xbf16>
    %cst_36 = arith.constant dense<0.000000e+00> : vector<16x33xf32>
    %80 = tpu.matmul %79, %11, %cst_36 {dimension_numbers = #tpu.dot_dimension_numbers<[1], [0], [0], [1], [0, 0, 1, 1], [], []>} : vector<16x64xbf16>, vector<64x33xbf16>, vector<16x33xf32> -> vector<16x33xf32>
    %81 = vector.extract_strided_slice %80 {offsets = [0, 32], sizes = [16, 1], strides = [1, 1]} : vector<16x33xf32> to vector<16x1xf32>
    %82 = arith.addf %81, %10 : vector<16x1xf32>
    %83 = vector.extract_strided_slice %80 {offsets = [0, 0], sizes = [16, 32], strides = [1, 1]} : vector<16x33xf32> to vector<16x32xf32>
    %84 = arith.addf %83, %16 : vector<16x32xf32>
    %cst_37 = arith.constant 0.000000e+00 : f32
    %85 = vector.broadcast %cst_37 : f32 to vector<16x32xf32>
    %86 = arith.maximumf %84, %85 : vector<16x32xf32>
    %87 = arith.truncf %86 : vector<16x32xf32> to vector<16x32xbf16>
    %cst_38 = arith.constant dense<0.000000e+00> : vector<16x32xf32>
    %88 = tpu.matmul %87, %12, %cst_38 {dimension_numbers = #tpu.dot_dimension_numbers<[1], [0], [0], [1], [0, 0, 1, 1], [], []>} : vector<16x32xbf16>, vector<32x32xbf16>, vector<16x32xf32> -> vector<16x32xf32>
    %89 = arith.addf %88, %19 : vector<16x32xf32>
    %cst_39 = arith.constant 0.000000e+00 : f32
    %90 = vector.broadcast %cst_39 : f32 to vector<16x32xf32>
    %91 = arith.maximumf %89, %90 : vector<16x32xf32>
    %92 = arith.truncf %91 : vector<16x32xf32> to vector<16x32xbf16>
    %cst_40 = arith.constant dense<0.000000e+00> : vector<16x32xf32>
    %93 = tpu.matmul %92, %13, %cst_40 {dimension_numbers = #tpu.dot_dimension_numbers<[1], [0], [0], [1], [0, 0, 1, 1], [], []>} : vector<16x32xbf16>, vector<32x32xbf16>, vector<16x32xf32> -> vector<16x32xf32>
    %94 = arith.addf %93, %22 : vector<16x32xf32>
    %95 = arith.maximumf %28, %46 : vector<16x1xf32>
    %96 = arith.maximumf %95, %64 : vector<16x1xf32>
    %97 = arith.maximumf %96, %82 : vector<16x1xf32>
    %98 = arith.subf %28, %97 : vector<16x1xf32>
    %99 = math.exp %98 : vector<16x1xf32>
    %100 = arith.subf %46, %97 : vector<16x1xf32>
    %101 = math.exp %100 : vector<16x1xf32>
    %102 = arith.subf %64, %97 : vector<16x1xf32>
    %103 = math.exp %102 : vector<16x1xf32>
    %104 = arith.subf %82, %97 : vector<16x1xf32>
    %105 = math.exp %104 : vector<16x1xf32>
    %106 = arith.addf %99, %101 : vector<16x1xf32>
    %107 = arith.addf %106, %103 : vector<16x1xf32>
    %108 = arith.addf %107, %105 : vector<16x1xf32>
    %109 = vector.broadcast %99 : vector<16x1xf32> to vector<16x32xf32>
    %110 = arith.mulf %40, %109 : vector<16x32xf32>
    %111 = vector.broadcast %101 : vector<16x1xf32> to vector<16x32xf32>
    %112 = arith.mulf %58, %111 : vector<16x32xf32>
    %113 = arith.addf %110, %112 : vector<16x32xf32>
    %114 = vector.broadcast %103 : vector<16x1xf32> to vector<16x32xf32>
    %115 = arith.mulf %76, %114 : vector<16x32xf32>
    %116 = arith.addf %113, %115 : vector<16x32xf32>
    %117 = vector.broadcast %105 : vector<16x1xf32> to vector<16x32xf32>
    %118 = arith.mulf %94, %117 : vector<16x32xf32>
    %119 = arith.addf %116, %118 : vector<16x32xf32>
    %120 = tpu.reciprocal %108 {approx = true} : vector<16x1xf32> -> vector<16x1xf32>
    %121 = vector.broadcast %120 : vector<16x1xf32> to vector<16x32xf32>
    %122 = arith.mulf %119, %121 : vector<16x32xf32>
    %123 = arith.addf %0, %122 : vector<16x32xf32>
    %cst_41 = arith.constant dense<0.000000e+00> : vector<16xf32>
    %124 = vector.multi_reduction <add>, %123, %cst_41 [1] : vector<16x32xf32> to vector<16xf32>
    %125 = vector.shape_cast %124 : vector<16xf32> to vector<16x1xf32>
    %cst_42 = arith.constant 3.200000e+01 : f32
    %126 = vector.broadcast %cst_42 : f32 to vector<16x1xf32>
    %127 = arith.divf %125, %126 : vector<16x1xf32>
    %128 = vector.broadcast %127 : vector<16x1xf32> to vector<16x32xf32>
    %129 = arith.subf %123, %128 : vector<16x32xf32>
    %130 = arith.mulf %129, %129 : vector<16x32xf32>
    %cst_43 = arith.constant dense<0.000000e+00> : vector<16xf32>
    %131 = vector.multi_reduction <add>, %130, %cst_43 [1] : vector<16x32xf32> to vector<16xf32>
    %132 = vector.shape_cast %131 : vector<16xf32> to vector<16x1xf32>
    %cst_44 = arith.constant 3.200000e+01 : f32
    %133 = vector.broadcast %cst_44 : f32 to vector<16x1xf32>
    %134 = arith.divf %132, %133 : vector<16x1xf32>
    %135 = vector.broadcast %127 : vector<16x1xf32> to vector<16x32xf32>
    %136 = arith.subf %123, %135 : vector<16x32xf32>
    %cst_45 = arith.constant 9.99999974E-6 : f32
    %137 = vector.broadcast %cst_45 : f32 to vector<16x1xf32>
    %138 = arith.addf %134, %137 : vector<16x1xf32>
    %139 = math.sqrt %138 : vector<16x1xf32>
    %140 = vector.broadcast %139 : vector<16x1xf32> to vector<16x32xf32>
    %141 = arith.divf %136, %140 : vector<16x32xf32>
    %c0_46 = arith.constant 0 : index
    %c0_47 = arith.constant 0 : index
    %142 = vector.load %arg12[%c0_46, %c0_47] : memref<1x32xf32, #tpu.memory_space<vmem>>, vector<1x32xf32>
    %143 = vector.broadcast %142 : vector<1x32xf32> to vector<16x32xf32>
    %144 = arith.mulf %141, %143 : vector<16x32xf32>
    %c0_48 = arith.constant 0 : index
    %c0_49 = arith.constant 0 : index
    %145 = vector.load %arg13[%c0_48, %c0_49] : memref<1x32xf32, #tpu.memory_space<vmem>>, vector<1x32xf32>
    %146 = vector.broadcast %145 : vector<1x32xf32> to vector<16x32xf32>
    %147 = arith.addf %144, %146 : vector<16x32xf32>
    %148 = arith.truncf %147 : vector<16x32xf32> to vector<16x32xbf16>
    %c0_50 = arith.constant 0 : index
    %c0_51 = arith.constant 0 : index
    %149 = vector.load %arg14[%c0_50, %c0_51] : memref<32x128xbf16, #tpu.memory_space<vmem>>, vector<32x128xbf16>
    %cst_52 = arith.constant dense<0.000000e+00> : vector<16x128xf32>
    %150 = tpu.matmul %148, %149, %cst_52 {dimension_numbers = #tpu.dot_dimension_numbers<[1], [0], [0], [1], [0, 0, 1, 1], [], []>} : vector<16x32xbf16>, vector<32x128xbf16>, vector<16x128xf32> -> vector<16x128xf32>
    %c0_53 = arith.constant 0 : index
    %c0_54 = arith.constant 0 : index
    %151 = vector.load %arg15[%c0_53, %c0_54] : memref<1x128xf32, #tpu.memory_space<vmem>>, vector<1x128xf32>
    %152 = vector.broadcast %151 : vector<1x128xf32> to vector<16x128xf32>
    %153 = arith.addf %150, %152 : vector<16x128xf32>
    %cst_55 = arith.constant 0.000000e+00 : f32
    %154 = vector.broadcast %cst_55 : f32 to vector<16x128xf32>
    %155 = arith.maximumf %153, %154 : vector<16x128xf32>
    %156 = arith.truncf %155 : vector<16x128xf32> to vector<16x128xbf16>
    %c0_56 = arith.constant 0 : index
    %c0_57 = arith.constant 0 : index
    %157 = vector.load %arg16[%c0_56, %c0_57] : memref<128x32xbf16, #tpu.memory_space<vmem>>, vector<128x32xbf16>
    %cst_58 = arith.constant dense<0.000000e+00> : vector<16x32xf32>
    %158 = tpu.matmul %156, %157, %cst_58 {dimension_numbers = #tpu.dot_dimension_numbers<[1], [0], [0], [1], [0, 0, 1, 1], [], []>} : vector<16x128xbf16>, vector<128x32xbf16>, vector<16x32xf32> -> vector<16x32xf32>
    %c0_59 = arith.constant 0 : index
    %c0_60 = arith.constant 0 : index
    %159 = vector.load %arg17[%c0_59, %c0_60] : memref<1x32xf32, #tpu.memory_space<vmem>>, vector<1x32xf32>
    %160 = vector.broadcast %159 : vector<1x32xf32> to vector<16x32xf32>
    %161 = arith.addf %158, %160 : vector<16x32xf32>
    %cst_61 = arith.constant 0.000000e+00 : f32
    %162 = vector.broadcast %cst_61 : f32 to vector<16x32xf32>
    %163 = arith.maximumf %161, %162 : vector<16x32xf32>
    %164 = arith.truncf %163 : vector<16x32xf32> to vector<16x32xbf16>
    %c0_62 = arith.constant 0 : index
    %c0_63 = arith.constant 0 : index
    %165 = vector.load %arg18[%c0_62, %c0_63] : memref<32x32xbf16, #tpu.memory_space<vmem>>, vector<32x32xbf16>
    %cst_64 = arith.constant dense<0.000000e+00> : vector<16x32xf32>
    %166 = tpu.matmul %164, %165, %cst_64 {dimension_numbers = #tpu.dot_dimension_numbers<[1], [0], [0], [1], [0, 0, 1, 1], [], []>} : vector<16x32xbf16>, vector<32x32xbf16>, vector<16x32xf32> -> vector<16x32xf32>
    %c0_65 = arith.constant 0 : index
    %c0_66 = arith.constant 0 : index
    %167 = vector.load %arg19[%c0_65, %c0_66] : memref<1x32xf32, #tpu.memory_space<vmem>>, vector<1x32xf32>
    %168 = vector.broadcast %167 : vector<1x32xf32> to vector<16x32xf32>
    %169 = arith.addf %166, %168 : vector<16x32xf32>
    %170 = arith.addf %147, %169 : vector<16x32xf32>
    %cst_67 = arith.constant dense<0.000000e+00> : vector<16xf32>
    %171 = vector.multi_reduction <add>, %170, %cst_67 [1] : vector<16x32xf32> to vector<16xf32>
    %172 = vector.shape_cast %171 : vector<16xf32> to vector<16x1xf32>
    %cst_68 = arith.constant 3.200000e+01 : f32
    %173 = vector.broadcast %cst_68 : f32 to vector<16x1xf32>
    %174 = arith.divf %172, %173 : vector<16x1xf32>
    %175 = vector.broadcast %174 : vector<16x1xf32> to vector<16x32xf32>
    %176 = arith.subf %170, %175 : vector<16x32xf32>
    %177 = arith.mulf %176, %176 : vector<16x32xf32>
    %cst_69 = arith.constant dense<0.000000e+00> : vector<16xf32>
    %178 = vector.multi_reduction <add>, %177, %cst_69 [1] : vector<16x32xf32> to vector<16xf32>
    %179 = vector.shape_cast %178 : vector<16xf32> to vector<16x1xf32>
    %cst_70 = arith.constant 3.200000e+01 : f32
    %180 = vector.broadcast %cst_70 : f32 to vector<16x1xf32>
    %181 = arith.divf %179, %180 : vector<16x1xf32>
    %182 = vector.broadcast %174 : vector<16x1xf32> to vector<16x32xf32>
    %183 = arith.subf %170, %182 : vector<16x32xf32>
    %cst_71 = arith.constant 9.99999974E-6 : f32
    %184 = vector.broadcast %cst_71 : f32 to vector<16x1xf32>
    %185 = arith.addf %181, %184 : vector<16x1xf32>
    %186 = math.sqrt %185 : vector<16x1xf32>
    %187 = vector.broadcast %186 : vector<16x1xf32> to vector<16x32xf32>
    %188 = arith.divf %183, %187 : vector<16x32xf32>
    %c0_72 = arith.constant 0 : index
    %c0_73 = arith.constant 0 : index
    %189 = vector.load %arg20[%c0_72, %c0_73] : memref<1x32xf32, #tpu.memory_space<vmem>>, vector<1x32xf32>
    %190 = vector.broadcast %189 : vector<1x32xf32> to vector<16x32xf32>
    %191 = arith.mulf %188, %190 : vector<16x32xf32>
    %c0_74 = arith.constant 0 : index
    %c0_75 = arith.constant 0 : index
    %192 = vector.load %arg21[%c0_74, %c0_75] : memref<1x32xf32, #tpu.memory_space<vmem>>, vector<1x32xf32>
    %193 = vector.broadcast %192 : vector<1x32xf32> to vector<16x32xf32>
    %194 = arith.addf %191, %193 : vector<16x32xf32>
    %c0_76 = arith.constant 0 : index
    %c0_77 = arith.constant 0 : index
    %195 = vector.load %arg22[%c0_76, %c0_77] : memref<16x32xf32, #tpu.memory_space<vmem>>, vector<16x32xf32>
    tpu.vector_store %arg22[%c0_76, %c0_77], %194 {strides = array<i32>} : memref<16x32xf32, #tpu.memory_space<vmem>>, vector<16x32xf32>,
    return
  }
  func.func @transform_0(%arg0: i32) -> (i32, i32) {
    %c0_i32 = arith.constant 0 : i32
    %c0_i32_0 = arith.constant 0 : i32
    return %arg0, %c0_i32 : i32, i32
  }
  func.func @transform_1(%arg0: i32) -> (i32, i32) {
    %c0_i32 = arith.constant 0 : i32
    %c0_i32_0 = arith.constant 0 : i32
    return %arg0, %c0_i32 : i32, i32
  }
  func.func @transform_2(%arg0: i32) -> (i32, i32) {
    %c0_i32 = arith.constant 0 : i32
    %c0_i32_0 = arith.constant 0 : i32
    return %arg0, %c0_i32 : i32, i32
  }
  func.func @transform_3(%arg0: i32) -> (i32, i32) {
    %c0_i32 = arith.constant 0 : i32
    %c0_i32_0 = arith.constant 0 : i32
    %c0_i32_1 = arith.constant 0 : i32
    return %c0_i32, %c0_i32_0 : i32, i32
  }
  func.func @transform_4(%arg0: i32) -> (i32, i32) {
    %c0_i32 = arith.constant 0 : i32
    %c0_i32_0 = arith.constant 0 : i32
    %c0_i32_1 = arith.constant 0 : i32
    return %c0_i32, %c0_i32_0 : i32, i32
  }
  func.func @transform_5(%arg0: i32) -> (i32, i32) {
    %c0_i32 = arith.constant 0 : i32
    %c0_i32_0 = arith.constant 0 : i32
    %c0_i32_1 = arith.constant 0 : i32
    return %c0_i32, %c0_i32_0 : i32, i32
  }
  func.func @transform_6(%arg0: i32) -> (i32, i32) {
    %c0_i32 = arith.constant 0 : i32
    %c0_i32_0 = arith.constant 0 : i32
    %c0_i32_1 = arith.constant 0 : i32
    return %c0_i32, %c0_i32_0 : i32, i32
  }
  func.func @transform_7(%arg0: i32) -> (i32, i32) {
    %c0_i32 = arith.constant 0 : i32
    %c0_i32_0 = arith.constant 0 : i32
    %c0_i32_1 = arith.constant 0 : i32
    return %c0_i32, %c0_i32_0 : i32, i32
  }
  func.func @transform_8(%arg0: i32) -> (i32, i32) {
    %c0_i32 = arith.constant 0 : i32
    %c0_i32_0 = arith.constant 0 : i32
    %c0_i32_1 = arith.constant 0 : i32
    return %c0_i32, %c0_i32_0 : i32, i32
  }
  func.func @transform_9(%arg0: i32) -> (i32, i32) {
    %c0_i32 = arith.constant 0 : i32
    %c0_i32_0 = arith.constant 0 : i32
    %c0_i32_1 = arith.constant 0 : i32
    return %c0_i32, %c0_i32_0 : i32, i32
  }
  func.func @transform_10(%arg0: i32) -> (i32, i32) {
    %c0_i32 = arith.constant 0 : i32
    %c0_i32_0 = arith.constant 0 : i32
    %c0_i32_1 = arith.constant 0 : i32
    return %c0_i32, %c0_i32_0 : i32, i32
  }
  func.func @transform_11(%arg0: i32) -> (i32, i32) {
    %c0_i32 = arith.constant 0 : i32
    %c0_i32_0 = arith.constant 0 : i32
    %c0_i32_1 = arith.constant 0 : i32
    return %c0_i32, %c0_i32_0 : i32, i32
  }
  func.func @transform_12(%arg0: i32) -> (i32, i32) {
    %c0_i32 = arith.constant 0 : i32
    %c0_i32_0 = arith.constant 0 : i32
    %c0_i32_1 = arith.constant 0 : i32
    return %c0_i32, %c0_i32_0 : i32, i32
  }
  func.func @transform_13(%arg0: i32) -> (i32, i32) {
    %c0_i32 = arith.constant 0 : i32
    %c0_i32_0 = arith.constant 0 : i32
    %c0_i32_1 = arith.constant 0 : i32
    return %c0_i32, %c0_i32_0 : i32, i32
  }
  func.func @transform_14(%arg0: i32) -> (i32, i32) {
    %c0_i32 = arith.constant 0 : i32
    %c0_i32_0 = arith.constant 0 : i32
    %c0_i32_1 = arith.constant 0 : i32
    return %c0_i32, %c0_i32_0 : i32, i32
  }
  func.func @transform_15(%arg0: i32) -> (i32, i32) {
    %c0_i32 = arith.constant 0 : i32
    %c0_i32_0 = arith.constant 0 : i32
    %c0_i32_1 = arith.constant 0 : i32
    return %c0_i32, %c0_i32_0 : i32, i32
  }
  func.func @transform_16(%arg0: i32) -> (i32, i32) {
    %c0_i32 = arith.constant 0 : i32
    %c0_i32_0 = arith.constant 0 : i32
    %c0_i32_1 = arith.constant 0 : i32
    return %c0_i32, %c0_i32_0 : i32, i32
  }
  func.func @transform_17(%arg0: i32) -> (i32, i32) {
    %c0_i32 = arith.constant 0 : i32
    %c0_i32_0 = arith.constant 0 : i32
    %c0_i32_1 = arith.constant 0 : i32
    return %c0_i32, %c0_i32_0 : i32, i32
  }
  func.func @transform_18(%arg0: i32) -> (i32, i32) {
    %c0_i32 = arith.constant 0 : i32
    %c0_i32_0 = arith.constant 0 : i32
    %c0_i32_1 = arith.constant 0 : i32
    return %c0_i32, %c0_i32_0 : i32, i32
  }
  func.func @transform_19(%arg0: i32) -> (i32, i32) {
    %c0_i32 = arith.constant 0 : i32
    %c0_i32_0 = arith.constant 0 : i32
    %c0_i32_1 = arith.constant 0 : i32
    return %c0_i32, %c0_i32_0 : i32, i32
  }
  func.func @transform_20(%arg0: i32) -> (i32, i32) {
    %c0_i32 = arith.constant 0 : i32
    %c0_i32_0 = arith.constant 0 : i32
    %c0_i32_1 = arith.constant 0 : i32
    return %c0_i32, %c0_i32_0 : i32, i32
  }
  func.func @transform_21(%arg0: i32) -> (i32, i32) {
    %c0_i32 = arith.constant 0 : i32
    %c0_i32_0 = arith.constant 0 : i32
    return %arg0, %c0_i32 : i32, i32
  }
}

module attributes {stable_mosaic.version = 11 : i64} {
  func.func @_gnn_edge_kernel(%arg0: i32, %arg1: memref<56x32xf32, #tpu.memory_space<vmem>>, %arg2: memref<56x32xf32, #tpu.memory_space<vmem>>, %arg3: memref<56x32xf32, #tpu.memory_space<vmem>>, %arg4: memref<96x32xbf16, #tpu.memory_space<vmem>>, %arg5: memref<1x32xf32, #tpu.memory_space<vmem>>, %arg6: memref<32x32xbf16, #tpu.memory_space<vmem>>, %arg7: memref<1x32xf32, #tpu.memory_space<vmem>>, %arg8: memref<32x32xbf16, #tpu.memory_space<vmem>>, %arg9: memref<1x32xf32, #tpu.memory_space<vmem>>, %arg10: memref<1x32xf32, #tpu.memory_space<vmem>>, %arg11: memref<1x32xf32, #tpu.memory_space<vmem>>, %arg12: memref<56x32xf32, #tpu.memory_space<vmem>>) attributes {dimension_semantics = [#tpu.dimension_semantics<parallel>], iteration_bounds = array<i64: 1>, scalar_prefetch = 0 : i64, scratch_operands = 0 : i64, tpu.core_type = #tpu.core_type<tc>, window_params = [{transform_indices = @transform_0, window_bounds = array<i64: 56, 32>}, {transform_indices = @transform_1, window_bounds = array<i64: 56, 32>}, {transform_indices = @transform_2, window_bounds = array<i64: 56, 32>}, {pipeline_mode = #tpu.pipeline_mode<synchronous>, transform_indices = @transform_3, window_bounds = array<i64: 96, 32>}, {pipeline_mode = #tpu.pipeline_mode<synchronous>, transform_indices = @transform_4, window_bounds = array<i64: 1, 32>}, {pipeline_mode = #tpu.pipeline_mode<synchronous>, transform_indices = @transform_5, window_bounds = array<i64: 32, 32>}, {pipeline_mode = #tpu.pipeline_mode<synchronous>, transform_indices = @transform_6, window_bounds = array<i64: 1, 32>}, {pipeline_mode = #tpu.pipeline_mode<synchronous>, transform_indices = @transform_7, window_bounds = array<i64: 32, 32>}, {pipeline_mode = #tpu.pipeline_mode<synchronous>, transform_indices = @transform_8, window_bounds = array<i64: 1, 32>}, {pipeline_mode = #tpu.pipeline_mode<synchronous>, transform_indices = @transform_9, window_bounds = array<i64: 1, 32>}, {pipeline_mode = #tpu.pipeline_mode<synchronous>, transform_indices = @transform_10, window_bounds = array<i64: 1, 32>}, {transform_indices = @transform_11, window_bounds = array<i64: 56, 32>}]} {
    %c0 = arith.constant 0 : index
    %c0_0 = arith.constant 0 : index
    %0 = vector.load %arg2[%c0, %c0_0] : memref<56x32xf32, #tpu.memory_space<vmem>>, vector<56x32xf32>
    %c0_1 = arith.constant 0 : index
    %c0_2 = arith.constant 0 : index
    %1 = vector.load %arg1[%c0_1, %c0_2] : memref<56x32xf32, #tpu.memory_space<vmem>>, vector<56x32xf32>
    %c0_3 = arith.constant 0 : index
    %c0_4 = arith.constant 0 : index
    %2 = vector.load %arg3[%c0_3, %c0_4] : memref<56x32xf32, #tpu.memory_space<vmem>>, vector<56x32xf32>
    %3 = tpu.concatenate %1, %0, %2 in 1 : vector<56x32xf32>, vector<56x32xf32>, vector<56x32xf32> -> vector<56x96xf32>
    %4 = arith.truncf %3 : vector<56x96xf32> to vector<56x96xbf16>
    %c0_5 = arith.constant 0 : index
    %c0_6 = arith.constant 0 : index
    %5 = vector.load %arg4[%c0_5, %c0_6] : memref<96x32xbf16, #tpu.memory_space<vmem>>, vector<96x32xbf16>
    %cst = arith.constant dense<0.000000e+00> : vector<56x32xf32>
    %6 = tpu.matmul %4, %5, %cst {dimension_numbers = #tpu.dot_dimension_numbers<[1], [0], [0], [1], [0, 0, 1, 1], [], []>} : vector<56x96xbf16>, vector<96x32xbf16>, vector<56x32xf32> -> vector<56x32xf32>
    %c0_7 = arith.constant 0 : index
    %c0_8 = arith.constant 0 : index
    %7 = vector.load %arg5[%c0_7, %c0_8] : memref<1x32xf32, #tpu.memory_space<vmem>>, vector<1x32xf32>
    %8 = vector.broadcast %7 : vector<1x32xf32> to vector<56x32xf32>
    %9 = arith.addf %6, %8 : vector<56x32xf32>
    %cst_9 = arith.constant 0.000000e+00 : f32
    %10 = vector.broadcast %cst_9 : f32 to vector<56x32xf32>
    %11 = arith.maximumf %9, %10 : vector<56x32xf32>
    %12 = arith.truncf %11 : vector<56x32xf32> to vector<56x32xbf16>
    %c0_10 = arith.constant 0 : index
    %c0_11 = arith.constant 0 : index
    %13 = vector.load %arg6[%c0_10, %c0_11] : memref<32x32xbf16, #tpu.memory_space<vmem>>, vector<32x32xbf16>
    %cst_12 = arith.constant dense<0.000000e+00> : vector<56x32xf32>
    %14 = tpu.matmul %12, %13, %cst_12 {dimension_numbers = #tpu.dot_dimension_numbers<[1], [0], [0], [1], [0, 0, 1, 1], [], []>} : vector<56x32xbf16>, vector<32x32xbf16>, vector<56x32xf32> -> vector<56x32xf32>
    %c0_13 = arith.constant 0 : index
    %c0_14 = arith.constant 0 : index
    %15 = vector.load %arg7[%c0_13, %c0_14] : memref<1x32xf32, #tpu.memory_space<vmem>>, vector<1x32xf32>
    %16 = vector.broadcast %15 : vector<1x32xf32> to vector<56x32xf32>
    %17 = arith.addf %14, %16 : vector<56x32xf32>
    %cst_15 = arith.constant 0.000000e+00 : f32
    %18 = vector.broadcast %cst_15 : f32 to vector<56x32xf32>
    %19 = arith.maximumf %17, %18 : vector<56x32xf32>
    %20 = arith.truncf %19 : vector<56x32xf32> to vector<56x32xbf16>
    %c0_16 = arith.constant 0 : index
    %c0_17 = arith.constant 0 : index
    %21 = vector.load %arg8[%c0_16, %c0_17] : memref<32x32xbf16, #tpu.memory_space<vmem>>, vector<32x32xbf16>
    %cst_18 = arith.constant dense<0.000000e+00> : vector<56x32xf32>
    %22 = tpu.matmul %20, %21, %cst_18 {dimension_numbers = #tpu.dot_dimension_numbers<[1], [0], [0], [1], [0, 0, 1, 1], [], []>} : vector<56x32xbf16>, vector<32x32xbf16>, vector<56x32xf32> -> vector<56x32xf32>
    %c0_19 = arith.constant 0 : index
    %c0_20 = arith.constant 0 : index
    %23 = vector.load %arg9[%c0_19, %c0_20] : memref<1x32xf32, #tpu.memory_space<vmem>>, vector<1x32xf32>
    %24 = vector.broadcast %23 : vector<1x32xf32> to vector<56x32xf32>
    %25 = arith.addf %22, %24 : vector<56x32xf32>
    %26 = arith.addf %0, %25 : vector<56x32xf32>
    %cst_21 = arith.constant dense<0.000000e+00> : vector<56xf32>
    %27 = vector.multi_reduction <add>, %26, %cst_21 [1] : vector<56x32xf32> to vector<56xf32>
    %28 = vector.shape_cast %27 : vector<56xf32> to vector<56x1xf32>
    %cst_22 = arith.constant 3.200000e+01 : f32
    %29 = vector.broadcast %cst_22 : f32 to vector<56x1xf32>
    %30 = arith.divf %28, %29 : vector<56x1xf32>
    %31 = vector.broadcast %30 : vector<56x1xf32> to vector<56x32xf32>
    %32 = arith.subf %26, %31 : vector<56x32xf32>
    %33 = arith.mulf %32, %32 : vector<56x32xf32>
    %cst_23 = arith.constant dense<0.000000e+00> : vector<56xf32>
    %34 = vector.multi_reduction <add>, %33, %cst_23 [1] : vector<56x32xf32> to vector<56xf32>
    %35 = vector.shape_cast %34 : vector<56xf32> to vector<56x1xf32>
    %cst_24 = arith.constant 3.200000e+01 : f32
    %36 = vector.broadcast %cst_24 : f32 to vector<56x1xf32>
    %37 = arith.divf %35, %36 : vector<56x1xf32>
    %38 = vector.broadcast %30 : vector<56x1xf32> to vector<56x32xf32>
    %39 = arith.subf %26, %38 : vector<56x32xf32>
    %cst_25 = arith.constant 9.99999974E-6 : f32
    %40 = vector.broadcast %cst_25 : f32 to vector<56x1xf32>
    %41 = arith.addf %37, %40 : vector<56x1xf32>
    %42 = math.sqrt %41 : vector<56x1xf32>
    %43 = vector.broadcast %42 : vector<56x1xf32> to vector<56x32xf32>
    %44 = arith.divf %39, %43 : vector<56x32xf32>
    %c0_26 = arith.constant 0 : index
    %c0_27 = arith.constant 0 : index
    %45 = vector.load %arg10[%c0_26, %c0_27] : memref<1x32xf32, #tpu.memory_space<vmem>>, vector<1x32xf32>
    %46 = vector.broadcast %45 : vector<1x32xf32> to vector<56x32xf32>
    %47 = arith.mulf %44, %46 : vector<56x32xf32>
    %c0_28 = arith.constant 0 : index
    %c0_29 = arith.constant 0 : index
    %48 = vector.load %arg11[%c0_28, %c0_29] : memref<1x32xf32, #tpu.memory_space<vmem>>, vector<1x32xf32>
    %49 = vector.broadcast %48 : vector<1x32xf32> to vector<56x32xf32>
    %50 = arith.addf %47, %49 : vector<56x32xf32>
    %c0_30 = arith.constant 0 : index
    %c0_31 = arith.constant 0 : index
    %51 = vector.load %arg12[%c0_30, %c0_31] : memref<56x32xf32, #tpu.memory_space<vmem>>, vector<56x32xf32>
    tpu.vector_store %arg12[%c0_30, %c0_31], %50 {strides = array<i32>} : memref<56x32xf32, #tpu.memory_space<vmem>>, vector<56x32xf32>,
    return
  }
  func.func @transform_0(%arg0: i32) -> (i32, i32) {
    %c0_i32 = arith.constant 0 : i32
    %c0_i32_0 = arith.constant 0 : i32
    return %arg0, %c0_i32 : i32, i32
  }
  func.func @transform_1(%arg0: i32) -> (i32, i32) {
    %c0_i32 = arith.constant 0 : i32
    %c0_i32_0 = arith.constant 0 : i32
    return %arg0, %c0_i32 : i32, i32
  }
  func.func @transform_2(%arg0: i32) -> (i32, i32) {
    %c0_i32 = arith.constant 0 : i32
    %c0_i32_0 = arith.constant 0 : i32
    return %arg0, %c0_i32 : i32, i32
  }
  func.func @transform_3(%arg0: i32) -> (i32, i32) {
    %c0_i32 = arith.constant 0 : i32
    %c0_i32_0 = arith.constant 0 : i32
    %c0_i32_1 = arith.constant 0 : i32
    return %c0_i32, %c0_i32_0 : i32, i32
  }
  func.func @transform_4(%arg0: i32) -> (i32, i32) {
    %c0_i32 = arith.constant 0 : i32
    %c0_i32_0 = arith.constant 0 : i32
    %c0_i32_1 = arith.constant 0 : i32
    return %c0_i32, %c0_i32_0 : i32, i32
  }
  func.func @transform_5(%arg0: i32) -> (i32, i32) {
    %c0_i32 = arith.constant 0 : i32
    %c0_i32_0 = arith.constant 0 : i32
    %c0_i32_1 = arith.constant 0 : i32
    return %c0_i32, %c0_i32_0 : i32, i32
  }
  func.func @transform_6(%arg0: i32) -> (i32, i32) {
    %c0_i32 = arith.constant 0 : i32
    %c0_i32_0 = arith.constant 0 : i32
    %c0_i32_1 = arith.constant 0 : i32
    return %c0_i32, %c0_i32_0 : i32, i32
  }
  func.func @transform_7(%arg0: i32) -> (i32, i32) {
    %c0_i32 = arith.constant 0 : i32
    %c0_i32_0 = arith.constant 0 : i32
    %c0_i32_1 = arith.constant 0 : i32
    return %c0_i32, %c0_i32_0 : i32, i32
  }
  func.func @transform_8(%arg0: i32) -> (i32, i32) {
    %c0_i32 = arith.constant 0 : i32
    %c0_i32_0 = arith.constant 0 : i32
    %c0_i32_1 = arith.constant 0 : i32
    return %c0_i32, %c0_i32_0 : i32, i32
  }
  func.func @transform_9(%arg0: i32) -> (i32, i32) {
    %c0_i32 = arith.constant 0 : i32
    %c0_i32_0 = arith.constant 0 : i32
    %c0_i32_1 = arith.constant 0 : i32
    return %c0_i32, %c0_i32_0 : i32, i32
  }
  func.func @transform_10(%arg0: i32) -> (i32, i32) {
    %c0_i32 = arith.constant 0 : i32
    %c0_i32_0 = arith.constant 0 : i32
    %c0_i32_1 = arith.constant 0 : i32
    return %c0_i32, %c0_i32_0 : i32, i32
  }
  func.func @transform_11(%arg0: i32) -> (i32, i32) {
    %c0_i32 = arith.constant 0 : i32
    %c0_i32_0 = arith.constant 0 : i32
    return %arg0, %c0_i32 : i32, i32
  }
}

module attributes {stable_mosaic.version = 11 : i64} {
  func.func @_tail_kernel(%arg0: i32, %arg1: memref<16x32xf32, #tpu.memory_space<vmem>>, %arg2: memref<16x32xf32, #tpu.memory_space<vmem>>, %arg3: memref<16x1xf32, #tpu.memory_space<vmem>>, %arg4: memref<32x33xbf16, #tpu.memory_space<vmem>>, %arg5: memref<1x33xf32, #tpu.memory_space<vmem>>, %arg6: memref<1x512xbf16, #tpu.memory_space<vmem>>, %arg7: memref<1x512xf32, #tpu.memory_space<vmem>>, %arg8: memref<512x32xbf16, #tpu.memory_space<vmem>>, %arg9: memref<1x32xf32, #tpu.memory_space<vmem>>, %arg10: memref<32x1xbf16, #tpu.memory_space<vmem>>, %arg11: memref<1x1xf32, #tpu.memory_space<vmem>>, %arg12: memref<1x512xbf16, #tpu.memory_space<vmem>>, %arg13: memref<1x512xf32, #tpu.memory_space<vmem>>, %arg14: memref<512x32xbf16, #tpu.memory_space<vmem>>, %arg15: memref<1x32xf32, #tpu.memory_space<vmem>>, %arg16: memref<32x1xbf16, #tpu.memory_space<vmem>>, %arg17: memref<1x1xf32, #tpu.memory_space<vmem>>, %arg18: memref<16x128xf32, #tpu.memory_space<vmem>>) attributes {dimension_semantics = [#tpu.dimension_semantics<parallel>], iteration_bounds = array<i64: 1>, scalar_prefetch = 0 : i64, scratch_operands = 0 : i64, tpu.core_type = #tpu.core_type<tc>, window_params = [{transform_indices = @transform_0, window_bounds = array<i64: 16, 32>}, {transform_indices = @transform_1, window_bounds = array<i64: 16, 32>}, {transform_indices = @transform_2, window_bounds = array<i64: 16, 1>}, {pipeline_mode = #tpu.pipeline_mode<synchronous>, transform_indices = @transform_3, window_bounds = array<i64: 32, 33>}, {pipeline_mode = #tpu.pipeline_mode<synchronous>, transform_indices = @transform_4, window_bounds = array<i64: 1, 33>}, {pipeline_mode = #tpu.pipeline_mode<synchronous>, transform_indices = @transform_5, window_bounds = array<i64: 1, 512>}, {pipeline_mode = #tpu.pipeline_mode<synchronous>, transform_indices = @transform_6, window_bounds = array<i64: 1, 512>}, {pipeline_mode = #tpu.pipeline_mode<synchronous>, transform_indices = @transform_7, window_bounds = array<i64: 512, 32>}, {pipeline_mode = #tpu.pipeline_mode<synchronous>, transform_indices = @transform_8, window_bounds = array<i64: 1, 32>}, {pipeline_mode = #tpu.pipeline_mode<synchronous>, transform_indices = @transform_9, window_bounds = array<i64: 32, 1>}, {pipeline_mode = #tpu.pipeline_mode<synchronous>, transform_indices = @transform_10, window_bounds = array<i64: 1, 1>}, {pipeline_mode = #tpu.pipeline_mode<synchronous>, transform_indices = @transform_11, window_bounds = array<i64: 1, 512>}, {pipeline_mode = #tpu.pipeline_mode<synchronous>, transform_indices = @transform_12, window_bounds = array<i64: 1, 512>}, {pipeline_mode = #tpu.pipeline_mode<synchronous>, transform_indices = @transform_13, window_bounds = array<i64: 512, 32>}, {pipeline_mode = #tpu.pipeline_mode<synchronous>, transform_indices = @transform_14, window_bounds = array<i64: 1, 32>}, {pipeline_mode = #tpu.pipeline_mode<synchronous>, transform_indices = @transform_15, window_bounds = array<i64: 32, 1>}, {pipeline_mode = #tpu.pipeline_mode<synchronous>, transform_indices = @transform_16, window_bounds = array<i64: 1, 1>}, {transform_indices = @transform_17, window_bounds = array<i64: 16, 128>}]} {
    %c0 = arith.constant 0 : index
    %c0_0 = arith.constant 0 : index
    %0 = vector.load %arg1[%c0, %c0_0] : memref<16x32xf32, #tpu.memory_space<vmem>>, vector<16x32xf32>
    %c0_1 = arith.constant 0 : index
    %c0_2 = arith.constant 0 : index
    %1 = vector.load %arg2[%c0_1, %c0_2] : memref<16x32xf32, #tpu.memory_space<vmem>>, vector<16x32xf32>
    %c0_3 = arith.constant 0 : index
    %c0_4 = arith.constant 0 : index
    %2 = vector.load %arg3[%c0_3, %c0_4] : memref<16x1xf32, #tpu.memory_space<vmem>>, vector<16x1xf32>
    %3 = arith.truncf %0 : vector<16x32xf32> to vector<16x32xbf16>
    %c0_5 = arith.constant 0 : index
    %c0_6 = arith.constant 0 : index
    %4 = vector.load %arg4[%c0_5, %c0_6] : memref<32x33xbf16, #tpu.memory_space<vmem>>, vector<32x33xbf16>
    %cst = arith.constant dense<0.000000e+00> : vector<16x33xf32>
    %5 = tpu.matmul %3, %4, %cst {dimension_numbers = #tpu.dot_dimension_numbers<[1], [0], [0], [1], [0, 0, 1, 1], [], []>} : vector<16x32xbf16>, vector<32x33xbf16>, vector<16x33xf32> -> vector<16x33xf32>
    %c0_7 = arith.constant 0 : index
    %c0_8 = arith.constant 0 : index
    %6 = vector.load %arg5[%c0_7, %c0_8] : memref<1x33xf32, #tpu.memory_space<vmem>>, vector<1x33xf32>
    %7 = vector.broadcast %6 : vector<1x33xf32> to vector<16x33xf32>
    %8 = arith.addf %5, %7 : vector<16x33xf32>
    %cst_9 = arith.constant dense<0xFF800000> : vector<16xf32>
    %9 = vector.multi_reduction <maximumf>, %8, %cst_9 [1] : vector<16x33xf32> to vector<16xf32>
    %10 = vector.shape_cast %9 : vector<16xf32> to vector<16x1xf32>
    %11 = vector.broadcast %10 : vector<16x1xf32> to vector<16x33xf32>
    %12 = arith.subf %8, %11 : vector<16x33xf32>
    %13 = math.exp %12 : vector<16x33xf32>
    %cst_10 = arith.constant dense<0.000000e+00> : vector<16xf32>
    %14 = vector.multi_reduction <add>, %13, %cst_10 [1] : vector<16x33xf32> to vector<16xf32>
    %15 = vector.shape_cast %14 : vector<16xf32> to vector<16x1xf32>
    %16 = vector.broadcast %15 : vector<16x1xf32> to vector<16x33xf32>
    %17 = arith.divf %13, %16 : vector<16x33xf32>
    %cst_11 = arith.constant dense<0xFF800000> : vector<16xf32>
    %18 = vector.multi_reduction <maximumf>, %17, %cst_11 [1] : vector<16x33xf32> to vector<16xf32>
    %19 = vector.shape_cast %18 : vector<16xf32> to vector<16x1xf32>
    %20 = arith.subf %19, %2 : vector<16x1xf32>
    %c0_12 = arith.constant 0 : index
    %c0_13 = arith.constant 0 : index
    %21 = vector.load %arg6[%c0_12, %c0_13] : memref<1x512xbf16, #tpu.memory_space<vmem>>, vector<1x512xbf16>
    %22 = arith.extf %21 : vector<1x512xbf16> to vector<1x512xf32>
    %23 = vector.broadcast %20 : vector<16x1xf32> to vector<16x512xf32>
    %24 = vector.broadcast %22 : vector<1x512xf32> to vector<16x512xf32>
    %25 = arith.mulf %23, %24 : vector<16x512xf32>
    %c0_14 = arith.constant 0 : index
    %c0_15 = arith.constant 0 : index
    %26 = vector.load %arg7[%c0_14, %c0_15] : memref<1x512xf32, #tpu.memory_space<vmem>>, vector<1x512xf32>
    %27 = vector.broadcast %26 : vector<1x512xf32> to vector<16x512xf32>
    %28 = arith.addf %25, %27 : vector<16x512xf32>
    %cst_16 = arith.constant 0.000000e+00 : f32
    %29 = vector.broadcast %cst_16 : f32 to vector<16x512xf32>
    %30 = arith.maximumf %28, %29 : vector<16x512xf32>
    %31 = arith.truncf %30 : vector<16x512xf32> to vector<16x512xbf16>
    %c0_17 = arith.constant 0 : index
    %c0_18 = arith.constant 0 : index
    %32 = vector.load %arg8[%c0_17, %c0_18] : memref<512x32xbf16, #tpu.memory_space<vmem>>, vector<512x32xbf16>
    %cst_19 = arith.constant dense<0.000000e+00> : vector<16x32xf32>
    %33 = tpu.matmul %31, %32, %cst_19 {dimension_numbers = #tpu.dot_dimension_numbers<[1], [0], [0], [1], [0, 0, 1, 1], [], []>} : vector<16x512xbf16>, vector<512x32xbf16>, vector<16x32xf32> -> vector<16x32xf32>
    %c0_20 = arith.constant 0 : index
    %c0_21 = arith.constant 0 : index
    %34 = vector.load %arg9[%c0_20, %c0_21] : memref<1x32xf32, #tpu.memory_space<vmem>>, vector<1x32xf32>
    %35 = vector.broadcast %34 : vector<1x32xf32> to vector<16x32xf32>
    %36 = arith.addf %33, %35 : vector<16x32xf32>
    %cst_22 = arith.constant 0.000000e+00 : f32
    %37 = vector.broadcast %cst_22 : f32 to vector<16x32xf32>
    %38 = arith.maximumf %36, %37 : vector<16x32xf32>
    %39 = arith.truncf %38 : vector<16x32xf32> to vector<16x32xbf16>
    %c0_23 = arith.constant 0 : index
    %c0_24 = arith.constant 0 : index
    %40 = vector.load %arg10[%c0_23, %c0_24] : memref<32x1xbf16, #tpu.memory_space<vmem>>, vector<32x1xbf16>
    %cst_25 = arith.constant dense<0.000000e+00> : vector<16x1xf32>
    %41 = tpu.matmul %39, %40, %cst_25 {dimension_numbers = #tpu.dot_dimension_numbers<[1], [0], [0], [1], [0, 0, 1, 1], [], []>} : vector<16x32xbf16>, vector<32x1xbf16>, vector<16x1xf32> -> vector<16x1xf32>
    %c0_26 = arith.constant 0 : index
    %c0_27 = arith.constant 0 : index
    %42 = vector.load %arg11[%c0_26, %c0_27] : memref<1x1xf32, #tpu.memory_space<vmem>>, vector<1x1xf32>
    %43 = vector.broadcast %42 : vector<1x1xf32> to vector<16x1xf32>
    %44 = arith.addf %41, %43 : vector<16x1xf32>
    %cst_28 = arith.constant 0.000000e+00 : f32
    %45 = vector.broadcast %cst_28 : f32 to vector<16x1xf32>
    %46 = arith.subf %45, %44 : vector<16x1xf32>
    %47 = math.exp %46 : vector<16x1xf32>
    %cst_29 = arith.constant 1.000000e+00 : f32
    %48 = vector.broadcast %cst_29 : f32 to vector<16x1xf32>
    %49 = arith.addf %48, %47 : vector<16x1xf32>
    %cst_30 = arith.constant 1.000000e+00 : f32
    %50 = vector.broadcast %cst_30 : f32 to vector<16x1xf32>
    %51 = arith.divf %50, %49 : vector<16x1xf32>
    %52 = arith.subf %2, %19 : vector<16x1xf32>
    %c0_31 = arith.constant 0 : index
    %c0_32 = arith.constant 0 : index
    %53 = vector.load %arg12[%c0_31, %c0_32] : memref<1x512xbf16, #tpu.memory_space<vmem>>, vector<1x512xbf16>
    %54 = arith.extf %53 : vector<1x512xbf16> to vector<1x512xf32>
    %55 = vector.broadcast %52 : vector<16x1xf32> to vector<16x512xf32>
    %56 = vector.broadcast %54 : vector<1x512xf32> to vector<16x512xf32>
    %57 = arith.mulf %55, %56 : vector<16x512xf32>
    %c0_33 = arith.constant 0 : index
    %c0_34 = arith.constant 0 : index
    %58 = vector.load %arg13[%c0_33, %c0_34] : memref<1x512xf32, #tpu.memory_space<vmem>>, vector<1x512xf32>
    %59 = vector.broadcast %58 : vector<1x512xf32> to vector<16x512xf32>
    %60 = arith.addf %57, %59 : vector<16x512xf32>
    %cst_35 = arith.constant 0.000000e+00 : f32
    %61 = vector.broadcast %cst_35 : f32 to vector<16x512xf32>
    %62 = arith.maximumf %60, %61 : vector<16x512xf32>
    %63 = arith.truncf %62 : vector<16x512xf32> to vector<16x512xbf16>
    %c0_36 = arith.constant 0 : index
    %c0_37 = arith.constant 0 : index
    %64 = vector.load %arg14[%c0_36, %c0_37] : memref<512x32xbf16, #tpu.memory_space<vmem>>, vector<512x32xbf16>
    %cst_38 = arith.constant dense<0.000000e+00> : vector<16x32xf32>
    %65 = tpu.matmul %63, %64, %cst_38 {dimension_numbers = #tpu.dot_dimension_numbers<[1], [0], [0], [1], [0, 0, 1, 1], [], []>} : vector<16x512xbf16>, vector<512x32xbf16>, vector<16x32xf32> -> vector<16x32xf32>
    %c0_39 = arith.constant 0 : index
    %c0_40 = arith.constant 0 : index
    %66 = vector.load %arg15[%c0_39, %c0_40] : memref<1x32xf32, #tpu.memory_space<vmem>>, vector<1x32xf32>
    %67 = vector.broadcast %66 : vector<1x32xf32> to vector<16x32xf32>
    %68 = arith.addf %65, %67 : vector<16x32xf32>
    %cst_41 = arith.constant 0.000000e+00 : f32
    %69 = vector.broadcast %cst_41 : f32 to vector<16x32xf32>
    %70 = arith.maximumf %68, %69 : vector<16x32xf32>
    %71 = arith.truncf %70 : vector<16x32xf32> to vector<16x32xbf16>
    %c0_42 = arith.constant 0 : index
    %c0_43 = arith.constant 0 : index
    %72 = vector.load %arg16[%c0_42, %c0_43] : memref<32x1xbf16, #tpu.memory_space<vmem>>, vector<32x1xbf16>
    %cst_44 = arith.constant dense<0.000000e+00> : vector<16x1xf32>
    %73 = tpu.matmul %71, %72, %cst_44 {dimension_numbers = #tpu.dot_dimension_numbers<[1], [0], [0], [1], [0, 0, 1, 1], [], []>} : vector<16x32xbf16>, vector<32x1xbf16>, vector<16x1xf32> -> vector<16x1xf32>
    %c0_45 = arith.constant 0 : index
    %c0_46 = arith.constant 0 : index
    %74 = vector.load %arg17[%c0_45, %c0_46] : memref<1x1xf32, #tpu.memory_space<vmem>>, vector<1x1xf32>
    %75 = vector.broadcast %74 : vector<1x1xf32> to vector<16x1xf32>
    %76 = arith.addf %73, %75 : vector<16x1xf32>
    %cst_47 = arith.constant 0.000000e+00 : f32
    %77 = vector.broadcast %cst_47 : f32 to vector<16x1xf32>
    %78 = arith.subf %77, %76 : vector<16x1xf32>
    %79 = math.exp %78 : vector<16x1xf32>
    %cst_48 = arith.constant 1.000000e+00 : f32
    %80 = vector.broadcast %cst_48 : f32 to vector<16x1xf32>
    %81 = arith.addf %80, %79 : vector<16x1xf32>
    %cst_49 = arith.constant 1.000000e+00 : f32
    %82 = vector.broadcast %cst_49 : f32 to vector<16x1xf32>
    %83 = arith.divf %82, %81 : vector<16x1xf32>
    %84 = vector.broadcast %51 : vector<16x1xf32> to vector<16x32xf32>
    %85 = arith.mulf %0, %84 : vector<16x32xf32>
    %86 = vector.broadcast %83 : vector<16x1xf32> to vector<16x32xf32>
    %87 = arith.mulf %1, %86 : vector<16x32xf32>
    %88 = arith.addf %85, %87 : vector<16x32xf32>
    %89 = arith.truncf %88 : vector<16x32xf32> to vector<16x32xbf16>
    %c0_50 = arith.constant 0 : index
    %c0_51 = arith.constant 0 : index
    %90 = vector.load %arg4[%c0_50, %c0_51] : memref<32x33xbf16, #tpu.memory_space<vmem>>, vector<32x33xbf16>
    %cst_52 = arith.constant dense<0.000000e+00> : vector<16x33xf32>
    %91 = tpu.matmul %89, %90, %cst_52 {dimension_numbers = #tpu.dot_dimension_numbers<[1], [0], [0], [1], [0, 0, 1, 1], [], []>} : vector<16x32xbf16>, vector<32x33xbf16>, vector<16x33xf32> -> vector<16x33xf32>
    %c0_53 = arith.constant 0 : index
    %c0_54 = arith.constant 0 : index
    %92 = vector.load %arg5[%c0_53, %c0_54] : memref<1x33xf32, #tpu.memory_space<vmem>>, vector<1x33xf32>
    %93 = vector.broadcast %92 : vector<1x33xf32> to vector<16x33xf32>
    %94 = arith.addf %91, %93 : vector<16x33xf32>
    %cst_55 = arith.constant dense<0xFF800000> : vector<16xf32>
    %95 = vector.multi_reduction <maximumf>, %94, %cst_55 [1] : vector<16x33xf32> to vector<16xf32>
    %96 = vector.shape_cast %95 : vector<16xf32> to vector<16x1xf32>
    %97 = vector.broadcast %96 : vector<16x1xf32> to vector<16x33xf32>
    %98 = arith.subf %94, %97 : vector<16x33xf32>
    %99 = math.exp %98 : vector<16x33xf32>
    %cst_56 = arith.constant dense<0.000000e+00> : vector<16xf32>
    %100 = vector.multi_reduction <add>, %99, %cst_56 [1] : vector<16x33xf32> to vector<16xf32>
    %101 = vector.shape_cast %100 : vector<16xf32> to vector<16x1xf32>
    %102 = vector.broadcast %101 : vector<16x1xf32> to vector<16x33xf32>
    %103 = arith.divf %99, %102 : vector<16x33xf32>
    %cst_57 = arith.constant dense<0xFF800000> : vector<16xf32>
    %104 = vector.multi_reduction <maximumf>, %103, %cst_57 [1] : vector<16x33xf32> to vector<16xf32>
    %105 = vector.shape_cast %104 : vector<16xf32> to vector<16x1xf32>
    %cst_58 = arith.constant 0.000000e+00 : f32
    %106 = vector.broadcast %cst_58 : f32 to vector<16x29xf32>
    %107 = tpu.concatenate %94, %103, %88, %105, %106 in 1 : vector<16x33xf32>, vector<16x33xf32>, vector<16x32xf32>, vector<16x1xf32>, vector<16x29xf32> -> vector<16x128xf32>
    %c0_59 = arith.constant 0 : index
    %c0_60 = arith.constant 0 : index
    %108 = vector.load %arg18[%c0_59, %c0_60] : memref<16x128xf32, #tpu.memory_space<vmem>>, vector<16x128xf32>
    tpu.vector_store %arg18[%c0_59, %c0_60], %107 {strides = array<i32>} : memref<16x128xf32, #tpu.memory_space<vmem>>, vector<16x128xf32>,
    return
  }
  func.func @transform_0(%arg0: i32) -> (i32, i32) {
    %c0_i32 = arith.constant 0 : i32
    %c0_i32_0 = arith.constant 0 : i32
    return %arg0, %c0_i32 : i32, i32
  }
  func.func @transform_1(%arg0: i32) -> (i32, i32) {
    %c0_i32 = arith.constant 0 : i32
    %c0_i32_0 = arith.constant 0 : i32
    return %arg0, %c0_i32 : i32, i32
  }
  func.func @transform_2(%arg0: i32) -> (i32, i32) {
    %c0_i32 = arith.constant 0 : i32
    %c0_i32_0 = arith.constant 0 : i32
    return %arg0, %c0_i32 : i32, i32
  }
  func.func @transform_3(%arg0: i32) -> (i32, i32) {
    %c0_i32 = arith.constant 0 : i32
    %c0_i32_0 = arith.constant 0 : i32
    %c0_i32_1 = arith.constant 0 : i32
    return %c0_i32, %c0_i32_0 : i32, i32
  }
  func.func @transform_4(%arg0: i32) -> (i32, i32) {
    %c0_i32 = arith.constant 0 : i32
    %c0_i32_0 = arith.constant 0 : i32
    %c0_i32_1 = arith.constant 0 : i32
    return %c0_i32, %c0_i32_0 : i32, i32
  }
  func.func @transform_5(%arg0: i32) -> (i32, i32) {
    %c0_i32 = arith.constant 0 : i32
    %c0_i32_0 = arith.constant 0 : i32
    %c0_i32_1 = arith.constant 0 : i32
    return %c0_i32, %c0_i32_0 : i32, i32
  }
  func.func @transform_6(%arg0: i32) -> (i32, i32) {
    %c0_i32 = arith.constant 0 : i32
    %c0_i32_0 = arith.constant 0 : i32
    %c0_i32_1 = arith.constant 0 : i32
    return %c0_i32, %c0_i32_0 : i32, i32
  }
  func.func @transform_7(%arg0: i32) -> (i32, i32) {
    %c0_i32 = arith.constant 0 : i32
    %c0_i32_0 = arith.constant 0 : i32
    %c0_i32_1 = arith.constant 0 : i32
    return %c0_i32, %c0_i32_0 : i32, i32
  }
  func.func @transform_8(%arg0: i32) -> (i32, i32) {
    %c0_i32 = arith.constant 0 : i32
    %c0_i32_0 = arith.constant 0 : i32
    %c0_i32_1 = arith.constant 0 : i32
    return %c0_i32, %c0_i32_0 : i32, i32
  }
  func.func @transform_9(%arg0: i32) -> (i32, i32) {
    %c0_i32 = arith.constant 0 : i32
    %c0_i32_0 = arith.constant 0 : i32
    %c0_i32_1 = arith.constant 0 : i32
    return %c0_i32, %c0_i32_0 : i32, i32
  }
  func.func @transform_10(%arg0: i32) -> (i32, i32) {
    %c0_i32 = arith.constant 0 : i32
    %c0_i32_0 = arith.constant 0 : i32
    %c0_i32_1 = arith.constant 0 : i32
    return %c0_i32, %c0_i32_0 : i32, i32
  }
  func.func @transform_11(%arg0: i32) -> (i32, i32) {
    %c0_i32 = arith.constant 0 : i32
    %c0_i32_0 = arith.constant 0 : i32
    %c0_i32_1 = arith.constant 0 : i32
    return %c0_i32, %c0_i32_0 : i32, i32
  }
  func.func @transform_12(%arg0: i32) -> (i32, i32) {
    %c0_i32 = arith.constant 0 : i32
    %c0_i32_0 = arith.constant 0 : i32
    %c0_i32_1 = arith.constant 0 : i32
    return %c0_i32, %c0_i32_0 : i32, i32
  }
  func.func @transform_13(%arg0: i32) -> (i32, i32) {
    %c0_i32 = arith.constant 0 : i32
    %c0_i32_0 = arith.constant 0 : i32
    %c0_i32_1 = arith.constant 0 : i32
    return %c0_i32, %c0_i32_0 : i32, i32
  }
  func.func @transform_14(%arg0: i32) -> (i32, i32) {
    %c0_i32 = arith.constant 0 : i32
    %c0_i32_0 = arith.constant 0 : i32
    %c0_i32_1 = arith.constant 0 : i32
    return %c0_i32, %c0_i32_0 : i32, i32
  }
  func.func @transform_15(%arg0: i32) -> (i32, i32) {
    %c0_i32 = arith.constant 0 : i32
    %c0_i32_0 = arith.constant 0 : i32
    %c0_i32_1 = arith.constant 0 : i32
    return %c0_i32, %c0_i32_0 : i32, i32
  }
  func.func @transform_16(%arg0: i32) -> (i32, i32) {
    %c0_i32 = arith.constant 0 : i32
    %c0_i32_0 = arith.constant 0 : i32
    %c0_i32_1 = arith.constant 0 : i32
    return %c0_i32, %c0_i32_0 : i32, i32
  }
  func.func @transform_17(%arg0: i32) -> (i32, i32) {
    %c0_i32 = arith.constant 0 : i32
    %c0_i32_0 = arith.constant 0 : i32
    return %arg0, %c0_i32 : i32, i32
  }
}

</mosaic_0001>

<llo_original>
// kernel: _forward_core.8
$region0: #{_forward_core.8}
  #allocation0 [shape = 'u32[]', space=smem, size = 0x4, offset = 0x4, fixed_abs, tag = 'smem constant byte address 0x4 - core index']
  #allocation1 [shape = 'u32[144,128]{1,0:T(1,128)}', space=vmem, size = 0x12000, scoped, tag = 'internal scratch']
  #allocation2 [shape = 'f32[1,1]{1,0:T(1,128)S(1)}', space=vmem, size = 0x200, scoped, tag = 'scoped memory for _forward_core.8']
  %s0 = inlined_call_operand.vmem [shape: f32[16,32], index: 0, kind: input, shape index: {}]
  %s1 = inlined_call_operand.vmem [shape: f32[16,128], index: 1, kind: input, shape index: {}]
  %s2 = inlined_call_operand.vmem [shape: f32[16,128], index: 2, kind: input, shape index: {}]
  %s3 = inlined_call_operand.vmem [shape: bf16[32,1], index: 3, kind: input, shape index: {}]
  %s4 = inlined_call_operand.<no memory space> [shape: f32[1,1], index: 4, kind: input, shape index: {}]
  %s5 = inlined_call_operand.vmem [shape: bf16[64,33], index: 5, kind: input, shape index: {}]
  %s6 = inlined_call_operand.vmem [shape: f32[1,32], index: 6, kind: input, shape index: {}]
  %s7 = inlined_call_operand.vmem [shape: bf16[32,32], index: 7, kind: input, shape index: {}]
  %s8 = inlined_call_operand.vmem [shape: f32[1,32], index: 8, kind: input, shape index: {}]
  %s9 = inlined_call_operand.vmem [shape: bf16[32,32], index: 9, kind: input, shape index: {}]
  %s10 = inlined_call_operand.vmem [shape: f32[1,32], index: 10, kind: input, shape index: {}]
  %s11 = inlined_call_operand.vmem [shape: f32[1,32], index: 11, kind: input, shape index: {}]
  %s12 = inlined_call_operand.vmem [shape: f32[1,32], index: 12, kind: input, shape index: {}]
  %s13 = inlined_call_operand.vmem [shape: bf16[32,128], index: 13, kind: input, shape index: {}]
  %s14 = inlined_call_operand.vmem [shape: f32[1,128], index: 14, kind: input, shape index: {}]
  %s15 = inlined_call_operand.vmem [shape: bf16[128,32], index: 15, kind: input, shape index: {}]
  %s16 = inlined_call_operand.vmem [shape: f32[1,32], index: 16, kind: input, shape index: {}]
  %s17 = inlined_call_operand.vmem [shape: bf16[32,32], index: 17, kind: input, shape index: {}]
  %s18 = inlined_call_operand.vmem [shape: f32[1,32], index: 18, kind: input, shape index: {}]
  %s19 = inlined_call_operand.vmem [shape: f32[1,32], index: 19, kind: input, shape index: {}]
  %s20 = inlined_call_operand.vmem [shape: f32[1,32], index: 20, kind: input, shape index: {}]
  %s21 = inlined_call_operand.vmem [shape: f32[16,32], index: 21, kind: output, shape index: {}]
  %s22 = sld [smem:[#allocation0]]
  $region94: #{_forward_core.8} parent=0
    _
  %s24 = ssub.s32 1, %s22
  %s25 = scalar_select 0, %s24, %s22
  %v26 = vstv %s4
  %27 = vst [vmem:[#allocation2] sm:$0x1] %v26
  // Predicated region
  $region2: #{_forward_core.8} parent=0 // pred_check
    _
  $region3: #{_forward_core.8} parent=0 // pred_check_branch
    %29 = sbr.rel (0) target = $region5
  $region4: #{_forward_core.8} parent=0 // pred_region
    _
  $region5: #{_forward_core.8} parent=0 // pred_fallthru
    _
  // Predicated region
  $region6: #{_forward_core.8} parent=0 // pred_check
    _
  $region7: #{_forward_core.8} parent=0 // pred_check_branch
    %31 = sbr.rel (0) target = $region9
  $region8: #{_forward_core.8} parent=0 // pred_region
    _
  $region9: #{_forward_core.8} parent=0 // pred_fallthru
    _
  // Predicated region
  $region10: #{_forward_core.8} parent=0 // pred_check
    _
  $region11: #{_forward_core.8} parent=0 // pred_check_branch
    %33 = sbr.rel (0) target = $region13
  $region12: #{_forward_core.8} parent=0 // pred_region
    _
  $region13: #{_forward_core.8} parent=0 // pred_fallthru
    _
  // Predicated region
  $region14: #{_forward_core.8} parent=0 // pred_check
    _
  $region15: #{_forward_core.8} parent=0 // pred_check_branch
    %35 = sbr.rel (0) target = $region17
  $region16: #{_forward_core.8} parent=0 // pred_region
    _
  $region17: #{_forward_core.8} parent=0 // pred_fallthru
    _
  // Predicated region
  $region18: #{_forward_core.8} parent=0 // pred_check
    _
  $region19: #{_forward_core.8} parent=0 // pred_check_branch
    %37 = sbr.rel (0) target = $region21
  $region20: #{_forward_core.8} parent=0 // pred_region
    _
  $region21: #{_forward_core.8} parent=0 // pred_fallthru
    _
  // Predicated region
  $region22: #{_forward_core.8} parent=0 // pred_check
    _
  $region23: #{_forward_core.8} parent=0 // pred_check_branch
    %39 = sbr.rel (0) target = $region25
  $region24: #{_forward_core.8} parent=0 // pred_region
    _
  $region25: #{_forward_core.8} parent=0 // pred_fallthru
    _
  // Predicated region
  $region26: #{_forward_core.8} parent=0 // pred_check
    _
  $region27: #{_forward_core.8} parent=0 // pred_check_branch
    %41 = sbr.rel (0) target = $region29
  $region28: #{_forward_core.8} parent=0 // pred_region
    _
  $region29: #{_forward_core.8} parent=0 // pred_fallthru
    _
  // Predicated region
  $region30: #{_forward_core.8} parent=0 // pred_check
    _
  $region31: #{_forward_core.8} parent=0 // pred_check_branch
    %43 = sbr.rel (0) target = $region33
  $region32: #{_forward_core.8} parent=0 // pred_region
    _
  $region33: #{_forward_core.8} parent=0 // pred_fallthru
    _
  // Predicated region
  $region34: #{_forward_core.8} parent=0 // pred_check
    _
  $region35: #{_forward_core.8} parent=0 // pred_check_branch
    %45 = sbr.rel (0) target = $region37
  $region36: #{_forward_core.8} parent=0 // pred_region
    _
  $region37: #{_forward_core.8} parent=0 // pred_fallthru
    _
  // Predicated region
  $region38: #{_forward_core.8} parent=0 // pred_check
    _
  $region39: #{_forward_core.8} parent=0 // pred_check_branch
    %47 = sbr.rel (0) target = $region41
  $region40: #{_forward_core.8} parent=0 // pred_region
    _
  $region41: #{_forward_core.8} parent=0 // pred_fallthru
    _
  // Predicated region
  $region42: #{_forward_core.8} parent=0 // pred_check
    _
  $region43: #{_forward_core.8} parent=0 // pred_check_branch
    %49 = sbr.rel (0) target = $region45
  $region44: #{_forward_core.8} parent=0 // pred_region
    _
  $region45: #{_forward_core.8} parent=0 // pred_fallthru
    _
  // Predicated region
  $region46: #{_forward_core.8} parent=0 // pred_check
    _
  $region47: #{_forward_core.8} parent=0 // pred_check_branch
    %51 = sbr.rel (0) target = $region49
  $region48: #{_forward_core.8} parent=0 // pred_region
    _
  $region49: #{_forward_core.8} parent=0 // pred_fallthru
    _
  // Predicated region
  $region50: #{_forward_core.8} parent=0 // pred_check
    _
  $region51: #{_forward_core.8} parent=0 // pred_check_branch
    %53 = sbr.rel (0) target = $region53
  $region52: #{_forward_core.8} parent=0 // pred_region
    _
  $region53: #{_forward_core.8} parent=0 // pred_fallthru
    _
  // Predicated region
  $region54: #{_forward_core.8} parent=0 // pred_check
    _
  $region55: #{_forward_core.8} parent=0 // pred_check_branch
    %55 = sbr.rel (0) target = $region57
  $region56: #{_forward_core.8} parent=0 // pred_region
    _
  $region57: #{_forward_core.8} parent=0 // pred_fallthru
    _
  // Predicated region
  $region58: #{_forward_core.8} parent=0 // pred_check
    _
  $region59: #{_forward_core.8} parent=0 // pred_check_branch
    %57 = sbr.rel (0) target = $region61
  $region60: #{_forward_core.8} parent=0 // pred_region
    _
  $region61: #{_forward_core.8} parent=0 // pred_fallthru
    _
  // Predicated region
  $region62: #{_forward_core.8} parent=0 // pred_check
    _
  $region63: #{_forward_core.8} parent=0 // pred_check_branch
    %59 = sbr.rel (0) target = $region65
  $region64: #{_forward_core.8} parent=0 // pred_region
    _
  $region65: #{_forward_core.8} parent=0 // pred_fallthru
    _
  // Predicated region
  $region66: #{_forward_core.8} parent=0 // pred_check
    _
  $region67: #{_forward_core.8} parent=0 // pred_check_branch
    %61 = sbr.rel (0) target = $region69
  $region68: #{_forward_core.8} parent=0 // pred_region
    _
  $region69: #{_forward_core.8} parent=0 // pred_fallthru
    _
  // Predicated region
  $region70: #{_forward_core.8} parent=0 // pred_check
    _
  $region71: #{_forward_core.8} parent=0 // pred_check_branch
    %63 = sbr.rel (0) target = $region73
  $region72: #{_forward_core.8} parent=0 // pred_region
    _
  $region73: #{_forward_core.8} parent=0 // pred_fallthru
    _
  // Predicated region
  $region74: #{_forward_core.8} parent=0 // pred_check
    _
  $region75: #{_forward_core.8} parent=0 // pred_check_branch
    %65 = sbr.rel (0) target = $region77
  $region76: #{_forward_core.8} parent=0 // pred_region
    _
  $region77: #{_forward_core.8} parent=0 // pred_fallthru
    _
  // Predicated region
  $region78: #{_forward_core.8} parent=0 // pred_check
    _
  $region79: #{_forward_core.8} parent=0 // pred_check_branch
    %67 = sbr.rel (0) target = $region81
  $region80: #{_forward_core.8} parent=0 // pred_region
    _
  $region81: #{_forward_core.8} parent=0 // pred_fallthru
    _
  // Predicated region
  $region82: #{_forward_core.8} parent=0 // pred_check
    _
  $region83: #{_forward_core.8} parent=0 // pred_check_branch
    %69 = sbr.rel (0) target = $region85
  $region84: #{_forward_core.8} parent=0 // pred_region
    _
  $region85: #{_forward_core.8} parent=0 // pred_fallthru
    _
  %v71 = vld [vmem:[%s0] sm:$0xff]
  %v72 = vld [vmem:[%s0 + $0x8] sm:$0xff]
  %v73 = vld [vmem:[%s1] sm:$0xff]
  %v74 = vld [vmem:[%s1 + $0x8] sm:$0xff]
  %v75 = vpack.c.bf16 %v74, %v73
  %v76 = vld [vmem:[%s2] sm:$0xff]
  %v77 = vld [vmem:[%s2 + $0x8] sm:$0xff]
  %v78 = vpack.c.bf16 %v77, %v76
  %v79 = vpack.c.bf16 %v72, %v71
  %v80 = vld [vmem:[%s3] sm:$0xf]
  %v81 = vld [vmem:[%s3 + $0x4] sm:$0xf]
  %v82 = vld [vmem:[%s3 + $0x8] sm:$0xf]
  %v83 = vld [vmem:[%s3 + $0xc] sm:$0xf]
  %v84 = vld [vmem:[#allocation2] sm:$0x1]
  %v86 = vlaneseq
  %v87 = vshrl.u32 %v86, 7
  %v88 = vsub.s32 0, %v87
  %v89 = vrot.slane %v84, %v88
  %v95 = vunpack.c.l.b16 %v80
  %v96 = vunpack.c.l.b16 %v81
  %v97 = vunpack.c.l.b16 %v82
  %v98 = vunpack.c.l.b16 %v83
  %v99 = vpack.c.b16 %v96, %v95
  %v100 = vpack.c.b16 %v98, %v97
  %vm103 = vcmask 261120
  %v105 = vsel %vm103, %v79, 0
  %107 = vmatprep.subr.bf16.mxu0 0
  %108 = vmatpush1.bf16.msra.mxu0 %v99
  %109 = vmatprep.subr.bf16.mxu0 0
  %110 = vmatpush1.bf16.msra.mxu0 %v100
  %111 = vmatprep.subr.bf16.mxu0 0
  %112 = vmatpush1.bf16.msra.mxu0 0
  %113 = vmatprep.subr.bf16.mxu0 0
  %114 = vmatpush1.bf16.msra.mxu0 0
  %115 = vmatprep.subr.bf16.mxu0 0
  %116 = vmatpush1.bf16.msra.mxu0 0
  %117 = vmatprep.subr.bf16.mxu0 0
  %118 = vmatpush1.bf16.msra.mxu0 0
  %119 = vmatprep.subr.bf16.mxu0 0
  %120 = vmatpush1.bf16.msra.mxu0 0
  %121 = vmatprep.subr.bf16.mxu0 0
  %122 = vmatpush1.bf16.msra.mxu0 0
  %123 = vmatprep.subr.bf16.mxu0 0
  %124 = vmatpush1.bf16.msra.mxu0 0
  %125 = vmatprep.subr.bf16.mxu0 0
  %126 = vmatpush1.bf16.msra.mxu0 0
  %127 = vmatprep.subr.bf16.mxu0 0
  %128 = vmatpush1.bf16.msra.mxu0 0
  %129 = vmatprep.subr.bf16.mxu0 0
  %130 = vmatpush1.bf16.msra.mxu0 0
  %131 = vmatprep.subr.bf16.mxu0 0
  %132 = vmatpush1.bf16.msra.mxu0 0
  %133 = vmatprep.subr.bf16.mxu0 0
  %134 = vmatpush1.bf16.msra.mxu0 0
  %135 = vmatprep.subr.bf16.mxu0 0
  %136 = vmatpush1.bf16.msra.mxu0 0
  %137 = vmatprep.subr.bf16.mxu0 0
  %138 = vmatpush1.bf16.msra.mxu0 0
  %139 = vmatprep.mubr.bf16.mxu0 0
  %140 = vmatmul.mubr.bf16.gmra.mrb[0].mxu0 %v105
  %v141 = vpop.f32.mrb[0].mxu0
  %v142 = vadd.f32 %v89, %v141
  %v143 = vpop.f32.mrb[0].mxu0
  %v144 = vpop.f32.mrb[0].mxu0
  %v145 = vadd.f32 %v89, %v144
  %v146 = vpop.f32.mrb[0].mxu0
  %147 = vdwg.mxu0
  %v148 = vld [vmem:[%s5] sm:$0xf]
  %v149 = vld [vmem:[%s5 + $0x4] sm:$0xf]
  %v150 = vld [vmem:[%s5 + $0x8] sm:$0xf]
  %v151 = vld [vmem:[%s5 + $0xc] sm:$0xf]
  %v152 = vld [vmem:[%s5 + $0x10] sm:$0xf]
  %v153 = vld [vmem:[%s5 + $0x14] sm:$0xf]
  %v154 = vld [vmem:[%s5 + $0x18] sm:$0xf]
  %v155 = vld [vmem:[%s5 + $0x1c] sm:$0xf]
  %v156 = vld [vmem:[%s7] sm:$0xf]
  %v157 = vld [vmem:[%s7 + $0x4] sm:$0xf]
  %v158 = vld [vmem:[%s7 + $0x8] sm:$0xf]
  %v159 = vld [vmem:[%s7 + $0xc] sm:$0xf]
  %v160 = vld [vmem:[%s9] sm:$0xf]
  %v161 = vld [vmem:[%s9 + $0x4] sm:$0xf]
  %v162 = vld [vmem:[%s9 + $0x8] sm:$0xf]
  %v163 = vld [vmem:[%s9 + $0xc] sm:$0xf]
  %v164 = vld [vmem:[%s6] sm:$0x1]
  %v166 = vlaneseq
  %v167 = vshrl.u32 %v166, 7
  %v168 = vsub.s32 0, %v167
  %v169 = vrot.slane %v164, %v168
  %v171 = vld [vmem:[%s8] sm:$0x1]
  %v173 = vlaneseq
  %v174 = vshrl.u32 %v173, 7
  %v175 = vsub.s32 0, %v174
  %v176 = vrot.slane %v171, %v175
  %v178 = vld [vmem:[%s10] sm:$0x1]
  %v180 = vlaneseq
  %v181 = vshrl.u32 %v180, 7
  %v182 = vsub.s32 0, %v181
  %v183 = vrot.slane %v178, %v182
  %186 = vrot.lane.b32.xlu0 %v75, 32
  %v187 = vpop.permute.xlu0 %186
  %v190 = vsel %vm103, %v78, %v187
  %v199 = vunpack.c.l.b16 %v148
  %v200 = vunpack.c.l.b16 %v149
  %v201 = vunpack.c.l.b16 %v150
  %v202 = vunpack.c.l.b16 %v151
  %v203 = vunpack.c.l.b16 %v152
  %v204 = vunpack.c.l.b16 %v153
  %v205 = vunpack.c.l.b16 %v154
  %v206 = vunpack.c.l.b16 %v155
  %v207 = vpack.c.b16 %v200, %v199
  %v208 = vpack.c.b16 %v202, %v201
  %v209 = vpack.c.b16 %v204, %v203
  %v210 = vpack.c.b16 %v206, %v205
  %vm215 = vcmask 523264
  %v216 = vsel %vm215, %v190, 0
  %218 = vmatprep.subr.bf16.mxu0 0
  %219 = vmatpush1.bf16.msra.mxu0 %v207
  %220 = vmatprep.subr.bf16.mxu0 0
  %221 = vmatpush1.bf16.msra.mxu0 %v208
  %222 = vmatprep.subr.bf16.mxu0 0
  %223 = vmatpush1.bf16.msra.mxu0 %v209
  %224 = vmatprep.subr.bf16.mxu0 0
  %225 = vmatpush1.bf16.msra.mxu0 %v210
  %226 = vmatprep.subr.bf16.mxu0 0
  %227 = vmatpush1.bf16.msra.mxu0 0
  %228 = vmatprep.subr.bf16.mxu0 0
  %229 = vmatpush1.bf16.msra.mxu0 0
  %230 = vmatprep.subr.bf16.mxu0 0
  %231 = vmatpush1.bf16.msra.mxu0 0
  %232 = vmatprep.subr.bf16.mxu0 0
  %233 = vmatpush1.bf16.msra.mxu0 0
  %234 = vmatprep.subr.bf16.mxu0 0
  %235 = vmatpush1.bf16.msra.mxu0 0
  %236 = vmatprep.subr.bf16.mxu0 0
  %237 = vmatpush1.bf16.msra.mxu0 0
  %238 = vmatprep.subr.bf16.mxu0 0
  %239 = vmatpush1.bf16.msra.mxu0 0
  %240 = vmatprep.subr.bf16.mxu0 0
  %241 = vmatpush1.bf16.msra.mxu0 0
  %242 = vmatprep.subr.bf16.mxu0 0
  %243 = vmatpush1.bf16.msra.mxu0 0
  %244 = vmatprep.subr.bf16.mxu0 0
  %245 = vmatpush1.bf16.msra.mxu0 0
  %246 = vmatprep.subr.bf16.mxu0 0
  %247 = vmatpush1.bf16.msra.mxu0 0
  %248 = vmatprep.subr.bf16.mxu0 0
  %249 = vmatpush1.bf16.msra.mxu0 0
  %250 = vmatprep.mubr.bf16.mxu0 0
  %251 = vmatmul.mubr.bf16.gmra.mrb[0].mxu0 %v216
  %v252 = vpop.f32.mrb[0].mxu0
  %v253 = vadd.f32 0.0, %v252
  %v254 = vpop.f32.mrb[0].mxu0
  %v255 = vpop.f32.mrb[0].mxu0
  %v256 = vadd.f32 0.0, %v255
  %v257 = vpop.f32.mrb[0].mxu0
  %258 = vdwg.mxu0
  %261 = vrot.lane.b32.xlu0 %v142, 32
  %v262 = vpop.permute.xlu0 %261
  %263 = vrot.lane.b32.xlu0 %v145, 32
  %v264 = vpop.permute.xlu0 %263
  %v267 = vadd.f32 %v253, %v262
  %v268 = vadd.f32 %v256, %v264
  %v269 = vadd.f32 %v253, %v169
  %v270 = vadd.f32 %v256, %v169
  %v271 = vmax.f32 %v269, 0.0
  %v272 = vmax.f32 %v270, 0.0
  %v273 = vpack.c.bf16 %v272, %v271
  %v278 = vunpack.c.l.b16 %v156
  %v279 = vunpack.c.l.b16 %v157
  %v280 = vunpack.c.l.b16 %v158
  %v281 = vunpack.c.l.b16 %v159
  %v282 = vpack.c.b16 %v279, %v278
  %v283 = vpack.c.b16 %v281, %v280
  %v287 = vsel %vm103, %v273, 0
  %289 = vmatprep.subr.bf16.mxu0 0
  %290 = vmatpush1.bf16.msra.mxu0 %v282
  %291 = vmatprep.subr.bf16.mxu0 0
  %292 = vmatpush1.bf16.msra.mxu0 %v283
  %293 = vmatprep.subr.bf16.mxu0 0
  %294 = vmatpush1.bf16.msra.mxu0 0
  %295 = vmatprep.subr.bf16.mxu0 0
  %296 = vmatpush1.bf16.msra.mxu0 0
  %297 = vmatprep.subr.bf16.mxu0 0
  %298 = vmatpush1.bf16.msra.mxu0 0
  %299 = vmatprep.subr.bf16.mxu0 0
  %300 = vmatpush1.bf16.msra.mxu0 0
  %301 = vmatprep.subr.bf16.mxu0 0
  %302 = vmatpush1.bf16.msra.mxu0 0
  %303 = vmatprep.subr.bf16.mxu0 0
  %304 = vmatpush1.bf16.msra.mxu0 0
  %305 = vmatprep.subr.bf16.mxu0 0
  %306 = vmatpush1.bf16.msra.mxu0 0
  %307 = vmatprep.subr.bf16.mxu0 0
  %308 = vmatpush1.bf16.msra.mxu0 0
  %309 = vmatprep.subr.bf16.mxu0 0
  %310 = vmatpush1.bf16.msra.mxu0 0
  %311 = vmatprep.subr.bf16.mxu0 0
  %312 = vmatpush1.bf16.msra.mxu0 0
  %313 = vmatprep.subr.bf16.mxu0 0
  %314 = vmatpush1.bf16.msra.mxu0 0
  %315 = vmatprep.subr.bf16.mxu0 0
  %316 = vmatpush1.bf16.msra.mxu0 0
  %317 = vmatprep.subr.bf16.mxu0 0
  %318 = vmatpush1.bf16.msra.mxu0 0
  %319 = vmatprep.subr.bf16.mxu0 0
  %320 = vmatpush1.bf16.msra.mxu0 0
  %321 = vmatprep.mubr.bf16.mxu0 0
  %322 = vmatmul.mubr.bf16.gmra.mrb[0].mxu0 %v287
  %v323 = vpop.f32.mrb[0].mxu0
  %v324 = vadd.f32 %v176, %v323
  %v325 = vpop.f32.mrb[0].mxu0
  %v326 = vpop.f32.mrb[0].mxu0
  %v327 = vadd.f32 %v176, %v326
  %v328 = vpop.f32.mrb[0].mxu0
  %329 = vdwg.mxu0
  %v330 = vmax.f32 %v324, 0.0
  %v331 = vmax.f32 %v327, 0.0
  %v332 = vpack.c.bf16 %v331, %v330
  %v337 = vunpack.c.l.b16 %v160
  %v338 = vunpack.c.l.b16 %v161
  %v339 = vunpack.c.l.b16 %v162
  %v340 = vunpack.c.l.b16 %v163
  %v341 = vpack.c.b16 %v338, %v337
  %v342 = vpack.c.b16 %v340, %v339
  %v346 = vsel %vm103, %v332, 0
  %348 = vmatprep.subr.bf16.mxu0 0
  %349 = vmatpush1.bf16.msra.mxu0 %v341
  %350 = vmatprep.subr.bf16.mxu0 0
  %351 = vmatpush1.bf16.msra.mxu0 %v342
  %352 = vmatprep.subr.bf16.mxu0 0
  %353 = vmatpush1.bf16.msra.mxu0 0
  %354 = vmatprep.subr.bf16.mxu0 0
  %355 = vmatpush1.bf16.msra.mxu0 0
  %356 = vmatprep.subr.bf16.mxu0 0
  %357 = vmatpush1.bf16.msra.mxu0 0
  %358 = vmatprep.subr.bf16.mxu0 0
  %359 = vmatpush1.bf16.msra.mxu0 0
  %360 = vmatprep.subr.bf16.mxu0 0
  %361 = vmatpush1.bf16.msra.mxu0 0
  %362 = vmatprep.subr.bf16.mxu0 0
  %363 = vmatpush1.bf16.msra.mxu0 0
  %364 = vmatprep.subr.bf16.mxu0 0
  %365 = vmatpush1.bf16.msra.mxu0 0
  %366 = vmatprep.subr.bf16.mxu0 0
  %367 = vmatpush1.bf16.msra.mxu0 0
  %368 = vmatprep.subr.bf16.mxu0 0
  %369 = vmatpush1.bf16.msra.mxu0 0
  %370 = vmatprep.subr.bf16.mxu0 0
  %371 = vmatpush1.bf16.msra.mxu0 0
  %372 = vmatprep.subr.bf16.mxu0 0
  %373 = vmatpush1.bf16.msra.mxu0 0
  %374 = vmatprep.subr.bf16.mxu0 0
  %375 = vmatpush1.bf16.msra.mxu0 0
  %376 = vmatprep.subr.bf16.mxu0 0
  %377 = vmatpush1.bf16.msra.mxu0 0
  %378 = vmatprep.subr.bf16.mxu0 0
  %379 = vmatpush1.bf16.msra.mxu0 0
  %380 = vmatprep.mubr.bf16.mxu0 0
  %381 = vmatmul.mubr.bf16.gmra.mrb[0].mxu0 %v346
  %v382 = vpop.f32.mrb[0].mxu0
  %v383 = vadd.f32 %v183, %v382
  %v384 = vpop.f32.mrb[0].mxu0
  %v385 = vpop.f32.mrb[0].mxu0
  %v386 = vadd.f32 %v183, %v385
  %v387 = vpop.f32.mrb[0].mxu0
  %388 = vdwg.mxu0
  %390 = vrot.lane.b32.xlu0 %v78, 96
  %v391 = vpop.permute.xlu0 %390
  %v394 = vsel %vm103, %v391, %v75
  %v395 = vsel %vm215, %v394, 0
  %397 = vmatprep.subr.bf16.mxu0 0
  %398 = vmatpush1.bf16.msra.mxu0 %v207
  %399 = vmatprep.subr.bf16.mxu0 0
  %400 = vmatpush1.bf16.msra.mxu0 %v208
  %401 = vmatprep.subr.bf16.mxu0 0
  %402 = vmatpush1.bf16.msra.mxu0 %v209
  %403 = vmatprep.subr.bf16.mxu0 0
  %404 = vmatpush1.bf16.msra.mxu0 %v210
  %405 = vmatprep.subr.bf16.mxu0 0
  %406 = vmatpush1.bf16.msra.mxu0 0
  %407 = vmatprep.subr.bf16.mxu0 0
  %408 = vmatpush1.bf16.msra.mxu0 0
  %409 = vmatprep.subr.bf16.mxu0 0
  %410 = vmatpush1.bf16.msra.mxu0 0
  %411 = vmatprep.subr.bf16.mxu0 0
  %412 = vmatpush1.bf16.msra.mxu0 0
  %413 = vmatprep.subr.bf16.mxu0 0
  %414 = vmatpush1.bf16.msra.mxu0 0
  %415 = vmatprep.subr.bf16.mxu0 0
  %416 = vmatpush1.bf16.msra.mxu0 0
  %417 = vmatprep.subr.bf16.mxu0 0
  %418 = vmatpush1.bf16.msra.mxu0 0
  %419 = vmatprep.subr.bf16.mxu0 0
  %420 = vmatpush1.bf16.msra.mxu0 0
  %421 = vmatprep.subr.bf16.mxu0 0
  %422 = vmatpush1.bf16.msra.mxu0 0
  %423 = vmatprep.subr.bf16.mxu0 0
  %424 = vmatpush1.bf16.msra.mxu0 0
  %425 = vmatprep.subr.bf16.mxu0 0
  %426 = vmatpush1.bf16.msra.mxu0 0
  %427 = vmatprep.subr.bf16.mxu0 0
  %428 = vmatpush1.bf16.msra.mxu0 0
  %429 = vmatprep.mubr.bf16.mxu0 0
  %430 = vmatmul.mubr.bf16.gmra.mrb[0].mxu0 %v395
  %v431 = vpop.f32.mrb[0].mxu0
  %v432 = vadd.f32 0.0, %v431
  %v433 = vpop.f32.mrb[0].mxu0
  %v434 = vpop.f32.mrb[0].mxu0
  %v435 = vadd.f32 0.0, %v434
  %v436 = vpop.f32.mrb[0].mxu0
  %437 = vdwg.mxu0
  %v438 = vadd.f32 %v432, %v262
  %v439 = vadd.f32 %v435, %v264
  %v440 = vadd.f32 %v432, %v169
  %v441 = vadd.f32 %v435, %v169
  %v442 = vmax.f32 %v440, 0.0
  %v443 = vmax.f32 %v441, 0.0
  %v444 = vpack.c.bf16 %v443, %v442
  %v446 = vsel %vm103, %v444, 0
  %448 = vmatprep.subr.bf16.mxu0 0
  %449 = vmatpush1.bf16.msra.mxu0 %v282
  %450 = vmatprep.subr.bf16.mxu0 0
  %451 = vmatpush1.bf16.msra.mxu0 %v283
  %452 = vmatprep.subr.bf16.mxu0 0
  %453 = vmatpush1.bf16.msra.mxu0 0
  %454 = vmatprep.subr.bf16.mxu0 0
  %455 = vmatpush1.bf16.msra.mxu0 0
  %456 = vmatprep.subr.bf16.mxu0 0
  %457 = vmatpush1.bf16.msra.mxu0 0
  %458 = vmatprep.subr.bf16.mxu0 0
  %459 = vmatpush1.bf16.msra.mxu0 0
  %460 = vmatprep.subr.bf16.mxu0 0
  %461 = vmatpush1.bf16.msra.mxu0 0
  %462 = vmatprep.subr.bf16.mxu0 0
  %463 = vmatpush1.bf16.msra.mxu0 0
  %464 = vmatprep.subr.bf16.mxu0 0
  %465 = vmatpush1.bf16.msra.mxu0 0
  %466 = vmatprep.subr.bf16.mxu0 0
  %467 = vmatpush1.bf16.msra.mxu0 0
  %468 = vmatprep.subr.bf16.mxu0 0
  %469 = vmatpush1.bf16.msra.mxu0 0
  %470 = vmatprep.subr.bf16.mxu0 0
  %471 = vmatpush1.bf16.msra.mxu0 0
  %472 = vmatprep.subr.bf16.mxu0 0
  %473 = vmatpush1.bf16.msra.mxu0 0
  %474 = vmatprep.subr.bf16.mxu0 0
  %475 = vmatpush1.bf16.msra.mxu0 0
  %476 = vmatprep.subr.bf16.mxu0 0
  %477 = vmatpush1.bf16.msra.mxu0 0
  %478 = vmatprep.subr.bf16.mxu0 0
  %479 = vmatpush1.bf16.msra.mxu0 0
  %480 = vmatprep.mubr.bf16.mxu0 0
  %481 = vmatmul.mubr.bf16.gmra.mrb[0].mxu0 %v446
  %v482 = vpop.f32.mrb[0].mxu0
  %v483 = vadd.f32 %v176, %v482
  %v484 = vpop.f32.mrb[0].mxu0
  %v485 = vpop.f32.mrb[0].mxu0
  %v486 = vadd.f32 %v176, %v485
  %v487 = vpop.f32.mrb[0].mxu0
  %488 = vdwg.mxu0
  %v489 = vmax.f32 %v483, 0.0
  %v490 = vmax.f32 %v486, 0.0
  %v491 = vpack.c.bf16 %v490, %v489
  %v493 = vsel %vm103, %v491, 0
  %495 = vmatprep.subr.bf16.mxu0 0
  %496 = vmatpush1.bf16.msra.mxu0 %v341
  %497 = vmatprep.subr.bf16.mxu0 0
  %498 = vmatpush1.bf16.msra.mxu0 %v342
  %499 = vmatprep.subr.bf16.mxu0 0
  %500 = vmatpush1.bf16.msra.mxu0 0
  %501 = vmatprep.subr.bf16.mxu0 0
  %502 = vmatpush1.bf16.msra.mxu0 0
  %503 = vmatprep.subr.bf16.mxu0 0
  %504 = vmatpush1.bf16.msra.mxu0 0
  %505 = vmatprep.subr.bf16.mxu0 0
  %506 = vmatpush1.bf16.msra.mxu0 0
  %507 = vmatprep.subr.bf16.mxu0 0
  %508 = vmatpush1.bf16.msra.mxu0 0
  %509 = vmatprep.subr.bf16.mxu0 0
  %510 = vmatpush1.bf16.msra.mxu0 0
  %511 = vmatprep.subr.bf16.mxu0 0
  %512 = vmatpush1.bf16.msra.mxu0 0
  %513 = vmatprep.subr.bf16.mxu0 0
  %514 = vmatpush1.bf16.msra.mxu0 0
  %515 = vmatprep.subr.bf16.mxu0 0
  %516 = vmatpush1.bf16.msra.mxu0 0
  %517 = vmatprep.subr.bf16.mxu0 0
  %518 = vmatpush1.bf16.msra.mxu0 0
  %519 = vmatprep.subr.bf16.mxu0 0
  %520 = vmatpush1.bf16.msra.mxu0 0
  %521 = vmatprep.subr.bf16.mxu0 0
  %522 = vmatpush1.bf16.msra.mxu0 0
  %523 = vmatprep.subr.bf16.mxu0 0
  %524 = vmatpush1.bf16.msra.mxu0 0
  %525 = vmatprep.subr.bf16.mxu0 0
  %526 = vmatpush1.bf16.msra.mxu0 0
  %527 = vmatprep.mubr.bf16.mxu0 0
  %528 = vmatmul.mubr.bf16.gmra.mrb[0].mxu0 %v493
  %v529 = vpop.f32.mrb[0].mxu0
  %v530 = vadd.f32 %v183, %v529
  %v531 = vpop.f32.mrb[0].mxu0
  %v532 = vpop.f32.mrb[0].mxu0
  %v533 = vadd.f32 %v183, %v532
  %v534 = vpop.f32.mrb[0].mxu0
  %535 = vdwg.mxu0
  %536 = vrot.lane.b32.xlu0 %v78, 64
  %v537 = vpop.permute.xlu0 %536
  %538 = vrot.lane.b32.xlu0 %v75, 96
  %v539 = vpop.permute.xlu0 %538
  %v542 = vsel %vm103, %v537, %v539
  %v543 = vsel %vm215, %v542, 0
  %545 = vmatprep.subr.bf16.mxu0 0
  %546 = vmatpush1.bf16.msra.mxu0 %v207
  %547 = vmatprep.subr.bf16.mxu0 0
  %548 = vmatpush1.bf16.msra.mxu0 %v208
  %549 = vmatprep.subr.bf16.mxu0 0
  %550 = vmatpush1.bf16.msra.mxu0 %v209
  %551 = vmatprep.subr.bf16.mxu0 0
  %552 = vmatpush1.bf16.msra.mxu0 %v210
  %553 = vmatprep.subr.bf16.mxu0 0
  %554 = vmatpush1.bf16.msra.mxu0 0
  %555 = vmatprep.subr.bf16.mxu0 0
  %556 = vmatpush1.bf16.msra.mxu0 0
  %557 = vmatprep.subr.bf16.mxu0 0
  %558 = vmatpush1.bf16.msra.mxu0 0
  %559 = vmatprep.subr.bf16.mxu0 0
  %560 = vmatpush1.bf16.msra.mxu0 0
  %561 = vmatprep.subr.bf16.mxu0 0
  %562 = vmatpush1.bf16.msra.mxu0 0
  %563 = vmatprep.subr.bf16.mxu0 0
  %564 = vmatpush1.bf16.msra.mxu0 0
  %565 = vmatprep.subr.bf16.mxu0 0
  %566 = vmatpush1.bf16.msra.mxu0 0
  %567 = vmatprep.subr.bf16.mxu0 0
  %568 = vmatpush1.bf16.msra.mxu0 0
  %569 = vmatprep.subr.bf16.mxu0 0
  %570 = vmatpush1.bf16.msra.mxu0 0
  %571 = vmatprep.subr.bf16.mxu0 0
  %572 = vmatpush1.bf16.msra.mxu0 0
  %573 = vmatprep.subr.bf16.mxu0 0
  %574 = vmatpush1.bf16.msra.mxu0 0
  %575 = vmatprep.subr.bf16.mxu0 0
  %576 = vmatpush1.bf16.msra.mxu0 0
  %577 = vmatprep.mubr.bf16.mxu0 0
  %578 = vmatmul.mubr.bf16.gmra.mrb[0].mxu0 %v543
  %v579 = vpop.f32.mrb[0].mxu0
  %v580 = vadd.f32 0.0, %v579
  %v581 = vpop.f32.mrb[0].mxu0
  %v582 = vpop.f32.mrb[0].mxu0
  %v583 = vadd.f32 0.0, %v582
  %v584 = vpop.f32.mrb[0].mxu0
  %585 = vdwg.mxu0
  %v586 = vadd.f32 %v580, %v262
  %v587 = vadd.f32 %v583, %v264
  %v588 = vadd.f32 %v580, %v169
  %v589 = vadd.f32 %v583, %v169
  %v590 = vmax.f32 %v588, 0.0
  %v591 = vmax.f32 %v589, 0.0
  %v592 = vpack.c.bf16 %v591, %v590
  %v594 = vsel %vm103, %v592, 0
  %596 = vmatprep.subr.bf16.mxu0 0
  %597 = vmatpush1.bf16.msra.mxu0 %v282
  %598 = vmatprep.subr.bf16.mxu0 0
  %599 = vmatpush1.bf16.msra.mxu0 %v283
  %600 = vmatprep.subr.bf16.mxu0 0
  %601 = vmatpush1.bf16.msra.mxu0 0
  %602 = vmatprep.subr.bf16.mxu0 0
  %603 = vmatpush1.bf16.msra.mxu0 0
  %604 = vmatprep.subr.bf16.mxu0 0
  %605 = vmatpush1.bf16.msra.mxu0 0
  %606 = vmatprep.subr.bf16.mxu0 0
  %607 = vmatpush1.bf16.msra.mxu0 0
  %608 = vmatprep.subr.bf16.mxu0 0
  %609 = vmatpush1.bf16.msra.mxu0 0
  %610 = vmatprep.subr.bf16.mxu0 0
  %611 = vmatpush1.bf16.msra.mxu0 0
  %612 = vmatprep.subr.bf16.mxu0 0
  %613 = vmatpush1.bf16.msra.mxu0 0
  %614 = vmatprep.subr.bf16.mxu0 0
  %615 = vmatpush1.bf16.msra.mxu0 0
  %616 = vmatprep.subr.bf16.mxu0 0
  %617 = vmatpush1.bf16.msra.mxu0 0
  %618 = vmatprep.subr.bf16.mxu0 0
  %619 = vmatpush1.bf16.msra.mxu0 0
  %620 = vmatprep.subr.bf16.mxu0 0
  %621 = vmatpush1.bf16.msra.mxu0 0
  %622 = vmatprep.subr.bf16.mxu0 0
  %623 = vmatpush1.bf16.msra.mxu0 0
  %624 = vmatprep.subr.bf16.mxu0 0
  %625 = vmatpush1.bf16.msra.mxu0 0
  %626 = vmatprep.subr.bf16.mxu0 0
  %627 = vmatpush1.bf16.msra.mxu0 0
  %628 = vmatprep.mubr.bf16.mxu0 0
  %629 = vmatmul.mubr.bf16.gmra.mrb[0].mxu0 %v594
  %v630 = vpop.f32.mrb[0].mxu0
  %v631 = vadd.f32 %v176, %v630
  %v632 = vpop.f32.mrb[0].mxu0
  %v633 = vpop.f32.mrb[0].mxu0
  %v634 = vadd.f32 %v176, %v633
  %v635 = vpop.f32.mrb[0].mxu0
  %636 = vdwg.mxu0
  %v637 = vmax.f32 %v631, 0.0
  %v638 = vmax.f32 %v634, 0.0
  %v639 = vpack.c.bf16 %v638, %v637
  %v641 = vsel %vm103, %v639, 0
  %643 = vmatprep.subr.bf16.mxu0 0
  %644 = vmatpush1.bf16.msra.mxu0 %v341
  %645 = vmatprep.subr.bf16.mxu0 0
  %646 = vmatpush1.bf16.msra.mxu0 %v342
  %647 = vmatprep.subr.bf16.mxu0 0
  %648 = vmatpush1.bf16.msra.mxu0 0
  %649 = vmatprep.subr.bf16.mxu0 0
  %650 = vmatpush1.bf16.msra.mxu0 0
  %651 = vmatprep.subr.bf16.mxu0 0
  %652 = vmatpush1.bf16.msra.mxu0 0
  %653 = vmatprep.subr.bf16.mxu0 0
  %654 = vmatpush1.bf16.msra.mxu0 0
  %655 = vmatprep.subr.bf16.mxu0 0
  %656 = vmatpush1.bf16.msra.mxu0 0
  %657 = vmatprep.subr.bf16.mxu0 0
  %658 = vmatpush1.bf16.msra.mxu0 0
  %659 = vmatprep.subr.bf16.mxu0 0
  %660 = vmatpush1.bf16.msra.mxu0 0
  %661 = vmatprep.subr.bf16.mxu0 0
  %662 = vmatpush1.bf16.msra.mxu0 0
  %663 = vmatprep.subr.bf16.mxu0 0
  %664 = vmatpush1.bf16.msra.mxu0 0
  %665 = vmatprep.subr.bf16.mxu0 0
  %666 = vmatpush1.bf16.msra.mxu0 0
  %667 = vmatprep.subr.bf16.mxu0 0
  %668 = vmatpush1.bf16.msra.mxu0 0
  %669 = vmatprep.subr.bf16.mxu0 0
  %670 = vmatpush1.bf16.msra.mxu0 0
  %671 = vmatprep.subr.bf16.mxu0 0
  %672 = vmatpush1.bf16.msra.mxu0 0
  %673 = vmatprep.subr.bf16.mxu0 0
  %674 = vmatpush1.bf16.msra.mxu0 0
  %675 = vmatprep.mubr.bf16.mxu0 0
  %676 = vmatmul.mubr.bf16.gmra.mrb[0].mxu0 %v641
  %v677 = vpop.f32.mrb[0].mxu0
  %v678 = vadd.f32 %v183, %v677
  %v679 = vpop.f32.mrb[0].mxu0
  %v680 = vpop.f32.mrb[0].mxu0
  %v681 = vadd.f32 %v183, %v680
  %v682 = vpop.f32.mrb[0].mxu0
  %683 = vdwg.mxu0
  %684 = vrot.lane.b32.xlu0 %v78, 32
  %v685 = vpop.permute.xlu0 %684
  %686 = vrot.lane.b32.xlu0 %v75, 64
  %v687 = vpop.permute.xlu0 %686
  %v690 = vsel %vm103, %v685, %v687
  %v691 = vsel %vm215, %v690, 0
  %693 = vmatprep.subr.bf16.mxu0 0
  %694 = vmatpush1.bf16.msra.mxu0 %v207
  %695 = vmatprep.subr.bf16.mxu0 0
  %696 = vmatpush1.bf16.msra.mxu0 %v208
  %697 = vmatprep.subr.bf16.mxu0 0
  %698 = vmatpush1.bf16.msra.mxu0 %v209
  %699 = vmatprep.subr.bf16.mxu0 0
  %700 = vmatpush1.bf16.msra.mxu0 %v210
  %701 = vmatprep.subr.bf16.mxu0 0
  %702 = vmatpush1.bf16.msra.mxu0 0
  %703 = vmatprep.subr.bf16.mxu0 0
  %704 = vmatpush1.bf16.msra.mxu0 0
  %705 = vmatprep.subr.bf16.mxu0 0
  %706 = vmatpush1.bf16.msra.mxu0 0
  %707 = vmatprep.subr.bf16.mxu0 0
  %708 = vmatpush1.bf16.msra.mxu0 0
  %709 = vmatprep.subr.bf16.mxu0 0
  %710 = vmatpush1.bf16.msra.mxu0 0
  %711 = vmatprep.subr.bf16.mxu0 0
  %712 = vmatpush1.bf16.msra.mxu0 0
  %713 = vmatprep.subr.bf16.mxu0 0
  %714 = vmatpush1.bf16.msra.mxu0 0
  %715 = vmatprep.subr.bf16.mxu0 0
  %716 = vmatpush1.bf16.msra.mxu0 0
  %717 = vmatprep.subr.bf16.mxu0 0
  %718 = vmatpush1.bf16.msra.mxu0 0
  %719 = vmatprep.subr.bf16.mxu0 0
  %720 = vmatpush1.bf16.msra.mxu0 0
  %721 = vmatprep.subr.bf16.mxu0 0
  %722 = vmatpush1.bf16.msra.mxu0 0
  %723 = vmatprep.subr.bf16.mxu0 0
  %724 = vmatpush1.bf16.msra.mxu0 0
  %725 = vmatprep.mubr.bf16.mxu0 0
  %726 = vmatmul.mubr.bf16.gmra.mrb[0].mxu0 %v691
  %v727 = vpop.f32.mrb[0].mxu0
  %v728 = vadd.f32 0.0, %v727
  %v729 = vpop.f32.mrb[0].mxu0
  %v730 = vpop.f32.mrb[0].mxu0
  %v731 = vadd.f32 0.0, %v730
  %v732 = vpop.f32.mrb[0].mxu0
  %733 = vdwg.mxu0
  %v734 = vadd.f32 %v728, %v262
  %v735 = vadd.f32 %v731, %v264
  %v736 = vadd.f32 %v728, %v169
  %v737 = vadd.f32 %v731, %v169
  %v738 = vmax.f32 %v736, 0.0
  %v739 = vmax.f32 %v737, 0.0
  %v740 = vpack.c.bf16 %v739, %v738
  %v742 = vsel %vm103, %v740, 0
  %744 = vmatprep.subr.bf16.mxu0 0
  %745 = vmatpush1.bf16.msra.mxu0 %v282
  %746 = vmatprep.subr.bf16.mxu0 0
  %747 = vmatpush1.bf16.msra.mxu0 %v283
  %748 = vmatprep.subr.bf16.mxu0 0
  %749 = vmatpush1.bf16.msra.mxu0 0
  %750 = vmatprep.subr.bf16.mxu0 0
  %751 = vmatpush1.bf16.msra.mxu0 0
  %752 = vmatprep.subr.bf16.mxu0 0
  %753 = vmatpush1.bf16.msra.mxu0 0
  %754 = vmatprep.subr.bf16.mxu0 0
  %755 = vmatpush1.bf16.msra.mxu0 0
  %756 = vmatprep.subr.bf16.mxu0 0
  %757 = vmatpush1.bf16.msra.mxu0 0
  %758 = vmatprep.subr.bf16.mxu0 0
  %759 = vmatpush1.bf16.msra.mxu0 0
  %760 = vmatprep.subr.bf16.mxu0 0
  %761 = vmatpush1.bf16.msra.mxu0 0
  %762 = vmatprep.subr.bf16.mxu0 0
  %763 = vmatpush1.bf16.msra.mxu0 0
  %764 = vmatprep.subr.bf16.mxu0 0
  %765 = vmatpush1.bf16.msra.mxu0 0
  %766 = vmatprep.subr.bf16.mxu0 0
  %767 = vmatpush1.bf16.msra.mxu0 0
  %768 = vmatprep.subr.bf16.mxu0 0
  %769 = vmatpush1.bf16.msra.mxu0 0
  %770 = vmatprep.subr.bf16.mxu0 0
  %771 = vmatpush1.bf16.msra.mxu0 0
  %772 = vmatprep.subr.bf16.mxu0 0
  %773 = vmatpush1.bf16.msra.mxu0 0
  %774 = vmatprep.subr.bf16.mxu0 0
  %775 = vmatpush1.bf16.msra.mxu0 0
  %776 = vmatprep.mubr.bf16.mxu0 0
  %777 = vmatmul.mubr.bf16.gmra.mrb[0].mxu0 %v742
  %v778 = vpop.f32.mrb[0].mxu0
  %v779 = vadd.f32 %v176, %v778
  %v780 = vpop.f32.mrb[0].mxu0
  %v781 = vpop.f32.mrb[0].mxu0
  %v782 = vadd.f32 %v176, %v781
  %v783 = vpop.f32.mrb[0].mxu0
  %784 = vdwg.mxu0
  %v785 = vmax.f32 %v779, 0.0
  %v786 = vmax.f32 %v782, 0.0
  %v787 = vpack.c.bf16 %v786, %v785
  %v789 = vsel %vm103, %v787, 0
  %791 = vmatprep.subr.bf16.mxu0 0
  %792 = vmatpush1.bf16.msra.mxu0 %v341
  %793 = vmatprep.subr.bf16.mxu0 0
  %794 = vmatpush1.bf16.msra.mxu0 %v342
  %795 = vmatprep.subr.bf16.mxu0 0
  %796 = vmatpush1.bf16.msra.mxu0 0
  %797 = vmatprep.subr.bf16.mxu0 0
  %798 = vmatpush1.bf16.msra.mxu0 0
  %799 = vmatprep.subr.bf16.mxu0 0
  %800 = vmatpush1.bf16.msra.mxu0 0
  %801 = vmatprep.subr.bf16.mxu0 0
  %802 = vmatpush1.bf16.msra.mxu0 0
  %803 = vmatprep.subr.bf16.mxu0 0
  %804 = vmatpush1.bf16.msra.mxu0 0
  %805 = vmatprep.subr.bf16.mxu0 0
  %806 = vmatpush1.bf16.msra.mxu0 0
  %807 = vmatprep.subr.bf16.mxu0 0
  %808 = vmatpush1.bf16.msra.mxu0 0
  %809 = vmatprep.subr.bf16.mxu0 0
  %810 = vmatpush1.bf16.msra.mxu0 0
  %811 = vmatprep.subr.bf16.mxu0 0
  %812 = vmatpush1.bf16.msra.mxu0 0
  %813 = vmatprep.subr.bf16.mxu0 0
  %814 = vmatpush1.bf16.msra.mxu0 0
  %815 = vmatprep.subr.bf16.mxu0 0
  %816 = vmatpush1.bf16.msra.mxu0 0
  %817 = vmatprep.subr.bf16.mxu0 0
  %818 = vmatpush1.bf16.msra.mxu0 0
  %819 = vmatprep.subr.bf16.mxu0 0
  %820 = vmatpush1.bf16.msra.mxu0 0
  %821 = vmatprep.subr.bf16.mxu0 0
  %822 = vmatpush1.bf16.msra.mxu0 0
  %823 = vmatprep.mubr.bf16.mxu0 0
  %824 = vmatmul.mubr.bf16.gmra.mrb[0].mxu0 %v789
  %v825 = vpop.f32.mrb[0].mxu0
  %v826 = vadd.f32 %v183, %v825
  %v827 = vpop.f32.mrb[0].mxu0
  %v828 = vpop.f32.mrb[0].mxu0
  %v829 = vadd.f32 %v183, %v828
  %v830 = vpop.f32.mrb[0].mxu0
  %831 = vdwg.mxu0
  %v832 = vmax.f32 %v267, %v438
  %v833 = vmax.f32 %v268, %v439
  %v834 = vmax.f32 %v832, %v586
  %v835 = vmax.f32 %v833, %v587
  %v836 = vmax.f32 %v834, %v734
  %v837 = vmax.f32 %v835, %v735
  %v838 = vsub.f32 %v267, %v836
  %v839 = vsub.f32 %v268, %v837
  %v840 = vmul.f32 %v838, 1.442695
  %v841 = vpow.pop %v840
  %v842 = vmul.f32 %v839, 1.442695
  %v843 = vpow.pop %v842
  %v844 = vsub.f32 %v438, %v836
  %v845 = vsub.f32 %v439, %v837
  %v846 = vmul.f32 %v844, 1.442695
  %v847 = vpow.pop %v846
  %v848 = vmul.f32 %v845, 1.442695
  %v849 = vpow.pop %v848
  %v850 = vsub.f32 %v586, %v836
  %v851 = vsub.f32 %v587, %v837
  %v852 = vmul.f32 %v850, 1.442695
  %v853 = vpow.pop %v852
  %v854 = vmul.f32 %v851, 1.442695
  %v855 = vpow.pop %v854
  %v856 = vsub.f32 %v734, %v836
  %v857 = vsub.f32 %v735, %v837
  %v858 = vmul.f32 %v856, 1.442695
  %v859 = vpow.pop %v858
  %v860 = vmul.f32 %v857, 1.442695
  %v861 = vpow.pop %v860
  %v862 = vadd.f32 %v841, %v847
  %v863 = vadd.f32 %v843, %v849
  %v864 = vadd.f32 %v862, %v853
  %v865 = vadd.f32 %v863, %v855
  %v866 = vadd.f32 %v864, %v859
  %v867 = vadd.f32 %v865, %v861
  %869 = vset.pattern.permute.xlu0 32
  %870 = vperm.xlu0 %869, %v841
  %v871 = vpop.permute.xlu0 %870
  %874 = vset.pattern.permute.xlu0 32
  %875 = vperm.xlu0 %874, %v843
  %v876 = vpop.permute.xlu0 %875
  %v878 = vmul.f32 %v383, %v871
  %v879 = vmul.f32 %v386, %v876
  %881 = vset.pattern.permute.xlu0 32
  %882 = vperm.xlu0 %881, %v847
  %v883 = vpop.permute.xlu0 %882
  %886 = vset.pattern.permute.xlu0 32
  %887 = vperm.xlu0 %886, %v849
  %v888 = vpop.permute.xlu0 %887
  %v890 = vmul.f32 %v530, %v883
  %v891 = vmul.f32 %v533, %v888
  %v892 = vadd.f32 %v878, %v890
  %v893 = vadd.f32 %v879, %v891
  %895 = vset.pattern.permute.xlu0 32
  %896 = vperm.xlu0 %895, %v853
  %v897 = vpop.permute.xlu0 %896
  %900 = vset.pattern.permute.xlu0 32
  %901 = vperm.xlu0 %900, %v855
  %v902 = vpop.permute.xlu0 %901
  %v904 = vmul.f32 %v678, %v897
  %v905 = vmul.f32 %v681, %v902
  %v906 = vadd.f32 %v892, %v904
  %v907 = vadd.f32 %v893, %v905
  %909 = vset.pattern.permute.xlu0 32
  %910 = vperm.xlu0 %909, %v859
  %v911 = vpop.permute.xlu0 %910
  %914 = vset.pattern.permute.xlu0 32
  %915 = vperm.xlu0 %914, %v861
  %v916 = vpop.permute.xlu0 %915
  %v918 = vmul.f32 %v826, %v911
  %v919 = vmul.f32 %v829, %v916
  %v920 = vadd.f32 %v906, %v918
  %v921 = vadd.f32 %v907, %v919
  %v922 = vrcp.pop %v866
  %v923 = vrcp.pop %v867
  %925 = vset.pattern.permute.xlu0 32
  %926 = vperm.xlu0 %925, %v922
  %v927 = vpop.permute.xlu0 %926
  %930 = vset.pattern.permute.xlu0 32
  %931 = vperm.xlu0 %930, %v923
  %v932 = vpop.permute.xlu0 %931
  %v934 = vmul.f32 %v920, %v927
  %v935 = vmul.f32 %v921, %v932
  %v936 = vadd.f32 %v71, %v934
  %v937 = vadd.f32 %v72, %v935
  %v938 = vsel %vm103, %v936, 0.0
  %939 = vadd.xlane.f32.xlu0 %v938
  %v940 = vpop.xlane.xlu0 %939
  %v941 = vsel %vm103, %v937, 0.0
  %942 = vadd.xlane.f32.xlu0 %v941
  %v943 = vpop.xlane.xlu0 %942
  %v944 = vrcp.pop 32.0
  %v945 = vmul.f32 %v940, %v944
  %v946 = vmul.f32 %v943, %v944
  %v947 = vsub.f32 %v936, %v945
  %v948 = vsub.f32 %v937, %v946
  %v949 = vmul.f32 %v947, %v947
  %v950 = vmul.f32 %v948, %v948
  %v951 = vsel %vm103, %v949, 0.0
  %952 = vadd.xlane.f32.xlu0 %v951
  %v953 = vpop.xlane.xlu0 %952
  %v954 = vsel %vm103, %v950, 0.0
  %955 = vadd.xlane.f32.xlu0 %v954
  %v956 = vpop.xlane.xlu0 %955
  %v957 = vmul.f32 %v953, %v944
  %v958 = vmul.f32 %v956, %v944
  %v959 = vadd.f32 %v957, 1e-05
  %v960 = vadd.f32 %v958, 1e-05
  %v961 = vrsqrt.pop %v959
  %v962 = vmul.f32 %v959, %v961
  %vm963 = vcmp.eq.f32.partialorder %v959, inf
  %v964 = vsel %vm963, %v959, %v962
  %vm965 = vcmp.eq.f32.partialorder %v959, 0.0
  %v966 = vand.u32 %v959, 2147483648
  %v967 = vsel %vm965, %v966, %v964
  %v968 = vrsqrt.pop %v960
  %v969 = vmul.f32 %v960, %v968
  %vm970 = vcmp.eq.f32.partialorder %v960, inf
  %v971 = vsel %vm970, %v960, %v969
  %vm972 = vcmp.eq.f32.partialorder %v960, 0.0
  %v973 = vand.u32 %v960, 2147483648
  %v974 = vsel %vm972, %v973, %v971
  %v975 = vrcp.pop %v967
  %v976 = vmul.f32 %v947, %v975
  %v977 = vrcp.pop %v974
  %v978 = vmul.f32 %v948, %v977
  %v979 = vld [vmem:[%s11] sm:$0x1]
  %v981 = vlaneseq
  %v982 = vshrl.u32 %v981, 7
  %v983 = vsub.s32 0, %v982
  %v984 = vrot.slane %v979, %v983
  %v986 = vmul.f32 %v976, %v984
  %v987 = vmul.f32 %v978, %v984
  %v988 = vld [vmem:[%s12] sm:$0x1]
  %v990 = vlaneseq
  %v991 = vshrl.u32 %v990, 7
  %v992 = vsub.s32 0, %v991
  %v993 = vrot.slane %v988, %v992
  %v995 = vadd.f32 %v986, %v993
  %v996 = vadd.f32 %v987, %v993
  %v997 = vpack.c.bf16 %v996, %v995
  %v998 = vld [vmem:[%s13] sm:$0xf]
  %v999 = vld [vmem:[%s13 + $0x4] sm:$0xf]
  %v1000 = vld [vmem:[%s13 + $0x8] sm:$0xf]
  %v1001 = vld [vmem:[%s13 + $0xc] sm:$0xf]
  %v1002 = vld [vmem:[%s14] sm:$0x1]
  %v1004 = vlaneseq
  %v1005 = vshrl.u32 %v1004, 7
  %v1006 = vsub.s32 0, %v1005
  %v1007 = vrot.slane %v1002, %v1006
  %v1013 = vunpack.c.l.b16 %v998
  %v1014 = vunpack.c.l.b16 %v999
  %v1015 = vunpack.c.l.b16 %v1000
  %v1016 = vunpack.c.l.b16 %v1001
  %v1017 = vpack.c.b16 %v1014, %v1013
  %v1018 = vpack.c.b16 %v1016, %v1015
  %v1022 = vsel %vm103, %v997, 0
  %1024 = vmatprep.subr.bf16.mxu0 0
  %1025 = vmatpush1.bf16.msra.mxu0 %v1017
  %1026 = vmatprep.subr.bf16.mxu0 0
  %1027 = vmatpush1.bf16.msra.mxu0 %v1018
  %1028 = vmatprep.subr.bf16.mxu0 0
  %1029 = vmatpush1.bf16.msra.mxu0 0
  %1030 = vmatprep.subr.bf16.mxu0 0
  %1031 = vmatpush1.bf16.msra.mxu0 0
  %1032 = vmatprep.subr.bf16.mxu0 0
  %1033 = vmatpush1.bf16.msra.mxu0 0
  %1034 = vmatprep.subr.bf16.mxu0 0
  %1035 = vmatpush1.bf16.msra.mxu0 0
  %1036 = vmatprep.subr.bf16.mxu0 0
  %1037 = vmatpush1.bf16.msra.mxu0 0
  %1038 = vmatprep.subr.bf16.mxu0 0
  %1039 = vmatpush1.bf16.msra.mxu0 0
  %1040 = vmatprep.subr.bf16.mxu0 0
  %1041 = vmatpush1.bf16.msra.mxu0 0
  %1042 = vmatprep.subr.bf16.mxu0 0
  %1043 = vmatpush1.bf16.msra.mxu0 0
  %1044 = vmatprep.subr.bf16.mxu0 0
  %1045 = vmatpush1.bf16.msra.mxu0 0
  %1046 = vmatprep.subr.bf16.mxu0 0
  %1047 = vmatpush1.bf16.msra.mxu0 0
  %1048 = vmatprep.subr.bf16.mxu0 0
  %1049 = vmatpush1.bf16.msra.mxu0 0
  %1050 = vmatprep.subr.bf16.mxu0 0
  %1051 = vmatpush1.bf16.msra.mxu0 0
  %1052 = vmatprep.subr.bf16.mxu0 0
  %1053 = vmatpush1.bf16.msra.mxu0 0
  %1054 = vmatprep.subr.bf16.mxu0 0
  %1055 = vmatpush1.bf16.msra.mxu0 0
  %1056 = vmatprep.mubr.bf16.mxu0 0
  %1057 = vmatmul.mubr.bf16.gmra.mrb[0].mxu0 %v1022
  %v1058 = vpop.f32.mrb[0].mxu0
  %v1059 = vadd.f32 %v1007, %v1058
  %v1060 = vpop.f32.mrb[0].mxu0
  %v1061 = vpop.f32.mrb[0].mxu0
  %v1062 = vadd.f32 %v1007, %v1061
  %v1063 = vpop.f32.mrb[0].mxu0
  %1064 = vdwg.mxu0
  %v1065 = vmax.f32 %v1059, 0.0
  %v1066 = vmax.f32 %v1062, 0.0
  %v1067 = vpack.c.bf16 %v1066, %v1065
  %v1068 = vld [vmem:[%s15] sm:$0xf]
  %v1069 = vld [vmem:[%s15 + $0x4] sm:$0xf]
  %v1070 = vld [vmem:[%s15 + $0x8] sm:$0xf]
  %v1071 = vld [vmem:[%s15 + $0xc] sm:$0xf]
  %v1072 = vld [vmem:[%s15 + $0x10] sm:$0xf]
  %v1073 = vld [vmem:[%s15 + $0x14] sm:$0xf]
  %v1074 = vld [vmem:[%s15 + $0x18] sm:$0xf]
  %v1075 = vld [vmem:[%s15 + $0x1c] sm:$0xf]
  %v1076 = vld [vmem:[%s15 + $0x20] sm:$0xf]
  %v1077 = vld [vmem:[%s15 + $0x24] sm:$0xf]
  %v1078 = vld [vmem:[%s15 + $0x28] sm:$0xf]
  %v1079 = vld [vmem:[%s15 + $0x2c] sm:$0xf]
  %v1080 = vld [vmem:[%s15 + $0x30] sm:$0xf]
  %v1081 = vld [vmem:[%s15 + $0x34] sm:$0xf]
  %v1082 = vld [vmem:[%s15 + $0x38] sm:$0xf]
  %v1083 = vld [vmem:[%s15 + $0x3c] sm:$0xf]
  %v1084 = vld [vmem:[%s16] sm:$0x1]
  %v1086 = vlaneseq
  %v1087 = vshrl.u32 %v1086, 7
  %v1088 = vsub.s32 0, %v1087
  %v1089 = vrot.slane %v1084, %v1088
  %v1107 = vunpack.c.l.b16 %v1068
  %v1108 = vunpack.c.l.b16 %v1069
  %v1109 = vunpack.c.l.b16 %v1070
  %v1110 = vunpack.c.l.b16 %v1071
  %v1111 = vunpack.c.l.b16 %v1072
  %v1112 = vunpack.c.l.b16 %v1073
  %v1113 = vunpack.c.l.b16 %v1074
  %v1114 = vunpack.c.l.b16 %v1075
  %v1115 = vunpack.c.l.b16 %v1076
  %v1116 = vunpack.c.l.b16 %v1077
  %v1117 = vunpack.c.l.b16 %v1078
  %v1118 = vunpack.c.l.b16 %v1079
  %v1119 = vunpack.c.l.b16 %v1080
  %v1120 = vunpack.c.l.b16 %v1081
  %v1121 = vunpack.c.l.b16 %v1082
  %v1122 = vunpack.c.l.b16 %v1083
  %v1123 = vpack.c.b16 %v1108, %v1107
  %v1124 = vpack.c.b16 %v1110, %v1109
  %v1125 = vpack.c.b16 %v1112, %v1111
  %v1126 = vpack.c.b16 %v1114, %v1113
  %v1127 = vpack.c.b16 %v1116, %v1115
  %v1128 = vpack.c.b16 %v1118, %v1117
  %v1129 = vpack.c.b16 %v1120, %v1119
  %v1130 = vpack.c.b16 %v1122, %v1121
  %1139 = vmatprep.subr.bf16.mxu0 0
  %1140 = vmatpush1.bf16.msra.mxu0 %v1123
  %1141 = vmatprep.subr.bf16.mxu0 0
  %1142 = vmatpush1.bf16.msra.mxu0 %v1124
  %1143 = vmatprep.subr.bf16.mxu0 0
  %1144 = vmatpush1.bf16.msra.mxu0 %v1125
  %1145 = vmatprep.subr.bf16.mxu0 0
  %1146 = vmatpush1.bf16.msra.mxu0 %v1126
  %1147 = vmatprep.subr.bf16.mxu0 0
  %1148 = vmatpush1.bf16.msra.mxu0 %v1127
  %1149 = vmatprep.subr.bf16.mxu0 0
  %1150 = vmatpush1.bf16.msra.mxu0 %v1128
  %1151 = vmatprep.subr.bf16.mxu0 0
  %1152 = vmatpush1.bf16.msra.mxu0 %v1129
  %1153 = vmatprep.subr.bf16.mxu0 0
  %1154 = vmatpush1.bf16.msra.mxu0 %v1130
  %1155 = vmatprep.subr.bf16.mxu0 0
  %1156 = vmatpush1.bf16.msra.mxu0 0
  %1157 = vmatprep.subr.bf16.mxu0 0
  %1158 = vmatpush1.bf16.msra.mxu0 0
  %1159 = vmatprep.subr.bf16.mxu0 0
  %1160 = vmatpush1.bf16.msra.mxu0 0
  %1161 = vmatprep.subr.bf16.mxu0 0
  %1162 = vmatpush1.bf16.msra.mxu0 0
  %1163 = vmatprep.subr.bf16.mxu0 0
  %1164 = vmatpush1.bf16.msra.mxu0 0
  %1165 = vmatprep.subr.bf16.mxu0 0
  %1166 = vmatpush1.bf16.msra.mxu0 0
  %1167 = vmatprep.subr.bf16.mxu0 0
  %1168 = vmatpush1.bf16.msra.mxu0 0
  %1169 = vmatprep.subr.bf16.mxu0 0
  %1170 = vmatpush1.bf16.msra.mxu0 0
  %1171 = vmatprep.mubr.bf16.mxu0 0
  %1172 = vmatmul.mubr.bf16.gmra.mrb[0].mxu0 %v1067
  %v1173 = vpop.f32.mrb[0].mxu0
  %v1174 = vadd.f32 %v1089, %v1173
  %v1175 = vpop.f32.mrb[0].mxu0
  %v1176 = vpop.f32.mrb[0].mxu0
  %v1177 = vadd.f32 %v1089, %v1176
  %v1178 = vpop.f32.mrb[0].mxu0
  %1179 = vdwg.mxu0
  %v1180 = vmax.f32 %v1174, 0.0
  %v1181 = vmax.f32 %v1177, 0.0
  %v1182 = vpack.c.bf16 %v1181, %v1180
  %v1183 = vld [vmem:[%s17] sm:$0xf]
  %v1184 = vld [vmem:[%s17 + $0x4] sm:$0xf]
  %v1185 = vld [vmem:[%s17 + $0x8] sm:$0xf]
  %v1186 = vld [vmem:[%s17 + $0xc] sm:$0xf]
  %v1187 = vld [vmem:[%s18] sm:$0x1]
  %v1189 = vlaneseq
  %v1190 = vshrl.u32 %v1189, 7
  %v1191 = vsub.s32 0, %v1190
  %v1192 = vrot.slane %v1187, %v1191
  %v1198 = vunpack.c.l.b16 %v1183
  %v1199 = vunpack.c.l.b16 %v1184
  %v1200 = vunpack.c.l.b16 %v1185
  %v1201 = vunpack.c.l.b16 %v1186
  %v1202 = vpack.c.b16 %v1199, %v1198
  %v1203 = vpack.c.b16 %v1201, %v1200
  %v1207 = vsel %vm103, %v1182, 0
  %1209 = vmatprep.subr.bf16.mxu0 0
  %1210 = vmatpush1.bf16.msra.mxu0 %v1202
  %1211 = vmatprep.subr.bf16.mxu0 0
  %1212 = vmatpush1.bf16.msra.mxu0 %v1203
  %1213 = vmatprep.subr.bf16.mxu0 0
  %1214 = vmatpush1.bf16.msra.mxu0 0
  %1215 = vmatprep.subr.bf16.mxu0 0
  %1216 = vmatpush1.bf16.msra.mxu0 0
  %1217 = vmatprep.subr.bf16.mxu0 0
  %1218 = vmatpush1.bf16.msra.mxu0 0
  %1219 = vmatprep.subr.bf16.mxu0 0
  %1220 = vmatpush1.bf16.msra.mxu0 0
  %1221 = vmatprep.subr.bf16.mxu0 0
  %1222 = vmatpush1.bf16.msra.mxu0 0
  %1223 = vmatprep.subr.bf16.mxu0 0
  %1224 = vmatpush1.bf16.msra.mxu0 0
  %1225 = vmatprep.subr.bf16.mxu0 0
  %1226 = vmatpush1.bf16.msra.mxu0 0
  %1227 = vmatprep.subr.bf16.mxu0 0
  %1228 = vmatpush1.bf16.msra.mxu0 0
  %1229 = vmatprep.subr.bf16.mxu0 0
  %1230 = vmatpush1.bf16.msra.mxu0 0
  %1231 = vmatprep.subr.bf16.mxu0 0
  %1232 = vmatpush1.bf16.msra.mxu0 0
  %1233 = vmatprep.subr.bf16.mxu0 0
  %1234 = vmatpush1.bf16.msra.mxu0 0
  %1235 = vmatprep.subr.bf16.mxu0 0
  %1236 = vmatpush1.bf16.msra.mxu0 0
  %1237 = vmatprep.subr.bf16.mxu0 0
  %1238 = vmatpush1.bf16.msra.mxu0 0
  %1239 = vmatprep.subr.bf16.mxu0 0
  %1240 = vmatpush1.bf16.msra.mxu0 0
  %1241 = vmatprep.mubr.bf16.mxu0 0
  %1242 = vmatmul.mubr.bf16.gmra.mrb[0].mxu0 %v1207
  %v1243 = vpop.f32.mrb[0].mxu0
  %v1244 = vadd.f32 %v1192, %v1243
  %v1245 = vpop.f32.mrb[0].mxu0
  %v1246 = vpop.f32.mrb[0].mxu0
  %v1247 = vadd.f32 %v1192, %v1246
  %v1248 = vpop.f32.mrb[0].mxu0
  %1249 = vdwg.mxu0
  %v1250 = vadd.f32 %v995, %v1244
  %v1251 = vadd.f32 %v996, %v1247
  %v1252 = vsel %vm103, %v1250, 0.0
  %1253 = vadd.xlane.f32.xlu0 %v1252
  %v1254 = vpop.xlane.xlu0 %1253
  %v1255 = vsel %vm103, %v1251, 0.0
  %1256 = vadd.xlane.f32.xlu0 %v1255
  %v1257 = vpop.xlane.xlu0 %1256
  %v1258 = vmul.f32 %v1254, %v944
  %v1259 = vmul.f32 %v1257, %v944
  %v1260 = vsub.f32 %v1250, %v1258
  %v1261 = vsub.f32 %v1251, %v1259
  %v1262 = vmul.f32 %v1260, %v1260
  %v1263 = vmul.f32 %v1261, %v1261
  %v1264 = vsel %vm103, %v1262, 0.0
  %1265 = vadd.xlane.f32.xlu0 %v1264
  %v1266 = vpop.xlane.xlu0 %1265
  %v1267 = vsel %vm103, %v1263, 0.0
  %1268 = vadd.xlane.f32.xlu0 %v1267
  %v1269 = vpop.xlane.xlu0 %1268
  %v1270 = vmul.f32 %v1266, %v944
  %v1271 = vmul.f32 %v1269, %v944
  %v1272 = vadd.f32 %v1270, 1e-05
  %v1273 = vadd.f32 %v1271, 1e-05
  %v1274 = vrsqrt.pop %v1272
  %v1275 = vmul.f32 %v1272, %v1274
  %vm1276 = vcmp.eq.f32.partialorder %v1272, inf
  %v1277 = vsel %vm1276, %v1272, %v1275
  %vm1278 = vcmp.eq.f32.partialorder %v1272, 0.0
  %v1279 = vand.u32 %v1272, 2147483648
  %v1280 = vsel %vm1278, %v1279, %v1277
  %v1281 = vrsqrt.pop %v1273
  %v1282 = vmul.f32 %v1273, %v1281
  %vm1283 = vcmp.eq.f32.partialorder %v1273, inf
  %v1284 = vsel %vm1283, %v1273, %v1282
  %vm1285 = vcmp.eq.f32.partialorder %v1273, 0.0
  %v1286 = vand.u32 %v1273, 2147483648
  %v1287 = vsel %vm1285, %v1286, %v1284
  %v1288 = vrcp.pop %v1280
  %v1289 = vmul.f32 %v1260, %v1288
  %v1290 = vrcp.pop %v1287
  %v1291 = vmul.f32 %v1261, %v1290
  %v1292 = vld [vmem:[%s19] sm:$0x1]
  %v1294 = vlaneseq
  %v1295 = vshrl.u32 %v1294, 7
  %v1296 = vsub.s32 0, %v1295
  %v1297 = vrot.slane %v1292, %v1296
  %v1299 = vmul.f32 %v1289, %v1297
  %v1300 = vmul.f32 %v1291, %v1297
  %v1301 = vld [vmem:[%s20] sm:$0x1]
  %v1303 = vlaneseq
  %v1304 = vshrl.u32 %v1303, 7
  %v1305 = vsub.s32 0, %v1304
  %v1306 = vrot.slane %v1301, %v1305
  %v1308 = vadd.f32 %v1299, %v1306
  %v1309 = vadd.f32 %v1300, %v1306
  %1310 = vst.msk [vmem:[%s21] sm:$0xff] %vm103, %v1308
  %1311 = vst.msk [vmem:[%s21 + $0x8] sm:$0xff] %vm103, %v1309
  // Predicated region
  $region86: #{_forward_core.8} parent=0 // pred_check
    _
  $region87: #{_forward_core.8} parent=0 // pred_check_branch
    %1313 = sbr.rel (0) target = $region89
  $region88: #{_forward_core.8} parent=0 // pred_region
    _
  $region89: #{_forward_core.8} parent=0 // pred_fallthru
    _
  // Predicated region
  $region90: #{_forward_core.8} parent=0 // pred_check
    _
  $region91: #{_forward_core.8} parent=0 // pred_check_branch
    %1315 = sbr.rel (0) target = $region93
  $region92: #{_forward_core.8} parent=0 // pred_region
    _
  $region93: #{_forward_core.8} parent=0 // pred_fallthru
    _

// kernel: _forward_core.7
$region0: #{_forward_core.7}
  #allocation0 [shape = 'u32[]', space=smem, size = 0x4, offset = 0x4, fixed_abs, tag = 'smem constant byte address 0x4 - core index']
  #allocation1 [shape = 'u32[144,128]{1,0:T(1,128)}', space=vmem, size = 0x12000, scoped, tag = 'internal scratch']
  %s0 = inlined_call_operand.vmem [shape: bf16[56,448], index: 0, kind: input, shape index: {}]
  %s1 = inlined_call_operand.vmem [shape: bf16[448,512], index: 1, kind: input, shape index: {}]
  %s2 = inlined_call_operand.vmem [shape: f32[1,512], index: 2, kind: input, shape index: {}]
  %s3 = inlined_call_operand.vmem [shape: bf16[512,32], index: 3, kind: input, shape index: {}]
  %s4 = inlined_call_operand.vmem [shape: f32[1,32], index: 4, kind: input, shape index: {}]
  %s5 = inlined_call_operand.vmem [shape: bf16[32,32], index: 5, kind: input, shape index: {}]
  %s6 = inlined_call_operand.vmem [shape: f32[1,32], index: 6, kind: input, shape index: {}]
  %s7 = inlined_call_operand.vmem [shape: f32[56,32], index: 7, kind: output, shape index: {}]
  %s8 = sld [smem:[#allocation0]]
  $region38: #{_forward_core.7} parent=0
    _
  %s10 = ssub.s32 1, %s8
  %s11 = scalar_select 0, %s10, %s8
  // Predicated region
  $region2: #{_forward_core.7} parent=0 // pred_check
    _
  $region3: #{_forward_core.7} parent=0 // pred_check_branch
    %13 = sbr.rel (0) target = $region5
  $region4: #{_forward_core.7} parent=0 // pred_region
    _
  $region5: #{_forward_core.7} parent=0 // pred_fallthru
    _
  // Predicated region
  $region6: #{_forward_core.7} parent=0 // pred_check
    _
  $region7: #{_forward_core.7} parent=0 // pred_check_branch
    %15 = sbr.rel (0) target = $region9
  $region8: #{_forward_core.7} parent=0 // pred_region
    _
  $region9: #{_forward_core.7} parent=0 // pred_fallthru
    _
  // Predicated region
  $region10: #{_forward_core.7} parent=0 // pred_check
    _
  $region11: #{_forward_core.7} parent=0 // pred_check_branch
    %17 = sbr.rel (0) target = $region13
  $region12: #{_forward_core.7} parent=0 // pred_region
    _
  $region13: #{_forward_core.7} parent=0 // pred_fallthru
    _
  // Predicated region
  $region14: #{_forward_core.7} parent=0 // pred_check
    _
  $region15: #{_forward_core.7} parent=0 // pred_check_branch
    %19 = sbr.rel (0) target = $region17
  $region16: #{_forward_core.7} parent=0 // pred_region
    _
  $region17: #{_forward_core.7} parent=0 // pred_fallthru
    _
  // Predicated region
  $region18: #{_forward_core.7} parent=0 // pred_check
    _
  $region19: #{_forward_core.7} parent=0 // pred_check_branch
    %21 = sbr.rel (0) target = $region21
  $region20: #{_forward_core.7} parent=0 // pred_region
    _
  $region21: #{_forward_core.7} parent=0 // pred_fallthru
    _
  // Predicated region
  $region22: #{_forward_core.7} parent=0 // pred_check
    _
  $region23: #{_forward_core.7} parent=0 // pred_check_branch
    %23 = sbr.rel (0) target = $region25
  $region24: #{_forward_core.7} parent=0 // pred_region
    _
  $region25: #{_forward_core.7} parent=0 // pred_fallthru
    _
  // Predicated region
  $region26: #{_forward_core.7} parent=0 // pred_check
    _
  $region27: #{_forward_core.7} parent=0 // pred_check_branch
    %25 = sbr.rel (0) target = $region29
  $region28: #{_forward_core.7} parent=0 // pred_region
    _
  $region29: #{_forward_core.7} parent=0 // pred_fallthru
    _
  %v27 = vld [vmem:[%s0] sm:$0xff]
  %v28 = vld [vmem:[%s0 + $0x8] sm:$0xff]
  %v29 = vld [vmem:[%s0 + $0x10] sm:$0xff]
  %v30 = vld [vmem:[%s0 + $0x18] sm:$0xff]
  %v31 = vld [vmem:[%s0 + $0x20] sm:$0xff]
  %v32 = vld [vmem:[%s0 + $0x28] sm:$0xff]
  %v33 = vld [vmem:[%s0 + $0x30] sm:$0xff]
  %v34 = vld [vmem:[%s0 + $0x38] sm:$0xff]
  %v35 = vld [vmem:[%s0 + $0x40] sm:$0xff]
  %v36 = vld [vmem:[%s0 + $0x48] sm:$0xff]
  %v37 = vld [vmem:[%s0 + $0x50] sm:$0xff]
  %v38 = vld [vmem:[%s0 + $0x58] sm:$0xff]
  %v39 = vld [vmem:[%s0 + $0x60] sm:$0xff]
  %v40 = vld [vmem:[%s0 + $0x68] sm:$0xff]
  %v41 = vld [vmem:[%s1] sm:$0xff]
  %v42 = vld [vmem:[%s1 + $0x8] sm:$0xff]
  %v43 = vld [vmem:[%s1 + $0x10] sm:$0xff]
  %v44 = vld [vmem:[%s1 + $0x18] sm:$0xff]
  %v45 = vld [vmem:[%s1 + $0x20] sm:$0xff]
  %v46 = vld [vmem:[%s1 + $0x28] sm:$0xff]
  %v47 = vld [vmem:[%s1 + $0x30] sm:$0xff]
  %v48 = vld [vmem:[%s1 + $0x38] sm:$0xff]
  %v49 = vld [vmem:[%s1 + $0x40] sm:$0xff]
  %v50 = vld [vmem:[%s1 + $0x48] sm:$0xff]
  %v51 = vld [vmem:[%s1 + $0x50] sm:$0xff]
  %v52 = vld [vmem:[%s1 + $0x58] sm:$0xff]
  %v53 = vld [vmem:[%s1 + $0x60] sm:$0xff]
  %v54 = vld [vmem:[%s1 + $0x68] sm:$0xff]
  %v55 = vld [vmem:[%s1 + $0x70] sm:$0xff]
  %v56 = vld [vmem:[%s1 + $0x78] sm:$0xff]
  %v57 = vld [vmem:[%s1 + $0x80] sm:$0xff]
  %v58 = vld [vmem:[%s1 + $0x88] sm:$0xff]
  %v59 = vld [vmem:[%s1 + $0x90] sm:$0xff]
  %v60 = vld [vmem:[%s1 + $0x98] sm:$0xff]
  %v61 = vld [vmem:[%s1 + $0xa0] sm:$0xff]
  %v62 = vld [vmem:[%s1 + $0xa8] sm:$0xff]
  %v63 = vld [vmem:[%s1 + $0xb0] sm:$0xff]
  %v64 = vld [vmem:[%s1 + $0xb8] sm:$0xff]
  %v65 = vld [vmem:[%s1 + $0xc0] sm:$0xff]
  %v66 = vld [vmem:[%s1 + $0xc8] sm:$0xff]
  %v67 = vld [vmem:[%s1 + $0xd0] sm:$0xff]
  %v68 = vld [vmem:[%s1 + $0xd8] sm:$0xff]
  %v69 = vld [vmem:[%s1 + $0xe0] sm:$0xff]
  %v70 = vld [vmem:[%s1 + $0xe8] sm:$0xff]
  %v71 = vld [vmem:[%s1 + $0xf0] sm:$0xff]
  %v72 = vld [vmem:[%s1 + $0xf8] sm:$0xff]
  %v73 = vld [vmem:[%s1 + $0x100] sm:$0xff]
  %v74 = vld [vmem:[%s1 + $0x108] sm:$0xff]
  %v75 = vld [vmem:[%s1 + $0x110] sm:$0xff]
  %v76 = vld [vmem:[%s1 + $0x118] sm:$0xff]
  %v77 = vld [vmem:[%s1 + $0x120] sm:$0xff]
  %v78 = vld [vmem:[%s1 + $0x128] sm:$0xff]
  %v79 = vld [vmem:[%s1 + $0x130] sm:$0xff]
  %v80 = vld [vmem:[%s1 + $0x138] sm:$0xff]
  %v81 = vld [vmem:[%s1 + $0x140] sm:$0xff]
  %v82 = vld [vmem:[%s1 + $0x148] sm:$0xff]
  %v83 = vld [vmem:[%s1 + $0x150] sm:$0xff]
  %v84 = vld [vmem:[%s1 + $0x158] sm:$0xff]
  %v85 = vld [vmem:[%s1 + $0x160] sm:$0xff]
  %v86 = vld [vmem:[%s1 + $0x168] sm:$0xff]
  %v87 = vld [vmem:[%s1 + $0x170] sm:$0xff]
  %v88 = vld [vmem:[%s1 + $0x178] sm:$0xff]
  %v89 = vld [vmem:[%s1 + $0x180] sm:$0xff]
  %v90 = vld [vmem:[%s1 + $0x188] sm:$0xff]
  %v91 = vld [vmem:[%s1 + $0x190] sm:$0xff]
  %v92 = vld [vmem:[%s1 + $0x198] sm:$0xff]
  %v93 = vld [vmem:[%s1 + $0x1a0] sm:$0xff]
  %v94 = vld [vmem:[%s1 + $0x1a8] sm:$0xff]
  %v95 = vld [vmem:[%s1 + $0x1b0] sm:$0xff]
  %v96 = vld [vmem:[%s1 + $0x1b8] sm:$0xff]
  %v97 = vld [vmem:[%s1 + $0x1c0] sm:$0xff]
  %v98 = vld [vmem:[%s1 + $0x1c8] sm:$0xff]
  %v99 = vld [vmem:[%s1 + $0x1d0] sm:$0xff]
  %v100 = vld [vmem:[%s1 + $0x1d8] sm:$0xff]
  %v101 = vld [vmem:[%s1 + $0x1e0] sm:$0xff]
  %v102 = vld [vmem:[%s1 + $0x1e8] sm:$0xff]
  %v103 = vld [vmem:[%s1 + $0x1f0] sm:$0xff]
  %v104 = vld [vmem:[%s1 + $0x1f8] sm:$0xff]
  %v105 = vld [vmem:[%s1 + $0x200] sm:$0xff]
  %v106 = vld [vmem:[%s1 + $0x208] sm:$0xff]
  %v107 = vld [vmem:[%s1 + $0x210] sm:$0xff]
  %v108 = vld [vmem:[%s1 + $0x218] sm:$0xff]
  %v109 = vld [vmem:[%s1 + $0x220] sm:$0xff]
  %v110 = vld [vmem:[%s1 + $0x228] sm:$0xff]
  %v111 = vld [vmem:[%s1 + $0x230] sm:$0xff]
  %v112 = vld [vmem:[%s1 + $0x238] sm:$0xff]
  %v113 = vld [vmem:[%s1 + $0x240] sm:$0xff]
  %v114 = vld [vmem:[%s1 + $0x248] sm:$0xff]
  %v115 = vld [vmem:[%s1 + $0x250] sm:$0xff]
  %v116 = vld [vmem:[%s1 + $0x258] sm:$0xff]
  %v117 = vld [vmem:[%s1 + $0x260] sm:$0xff]
  %v118 = vld [vmem:[%s1 + $0x268] sm:$0xff]
  %v119 = vld [vmem:[%s1 + $0x270] sm:$0xff]
  %v120 = vld [vmem:[%s1 + $0x278] sm:$0xff]
  %v121 = vld [vmem:[%s1 + $0x280] sm:$0xff]
  %v122 = vld [vmem:[%s1 + $0x288] sm:$0xff]
  %v123 = vld [vmem:[%s1 + $0x290] sm:$0xff]
  %v124 = vld [vmem:[%s1 + $0x298] sm:$0xff]
  %v125 = vld [vmem:[%s1 + $0x2a0] sm:$0xff]
  %v126 = vld [vmem:[%s1 + $0x2a8] sm:$0xff]
  %v127 = vld [vmem:[%s1 + $0x2b0] sm:$0xff]
  %v128 = vld [vmem:[%s1 + $0x2b8] sm:$0xff]
  %v129 = vld [vmem:[%s1 + $0x2c0] sm:$0xff]
  %v130 = vld [vmem:[%s1 + $0x2c8] sm:$0xff]
  %v131 = vld [vmem:[%s1 + $0x2d0] sm:$0xff]
  %v132 = vld [vmem:[%s1 + $0x2d8] sm:$0xff]
  %v133 = vld [vmem:[%s1 + $0x2e0] sm:$0xff]
  %v134 = vld [vmem:[%s1 + $0x2e8] sm:$0xff]
  %v135 = vld [vmem:[%s1 + $0x2f0] sm:$0xff]
  %v136 = vld [vmem:[%s1 + $0x2f8] sm:$0xff]
  %v137 = vld [vmem:[%s1 + $0x300] sm:$0xff]
  %v138 = vld [vmem:[%s1 + $0x308] sm:$0xff]
  %v139 = vld [vmem:[%s1 + $0x310] sm:$0xff]
  %v140 = vld [vmem:[%s1 + $0x318] sm:$0xff]
  %v141 = vld [vmem:[%s1 + $0x320] sm:$0xff]
  %v142 = vld [vmem:[%s1 + $0x328] sm:$0xff]
  %v143 = vld [vmem:[%s1 + $0x330] sm:$0xff]
  %v144 = vld [vmem:[%s1 + $0x338] sm:$0xff]
  %v145 = vld [vmem:[%s1 + $0x340] sm:$0xff]
  %v146 = vld [vmem:[%s1 + $0x348] sm:$0xff]
  %v147 = vld [vmem:[%s1 + $0x350] sm:$0xff]
  %v148 = vld [vmem:[%s1 + $0x358] sm:$0xff]
  %v149 = vld [vmem:[%s1 + $0x360] sm:$0xff]
  %v150 = vld [vmem:[%s1 + $0x368] sm:$0xff]
  %v151 = vld [vmem:[%s1 + $0x370] sm:$0xff]
  %v152 = vld [vmem:[%s1 + $0x378] sm:$0xff]
  %v153 = vld [vmem:[%s2] sm:$0xf]
  %v155 = vlaneseq
  %v156 = vshrl.u32 %v155, 7
  %v157 = vsub.s32 0, %v156
  %v158 = vrot.slane %v153, %v157
  %v159 = vlaneseq
  %v160 = vshrl.u32 %v159, 7
  %v161 = vsub.s32 1, %v160
  %v162 = vrot.slane %v153, %v161
  %v163 = vlaneseq
  %v164 = vshrl.u32 %v163, 7
  %v165 = vsub.s32 2, %v164
  %v166 = vrot.slane %v153, %v165
  %v167 = vlaneseq
  %v168 = vshrl.u32 %v167, 7
  %v169 = vsub.s32 3, %v168
  %v170 = vrot.slane %v153, %v169
  %v189 = vunpack.c.l.b16 %v27
  %v190 = vunpack.c.h.b16 %v27
  %v191 = vunpack.c.l.b16 %v28
  %v192 = vunpack.c.h.b16 %v28
  %v193 = vunpack.c.l.b16 %v29
  %v194 = vunpack.c.h.b16 %v29
  %v195 = vunpack.c.l.b16 %v30
  %v196 = vunpack.c.h.b16 %v30
  %v197 = vunpack.c.l.b16 %v31
  %v198 = vunpack.c.h.b16 %v31
  %v199 = vunpack.c.l.b16 %v32
  %v200 = vunpack.c.h.b16 %v32
  %v201 = vunpack.c.l.b16 %v33
  %v202 = vunpack.c.h.b16 %v33
  %v203 = vunpack.c.l.b16 %v34
  %v204 = vunpack.c.h.b16 %v34
  %v205 = vunpack.c.l.b16 %v35
  %v206 = vunpack.c.h.b16 %v35
  %v207 = vunpack.c.l.b16 %v36
  %v208 = vunpack.c.h.b16 %v36
  %v209 = vunpack.c.l.b16 %v37
  %v210 = vunpack.c.h.b16 %v37
  %v211 = vunpack.c.l.b16 %v38
  %v212 = vunpack.c.h.b16 %v38
  %v213 = vunpack.c.l.b16 %v39
  %v214 = vunpack.c.h.b16 %v39
  %v215 = vunpack.c.l.b16 %v40
  %v216 = vunpack.c.h.b16 %v40
  %v217 = vpack.c.b16 %v193, %v189
  %v218 = vpack.c.b16 %v194, %v190
  %v219 = vpack.c.b16 %v195, %v191
  %v220 = vpack.c.b16 %v196, %v192
  %v221 = vpack.c.b16 %v201, %v197
  %v222 = vpack.c.b16 %v202, %v198
  %v223 = vpack.c.b16 %v203, %v199
  %v224 = vpack.c.b16 %v204, %v200
  %v225 = vpack.c.b16 %v209, %v205
  %v226 = vpack.c.b16 %v210, %v206
  %v227 = vpack.c.b16 %v211, %v207
  %v228 = vpack.c.b16 %v212, %v208
  %v229 = vpack.c.b16 %v213, %v213
  %v230 = vpack.c.b16 %v214, %v214
  %v231 = vpack.c.b16 %v215, %v215
  %v232 = vpack.c.b16 %v216, %v216
  %v357 = vunpack.c.l.b16 %v41
  %v358 = vunpack.c.h.b16 %v41
  %v359 = vunpack.c.l.b16 %v42
  %v360 = vunpack.c.h.b16 %v42
  %v361 = vunpack.c.l.b16 %v43
  %v362 = vunpack.c.h.b16 %v43
  %v363 = vunpack.c.l.b16 %v44
  %v364 = vunpack.c.h.b16 %v44
  %v365 = vunpack.c.l.b16 %v45
  %v366 = vunpack.c.h.b16 %v45
  %v367 = vunpack.c.l.b16 %v46
  %v368 = vunpack.c.h.b16 %v46
  %v369 = vunpack.c.l.b16 %v47
  %v370 = vunpack.c.h.b16 %v47
  %v371 = vunpack.c.l.b16 %v48
  %v372 = vunpack.c.h.b16 %v48
  %v373 = vunpack.c.l.b16 %v49
  %v374 = vunpack.c.h.b16 %v49
  %v375 = vunpack.c.l.b16 %v50
  %v376 = vunpack.c.h.b16 %v50
  %v377 = vunpack.c.l.b16 %v51
  %v378 = vunpack.c.h.b16 %v51
  %v379 = vunpack.c.l.b16 %v52
  %v380 = vunpack.c.h.b16 %v52
  %v381 = vunpack.c.l.b16 %v53
  %v382 = vunpack.c.h.b16 %v53
  %v383 = vunpack.c.l.b16 %v54
  %v384 = vunpack.c.h.b16 %v54
  %v385 = vunpack.c.l.b16 %v55
  %v386 = vunpack.c.h.b16 %v55
  %v387 = vunpack.c.l.b16 %v56
  %v388 = vunpack.c.h.b16 %v56
  %v389 = vunpack.c.l.b16 %v57
  %v390 = vunpack.c.h.b16 %v57
  %v391 = vunpack.c.l.b16 %v58
  %v392 = vunpack.c.h.b16 %v58
  %v393 = vunpack.c.l.b16 %v59
  %v394 = vunpack.c.h.b16 %v59
  %v395 = vunpack.c.l.b16 %v60
  %v396 = vunpack.c.h.b16 %v60
  %v397 = vunpack.c.l.b16 %v61
  %v398 = vunpack.c.h.b16 %v61
  %v399 = vunpack.c.l.b16 %v62
  %v400 = vunpack.c.h.b16 %v62
  %v401 = vunpack.c.l.b16 %v63
  %v402 = vunpack.c.h.b16 %v63
  %v403 = vunpack.c.l.b16 %v64
  %v404 = vunpack.c.h.b16 %v64
  %v405 = vunpack.c.l.b16 %v65
  %v406 = vunpack.c.h.b16 %v65
  %v407 = vunpack.c.l.b16 %v66
  %v408 = vunpack.c.h.b16 %v66
  %v409 = vunpack.c.l.b16 %v67
  %v410 = vunpack.c.h.b16 %v67
  %v411 = vunpack.c.l.b16 %v68
  %v412 = vunpack.c.h.b16 %v68
  %v413 = vunpack.c.l.b16 %v69
  %v414 = vunpack.c.h.b16 %v69
  %v415 = vunpack.c.l.b16 %v70
  %v416 = vunpack.c.h.b16 %v70
  %v417 = vunpack.c.l.b16 %v71
  %v418 = vunpack.c.h.b16 %v71
  %v419 = vunpack.c.l.b16 %v72
  %v420 = vunpack.c.h.b16 %v72
  %v421 = vunpack.c.l.b16 %v73
  %v422 = vunpack.c.h.b16 %v73
  %v423 = vunpack.c.l.b16 %v74
  %v424 = vunpack.c.h.b16 %v74
  %v425 = vunpack.c.l.b16 %v75
  %v426 = vunpack.c.h.b16 %v75
  %v427 = vunpack.c.l.b16 %v76
  %v428 = vunpack.c.h.b16 %v76
  %v429 = vunpack.c.l.b16 %v77
  %v430 = vunpack.c.h.b16 %v77
  %v431 = vunpack.c.l.b16 %v78
  %v432 = vunpack.c.h.b16 %v78
  %v433 = vunpack.c.l.b16 %v79
  %v434 = vunpack.c.h.b16 %v79
  %v435 = vunpack.c.l.b16 %v80
  %v436 = vunpack.c.h.b16 %v80
  %v437 = vunpack.c.l.b16 %v81
  %v438 = vunpack.c.h.b16 %v81
  %v439 = vunpack.c.l.b16 %v82
  %v440 = vunpack.c.h.b16 %v82
  %v441 = vunpack.c.l.b16 %v83
  %v442 = vunpack.c.h.b16 %v83
  %v443 = vunpack.c.l.b16 %v84
  %v444 = vunpack.c.h.b16 %v84
  %v445 = vunpack.c.l.b16 %v85
  %v446 = vunpack.c.h.b16 %v85
  %v447 = vunpack.c.l.b16 %v86
  %v448 = vunpack.c.h.b16 %v86
  %v449 = vunpack.c.l.b16 %v87
  %v450 = vunpack.c.h.b16 %v87
  %v451 = vunpack.c.l.b16 %v88
  %v452 = vunpack.c.h.b16 %v88
  %v453 = vunpack.c.l.b16 %v89
  %v454 = vunpack.c.h.b16 %v89
  %v455 = vunpack.c.l.b16 %v90
  %v456 = vunpack.c.h.b16 %v90
  %v457 = vunpack.c.l.b16 %v91
  %v458 = vunpack.c.h.b16 %v91
  %v459 = vunpack.c.l.b16 %v92
  %v460 = vunpack.c.h.b16 %v92
  %v461 = vunpack.c.l.b16 %v93
  %v462 = vunpack.c.h.b16 %v93
  %v463 = vunpack.c.l.b16 %v94
  %v464 = vunpack.c.h.b16 %v94
  %v465 = vunpack.c.l.b16 %v95
  %v466 = vunpack.c.h.b16 %v95
  %v467 = vunpack.c.l.b16 %v96
  %v468 = vunpack.c.h.b16 %v96
  %v469 = vunpack.c.l.b16 %v97
  %v470 = vunpack.c.h.b16 %v97
  %v471 = vunpack.c.l.b16 %v98
  %v472 = vunpack.c.h.b16 %v98
  %v473 = vunpack.c.l.b16 %v99
  %v474 = vunpack.c.h.b16 %v99
  %v475 = vunpack.c.l.b16 %v100
  %v476 = vunpack.c.h.b16 %v100
  %v477 = vunpack.c.l.b16 %v101
  %v478 = vunpack.c.h.b16 %v101
  %v479 = vunpack.c.l.b16 %v102
  %v480 = vunpack.c.h.b16 %v102
  %v481 = vunpack.c.l.b16 %v103
  %v482 = vunpack.c.h.b16 %v103
  %v483 = vunpack.c.l.b16 %v104
  %v484 = vunpack.c.h.b16 %v104
  %v485 = vunpack.c.l.b16 %v105
  %v486 = vunpack.c.h.b16 %v105
  %v487 = vunpack.c.l.b16 %v106
  %v488 = vunpack.c.h.b16 %v106
  %v489 = vunpack.c.l.b16 %v107
  %v490 = vunpack.c.h.b16 %v107
  %v491 = vunpack.c.l.b16 %v108
  %v492 = vunpack.c.h.b16 %v108
  %v493 = vunpack.c.l.b16 %v109
  %v494 = vunpack.c.h.b16 %v109
  %v495 = vunpack.c.l.b16 %v110
  %v496 = vunpack.c.h.b16 %v110
  %v497 = vunpack.c.l.b16 %v111
  %v498 = vunpack.c.h.b16 %v111
  %v499 = vunpack.c.l.b16 %v112
  %v500 = vunpack.c.h.b16 %v112
  %v501 = vunpack.c.l.b16 %v113
  %v502 = vunpack.c.h.b16 %v113
  %v503 = vunpack.c.l.b16 %v114
  %v504 = vunpack.c.h.b16 %v114
  %v505 = vunpack.c.l.b16 %v115
  %v506 = vunpack.c.h.b16 %v115
  %v507 = vunpack.c.l.b16 %v116
  %v508 = vunpack.c.h.b16 %v116
  %v509 = vunpack.c.l.b16 %v117
  %v510 = vunpack.c.h.b16 %v117
  %v511 = vunpack.c.l.b16 %v118
  %v512 = vunpack.c.h.b16 %v118
  %v513 = vunpack.c.l.b16 %v119
  %v514 = vunpack.c.h.b16 %v119
  %v515 = vunpack.c.l.b16 %v120
  %v516 = vunpack.c.h.b16 %v120
  %v517 = vunpack.c.l.b16 %v121
  %v518 = vunpack.c.h.b16 %v121
  %v519 = vunpack.c.l.b16 %v122
  %v520 = vunpack.c.h.b16 %v122
  %v521 = vunpack.c.l.b16 %v123
  %v522 = vunpack.c.h.b16 %v123
  %v523 = vunpack.c.l.b16 %v124
  %v524 = vunpack.c.h.b16 %v124
  %v525 = vunpack.c.l.b16 %v125
  %v526 = vunpack.c.h.b16 %v125
  %v527 = vunpack.c.l.b16 %v126
  %v528 = vunpack.c.h.b16 %v126
  %v529 = vunpack.c.l.b16 %v127
  %v530 = vunpack.c.h.b16 %v127
  %v531 = vunpack.c.l.b16 %v128
  %v532 = vunpack.c.h.b16 %v128
  %v533 = vunpack.c.l.b16 %v129
  %v534 = vunpack.c.h.b16 %v129
  %v535 = vunpack.c.l.b16 %v130
  %v536 = vunpack.c.h.b16 %v130
  %v537 = vunpack.c.l.b16 %v131
  %v538 = vunpack.c.h.b16 %v131
  %v539 = vunpack.c.l.b16 %v132
  %v540 = vunpack.c.h.b16 %v132
  %v541 = vunpack.c.l.b16 %v133
  %v542 = vunpack.c.h.b16 %v133
  %v543 = vunpack.c.l.b16 %v134
  %v544 = vunpack.c.h.b16 %v134
  %v545 = vunpack.c.l.b16 %v135
  %v546 = vunpack.c.h.b16 %v135
  %v547 = vunpack.c.l.b16 %v136
  %v548 = vunpack.c.h.b16 %v136
  %v549 = vunpack.c.l.b16 %v137
  %v550 = vunpack.c.h.b16 %v137
  %v551 = vunpack.c.l.b16 %v138
  %v552 = vunpack.c.h.b16 %v138
  %v553 = vunpack.c.l.b16 %v139
  %v554 = vunpack.c.h.b16 %v139
  %v555 = vunpack.c.l.b16 %v140
  %v556 = vunpack.c.h.b16 %v140
  %v557 = vunpack.c.l.b16 %v141
  %v558 = vunpack.c.h.b16 %v141
  %v559 = vunpack.c.l.b16 %v142
  %v560 = vunpack.c.h.b16 %v142
  %v561 = vunpack.c.l.b16 %v143
  %v562 = vunpack.c.h.b16 %v143
  %v563 = vunpack.c.l.b16 %v144
  %v564 = vunpack.c.h.b16 %v144
  %v565 = vunpack.c.l.b16 %v145
  %v566 = vunpack.c.h.b16 %v145
  %v567 = vunpack.c.l.b16 %v146
  %v568 = vunpack.c.h.b16 %v146
  %v569 = vunpack.c.l.b16 %v147
  %v570 = vunpack.c.h.b16 %v147
  %v571 = vunpack.c.l.b16 %v148
  %v572 = vunpack.c.h.b16 %v148
  %v573 = vunpack.c.l.b16 %v149
  %v574 = vunpack.c.h.b16 %v149
  %v575 = vunpack.c.l.b16 %v150
  %v576 = vunpack.c.h.b16 %v150
  %v577 = vunpack.c.l.b16 %v151
  %v578 = vunpack.c.h.b16 %v151
  %v579 = vunpack.c.l.b16 %v152
  %v580 = vunpack.c.h.b16 %v152
  %v581 = vpack.c.b16 %v361, %v357
  %v582 = vpack.c.b16 %v362, %v358
  %v583 = vpack.c.b16 %v363, %v359
  %v584 = vpack.c.b16 %v364, %v360
  %v585 = vpack.c.b16 %v369, %v365
  %v586 = vpack.c.b16 %v370, %v366
  %v587 = vpack.c.b16 %v371, %v367
  %v588 = vpack.c.b16 %v372, %v368
  %v589 = vpack.c.b16 %v377, %v373
  %v590 = vpack.c.b16 %v378, %v374
  %v591 = vpack.c.b16 %v379, %v375
  %v592 = vpack.c.b16 %v380, %v376
  %v593 = vpack.c.b16 %v385, %v381
  %v594 = vpack.c.b16 %v386, %v382
  %v595 = vpack.c.b16 %v387, %v383
  %v596 = vpack.c.b16 %v388, %v384
  %v597 = vpack.c.b16 %v393, %v389
  %v598 = vpack.c.b16 %v394, %v390
  %v599 = vpack.c.b16 %v395, %v391
  %v600 = vpack.c.b16 %v396, %v392
  %v601 = vpack.c.b16 %v401, %v397
  %v602 = vpack.c.b16 %v402, %v398
  %v603 = vpack.c.b16 %v403, %v399
  %v604 = vpack.c.b16 %v404, %v400
  %v605 = vpack.c.b16 %v409, %v405
  %v606 = vpack.c.b16 %v410, %v406
  %v607 = vpack.c.b16 %v411, %v407
  %v608 = vpack.c.b16 %v412, %v408
  %v609 = vpack.c.b16 %v417, %v413
  %v610 = vpack.c.b16 %v418, %v414
  %v611 = vpack.c.b16 %v419, %v415
  %v612 = vpack.c.b16 %v420, %v416
  %v613 = vpack.c.b16 %v425, %v421
  %v614 = vpack.c.b16 %v426, %v422
  %v615 = vpack.c.b16 %v427, %v423
  %v616 = vpack.c.b16 %v428, %v424
  %v617 = vpack.c.b16 %v433, %v429
  %v618 = vpack.c.b16 %v434, %v430
  %v619 = vpack.c.b16 %v435, %v431
  %v620 = vpack.c.b16 %v436, %v432
  %v621 = vpack.c.b16 %v441, %v437
  %v622 = vpack.c.b16 %v442, %v438
  %v623 = vpack.c.b16 %v443, %v439
  %v624 = vpack.c.b16 %v444, %v440
  %v625 = vpack.c.b16 %v449, %v445
  %v626 = vpack.c.b16 %v450, %v446
  %v627 = vpack.c.b16 %v451, %v447
  %v628 = vpack.c.b16 %v452, %v448
  %v629 = vpack.c.b16 %v457, %v453
  %v630 = vpack.c.b16 %v458, %v454
  %v631 = vpack.c.b16 %v459, %v455
  %v632 = vpack.c.b16 %v460, %v456
  %v633 = vpack.c.b16 %v465, %v461
  %v634 = vpack.c.b16 %v466, %v462
  %v635 = vpack.c.b16 %v467, %v463
  %v636 = vpack.c.b16 %v468, %v464
  %v637 = vpack.c.b16 %v473, %v469
  %v638 = vpack.c.b16 %v474, %v470
  %v639 = vpack.c.b16 %v475, %v471
  %v640 = vpack.c.b16 %v476, %v472
  %v641 = vpack.c.b16 %v481, %v477
  %v642 = vpack.c.b16 %v482, %v478
  %v643 = vpack.c.b16 %v483, %v479
  %v644 = vpack.c.b16 %v484, %v480
  %v645 = vpack.c.b16 %v489, %v485
  %v646 = vpack.c.b16 %v490, %v486
  %v647 = vpack.c.b16 %v491, %v487
  %v648 = vpack.c.b16 %v492, %v488
  %v649 = vpack.c.b16 %v497, %v493
  %v650 = vpack.c.b16 %v498, %v494
  %v651 = vpack.c.b16 %v499, %v495
  %v652 = vpack.c.b16 %v500, %v496
  %v653 = vpack.c.b16 %v505, %v501
  %v654 = vpack.c.b16 %v506, %v502
  %v655 = vpack.c.b16 %v507, %v503
  %v656 = vpack.c.b16 %v508, %v504
  %v657 = vpack.c.b16 %v513, %v509
  %v658 = vpack.c.b16 %v514, %v510
  %v659 = vpack.c.b16 %v515, %v511
  %v660 = vpack.c.b16 %v516, %v512
  %v661 = vpack.c.b16 %v521, %v517
  %v662 = vpack.c.b16 %v522, %v518
  %v663 = vpack.c.b16 %v523, %v519
  %v664 = vpack.c.b16 %v524, %v520
  %v665 = vpack.c.b16 %v529, %v525
  %v666 = vpack.c.b16 %v530, %v526
  %v667 = vpack.c.b16 %v531, %v527
  %v668 = vpack.c.b16 %v532, %v528
  %v669 = vpack.c.b16 %v537, %v533
  %v670 = vpack.c.b16 %v538, %v534
  %v671 = vpack.c.b16 %v539, %v535
  %v672 = vpack.c.b16 %v540, %v536
  %v673 = vpack.c.b16 %v545, %v541
  %v674 = vpack.c.b16 %v546, %v542
  %v675 = vpack.c.b16 %v547, %v543
  %v676 = vpack.c.b16 %v548, %v544
  %v677 = vpack.c.b16 %v553, %v549
  %v678 = vpack.c.b16 %v554, %v550
  %v679 = vpack.c.b16 %v555, %v551
  %v680 = vpack.c.b16 %v556, %v552
  %v681 = vpack.c.b16 %v561, %v557
  %v682 = vpack.c.b16 %v562, %v558
  %v683 = vpack.c.b16 %v563, %v559
  %v684 = vpack.c.b16 %v564, %v560
  %v685 = vpack.c.b16 %v569, %v565
  %v686 = vpack.c.b16 %v570, %v566
  %v687 = vpack.c.b16 %v571, %v567
  %v688 = vpack.c.b16 %v572, %v568
  %v689 = vpack.c.b16 %v577, %v573
  %v690 = vpack.c.b16 %v578, %v574
  %v691 = vpack.c.b16 %v579, %v575
  %v692 = vpack.c.b16 %v580, %v576
  %vm805 = vcmask 523264
  %v807 = vsel %vm805, %v220, 0
  %v810 = vsel %vm805, %v224, 0
  %v813 = vsel %vm805, %v228, 0
  %v816 = vsel %vm805, %v232, 0
  %818 = vmatprep.subr.bf16.mxu0 %v582
  %819 = vmatpush1.bf16.msra.mxu0 %v581
  %820 = vmatprep.subr.bf16.mxu0 %v586
  %821 = vmatpush1.bf16.msra.mxu0 %v585
  %822 = vmatprep.subr.bf16.mxu0 %v590
  %823 = vmatpush1.bf16.msra.mxu0 %v589
  %824 = vmatprep.subr.bf16.mxu0 %v594
  %825 = vmatpush1.bf16.msra.mxu0 %v593
  %826 = vmatprep.subr.bf16.mxu0 %v598
  %827 = vmatpush1.bf16.msra.mxu0 %v597
  %828 = vmatprep.subr.bf16.mxu0 %v602
  %829 = vmatpush1.bf16.msra.mxu0 %v601
  %830 = vmatprep.subr.bf16.mxu0 %v606
  %831 = vmatpush1.bf16.msra.mxu0 %v605
  %832 = vmatprep.subr.bf16.mxu0 %v610
  %833 = vmatpush1.bf16.msra.mxu0 %v609
  %834 = vmatprep.subr.bf16.mxu0 %v614
  %835 = vmatpush1.bf16.msra.mxu0 %v613
  %836 = vmatprep.subr.bf16.mxu0 %v618
  %837 = vmatpush1.bf16.msra.mxu0 %v617
  %838 = vmatprep.subr.bf16.mxu0 %v622
  %839 = vmatpush1.bf16.msra.mxu0 %v621
  %840 = vmatprep.subr.bf16.mxu0 %v626
  %841 = vmatpush1.bf16.msra.mxu0 %v625
  %842 = vmatprep.subr.bf16.mxu0 %v630
  %843 = vmatpush1.bf16.msra.mxu0 %v629
  %844 = vmatprep.subr.bf16.mxu0 %v634
  %845 = vmatpush1.bf16.msra.mxu0 %v633
  %846 = vmatprep.subr.bf16.mxu0 %v638
  %847 = vmatpush1.bf16.msra.mxu0 %v637
  %848 = vmatprep.subr.bf16.mxu0 %v642
  %849 = vmatpush1.bf16.msra.mxu0 %v641
  %850 = vmatprep.mubr.bf16.mxu0 %v218
  %851 = vmatmul.mubr.bf16.gmra.mrb[0].mxu0 %v217
  %v852 = vpop.f32.mrb[0].mxu0
  %v853 = vadd.f32 %v158, %v852
  %v854 = vpop.f32.mrb[0].mxu0
  %v855 = vadd.f32 %v162, %v854
  %v856 = vpop.f32.mrb[0].mxu0
  %v857 = vadd.f32 %v158, %v856
  %v858 = vpop.f32.mrb[0].mxu0
  %v859 = vadd.f32 %v162, %v858
  %860 = vmatprep.mubr.bf16.mxu0 %v222
  %861 = vmatmul.mubr.bf16.gmra.mrb[0].mxu0 %v221
  %v862 = vpop.f32.mrb[0].mxu0
  %v863 = vadd.f32 %v158, %v862
  %v864 = vpop.f32.mrb[0].mxu0
  %v865 = vadd.f32 %v162, %v864
  %v866 = vpop.f32.mrb[0].mxu0
  %v867 = vadd.f32 %v158, %v866
  %v868 = vpop.f32.mrb[0].mxu0
  %v869 = vadd.f32 %v162, %v868
  %870 = vmatprep.mubr.bf16.mxu0 %v226
  %871 = vmatmul.mubr.bf16.gmra.mrb[0].mxu0 %v225
  %v872 = vpop.f32.mrb[0].mxu0
  %v873 = vadd.f32 %v158, %v872
  %v874 = vpop.f32.mrb[0].mxu0
  %v875 = vadd.f32 %v162, %v874
  %v876 = vpop.f32.mrb[0].mxu0
  %v877 = vadd.f32 %v158, %v876
  %v878 = vpop.f32.mrb[0].mxu0
  %v879 = vadd.f32 %v162, %v878
  %880 = vmatprep.mubr.bf16.mxu0 %v230
  %881 = vmatmul.mubr.bf16.gmra.mrb[0].mxu0 %v229
  %v882 = vpop.f32.mrb[0].mxu0
  %v883 = vadd.f32 %v158, %v882
  %v884 = vpop.f32.mrb[0].mxu0
  %v885 = vadd.f32 %v162, %v884
  %v886 = vpop.f32.mrb[0].mxu0
  %v887 = vpop.f32.mrb[0].mxu0
  %888 = vdwg.mxu0
  %889 = vmatprep.subr.bf16.mxu0 %v646
  %890 = vmatpush1.bf16.msra.mxu0 %v645
  %891 = vmatprep.subr.bf16.mxu0 %v650
  %892 = vmatpush1.bf16.msra.mxu0 %v649
  %893 = vmatprep.subr.bf16.mxu0 %v654
  %894 = vmatpush1.bf16.msra.mxu0 %v653
  %895 = vmatprep.subr.bf16.mxu0 %v658
  %896 = vmatpush1.bf16.msra.mxu0 %v657
  %897 = vmatprep.subr.bf16.mxu0 %v662
  %898 = vmatpush1.bf16.msra.mxu0 %v661
  %899 = vmatprep.subr.bf16.mxu0 %v666
  %900 = vmatpush1.bf16.msra.mxu0 %v665
  %901 = vmatprep.subr.bf16.mxu0 %v670
  %902 = vmatpush1.bf16.msra.mxu0 %v669
  %903 = vmatprep.subr.bf16.mxu0 %v674
  %904 = vmatpush1.bf16.msra.mxu0 %v673
  %905 = vmatprep.subr.bf16.mxu0 %v678
  %906 = vmatpush1.bf16.msra.mxu0 %v677
  %907 = vmatprep.subr.bf16.mxu0 %v682
  %908 = vmatpush1.bf16.msra.mxu0 %v681
  %909 = vmatprep.subr.bf16.mxu0 %v686
  %910 = vmatpush1.bf16.msra.mxu0 %v685
  %911 = vmatprep.subr.bf16.mxu0 %v690
  %912 = vmatpush1.bf16.msra.mxu0 %v689
  %913 = vmatprep.subr.bf16.mxu0 0
  %914 = vmatpush1.bf16.msra.mxu0 0
  %915 = vmatprep.subr.bf16.mxu0 0
  %916 = vmatpush1.bf16.msra.mxu0 0
  %917 = vmatprep.subr.bf16.mxu0 0
  %918 = vmatpush1.bf16.msra.mxu0 0
  %919 = vmatprep.subr.bf16.mxu0 0
  %920 = vmatpush1.bf16.msra.mxu0 0
  %921 = vmatprep.mubr.bf16.mxu0 %v807
  %922 = vmatmul.mubr.bf16.gmra.mrb[0].mxu0 %v219
  %v923 = vpop.f32.mrb[0].mxu0
  %v924 = vadd.f32 %v853, %v923
  %v925 = vpop.f32.mrb[0].mxu0
  %v926 = vadd.f32 %v855, %v925
  %v927 = vpop.f32.mrb[0].mxu0
  %v928 = vadd.f32 %v857, %v927
  %v929 = vpop.f32.mrb[0].mxu0
  %v930 = vadd.f32 %v859, %v929
  %931 = vmatprep.mubr.bf16.mxu0 %v810
  %932 = vmatmul.mubr.bf16.gmra.mrb[0].mxu0 %v223
  %v933 = vpop.f32.mrb[0].mxu0
  %v934 = vadd.f32 %v863, %v933
  %v935 = vpop.f32.mrb[0].mxu0
  %v936 = vadd.f32 %v865, %v935
  %v937 = vpop.f32.mrb[0].mxu0
  %v938 = vadd.f32 %v867, %v937
  %v939 = vpop.f32.mrb[0].mxu0
  %v940 = vadd.f32 %v869, %v939
  %941 = vmatprep.mubr.bf16.mxu0 %v813
  %942 = vmatmul.mubr.bf16.gmra.mrb[0].mxu0 %v227
  %v943 = vpop.f32.mrb[0].mxu0
  %v944 = vadd.f32 %v873, %v943
  %v945 = vpop.f32.mrb[0].mxu0
  %v946 = vadd.f32 %v875, %v945
  %v947 = vpop.f32.mrb[0].mxu0
  %v948 = vadd.f32 %v877, %v947
  %v949 = vpop.f32.mrb[0].mxu0
  %v950 = vadd.f32 %v879, %v949
  %951 = vmatprep.mubr.bf16.mxu0 %v816
  %952 = vmatmul.mubr.bf16.gmra.mrb[0].mxu0 %v231
  %v953 = vpop.f32.mrb[0].mxu0
  %v954 = vadd.f32 %v883, %v953
  %v955 = vpop.f32.mrb[0].mxu0
  %v956 = vadd.f32 %v885, %v955
  %v957 = vpop.f32.mrb[0].mxu0
  %v958 = vpop.f32.mrb[0].mxu0
  %959 = vdwg.mxu0
  %960 = vmatprep.subr.bf16.mxu0 %v584
  %961 = vmatpush1.bf16.msra.mxu0 %v583
  %962 = vmatprep.subr.bf16.mxu0 %v588
  %963 = vmatpush1.bf16.msra.mxu0 %v587
  %964 = vmatprep.subr.bf16.mxu0 %v592
  %965 = vmatpush1.bf16.msra.mxu0 %v591
  %966 = vmatprep.subr.bf16.mxu0 %v596
  %967 = vmatpush1.bf16.msra.mxu0 %v595
  %968 = vmatprep.subr.bf16.mxu0 %v600
  %969 = vmatpush1.bf16.msra.mxu0 %v599
  %970 = vmatprep.subr.bf16.mxu0 %v604
  %971 = vmatpush1.bf16.msra.mxu0 %v603
  %972 = vmatprep.subr.bf16.mxu0 %v608
  %973 = vmatpush1.bf16.msra.mxu0 %v607
  %974 = vmatprep.subr.bf16.mxu0 %v612
  %975 = vmatpush1.bf16.msra.mxu0 %v611
  %976 = vmatprep.subr.bf16.mxu0 %v616
  %977 = vmatpush1.bf16.msra.mxu0 %v615
  %978 = vmatprep.subr.bf16.mxu0 %v620
  %979 = vmatpush1.bf16.msra.mxu0 %v619
  %980 = vmatprep.subr.bf16.mxu0 %v624
  %981 = vmatpush1.bf16.msra.mxu0 %v623
  %982 = vmatprep.subr.bf16.mxu0 %v628
  %983 = vmatpush1.bf16.msra.mxu0 %v627
  %984 = vmatprep.subr.bf16.mxu0 %v632
  %985 = vmatpush1.bf16.msra.mxu0 %v631
  %986 = vmatprep.subr.bf16.mxu0 %v636
  %987 = vmatpush1.bf16.msra.mxu0 %v635
  %988 = vmatprep.subr.bf16.mxu0 %v640
  %989 = vmatpush1.bf16.msra.mxu0 %v639
  %990 = vmatprep.subr.bf16.mxu0 %v644
  %991 = vmatpush1.bf16.msra.mxu0 %v643
  %992 = vmatprep.mubr.bf16.mxu0 %v218
  %993 = vmatmul.mubr.bf16.gmra.mrb[0].mxu0 %v217
  %v994 = vpop.f32.mrb[0].mxu0
  %v995 = vadd.f32 %v166, %v994
  %v996 = vpop.f32.mrb[0].mxu0
  %v997 = vadd.f32 %v170, %v996
  %v998 = vpop.f32.mrb[0].mxu0
  %v999 = vadd.f32 %v166, %v998
  %v1000 = vpop.f32.mrb[0].mxu0
  %v1001 = vadd.f32 %v170, %v1000
  %1002 = vmatprep.mubr.bf16.mxu0 %v222
  %1003 = vmatmul.mubr.bf16.gmra.mrb[0].mxu0 %v221
  %v1004 = vpop.f32.mrb[0].mxu0
  %v1005 = vadd.f32 %v166, %v1004
  %v1006 = vpop.f32.mrb[0].mxu0
  %v1007 = vadd.f32 %v170, %v1006
  %v1008 = vpop.f32.mrb[0].mxu0
  %v1009 = vadd.f32 %v166, %v1008
  %v1010 = vpop.f32.mrb[0].mxu0
  %v1011 = vadd.f32 %v170, %v1010
  %1012 = vmatprep.mubr.bf16.mxu0 %v226
  %1013 = vmatmul.mubr.bf16.gmra.mrb[0].mxu0 %v225
  %v1014 = vpop.f32.mrb[0].mxu0
  %v1015 = vadd.f32 %v166, %v1014
  %v1016 = vpop.f32.mrb[0].mxu0
  %v1017 = vadd.f32 %v170, %v1016
  %v1018 = vpop.f32.mrb[0].mxu0
  %v1019 = vadd.f32 %v166, %v1018
  %v1020 = vpop.f32.mrb[0].mxu0
  %v1021 = vadd.f32 %v170, %v1020
  %1022 = vmatprep.mubr.bf16.mxu0 %v230
  %1023 = vmatmul.mubr.bf16.gmra.mrb[0].mxu0 %v229
  %v1024 = vpop.f32.mrb[0].mxu0
  %v1025 = vadd.f32 %v166, %v1024
  %v1026 = vpop.f32.mrb[0].mxu0
  %v1027 = vadd.f32 %v170, %v1026
  %v1028 = vpop.f32.mrb[0].mxu0
  %v1029 = vpop.f32.mrb[0].mxu0
  %1030 = vdwg.mxu0
  %1031 = vmatprep.subr.bf16.mxu0 %v648
  %1032 = vmatpush1.bf16.msra.mxu0 %v647
  %1033 = vmatprep.subr.bf16.mxu0 %v652
  %1034 = vmatpush1.bf16.msra.mxu0 %v651
  %1035 = vmatprep.subr.bf16.mxu0 %v656
  %1036 = vmatpush1.bf16.msra.mxu0 %v655
  %1037 = vmatprep.subr.bf16.mxu0 %v660
  %1038 = vmatpush1.bf16.msra.mxu0 %v659
  %1039 = vmatprep.subr.bf16.mxu0 %v664
  %1040 = vmatpush1.bf16.msra.mxu0 %v663
  %1041 = vmatprep.subr.bf16.mxu0 %v668
  %1042 = vmatpush1.bf16.msra.mxu0 %v667
  %1043 = vmatprep.subr.bf16.mxu0 %v672
  %1044 = vmatpush1.bf16.msra.mxu0 %v671
  %1045 = vmatprep.subr.bf16.mxu0 %v676
  %1046 = vmatpush1.bf16.msra.mxu0 %v675
  %1047 = vmatprep.subr.bf16.mxu0 %v680
  %1048 = vmatpush1.bf16.msra.mxu0 %v679
  %1049 = vmatprep.subr.bf16.mxu0 %v684
  %1050 = vmatpush1.bf16.msra.mxu0 %v683
  %1051 = vmatprep.subr.bf16.mxu0 %v688
  %1052 = vmatpush1.bf16.msra.mxu0 %v687
  %1053 = vmatprep.subr.bf16.mxu0 %v692
  %1054 = vmatpush1.bf16.msra.mxu0 %v691
  %1055 = vmatprep.subr.bf16.mxu0 0
  %1056 = vmatpush1.bf16.msra.mxu0 0
  %1057 = vmatprep.subr.bf16.mxu0 0
  %1058 = vmatpush1.bf16.msra.mxu0 0
  %1059 = vmatprep.subr.bf16.mxu0 0
  %1060 = vmatpush1.bf16.msra.mxu0 0
  %1061 = vmatprep.subr.bf16.mxu0 0
  %1062 = vmatpush1.bf16.msra.mxu0 0
  %1063 = vmatprep.mubr.bf16.mxu0 %v807
  %1064 = vmatmul.mubr.bf16.gmra.mrb[0].mxu0 %v219
  %v1065 = vpop.f32.mrb[0].mxu0
  %v1066 = vadd.f32 %v995, %v1065
  %v1067 = vpop.f32.mrb[0].mxu0
  %v1068 = vadd.f32 %v997, %v1067
  %v1069 = vpop.f32.mrb[0].mxu0
  %v1070 = vadd.f32 %v999, %v1069
  %v1071 = vpop.f32.mrb[0].mxu0
  %v1072 = vadd.f32 %v1001, %v1071
  %1073 = vmatprep.mubr.bf16.mxu0 %v810
  %1074 = vmatmul.mubr.bf16.gmra.mrb[0].mxu0 %v223
  %v1075 = vpop.f32.mrb[0].mxu0
  %v1076 = vadd.f32 %v1005, %v1075
  %v1077 = vpop.f32.mrb[0].mxu0
  %v1078 = vadd.f32 %v1007, %v1077
  %v1079 = vpop.f32.mrb[0].mxu0
  %v1080 = vadd.f32 %v1009, %v1079
  %v1081 = vpop.f32.mrb[0].mxu0
  %v1082 = vadd.f32 %v1011, %v1081
  %1083 = vmatprep.mubr.bf16.mxu0 %v813
  %1084 = vmatmul.mubr.bf16.gmra.mrb[0].mxu0 %v227
  %v1085 = vpop.f32.mrb[0].mxu0
  %v1086 = vadd.f32 %v1015, %v1085
  %v1087 = vpop.f32.mrb[0].mxu0
  %v1088 = vadd.f32 %v1017, %v1087
  %v1089 = vpop.f32.mrb[0].mxu0
  %v1090 = vadd.f32 %v1019, %v1089
  %v1091 = vpop.f32.mrb[0].mxu0
  %v1092 = vadd.f32 %v1021, %v1091
  %1093 = vmatprep.mubr.bf16.mxu0 %v816
  %1094 = vmatmul.mubr.bf16.gmra.mrb[0].mxu0 %v231
  %v1095 = vpop.f32.mrb[0].mxu0
  %v1096 = vadd.f32 %v1025, %v1095
  %v1097 = vpop.f32.mrb[0].mxu0
  %v1098 = vadd.f32 %v1027, %v1097
  %v1099 = vpop.f32.mrb[0].mxu0
  %v1100 = vpop.f32.mrb[0].mxu0
  %1101 = vdwg.mxu0
  %v1102 = vmax.f32 %v924, 0.0
  %v1103 = vmax.f32 %v926, 0.0
  %v1104 = vmax.f32 %v1066, 0.0
  %v1105 = vmax.f32 %v1068, 0.0
  %v1106 = vmax.f32 %v928, 0.0
  %v1107 = vmax.f32 %v930, 0.0
  %v1108 = vmax.f32 %v1070, 0.0
  %v1109 = vmax.f32 %v1072, 0.0
  %v1110 = vmax.f32 %v934, 0.0
  %v1111 = vmax.f32 %v936, 0.0
  %v1112 = vmax.f32 %v1076, 0.0
  %v1113 = vmax.f32 %v1078, 0.0
  %v1114 = vmax.f32 %v938, 0.0
  %v1115 = vmax.f32 %v940, 0.0
  %v1116 = vmax.f32 %v1080, 0.0
  %v1117 = vmax.f32 %v1082, 0.0
  %v1118 = vmax.f32 %v944, 0.0
  %v1119 = vmax.f32 %v946, 0.0
  %v1120 = vmax.f32 %v1086, 0.0
  %v1121 = vmax.f32 %v1088, 0.0
  %v1122 = vmax.f32 %v948, 0.0
  %v1123 = vmax.f32 %v950, 0.0
  %v1124 = vmax.f32 %v1090, 0.0
  %v1125 = vmax.f32 %v1092, 0.0
  %v1126 = vmax.f32 %v954, 0.0
  %v1127 = vmax.f32 %v956, 0.0
  %v1128 = vmax.f32 %v1096, 0.0
  %v1129 = vmax.f32 %v1098, 0.0
  %v1130 = vpack.c.bf16 %v1106, %v1102
  %v1131 = vpack.c.bf16 %v1107, %v1103
  %v1132 = vpack.c.bf16 %v1108, %v1104
  %v1133 = vpack.c.bf16 %v1109, %v1105
  %v1134 = vpack.c.bf16 %v1114, %v1110
  %v1135 = vpack.c.bf16 %v1115, %v1111
  %v1136 = vpack.c.bf16 %v1116, %v1112
  %v1137 = vpack.c.bf16 %v1117, %v1113
  %v1138 = vpack.c.bf16 %v1122, %v1118
  %v1139 = vpack.c.bf16 %v1123, %v1119
  %v1140 = vpack.c.bf16 %v1124, %v1120
  %v1141 = vpack.c.bf16 %v1125, %v1121
  %v1142 = vpack.c.bf16 %v1126, %v1126
  %v1143 = vpack.c.bf16 %v1127, %v1127
  %v1144 = vpack.c.bf16 %v1128, %v1128
  %v1145 = vpack.c.bf16 %v1129, %v1129
  %v1146 = vld [vmem:[%s3] sm:$0xf]
  %v1147 = vld [vmem:[%s3 + $0x4] sm:$0xf]
  %v1148 = vld [vmem:[%s3 + $0x8] sm:$0xf]
  %v1149 = vld [vmem:[%s3 + $0xc] sm:$0xf]
  %v1150 = vld [vmem:[%s3 + $0x10] sm:$0xf]
  %v1151 = vld [vmem:[%s3 + $0x14] sm:$0xf]
  %v1152 = vld [vmem:[%s3 + $0x18] sm:$0xf]
  %v1153 = vld [vmem:[%s3 + $0x1c] sm:$0xf]
  %v1154 = vld [vmem:[%s3 + $0x20] sm:$0xf]
  %v1155 = vld [vmem:[%s3 + $0x24] sm:$0xf]
  %v1156 = vld [vmem:[%s3 + $0x28] sm:$0xf]
  %v1157 = vld [vmem:[%s3 + $0x2c] sm:$0xf]
  %v1158 = vld [vmem:[%s3 + $0x30] sm:$0xf]
  %v1159 = vld [vmem:[%s3 + $0x34] sm:$0xf]
  %v1160 = vld [vmem:[%s3 + $0x38] sm:$0xf]
  %v1161 = vld [vmem:[%s3 + $0x3c] sm:$0xf]
  %v1162 = vld [vmem:[%s3 + $0x40] sm:$0xf]
  %v1163 = vld [vmem:[%s3 + $0x44] sm:$0xf]
  %v1164 = vld [vmem:[%s3 + $0x48] sm:$0xf]
  %v1165 = vld [vmem:[%s3 + $0x4c] sm:$0xf]
  %v1166 = vld [vmem:[%s3 + $0x50] sm:$0xf]
  %v1167 = vld [vmem:[%s3 + $0x54] sm:$0xf]
  %v1168 = vld [vmem:[%s3 + $0x58] sm:$0xf]
  %v1169 = vld [vmem:[%s3 + $0x5c] sm:$0xf]
  %v1170 = vld [vmem:[%s3 + $0x60] sm:$0xf]
  %v1171 = vld [vmem:[%s3 + $0x64] sm:$0xf]
  %v1172 = vld [vmem:[%s3 + $0x68] sm:$0xf]
  %v1173 = vld [vmem:[%s3 + $0x6c] sm:$0xf]
  %v1174 = vld [vmem:[%s3 + $0x70] sm:$0xf]
  %v1175 = vld [vmem:[%s3 + $0x74] sm:$0xf]
  %v1176 = vld [vmem:[%s3 + $0x78] sm:$0xf]
  %v1177 = vld [vmem:[%s3 + $0x7c] sm:$0xf]
  %v1178 = vld [vmem:[%s3 + $0x80] sm:$0xf]
  %v1179 = vld [vmem:[%s3 + $0x84] sm:$0xf]
  %v1180 = vld [vmem:[%s3 + $0x88] sm:$0xf]
  %v1181 = vld [vmem:[%s3 + $0x8c] sm:$0xf]
  %v1182 = vld [vmem:[%s3 + $0x90] sm:$0xf]
  %v1183 = vld [vmem:[%s3 + $0x94] sm:$0xf]
  %v1184 = vld [vmem:[%s3 + $0x98] sm:$0xf]
  %v1185 = vld [vmem:[%s3 + $0x9c] sm:$0xf]
  %v1186 = vld [vmem:[%s3 + $0xa0] sm:$0xf]
  %v1187 = vld [vmem:[%s3 + $0xa4] sm:$0xf]
  %v1188 = vld [vmem:[%s3 + $0xa8] sm:$0xf]
  %v1189 = vld [vmem:[%s3 + $0xac] sm:$0xf]
  %v1190 = vld [vmem:[%s3 + $0xb0] sm:$0xf]
  %v1191 = vld [vmem:[%s3 + $0xb4] sm:$0xf]
  %v1192 = vld [vmem:[%s3 + $0xb8] sm:$0xf]
  %v1193 = vld [vmem:[%s3 + $0xbc] sm:$0xf]
  %v1194 = vld [vmem:[%s3 + $0xc0] sm:$0xf]
  %v1195 = vld [vmem:[%s3 + $0xc4] sm:$0xf]
  %v1196 = vld [vmem:[%s3 + $0xc8] sm:$0xf]
  %v1197 = vld [vmem:[%s3 + $0xcc] sm:$0xf]
  %v1198 = vld [vmem:[%s3 + $0xd0] sm:$0xf]
  %v1199 = vld [vmem:[%s3 + $0xd4] sm:$0xf]
  %v1200 = vld [vmem:[%s3 + $0xd8] sm:$0xf]
  %v1201 = vld [vmem:[%s3 + $0xdc] sm:$0xf]
  %v1202 = vld [vmem:[%s3 + $0xe0] sm:$0xf]
  %v1203 = vld [vmem:[%s3 + $0xe4] sm:$0xf]
  %v1204 = vld [vmem:[%s3 + $0xe8] sm:$0xf]
  %v1205 = vld [vmem:[%s3 + $0xec] sm:$0xf]
  %v1206 = vld [vmem:[%s3 + $0xf0] sm:$0xf]
  %v1207 = vld [vmem:[%s3 + $0xf4] sm:$0xf]
  %v1208 = vld [vmem:[%s3 + $0xf8] sm:$0xf]
  %v1209 = vld [vmem:[%s3 + $0xfc] sm:$0xf]
  %v1210 = vld [vmem:[%s4] sm:$0x1]
  %v1212 = vlaneseq
  %v1213 = vshrl.u32 %v1212, 7
  %v1214 = vsub.s32 0, %v1213
  %v1215 = vrot.slane %v1210, %v1214
  %v1281 = vunpack.c.l.b16 %v1146
  %v1282 = vunpack.c.l.b16 %v1147
  %v1283 = vunpack.c.l.b16 %v1148
  %v1284 = vunpack.c.l.b16 %v1149
  %v1285 = vunpack.c.l.b16 %v1150
  %v1286 = vunpack.c.l.b16 %v1151
  %v1287 = vunpack.c.l.b16 %v1152
  %v1288 = vunpack.c.l.b16 %v1153
  %v1289 = vunpack.c.l.b16 %v1154
  %v1290 = vunpack.c.l.b16 %v1155
  %v1291 = vunpack.c.l.b16 %v1156
  %v1292 = vunpack.c.l.b16 %v1157
  %v1293 = vunpack.c.l.b16 %v1158
  %v1294 = vunpack.c.l.b16 %v1159
  %v1295 = vunpack.c.l.b16 %v1160
  %v1296 = vunpack.c.l.b16 %v1161
  %v1297 = vunpack.c.l.b16 %v1162
  %v1298 = vunpack.c.l.b16 %v1163
  %v1299 = vunpack.c.l.b16 %v1164
  %v1300 = vunpack.c.l.b16 %v1165
  %v1301 = vunpack.c.l.b16 %v1166
  %v1302 = vunpack.c.l.b16 %v1167
  %v1303 = vunpack.c.l.b16 %v1168
  %v1304 = vunpack.c.l.b16 %v1169
  %v1305 = vunpack.c.l.b16 %v1170
  %v1306 = vunpack.c.l.b16 %v1171
  %v1307 = vunpack.c.l.b16 %v1172
  %v1308 = vunpack.c.l.b16 %v1173
  %v1309 = vunpack.c.l.b16 %v1174
  %v1310 = vunpack.c.l.b16 %v1175
  %v1311 = vunpack.c.l.b16 %v1176
  %v1312 = vunpack.c.l.b16 %v1177
  %v1313 = vunpack.c.l.b16 %v1178
  %v1314 = vunpack.c.l.b16 %v1179
  %v1315 = vunpack.c.l.b16 %v1180
  %v1316 = vunpack.c.l.b16 %v1181
  %v1317 = vunpack.c.l.b16 %v1182
  %v1318 = vunpack.c.l.b16 %v1183
  %v1319 = vunpack.c.l.b16 %v1184
  %v1320 = vunpack.c.l.b16 %v1185
  %v1321 = vunpack.c.l.b16 %v1186
  %v1322 = vunpack.c.l.b16 %v1187
  %v1323 = vunpack.c.l.b16 %v1188
  %v1324 = vunpack.c.l.b16 %v1189
  %v1325 = vunpack.c.l.b16 %v1190
  %v1326 = vunpack.c.l.b16 %v1191
  %v1327 = vunpack.c.l.b16 %v1192
  %v1328 = vunpack.c.l.b16 %v1193
  %v1329 = vunpack.c.l.b16 %v1194
  %v1330 = vunpack.c.l.b16 %v1195
  %v1331 = vunpack.c.l.b16 %v1196
  %v1332 = vunpack.c.l.b16 %v1197
  %v1333 = vunpack.c.l.b16 %v1198
  %v1334 = vunpack.c.l.b16 %v1199
  %v1335 = vunpack.c.l.b16 %v1200
  %v1336 = vunpack.c.l.b16 %v1201
  %v1337 = vunpack.c.l.b16 %v1202
  %v1338 = vunpack.c.l.b16 %v1203
  %v1339 = vunpack.c.l.b16 %v1204
  %v1340 = vunpack.c.l.b16 %v1205
  %v1341 = vunpack.c.l.b16 %v1206
  %v1342 = vunpack.c.l.b16 %v1207
  %v1343 = vunpack.c.l.b16 %v1208
  %v1344 = vunpack.c.l.b16 %v1209
  %v1345 = vpack.c.b16 %v1282, %v1281
  %v1346 = vpack.c.b16 %v1284, %v1283
  %v1347 = vpack.c.b16 %v1286, %v1285
  %v1348 = vpack.c.b16 %v1288, %v1287
  %v1349 = vpack.c.b16 %v1290, %v1289
  %v1350 = vpack.c.b16 %v1292, %v1291
  %v1351 = vpack.c.b16 %v1294, %v1293
  %v1352 = vpack.c.b16 %v1296, %v1295
  %v1353 = vpack.c.b16 %v1298, %v1297
  %v1354 = vpack.c.b16 %v1300, %v1299
  %v1355 = vpack.c.b16 %v1302, %v1301
  %v1356 = vpack.c.b16 %v1304, %v1303
  %v1357 = vpack.c.b16 %v1306, %v1305
  %v1358 = vpack.c.b16 %v1308, %v1307
  %v1359 = vpack.c.b16 %v1310, %v1309
  %v1360 = vpack.c.b16 %v1312, %v1311
  %v1361 = vpack.c.b16 %v1314, %v1313
  %v1362 = vpack.c.b16 %v1316, %v1315
  %v1363 = vpack.c.b16 %v1318, %v1317
  %v1364 = vpack.c.b16 %v1320, %v1319
  %v1365 = vpack.c.b16 %v1322, %v1321
  %v1366 = vpack.c.b16 %v1324, %v1323
  %v1367 = vpack.c.b16 %v1326, %v1325
  %v1368 = vpack.c.b16 %v1328, %v1327
  %v1369 = vpack.c.b16 %v1330, %v1329
  %v1370 = vpack.c.b16 %v1332, %v1331
  %v1371 = vpack.c.b16 %v1334, %v1333
  %v1372 = vpack.c.b16 %v1336, %v1335
  %v1373 = vpack.c.b16 %v1338, %v1337
  %v1374 = vpack.c.b16 %v1340, %v1339
  %v1375 = vpack.c.b16 %v1342, %v1341
  %v1376 = vpack.c.b16 %v1344, %v1343
  %1409 = vmatprep.subr.bf16.mxu0 0
  %1410 = vmatpush1.bf16.msra.mxu0 %v1345
  %1411 = vmatprep.subr.bf16.mxu0 0
  %1412 = vmatpush1.bf16.msra.mxu0 %v1346
  %1413 = vmatprep.subr.bf16.mxu0 0
  %1414 = vmatpush1.bf16.msra.mxu0 %v1347
  %1415 = vmatprep.subr.bf16.mxu0 0
  %1416 = vmatpush1.bf16.msra.mxu0 %v1348
  %1417 = vmatprep.subr.bf16.mxu0 0
  %1418 = vmatpush1.bf16.msra.mxu0 %v1349
  %1419 = vmatprep.subr.bf16.mxu0 0
  %1420 = vmatpush1.bf16.msra.mxu0 %v1350
  %1421 = vmatprep.subr.bf16.mxu0 0
  %1422 = vmatpush1.bf16.msra.mxu0 %v1351
  %1423 = vmatprep.subr.bf16.mxu0 0
  %1424 = vmatpush1.bf16.msra.mxu0 %v1352
  %1425 = vmatprep.subr.bf16.mxu0 0
  %1426 = vmatpush1.bf16.msra.mxu0 %v1353
  %1427 = vmatprep.subr.bf16.mxu0 0
  %1428 = vmatpush1.bf16.msra.mxu0 %v1354
  %1429 = vmatprep.subr.bf16.mxu0 0
  %1430 = vmatpush1.bf16.msra.mxu0 %v1355
  %1431 = vmatprep.subr.bf16.mxu0 0
  %1432 = vmatpush1.bf16.msra.mxu0 %v1356
  %1433 = vmatprep.subr.bf16.mxu0 0
  %1434 = vmatpush1.bf16.msra.mxu0 %v1357
  %1435 = vmatprep.subr.bf16.mxu0 0
  %1436 = vmatpush1.bf16.msra.mxu0 %v1358
  %1437 = vmatprep.subr.bf16.mxu0 0
  %1438 = vmatpush1.bf16.msra.mxu0 %v1359
  %1439 = vmatprep.subr.bf16.mxu0 0
  %1440 = vmatpush1.bf16.msra.mxu0 %v1360
  %1441 = vmatprep.mubr.bf16.mxu0 %v1131
  %1442 = vmatmul.mubr.bf16.gmra.mrb[0].mxu0 %v1130
  %v1443 = vpop.f32.mrb[0].mxu0
  %v1444 = vadd.f32 %v1215, %v1443
  %v1445 = vpop.f32.mrb[0].mxu0
  %v1446 = vpop.f32.mrb[0].mxu0
  %v1447 = vadd.f32 %v1215, %v1446
  %v1448 = vpop.f32.mrb[0].mxu0
  %1449 = vmatprep.mubr.bf16.mxu0 %v1135
  %1450 = vmatmul.mubr.bf16.gmra.mrb[0].mxu0 %v1134
  %v1451 = vpop.f32.mrb[0].mxu0
  %v1452 = vadd.f32 %v1215, %v1451
  %v1453 = vpop.f32.mrb[0].mxu0
  %v1454 = vpop.f32.mrb[0].mxu0
  %v1455 = vadd.f32 %v1215, %v1454
  %v1456 = vpop.f32.mrb[0].mxu0
  %1457 = vmatprep.mubr.bf16.mxu0 %v1139
  %1458 = vmatmul.mubr.bf16.gmra.mrb[0].mxu0 %v1138
  %v1459 = vpop.f32.mrb[0].mxu0
  %v1460 = vadd.f32 %v1215, %v1459
  %v1461 = vpop.f32.mrb[0].mxu0
  %v1462 = vpop.f32.mrb[0].mxu0
  %v1463 = vadd.f32 %v1215, %v1462
  %v1464 = vpop.f32.mrb[0].mxu0
  %1465 = vmatprep.mubr.bf16.mxu0 %v1143
  %1466 = vmatmul.mubr.bf16.gmra.mrb[0].mxu0 %v1142
  %v1467 = vpop.f32.mrb[0].mxu0
  %v1468 = vadd.f32 %v1215, %v1467
  %v1469 = vpop.f32.mrb[0].mxu0
  %v1470 = vpop.f32.mrb[0].mxu0
  %v1471 = vpop.f32.mrb[0].mxu0
  %1472 = vdwg.mxu0
  %1473 = vmatprep.subr.bf16.mxu0 0
  %1474 = vmatpush1.bf16.msra.mxu0 %v1361
  %1475 = vmatprep.subr.bf16.mxu0 0
  %1476 = vmatpush1.bf16.msra.mxu0 %v1362
  %1477 = vmatprep.subr.bf16.mxu0 0
  %1478 = vmatpush1.bf16.msra.mxu0 %v1363
  %1479 = vmatprep.subr.bf16.mxu0 0
  %1480 = vmatpush1.bf16.msra.mxu0 %v1364
  %1481 = vmatprep.subr.bf16.mxu0 0
  %1482 = vmatpush1.bf16.msra.mxu0 %v1365
  %1483 = vmatprep.subr.bf16.mxu0 0
  %1484 = vmatpush1.bf16.msra.mxu0 %v1366
  %1485 = vmatprep.subr.bf16.mxu0 0
  %1486 = vmatpush1.bf16.msra.mxu0 %v1367
  %1487 = vmatprep.subr.bf16.mxu0 0
  %1488 = vmatpush1.bf16.msra.mxu0 %v1368
  %1489 = vmatprep.subr.bf16.mxu0 0
  %1490 = vmatpush1.bf16.msra.mxu0 %v1369
  %1491 = vmatprep.subr.bf16.mxu0 0
  %1492 = vmatpush1.bf16.msra.mxu0 %v1370
  %1493 = vmatprep.subr.bf16.mxu0 0
  %1494 = vmatpush1.bf16.msra.mxu0 %v1371
  %1495 = vmatprep.subr.bf16.mxu0 0
  %1496 = vmatpush1.bf16.msra.mxu0 %v1372
  %1497 = vmatprep.subr.bf16.mxu0 0
  %1498 = vmatpush1.bf16.msra.mxu0 %v1373
  %1499 = vmatprep.subr.bf16.mxu0 0
  %1500 = vmatpush1.bf16.msra.mxu0 %v1374
  %1501 = vmatprep.subr.bf16.mxu0 0
  %1502 = vmatpush1.bf16.msra.mxu0 %v1375
  %1503 = vmatprep.subr.bf16.mxu0 0
  %1504 = vmatpush1.bf16.msra.mxu0 %v1376
  %1505 = vmatprep.mubr.bf16.mxu0 %v1133
  %1506 = vmatmul.mubr.bf16.gmra.mrb[0].mxu0 %v1132
  %v1507 = vpop.f32.mrb[0].mxu0
  %v1508 = vadd.f32 %v1444, %v1507
  %v1509 = vpop.f32.mrb[0].mxu0
  %v1510 = vpop.f32.mrb[0].mxu0
  %v1511 = vadd.f32 %v1447, %v1510
  %v1512 = vpop.f32.mrb[0].mxu0
  %1513 = vmatprep.mubr.bf16.mxu0 %v1137
  %1514 = vmatmul.mubr.bf16.gmra.mrb[0].mxu0 %v1136
  %v1515 = vpop.f32.mrb[0].mxu0
  %v1516 = vadd.f32 %v1452, %v1515
  %v1517 = vpop.f32.mrb[0].mxu0
  %v1518 = vpop.f32.mrb[0].mxu0
  %v1519 = vadd.f32 %v1455, %v1518
  %v1520 = vpop.f32.mrb[0].mxu0
  %1521 = vmatprep.mubr.bf16.mxu0 %v1141
  %1522 = vmatmul.mubr.bf16.gmra.mrb[0].mxu0 %v1140
  %v1523 = vpop.f32.mrb[0].mxu0
  %v1524 = vadd.f32 %v1460, %v1523
  %v1525 = vpop.f32.mrb[0].mxu0
  %v1526 = vpop.f32.mrb[0].mxu0
  %v1527 = vadd.f32 %v1463, %v1526
  %v1528 = vpop.f32.mrb[0].mxu0
  %1529 = vmatprep.mubr.bf16.mxu0 %v1145
  %1530 = vmatmul.mubr.bf16.gmra.mrb[0].mxu0 %v1144
  %v1531 = vpop.f32.mrb[0].mxu0
  %v1532 = vadd.f32 %v1468, %v1531
  %v1533 = vpop.f32.mrb[0].mxu0
  %v1534 = vpop.f32.mrb[0].mxu0
  %v1535 = vpop.f32.mrb[0].mxu0
  %1536 = vdwg.mxu0
  %v1537 = vmax.f32 %v1508, 0.0
  %v1538 = vmax.f32 %v1511, 0.0
  %v1539 = vmax.f32 %v1516, 0.0
  %v1540 = vmax.f32 %v1519, 0.0
  %v1541 = vmax.f32 %v1524, 0.0
  %v1542 = vmax.f32 %v1527, 0.0
  %v1543 = vmax.f32 %v1532, 0.0
  %v1544 = vpack.c.bf16 %v1538, %v1537
  %v1545 = vpack.c.bf16 %v1540, %v1539
  %v1546 = vpack.c.bf16 %v1542, %v1541
  %v1547 = vpack.c.bf16 %v1543, %v1543
  %v1548 = vld [vmem:[%s5] sm:$0xf]
  %v1549 = vld [vmem:[%s5 + $0x4] sm:$0xf]
  %v1550 = vld [vmem:[%s5 + $0x8] sm:$0xf]
  %v1551 = vld [vmem:[%s5 + $0xc] sm:$0xf]
  %v1552 = vld [vmem:[%s6] sm:$0x1]
  %v1554 = vlaneseq
  %v1555 = vshrl.u32 %v1554, 7
  %v1556 = vsub.s32 0, %v1555
  %v1557 = vrot.slane %v1552, %v1556
  %v1563 = vunpack.c.l.b16 %v1548
  %v1564 = vunpack.c.l.b16 %v1549
  %v1565 = vunpack.c.l.b16 %v1550
  %v1566 = vunpack.c.l.b16 %v1551
  %v1567 = vpack.c.b16 %v1564, %v1563
  %v1568 = vpack.c.b16 %v1566, %v1565
  %vm1571 = vcmask 261120
  %v1573 = vsel %vm1571, %v1544, 0
  %v1576 = vsel %vm1571, %v1545, 0
  %v1579 = vsel %vm1571, %v1546, 0
  %v1582 = vsel %vm1571, %v1547, 0
  %1584 = vmatprep.subr.bf16.mxu0 0
  %1585 = vmatpush1.bf16.msra.mxu0 %v1567
  %1586 = vmatprep.subr.bf16.mxu0 0
  %1587 = vmatpush1.bf16.msra.mxu0 %v1568
  %1588 = vmatprep.subr.bf16.mxu0 0
  %1589 = vmatpush1.bf16.msra.mxu0 0
  %1590 = vmatprep.subr.bf16.mxu0 0
  %1591 = vmatpush1.bf16.msra.mxu0 0
  %1592 = vmatprep.subr.bf16.mxu0 0
  %1593 = vmatpush1.bf16.msra.mxu0 0
  %1594 = vmatprep.subr.bf16.mxu0 0
  %1595 = vmatpush1.bf16.msra.mxu0 0
  %1596 = vmatprep.subr.bf16.mxu0 0
  %1597 = vmatpush1.bf16.msra.mxu0 0
  %1598 = vmatprep.subr.bf16.mxu0 0
  %1599 = vmatpush1.bf16.msra.mxu0 0
  %1600 = vmatprep.subr.bf16.mxu0 0
  %1601 = vmatpush1.bf16.msra.mxu0 0
  %1602 = vmatprep.subr.bf16.mxu0 0
  %1603 = vmatpush1.bf16.msra.mxu0 0
  %1604 = vmatprep.subr.bf16.mxu0 0
  %1605 = vmatpush1.bf16.msra.mxu0 0
  %1606 = vmatprep.subr.bf16.mxu0 0
  %1607 = vmatpush1.bf16.msra.mxu0 0
  %1608 = vmatprep.subr.bf16.mxu0 0
  %1609 = vmatpush1.bf16.msra.mxu0 0
  %1610 = vmatprep.subr.bf16.mxu0 0
  %1611 = vmatpush1.bf16.msra.mxu0 0
  %1612 = vmatprep.subr.bf16.mxu0 0
  %1613 = vmatpush1.bf16.msra.mxu0 0
  %1614 = vmatprep.subr.bf16.mxu0 0
  %1615 = vmatpush1.bf16.msra.mxu0 0
  %1616 = vmatprep.mubr.bf16.mxu0 0
  %1617 = vmatmul.mubr.bf16.gmra.mrb[0].mxu0 %v1573
  %v1618 = vpop.f32.mrb[0].mxu0
  %v1619 = vadd.f32 %v1557, %v1618
  %v1620 = vpop.f32.mrb[0].mxu0
  %v1621 = vpop.f32.mrb[0].mxu0
  %v1622 = vadd.f32 %v1557, %v1621
  %v1623 = vpop.f32.mrb[0].mxu0
  %1624 = vmatprep.mubr.bf16.mxu0 0
  %1625 = vmatmul.mubr.bf16.gmra.mrb[0].mxu0 %v1576
  %v1626 = vpop.f32.mrb[0].mxu0
  %v1627 = vadd.f32 %v1557, %v1626
  %v1628 = vpop.f32.mrb[0].mxu0
  %v1629 = vpop.f32.mrb[0].mxu0
  %v1630 = vadd.f32 %v1557, %v1629
  %v1631 = vpop.f32.mrb[0].mxu0
  %1632 = vmatprep.mubr.bf16.mxu0 0
  %1633 = vmatmul.mubr.bf16.gmra.mrb[0].mxu0 %v1579
  %v1634 = vpop.f32.mrb[0].mxu0
  %v1635 = vadd.f32 %v1557, %v1634
  %v1636 = vpop.f32.mrb[0].mxu0
  %v1637 = vpop.f32.mrb[0].mxu0
  %v1638 = vadd.f32 %v1557, %v1637
  %v1639 = vpop.f32.mrb[0].mxu0
  %1640 = vmatprep.mubr.bf16.mxu0 0
  %1641 = vmatmul.mubr.bf16.gmra.mrb[0].mxu0 %v1582
  %v1642 = vpop.f32.mrb[0].mxu0
  %v1643 = vadd.f32 %v1557, %v1642
  %v1644 = vpop.f32.mrb[0].mxu0
  %v1645 = vpop.f32.mrb[0].mxu0
  %v1646 = vpop.f32.mrb[0].mxu0
  %1647 = vdwg.mxu0
  %1648 = vst.msk [vmem:[%s7] sm:$0xff] %vm1571, %v1619
  %1649 = vst.msk [vmem:[%s7 + $0x8] sm:$0xff] %vm1571, %v1622
  %1650 = vst.msk [vmem:[%s7 + $0x10] sm:$0xff] %vm1571, %v1627
  %1651 = vst.msk [vmem:[%s7 + $0x18] sm:$0xff] %vm1571, %v1630
  %1652 = vst.msk [vmem:[%s7 + $0x20] sm:$0xff] %vm1571, %v1635
  %1653 = vst.msk [vmem:[%s7 + $0x28] sm:$0xff] %vm1571, %v1638
  %1654 = vst.msk [vmem:[%s7 + $0x30] sm:$0xff] %vm1571, %v1643
  // Predicated region
  $region30: #{_forward_core.7} parent=0 // pred_check
    _
  $region31: #{_forward_core.7} parent=0 // pred_check_branch
    %1656 = sbr.rel (0) target = $region33
  $region32: #{_forward_core.7} parent=0 // pred_region
    _
  $region33: #{_forward_core.7} parent=0 // pred_fallthru
    _
  // Predicated region
  $region34: #{_forward_core.7} parent=0 // pred_check
    _
  $region35: #{_forward_core.7} parent=0 // pred_check_branch
    %1658 = sbr.rel (0) target = $region37
  $region36: #{_forward_core.7} parent=0 // pred_region
    _
  $region37: #{_forward_core.7} parent=0 // pred_fallthru
    _

// kernel: _forward_core.6
$region0: #{_forward_core.6}
  #allocation0 [shape = 'u32[]', space=smem, size = 0x4, offset = 0x4, fixed_abs, tag = 'smem constant byte address 0x4 - core index']
  #allocation1 [shape = 'u32[144,128]{1,0:T(1,128)}', space=vmem, size = 0x12000, scoped, tag = 'internal scratch']
  #allocation2 [shape = 'f32[1,1]{1,0:T(1,128)S(1)}', space=vmem, size = 0x200, scoped, tag = 'scoped memory for _forward_core.6']
  #allocation3 [shape = 'f32[1,1]{1,0:T(1,128)S(1)}', space=vmem, size = 0x200, scoped, tag = 'scoped memory for _forward_core.6']
  %s0 = inlined_call_operand.smem [shape: u32[45], index: -1, kind: input, shape index: {}]
  %s1 = sld [smem:[%s0]]
  %s2 = scalar_lea.smem %s0, 1
  %s3 = sld [smem:[%s2]]
  %s4 = scalar_lea.smem %s0, 2
  %s5 = sld [smem:[%s4]]
  %s6 = scalar_lea.smem %s0, 3
  %s7 = sld [smem:[%s6]]
  %s8 = scalar_lea.smem %s0, 4
  %s9 = sld [smem:[%s8]]
  %s10 = scalar_lea.smem %s0, 5
  %s11 = sld [smem:[%s10]]
  %s12 = scalar_lea.smem %s0, 6
  %s13 = sld [smem:[%s12]]
  %s14 = scalar_lea.smem %s0, 7
  %s15 = sld [smem:[%s14]]
  %s16 = scalar_lea.smem %s0, 8
  %s17 = sld [smem:[%s16]]
  %s18 = scalar_lea.smem %s0, 9
  %s19 = sld [smem:[%s18]]
  %s20 = scalar_lea.smem %s0, 10
  %s21 = sld [smem:[%s20]]
  %s22 = scalar_lea.smem %s0, 11
  %s23 = sld [smem:[%s22]]
  %s24 = scalar_lea.smem %s0, 12
  %s25 = sld [smem:[%s24]]
  %s26 = scalar_lea.smem %s0, 13
  %s27 = sld [smem:[%s26]]
  %s28 = scalar_lea.smem %s0, 14
  %s29 = sld [smem:[%s28]]
  %s30 = scalar_lea.smem %s0, 15
  %s31 = sld [smem:[%s30]]
  %s32 = scalar_lea.smem %s0, 16
  %s33 = sld [smem:[%s32]]
  %s34 = scalar_lea.smem %s0, 17
  %s35 = sld [smem:[%s34]]
  %s36 = scalar_lea.smem %s0, 18
  %s37 = sld [smem:[%s36]]
  %s38 = scalar_lea.smem %s0, 19
  %s39 = sld [smem:[%s38]]
  %s40 = scalar_lea.smem %s0, 20
  %s41 = sld [smem:[%s40]]
  %s42 = scalar_lea.smem %s0, 21
  %s43 = sld [smem:[%s42]]
  %s44 = scalar_lea.smem %s0, 22
  %s45 = sld [smem:[%s44]]
  %s46 = scalar_lea.smem %s0, 23
  %s47 = sld [smem:[%s46]]
  %s48 = scalar_lea.smem %s0, 24
  %s49 = sld [smem:[%s48]]
  %s50 = scalar_lea.smem %s0, 25
  %s51 = sld [smem:[%s50]]
  %s52 = scalar_lea.smem %s0, 26
  %s53 = sld [smem:[%s52]]
  %s54 = scalar_lea.smem %s0, 27
  %s55 = sld [smem:[%s54]]
  %s56 = scalar_lea.smem %s0, 28
  %s57 = sld [smem:[%s56]]
  %s58 = scalar_lea.smem %s0, 29
  %s59 = sld [smem:[%s58]]
  %s60 = scalar_lea.smem %s0, 30
  %s61 = sld [smem:[%s60]]
  %s62 = scalar_lea.smem %s0, 31
  %s63 = sld [smem:[%s62]]
  %s64 = scalar_lea.smem %s0, 32
  %s65 = sld [smem:[%s64]]
  %s66 = scalar_lea.smem %s0, 33
  %s67 = sld [smem:[%s66]]
  %s68 = scalar_lea.smem %s0, 34
  %s69 = sld [smem:[%s68]]
  %s70 = scalar_lea.smem %s0, 35
  %s71 = sld [smem:[%s70]]
  %s72 = scalar_lea.smem %s0, 36
  %s73 = sld [smem:[%s72]]
  %s74 = scalar_lea.smem %s0, 37
  %s75 = sld [smem:[%s74]]
  %s76 = scalar_lea.smem %s0, 38
  %s77 = sld [smem:[%s76]]
  %s78 = scalar_lea.smem %s0, 39
  %s79 = sld [smem:[%s78]]
  %s80 = scalar_lea.smem %s0, 40
  %s81 = sld [smem:[%s80]]
  %s82 = scalar_lea.smem %s0, 41
  %s83 = sld [smem:[%s82]]
  %s84 = scalar_lea.smem %s0, 42
  %s85 = sld [smem:[%s84]]
  %s86 = scalar_lea.smem %s0, 43
  %s87 = sld [smem:[%s86]]
  %s88 = scalar_lea.smem %s0, 44
  %s89 = sld [smem:[%s88]]
  %s90 = sld [smem:[#allocation0]]
  $region186: #{_forward_core.6} parent=0
    _
  %s92 = ssub.s32 1, %s90
  %s93 = scalar_select 0, %s92, %s90
  %v94 = vstv %s75
  %95 = vst [vmem:[#allocation2] sm:$0x1] %v94
  %v96 = vstv %s87
  %97 = vst [vmem:[#allocation3] sm:$0x1] %v96
  // Predicated region
  $region2: #{_forward_core.6} parent=0 // pred_check
    _
  $region3: #{_forward_core.6} parent=0 // pred_check_branch
    %99 = sbr.rel (0) target = $region5
  $region4: #{_forward_core.6} parent=0 // pred_region
    _
  $region5: #{_forward_core.6} parent=0 // pred_fallthru
    _
  // Predicated region
  $region6: #{_forward_core.6} parent=0 // pred_check
    _
  $region7: #{_forward_core.6} parent=0 // pred_check_branch
    %101 = sbr.rel (0) target = $region9
  $region8: #{_forward_core.6} parent=0 // pred_region
    _
  $region9: #{_forward_core.6} parent=0 // pred_fallthru
    _
  // Predicated region
  $region10: #{_forward_core.6} parent=0 // pred_check
    _
  $region11: #{_forward_core.6} parent=0 // pred_check_branch
    %103 = sbr.rel (0) target = $region13
  $region12: #{_forward_core.6} parent=0 // pred_region
    _
  $region13: #{_forward_core.6} parent=0 // pred_fallthru
    _
  // Predicated region
  $region14: #{_forward_core.6} parent=0 // pred_check
    _
  $region15: #{_forward_core.6} parent=0 // pred_check_branch
    %105 = sbr.rel (0) target = $region17
  $region16: #{_forward_core.6} parent=0 // pred_region
    _
  $region17: #{_forward_core.6} parent=0 // pred_fallthru
    _
  // Predicated region
  $region18: #{_forward_core.6} parent=0 // pred_check
    _
  $region19: #{_forward_core.6} parent=0 // pred_check_branch
    %107 = sbr.rel (0) target = $region21
  $region20: #{_forward_core.6} parent=0 // pred_region
    _
  $region21: #{_forward_core.6} parent=0 // pred_fallthru
    _
  // Predicated region
  $region22: #{_forward_core.6} parent=0 // pred_check
    _
  $region23: #{_forward_core.6} parent=0 // pred_check_branch
    %109 = sbr.rel (0) target = $region25
  $region24: #{_forward_core.6} parent=0 // pred_region
    _
  $region25: #{_forward_core.6} parent=0 // pred_fallthru
    _
  // Predicated region
  $region26: #{_forward_core.6} parent=0 // pred_check
    _
  $region27: #{_forward_core.6} parent=0 // pred_check_branch
    %111 = sbr.rel (0) target = $region29
  $region28: #{_forward_core.6} parent=0 // pred_region
    _
  $region29: #{_forward_core.6} parent=0 // pred_fallthru
    _
  // Predicated region
  $region30: #{_forward_core.6} parent=0 // pred_check
    _
  $region31: #{_forward_core.6} parent=0 // pred_check_branch
    %113 = sbr.rel (0) target = $region33
  $region32: #{_forward_core.6} parent=0 // pred_region
    _
  $region33: #{_forward_core.6} parent=0 // pred_fallthru
    _
  // Predicated region
  $region34: #{_forward_core.6} parent=0 // pred_check
    _
  $region35: #{_forward_core.6} parent=0 // pred_check_branch
    %115 = sbr.rel (0) target = $region37
  $region36: #{_forward_core.6} parent=0 // pred_region
    _
  $region37: #{_forward_core.6} parent=0 // pred_fallthru
    _
  // Predicated region
  $region38: #{_forward_core.6} parent=0 // pred_check
    _
  $region39: #{_forward_core.6} parent=0 // pred_check_branch
    %117 = sbr.rel (0) target = $region41
  $region40: #{_forward_core.6} parent=0 // pred_region
    _
  $region41: #{_forward_core.6} parent=0 // pred_fallthru
    _
  // Predicated region
  $region42: #{_forward_core.6} parent=0 // pred_check
    _
  $region43: #{_forward_core.6} parent=0 // pred_check_branch
    %119 = sbr.rel (0) target = $region45
  $region44: #{_forward_core.6} parent=0 // pred_region
    _
  $region45: #{_forward_core.6} parent=0 // pred_fallthru
    _
  // Predicated region
  $region46: #{_forward_core.6} parent=0 // pred_check
    _
  $region47: #{_forward_core.6} parent=0 // pred_check_branch
    %121 = sbr.rel (0) target = $region49
  $region48: #{_forward_core.6} parent=0 // pred_region
    _
  $region49: #{_forward_core.6} parent=0 // pred_fallthru
    _
  // Predicated region
  $region50: #{_forward_core.6} parent=0 // pred_check
    _
  $region51: #{_forward_core.6} parent=0 // pred_check_branch
    %123 = sbr.rel (0) target = $region53
  $region52: #{_forward_core.6} parent=0 // pred_region
    _
  $region53: #{_forward_core.6} parent=0 // pred_fallthru
    _
  // Predicated region
  $region54: #{_forward_core.6} parent=0 // pred_check
    _
  $region55: #{_forward_core.6} parent=0 // pred_check_branch
    %125 = sbr.rel (0) target = $region57
  $region56: #{_forward_core.6} parent=0 // pred_region
    _
  $region57: #{_forward_core.6} parent=0 // pred_fallthru
    _
  // Predicated region
  $region58: #{_forward_core.6} parent=0 // pred_check
    _
  $region59: #{_forward_core.6} parent=0 // pred_check_branch
    %127 = sbr.rel (0) target = $region61
  $region60: #{_forward_core.6} parent=0 // pred_region
    _
  $region61: #{_forward_core.6} parent=0 // pred_fallthru
    _
  // Predicated region
  $region62: #{_forward_core.6} parent=0 // pred_check
    _
  $region63: #{_forward_core.6} parent=0 // pred_check_branch
    %129 = sbr.rel (0) target = $region65
  $region64: #{_forward_core.6} parent=0 // pred_region
    _
  $region65: #{_forward_core.6} parent=0 // pred_fallthru
    _
  // Predicated region
  $region66: #{_forward_core.6} parent=0 // pred_check
    _
  $region67: #{_forward_core.6} parent=0 // pred_check_branch
    %131 = sbr.rel (0) target = $region69
  $region68: #{_forward_core.6} parent=0 // pred_region
    _
  $region69: #{_forward_core.6} parent=0 // pred_fallthru
    _
  // Predicated region
  $region70: #{_forward_core.6} parent=0 // pred_check
    _
  $region71: #{_forward_core.6} parent=0 // pred_check_branch
    %133 = sbr.rel (0) target = $region73
  $region72: #{_forward_core.6} parent=0 // pred_region
    _
  $region73: #{_forward_core.6} parent=0 // pred_fallthru
    _
  // Predicated region
  $region74: #{_forward_core.6} parent=0 // pred_check
    _
  $region75: #{_forward_core.6} parent=0 // pred_check_branch
    %135 = sbr.rel (0) target = $region77
  $region76: #{_forward_core.6} parent=0 // pred_region
    _
  $region77: #{_forward_core.6} parent=0 // pred_fallthru
    _
  // Predicated region
  $region78: #{_forward_core.6} parent=0 // pred_check
    _
  $region79: #{_forward_core.6} parent=0 // pred_check_branch
    %137 = sbr.rel (0) target = $region81
  $region80: #{_forward_core.6} parent=0 // pred_region
    _
  $region81: #{_forward_core.6} parent=0 // pred_fallthru
    _
  // Predicated region
  $region82: #{_forward_core.6} parent=0 // pred_check
    _
  $region83: #{_forward_core.6} parent=0 // pred_check_branch
    %139 = sbr.rel (0) target = $region85
  $region84: #{_forward_core.6} parent=0 // pred_region
    _
  $region85: #{_forward_core.6} parent=0 // pred_fallthru
    _
  // Predicated region
  $region86: #{_forward_core.6} parent=0 // pred_check
    _
  $region87: #{_forward_core.6} parent=0 // pred_check_branch
    %141 = sbr.rel (0) target = $region89
  $region88: #{_forward_core.6} parent=0 // pred_region
    _
  $region89: #{_forward_core.6} parent=0 // pred_fallthru
    _
  // Predicated region
  $region90: #{_forward_core.6} parent=0 // pred_check
    _
  $region91: #{_forward_core.6} parent=0 // pred_check_branch
    %143 = sbr.rel (0) target = $region93
  $region92: #{_forward_core.6} parent=0 // pred_region
    _
  $region93: #{_forward_core.6} parent=0 // pred_fallthru
    _
  // Predicated region
  $region94: #{_forward_core.6} parent=0 // pred_check
    _
  $region95: #{_forward_core.6} parent=0 // pred_check_branch
    %145 = sbr.rel (0) target = $region97
  $region96: #{_forward_core.6} parent=0 // pred_region
    _
  $region97: #{_forward_core.6} parent=0 // pred_fallthru
    _
  // Predicated region
  $region98: #{_forward_core.6} parent=0 // pred_check
    _
  $region99: #{_forward_core.6} parent=0 // pred_check_branch
    %147 = sbr.rel (0) target = $region101
  $region100: #{_forward_core.6} parent=0 // pred_region
    _
  $region101: #{_forward_core.6} parent=0 // pred_fallthru
    _
  // Predicated region
  $region102: #{_forward_core.6} parent=0 // pred_check
    _
  $region103: #{_forward_core.6} parent=0 // pred_check_branch
    %149 = sbr.rel (0) target = $region105
  $region104: #{_forward_core.6} parent=0 // pred_region
    _
  $region105: #{_forward_core.6} parent=0 // pred_fallthru
    _
  // Predicated region
  $region106: #{_forward_core.6} parent=0 // pred_check
    _
  $region107: #{_forward_core.6} parent=0 // pred_check_branch
    %151 = sbr.rel (0) target = $region109
  $region108: #{_forward_core.6} parent=0 // pred_region
    _
  $region109: #{_forward_core.6} parent=0 // pred_fallthru
    _
  // Predicated region
  $region110: #{_forward_core.6} parent=0 // pred_check
    _
  $region111: #{_forward_core.6} parent=0 // pred_check_branch
    %153 = sbr.rel (0) target = $region113
  $region112: #{_forward_core.6} parent=0 // pred_region
    _
  $region113: #{_forward_core.6} parent=0 // pred_fallthru
    _
  // Predicated region
  $region114: #{_forward_core.6} parent=0 // pred_check
    _
  $region115: #{_forward_core.6} parent=0 // pred_check_branch
    %155 = sbr.rel (0) target = $region117
  $region116: #{_forward_core.6} parent=0 // pred_region
    _
  $region117: #{_forward_core.6} parent=0 // pred_fallthru
    _
  // Predicated region
  $region118: #{_forward_core.6} parent=0 // pred_check
    _
  $region119: #{_forward_core.6} parent=0 // pred_check_branch
    %157 = sbr.rel (0) target = $region121
  $region120: #{_forward_core.6} parent=0 // pred_region
    _
  $region121: #{_forward_core.6} parent=0 // pred_fallthru
    _
  // Predicated region
  $region122: #{_forward_core.6} parent=0 // pred_check
    _
  $region123: #{_forward_core.6} parent=0 // pred_check_branch
    %159 = sbr.rel (0) target = $region125
  $region124: #{_forward_core.6} parent=0 // pred_region
    _
  $region125: #{_forward_core.6} parent=0 // pred_fallthru
    _
  // Predicated region
  $region126: #{_forward_core.6} parent=0 // pred_check
    _
  $region127: #{_forward_core.6} parent=0 // pred_check_branch
    %161 = sbr.rel (0) target = $region129
  $region128: #{_forward_core.6} parent=0 // pred_region
    _
  $region129: #{_forward_core.6} parent=0 // pred_fallthru
    _
  // Predicated region
  $region130: #{_forward_core.6} parent=0 // pred_check
    _
  $region131: #{_forward_core.6} parent=0 // pred_check_branch
    %163 = sbr.rel (0) target = $region133
  $region132: #{_forward_core.6} parent=0 // pred_region
    _
  $region133: #{_forward_core.6} parent=0 // pred_fallthru
    _
  // Predicated region
  $region134: #{_forward_core.6} parent=0 // pred_check
    _
  $region135: #{_forward_core.6} parent=0 // pred_check_branch
    %165 = sbr.rel (0) target = $region137
  $region136: #{_forward_core.6} parent=0 // pred_region
    _
  $region137: #{_forward_core.6} parent=0 // pred_fallthru
    _
  // Predicated region
  $region138: #{_forward_core.6} parent=0 // pred_check
    _
  $region139: #{_forward_core.6} parent=0 // pred_check_branch
    %167 = sbr.rel (0) target = $region141
  $region140: #{_forward_core.6} parent=0 // pred_region
    _
  $region141: #{_forward_core.6} parent=0 // pred_fallthru
    _
  // Predicated region
  $region142: #{_forward_core.6} parent=0 // pred_check
    _
  $region143: #{_forward_core.6} parent=0 // pred_check_branch
    %169 = sbr.rel (0) target = $region145
  $region144: #{_forward_core.6} parent=0 // pred_region
    _
  $region145: #{_forward_core.6} parent=0 // pred_fallthru
    _
  // Predicated region
  $region146: #{_forward_core.6} parent=0 // pred_check
    _
  $region147: #{_forward_core.6} parent=0 // pred_check_branch
    %171 = sbr.rel (0) target = $region149
  $region148: #{_forward_core.6} parent=0 // pred_region
    _
  $region149: #{_forward_core.6} parent=0 // pred_fallthru
    _
  // Predicated region
  $region150: #{_forward_core.6} parent=0 // pred_check
    _
  $region151: #{_forward_core.6} parent=0 // pred_check_branch
    %173 = sbr.rel (0) target = $region153
  $region152: #{_forward_core.6} parent=0 // pred_region
    _
  $region153: #{_forward_core.6} parent=0 // pred_fallthru
    _
  // Predicated region
  $region154: #{_forward_core.6} parent=0 // pred_check
    _
  $region155: #{_forward_core.6} parent=0 // pred_check_branch
    %175 = sbr.rel (0) target = $region157
  $region156: #{_forward_core.6} parent=0 // pred_region
    _
  $region157: #{_forward_core.6} parent=0 // pred_fallthru
    _
  // Predicated region
  $region158: #{_forward_core.6} parent=0 // pred_check
    _
  $region159: #{_forward_core.6} parent=0 // pred_check_branch
    %177 = sbr.rel (0) target = $region161
  $region160: #{_forward_core.6} parent=0 // pred_region
    _
  $region161: #{_forward_core.6} parent=0 // pred_fallthru
    _
  // Predicated region
  $region162: #{_forward_core.6} parent=0 // pred_check
    _
  $region163: #{_forward_core.6} parent=0 // pred_check_branch
    %179 = sbr.rel (0) target = $region165
  $region164: #{_forward_core.6} parent=0 // pred_region
    _
  $region165: #{_forward_core.6} parent=0 // pred_fallthru
    _
  // Predicated region
  $region166: #{_forward_core.6} parent=0 // pred_check
    _
  $region167: #{_forward_core.6} parent=0 // pred_check_branch
    %181 = sbr.rel (0) target = $region169
  $region168: #{_forward_core.6} parent=0 // pred_region
    _
  $region169: #{_forward_core.6} parent=0 // pred_fallthru
    _
  // Predicated region
  $region170: #{_forward_core.6} parent=0 // pred_check
    _
  $region171: #{_forward_core.6} parent=0 // pred_check_branch
    %183 = sbr.rel (0) target = $region173
  $region172: #{_forward_core.6} parent=0 // pred_region
    _
  $region173: #{_forward_core.6} parent=0 // pred_fallthru
    _
  // Predicated region
  $region174: #{_forward_core.6} parent=0 // pred_check
    _
  $region175: #{_forward_core.6} parent=0 // pred_check_branch
    %185 = sbr.rel (0) target = $region177
  $region176: #{_forward_core.6} parent=0 // pred_region
    _
  $region177: #{_forward_core.6} parent=0 // pred_fallthru
    _
  %v187 = vld [vmem:[%s1] sm:$0xf]
  %v188 = vld [vmem:[%s1 + $0x4] sm:$0xf]
  %v189 = vld [vmem:[%s17] sm:$0xff]
  %v190 = vld [vmem:[%s17 + $0x8] sm:$0xff]
  %v191 = vld [vmem:[%s17 + $0x10] sm:$0xff]
  %v192 = vld [vmem:[%s17 + $0x18] sm:$0xff]
  %v193 = vld [vmem:[%s17 + $0x20] sm:$0xff]
  %v194 = vld [vmem:[%s17 + $0x28] sm:$0xff]
  %v195 = vld [vmem:[%s17 + $0x30] sm:$0xff]
  %v196 = vld [vmem:[%s17 + $0x38] sm:$0xff]
  %v197 = vld [vmem:[%s17 + $0x40] sm:$0xff]
  %v198 = vld [vmem:[%s17 + $0x48] sm:$0xff]
  %v199 = vld [vmem:[%s17 + $0x50] sm:$0xff]
  %v200 = vld [vmem:[%s17 + $0x58] sm:$0xff]
  %v201 = vld [vmem:[%s17 + $0x60] sm:$0xff]
  %v202 = vld [vmem:[%s17 + $0x68] sm:$0xff]
  %v203 = vld [vmem:[%s17 + $0x70] sm:$0xff]
  %v204 = vld [vmem:[%s17 + $0x78] sm:$0xff]
  %v205 = vld [vmem:[%s19] sm:$0xf]
  %v207 = vlaneseq
  %v208 = vshrl.u32 %v207, 7
  %v209 = vsub.s32 0, %v208
  %v210 = vrot.slane %v205, %v209
  %v211 = vlaneseq
  %v212 = vshrl.u32 %v211, 7
  %v213 = vsub.s32 1, %v212
  %v214 = vrot.slane %v205, %v213
  %v215 = vlaneseq
  %v216 = vshrl.u32 %v215, 7
  %v217 = vsub.s32 2, %v216
  %v218 = vrot.slane %v205, %v217
  %v219 = vlaneseq
  %v220 = vshrl.u32 %v219, 7
  %v221 = vsub.s32 3, %v220
  %v222 = vrot.slane %v205, %v221
  %v229 = vunpack.c.l.b16 %v187
  %v230 = vunpack.c.l.b16 %v188
  %v231 = vpack.c.b16 %v230, %v229
  %v248 = vunpack.c.l.b16 %v189
  %v249 = vunpack.c.h.b16 %v189
  %v250 = vunpack.c.l.b16 %v190
  %v251 = vunpack.c.h.b16 %v190
  %v252 = vunpack.c.l.b16 %v191
  %v253 = vunpack.c.h.b16 %v191
  %v254 = vunpack.c.l.b16 %v192
  %v255 = vunpack.c.h.b16 %v192
  %v256 = vunpack.c.l.b16 %v193
  %v257 = vunpack.c.h.b16 %v193
  %v258 = vunpack.c.l.b16 %v194
  %v259 = vunpack.c.h.b16 %v194
  %v260 = vunpack.c.l.b16 %v195
  %v261 = vunpack.c.h.b16 %v195
  %v262 = vunpack.c.l.b16 %v196
  %v263 = vunpack.c.h.b16 %v196
  %v264 = vunpack.c.l.b16 %v197
  %v265 = vunpack.c.h.b16 %v197
  %v266 = vunpack.c.l.b16 %v198
  %v267 = vunpack.c.h.b16 %v198
  %v268 = vunpack.c.l.b16 %v199
  %v269 = vunpack.c.h.b16 %v199
  %v270 = vunpack.c.l.b16 %v200
  %v271 = vunpack.c.h.b16 %v200
  %v272 = vunpack.c.l.b16 %v201
  %v273 = vunpack.c.h.b16 %v201
  %v274 = vunpack.c.l.b16 %v202
  %v275 = vunpack.c.h.b16 %v202
  %v276 = vunpack.c.l.b16 %v203
  %v277 = vunpack.c.h.b16 %v203
  %v278 = vunpack.c.l.b16 %v204
  %v279 = vunpack.c.h.b16 %v204
  %v280 = vpack.c.b16 %v252, %v248
  %v281 = vpack.c.b16 %v253, %v249
  %v282 = vpack.c.b16 %v254, %v250
  %v283 = vpack.c.b16 %v255, %v251
  %v284 = vpack.c.b16 %v260, %v256
  %v285 = vpack.c.b16 %v261, %v257
  %v286 = vpack.c.b16 %v262, %v258
  %v287 = vpack.c.b16 %v263, %v259
  %v288 = vpack.c.b16 %v268, %v264
  %v289 = vpack.c.b16 %v269, %v265
  %v290 = vpack.c.b16 %v270, %v266
  %v291 = vpack.c.b16 %v271, %v267
  %v292 = vpack.c.b16 %v276, %v272
  %v293 = vpack.c.b16 %v277, %v273
  %v294 = vpack.c.b16 %v278, %v274
  %v295 = vpack.c.b16 %v279, %v275
  %vm312 = vcmask 523264
  %v314 = vsel %vm312, %v231, 0
  %316 = vmatprep.subr.bf16.mxu0 %v281
  %317 = vmatpush1.bf16.msra.mxu0 %v280
  %318 = vmatprep.subr.bf16.mxu0 %v285
  %319 = vmatpush1.bf16.msra.mxu0 %v284
  %320 = vmatprep.subr.bf16.mxu0 %v289
  %321 = vmatpush1.bf16.msra.mxu0 %v288
  %322 = vmatprep.subr.bf16.mxu0 %v293
  %323 = vmatpush1.bf16.msra.mxu0 %v292
  %324 = vmatprep.subr.bf16.mxu0 0
  %325 = vmatpush1.bf16.msra.mxu0 0
  %326 = vmatprep.subr.bf16.mxu0 0
  %327 = vmatpush1.bf16.msra.mxu0 0
  %328 = vmatprep.subr.bf16.mxu0 0
  %329 = vmatpush1.bf16.msra.mxu0 0
  %330 = vmatprep.subr.bf16.mxu0 0
  %331 = vmatpush1.bf16.msra.mxu0 0
  %332 = vmatprep.subr.bf16.mxu0 0
  %333 = vmatpush1.bf16.msra.mxu0 0
  %334 = vmatprep.subr.bf16.mxu0 0
  %335 = vmatpush1.bf16.msra.mxu0 0
  %336 = vmatprep.subr.bf16.mxu0 0
  %337 = vmatpush1.bf16.msra.mxu0 0
  %338 = vmatprep.subr.bf16.mxu0 0
  %339 = vmatpush1.bf16.msra.mxu0 0
  %340 = vmatprep.subr.bf16.mxu0 0
  %341 = vmatpush1.bf16.msra.mxu0 0
  %342 = vmatprep.subr.bf16.mxu0 0
  %343 = vmatpush1.bf16.msra.mxu0 0
  %344 = vmatprep.subr.bf16.mxu0 0
  %345 = vmatpush1.bf16.msra.mxu0 0
  %346 = vmatprep.subr.bf16.mxu0 0
  %347 = vmatpush1.bf16.msra.mxu0 0
  %348 = vmatprep.mubr.bf16.mxu0 0
  %349 = vmatmul.mubr.bf16.gmra.mrb[0].mxu0 %v314
  %v350 = vpop.f32.mrb[0].mxu0
  %v351 = vadd.f32 %v210, %v350
  %v352 = vpop.f32.mrb[0].mxu0
  %v353 = vadd.f32 %v214, %v352
  %v354 = vpop.f32.mrb[0].mxu0
  %v355 = vadd.f32 %v210, %v354
  %v356 = vpop.f32.mrb[0].mxu0
  %v357 = vadd.f32 %v214, %v356
  %358 = vdwg.mxu0
  %359 = vmatprep.subr.bf16.mxu0 %v283
  %360 = vmatpush1.bf16.msra.mxu0 %v282
  %361 = vmatprep.subr.bf16.mxu0 %v287
  %362 = vmatpush1.bf16.msra.mxu0 %v286
  %363 = vmatprep.subr.bf16.mxu0 %v291
  %364 = vmatpush1.bf16.msra.mxu0 %v290
  %365 = vmatprep.subr.bf16.mxu0 %v295
  %366 = vmatpush1.bf16.msra.mxu0 %v294
  %367 = vmatprep.subr.bf16.mxu0 0
  %368 = vmatpush1.bf16.msra.mxu0 0
  %369 = vmatprep.subr.bf16.mxu0 0
  %370 = vmatpush1.bf16.msra.mxu0 0
  %371 = vmatprep.subr.bf16.mxu0 0
  %372 = vmatpush1.bf16.msra.mxu0 0
  %373 = vmatprep.subr.bf16.mxu0 0
  %374 = vmatpush1.bf16.msra.mxu0 0
  %375 = vmatprep.subr.bf16.mxu0 0
  %376 = vmatpush1.bf16.msra.mxu0 0
  %377 = vmatprep.subr.bf16.mxu0 0
  %378 = vmatpush1.bf16.msra.mxu0 0
  %379 = vmatprep.subr.bf16.mxu0 0
  %380 = vmatpush1.bf16.msra.mxu0 0
  %381 = vmatprep.subr.bf16.mxu0 0
  %382 = vmatpush1.bf16.msra.mxu0 0
  %383 = vmatprep.subr.bf16.mxu0 0
  %384 = vmatpush1.bf16.msra.mxu0 0
  %385 = vmatprep.subr.bf16.mxu0 0
  %386 = vmatpush1.bf16.msra.mxu0 0
  %387 = vmatprep.subr.bf16.mxu0 0
  %388 = vmatpush1.bf16.msra.mxu0 0
  %389 = vmatprep.subr.bf16.mxu0 0
  %390 = vmatpush1.bf16.msra.mxu0 0
  %391 = vmatprep.mubr.bf16.mxu0 0
  %392 = vmatmul.mubr.bf16.gmra.mrb[0].mxu0 %v314
  %v393 = vpop.f32.mrb[0].mxu0
  %v394 = vadd.f32 %v218, %v393
  %v395 = vpop.f32.mrb[0].mxu0
  %v396 = vadd.f32 %v222, %v395
  %v397 = vpop.f32.mrb[0].mxu0
  %v398 = vadd.f32 %v218, %v397
  %v399 = vpop.f32.mrb[0].mxu0
  %v400 = vadd.f32 %v222, %v399
  %401 = vdwg.mxu0
  %v402 = vmax.f32 %v351, 0.0
  %v403 = vmax.f32 %v353, 0.0
  %v404 = vmax.f32 %v394, 0.0
  %v405 = vmax.f32 %v396, 0.0
  %v406 = vmax.f32 %v355, 0.0
  %v407 = vmax.f32 %v357, 0.0
  %v408 = vmax.f32 %v398, 0.0
  %v409 = vmax.f32 %v400, 0.0
  %v410 = vpack.c.bf16 %v406, %v402
  %v411 = vpack.c.bf16 %v407, %v403
  %v412 = vpack.c.bf16 %v408, %v404
  %v413 = vpack.c.bf16 %v409, %v405
  %v414 = vld [vmem:[%s21] sm:$0xf]
  %v415 = vld [vmem:[%s21 + $0x4] sm:$0xf]
  %v416 = vld [vmem:[%s21 + $0x8] sm:$0xf]
  %v417 = vld [vmem:[%s21 + $0xc] sm:$0xf]
  %v418 = vld [vmem:[%s21 + $0x10] sm:$0xf]
  %v419 = vld [vmem:[%s21 + $0x14] sm:$0xf]
  %v420 = vld [vmem:[%s21 + $0x18] sm:$0xf]
  %v421 = vld [vmem:[%s21 + $0x1c] sm:$0xf]
  %v422 = vld [vmem:[%s21 + $0x20] sm:$0xf]
  %v423 = vld [vmem:[%s21 + $0x24] sm:$0xf]
  %v424 = vld [vmem:[%s21 + $0x28] sm:$0xf]
  %v425 = vld [vmem:[%s21 + $0x2c] sm:$0xf]
  %v426 = vld [vmem:[%s21 + $0x30] sm:$0xf]
  %v427 = vld [vmem:[%s21 + $0x34] sm:$0xf]
  %v428 = vld [vmem:[%s21 + $0x38] sm:$0xf]
  %v429 = vld [vmem:[%s21 + $0x3c] sm:$0xf]
  %v430 = vld [vmem:[%s21 + $0x40] sm:$0xf]
  %v431 = vld [vmem:[%s21 + $0x44] sm:$0xf]
  %v432 = vld [vmem:[%s21 + $0x48] sm:$0xf]
  %v433 = vld [vmem:[%s21 + $0x4c] sm:$0xf]
  %v434 = vld [vmem:[%s21 + $0x50] sm:$0xf]
  %v435 = vld [vmem:[%s21 + $0x54] sm:$0xf]
  %v436 = vld [vmem:[%s21 + $0x58] sm:$0xf]
  %v437 = vld [vmem:[%s21 + $0x5c] sm:$0xf]
  %v438 = vld [vmem:[%s21 + $0x60] sm:$0xf]
  %v439 = vld [vmem:[%s21 + $0x64] sm:$0xf]
  %v440 = vld [vmem:[%s21 + $0x68] sm:$0xf]
  %v441 = vld [vmem:[%s21 + $0x6c] sm:$0xf]
  %v442 = vld [vmem:[%s21 + $0x70] sm:$0xf]
  %v443 = vld [vmem:[%s21 + $0x74] sm:$0xf]
  %v444 = vld [vmem:[%s21 + $0x78] sm:$0xf]
  %v445 = vld [vmem:[%s21 + $0x7c] sm:$0xf]
  %v446 = vld [vmem:[%s21 + $0x80] sm:$0xf]
  %v447 = vld [vmem:[%s21 + $0x84] sm:$0xf]
  %v448 = vld [vmem:[%s21 + $0x88] sm:$0xf]
  %v449 = vld [vmem:[%s21 + $0x8c] sm:$0xf]
  %v450 = vld [vmem:[%s21 + $0x90] sm:$0xf]
  %v451 = vld [vmem:[%s21 + $0x94] sm:$0xf]
  %v452 = vld [vmem:[%s21 + $0x98] sm:$0xf]
  %v453 = vld [vmem:[%s21 + $0x9c] sm:$0xf]
  %v454 = vld [vmem:[%s21 + $0xa0] sm:$0xf]
  %v455 = vld [vmem:[%s21 + $0xa4] sm:$0xf]
  %v456 = vld [vmem:[%s21 + $0xa8] sm:$0xf]
  %v457 = vld [vmem:[%s21 + $0xac] sm:$0xf]
  %v458 = vld [vmem:[%s21 + $0xb0] sm:$0xf]
  %v459 = vld [vmem:[%s21 + $0xb4] sm:$0xf]
  %v460 = vld [vmem:[%s21 + $0xb8] sm:$0xf]
  %v461 = vld [vmem:[%s21 + $0xbc] sm:$0xf]
  %v462 = vld [vmem:[%s21 + $0xc0] sm:$0xf]
  %v463 = vld [vmem:[%s21 + $0xc4] sm:$0xf]
  %v464 = vld [vmem:[%s21 + $0xc8] sm:$0xf]
  %v465 = vld [vmem:[%s21 + $0xcc] sm:$0xf]
  %v466 = vld [vmem:[%s21 + $0xd0] sm:$0xf]
  %v467 = vld [vmem:[%s21 + $0xd4] sm:$0xf]
  %v468 = vld [vmem:[%s21 + $0xd8] sm:$0xf]
  %v469 = vld [vmem:[%s21 + $0xdc] sm:$0xf]
  %v470 = vld [vmem:[%s21 + $0xe0] sm:$0xf]
  %v471 = vld [vmem:[%s21 + $0xe4] sm:$0xf]
  %v472 = vld [vmem:[%s21 + $0xe8] sm:$0xf]
  %v473 = vld [vmem:[%s21 + $0xec] sm:$0xf]
  %v474 = vld [vmem:[%s21 + $0xf0] sm:$0xf]
  %v475 = vld [vmem:[%s21 + $0xf4] sm:$0xf]
  %v476 = vld [vmem:[%s21 + $0xf8] sm:$0xf]
  %v477 = vld [vmem:[%s21 + $0xfc] sm:$0xf]
  %v478 = vld [vmem:[%s23] sm:$0x1]
  %v480 = vlaneseq
  %v481 = vshrl.u32 %v480, 7
  %v482 = vsub.s32 0, %v481
  %v483 = vrot.slane %v478, %v482
  %v549 = vunpack.c.l.b16 %v414
  %v550 = vunpack.c.l.b16 %v415
  %v551 = vunpack.c.l.b16 %v416
  %v552 = vunpack.c.l.b16 %v417
  %v553 = vunpack.c.l.b16 %v418
  %v554 = vunpack.c.l.b16 %v419
  %v555 = vunpack.c.l.b16 %v420
  %v556 = vunpack.c.l.b16 %v421
  %v557 = vunpack.c.l.b16 %v422
  %v558 = vunpack.c.l.b16 %v423
  %v559 = vunpack.c.l.b16 %v424
  %v560 = vunpack.c.l.b16 %v425
  %v561 = vunpack.c.l.b16 %v426
  %v562 = vunpack.c.l.b16 %v427
  %v563 = vunpack.c.l.b16 %v428
  %v564 = vunpack.c.l.b16 %v429
  %v565 = vunpack.c.l.b16 %v430
  %v566 = vunpack.c.l.b16 %v431
  %v567 = vunpack.c.l.b16 %v432
  %v568 = vunpack.c.l.b16 %v433
  %v569 = vunpack.c.l.b16 %v434
  %v570 = vunpack.c.l.b16 %v435
  %v571 = vunpack.c.l.b16 %v436
  %v572 = vunpack.c.l.b16 %v437
  %v573 = vunpack.c.l.b16 %v438
  %v574 = vunpack.c.l.b16 %v439
  %v575 = vunpack.c.l.b16 %v440
  %v576 = vunpack.c.l.b16 %v441
  %v577 = vunpack.c.l.b16 %v442
  %v578 = vunpack.c.l.b16 %v443
  %v579 = vunpack.c.l.b16 %v444
  %v580 = vunpack.c.l.b16 %v445
  %v581 = vunpack.c.l.b16 %v446
  %v582 = vunpack.c.l.b16 %v447
  %v583 = vunpack.c.l.b16 %v448
  %v584 = vunpack.c.l.b16 %v449
  %v585 = vunpack.c.l.b16 %v450
  %v586 = vunpack.c.l.b16 %v451
  %v587 = vunpack.c.l.b16 %v452
  %v588 = vunpack.c.l.b16 %v453
  %v589 = vunpack.c.l.b16 %v454
  %v590 = vunpack.c.l.b16 %v455
  %v591 = vunpack.c.l.b16 %v456
  %v592 = vunpack.c.l.b16 %v457
  %v593 = vunpack.c.l.b16 %v458
  %v594 = vunpack.c.l.b16 %v459
  %v595 = vunpack.c.l.b16 %v460
  %v596 = vunpack.c.l.b16 %v461
  %v597 = vunpack.c.l.b16 %v462
  %v598 = vunpack.c.l.b16 %v463
  %v599 = vunpack.c.l.b16 %v464
  %v600 = vunpack.c.l.b16 %v465
  %v601 = vunpack.c.l.b16 %v466
  %v602 = vunpack.c.l.b16 %v467
  %v603 = vunpack.c.l.b16 %v468
  %v604 = vunpack.c.l.b16 %v469
  %v605 = vunpack.c.l.b16 %v470
  %v606 = vunpack.c.l.b16 %v471
  %v607 = vunpack.c.l.b16 %v472
  %v608 = vunpack.c.l.b16 %v473
  %v609 = vunpack.c.l.b16 %v474
  %v610 = vunpack.c.l.b16 %v475
  %v611 = vunpack.c.l.b16 %v476
  %v612 = vunpack.c.l.b16 %v477
  %v613 = vpack.c.b16 %v550, %v549
  %v614 = vpack.c.b16 %v552, %v551
  %v615 = vpack.c.b16 %v554, %v553
  %v616 = vpack.c.b16 %v556, %v555
  %v617 = vpack.c.b16 %v558, %v557
  %v618 = vpack.c.b16 %v560, %v559
  %v619 = vpack.c.b16 %v562, %v561
  %v620 = vpack.c.b16 %v564, %v563
  %v621 = vpack.c.b16 %v566, %v565
  %v622 = vpack.c.b16 %v568, %v567
  %v623 = vpack.c.b16 %v570, %v569
  %v624 = vpack.c.b16 %v572, %v571
  %v625 = vpack.c.b16 %v574, %v573
  %v626 = vpack.c.b16 %v576, %v575
  %v627 = vpack.c.b16 %v578, %v577
  %v628 = vpack.c.b16 %v580, %v579
  %v629 = vpack.c.b16 %v582, %v581
  %v630 = vpack.c.b16 %v584, %v583
  %v631 = vpack.c.b16 %v586, %v585
  %v632 = vpack.c.b16 %v588, %v587
  %v633 = vpack.c.b16 %v590, %v589
  %v634 = vpack.c.b16 %v592, %v591
  %v635 = vpack.c.b16 %v594, %v593
  %v636 = vpack.c.b16 %v596, %v595
  %v637 = vpack.c.b16 %v598, %v597
  %v638 = vpack.c.b16 %v600, %v599
  %v639 = vpack.c.b16 %v602, %v601
  %v640 = vpack.c.b16 %v604, %v603
  %v641 = vpack.c.b16 %v606, %v605
  %v642 = vpack.c.b16 %v608, %v607
  %v643 = vpack.c.b16 %v610, %v609
  %v644 = vpack.c.b16 %v612, %v611
  %677 = vmatprep.subr.bf16.mxu0 0
  %678 = vmatpush1.bf16.msra.mxu0 %v613
  %679 = vmatprep.subr.bf16.mxu0 0
  %680 = vmatpush1.bf16.msra.mxu0 %v614
  %681 = vmatprep.subr.bf16.mxu0 0
  %682 = vmatpush1.bf16.msra.mxu0 %v615
  %683 = vmatprep.subr.bf16.mxu0 0
  %684 = vmatpush1.bf16.msra.mxu0 %v616
  %685 = vmatprep.subr.bf16.mxu0 0
  %686 = vmatpush1.bf16.msra.mxu0 %v617
  %687 = vmatprep.subr.bf16.mxu0 0
  %688 = vmatpush1.bf16.msra.mxu0 %v618
  %689 = vmatprep.subr.bf16.mxu0 0
  %690 = vmatpush1.bf16.msra.mxu0 %v619
  %691 = vmatprep.subr.bf16.mxu0 0
  %692 = vmatpush1.bf16.msra.mxu0 %v620
  %693 = vmatprep.subr.bf16.mxu0 0
  %694 = vmatpush1.bf16.msra.mxu0 %v621
  %695 = vmatprep.subr.bf16.mxu0 0
  %696 = vmatpush1.bf16.msra.mxu0 %v622
  %697 = vmatprep.subr.bf16.mxu0 0
  %698 = vmatpush1.bf16.msra.mxu0 %v623
  %699 = vmatprep.subr.bf16.mxu0 0
  %700 = vmatpush1.bf16.msra.mxu0 %v624
  %701 = vmatprep.subr.bf16.mxu0 0
  %702 = vmatpush1.bf16.msra.mxu0 %v625
  %703 = vmatprep.subr.bf16.mxu0 0
  %704 = vmatpush1.bf16.msra.mxu0 %v626
  %705 = vmatprep.subr.bf16.mxu0 0
  %706 = vmatpush1.bf16.msra.mxu0 %v627
  %707 = vmatprep.subr.bf16.mxu0 0
  %708 = vmatpush1.bf16.msra.mxu0 %v628
  %709 = vmatprep.mubr.bf16.mxu0 %v411
  %710 = vmatmul.mubr.bf16.gmra.mrb[0].mxu0 %v410
  %v711 = vpop.f32.mrb[0].mxu0
  %v712 = vadd.f32 %v483, %v711
  %v713 = vpop.f32.mrb[0].mxu0
  %v714 = vpop.f32.mrb[0].mxu0
  %v715 = vadd.f32 %v483, %v714
  %v716 = vpop.f32.mrb[0].mxu0
  %717 = vdwg.mxu0
  %718 = vmatprep.subr.bf16.mxu0 0
  %719 = vmatpush1.bf16.msra.mxu0 %v629
  %720 = vmatprep.subr.bf16.mxu0 0
  %721 = vmatpush1.bf16.msra.mxu0 %v630
  %722 = vmatprep.subr.bf16.mxu0 0
  %723 = vmatpush1.bf16.msra.mxu0 %v631
  %724 = vmatprep.subr.bf16.mxu0 0
  %725 = vmatpush1.bf16.msra.mxu0 %v632
  %726 = vmatprep.subr.bf16.mxu0 0
  %727 = vmatpush1.bf16.msra.mxu0 %v633
  %728 = vmatprep.subr.bf16.mxu0 0
  %729 = vmatpush1.bf16.msra.mxu0 %v634
  %730 = vmatprep.subr.bf16.mxu0 0
  %731 = vmatpush1.bf16.msra.mxu0 %v635
  %732 = vmatprep.subr.bf16.mxu0 0
  %733 = vmatpush1.bf16.msra.mxu0 %v636
  %734 = vmatprep.subr.bf16.mxu0 0
  %735 = vmatpush1.bf16.msra.mxu0 %v637
  %736 = vmatprep.subr.bf16.mxu0 0
  %737 = vmatpush1.bf16.msra.mxu0 %v638
  %738 = vmatprep.subr.bf16.mxu0 0
  %739 = vmatpush1.bf16.msra.mxu0 %v639
  %740 = vmatprep.subr.bf16.mxu0 0
  %741 = vmatpush1.bf16.msra.mxu0 %v640
  %742 = vmatprep.subr.bf16.mxu0 0
  %743 = vmatpush1.bf16.msra.mxu0 %v641
  %744 = vmatprep.subr.bf16.mxu0 0
  %745 = vmatpush1.bf16.msra.mxu0 %v642
  %746 = vmatprep.subr.bf16.mxu0 0
  %747 = vmatpush1.bf16.msra.mxu0 %v643
  %748 = vmatprep.subr.bf16.mxu0 0
  %749 = vmatpush1.bf16.msra.mxu0 %v644
  %750 = vmatprep.mubr.bf16.mxu0 %v413
  %751 = vmatmul.mubr.bf16.gmra.mrb[0].mxu0 %v412
  %v752 = vpop.f32.mrb[0].mxu0
  %v753 = vadd.f32 %v712, %v752
  %v754 = vpop.f32.mrb[0].mxu0
  %v755 = vpop.f32.mrb[0].mxu0
  %v756 = vadd.f32 %v715, %v755
  %v757 = vpop.f32.mrb[0].mxu0
  %758 = vdwg.mxu0
  %v759 = vmax.f32 %v753, 0.0
  %v760 = vmax.f32 %v756, 0.0
  %v761 = vpack.c.bf16 %v760, %v759
  %v762 = vld [vmem:[%s25] sm:$0xf]
  %v763 = vld [vmem:[%s25 + $0x4] sm:$0xf]
  %v764 = vld [vmem:[%s25 + $0x8] sm:$0xf]
  %v765 = vld [vmem:[%s25 + $0xc] sm:$0xf]
  %v766 = vld [vmem:[%s27] sm:$0x1]
  %v768 = vlaneseq
  %v769 = vshrl.u32 %v768, 7
  %v770 = vsub.s32 0, %v769
  %v771 = vrot.slane %v766, %v770
  %v777 = vunpack.c.l.b16 %v762
  %v778 = vunpack.c.l.b16 %v763
  %v779 = vunpack.c.l.b16 %v764
  %v780 = vunpack.c.l.b16 %v765
  %v781 = vpack.c.b16 %v778, %v777
  %v782 = vpack.c.b16 %v780, %v779
  %vm785 = vcmask 261120
  %v787 = vsel %vm785, %v761, 0
  %789 = vmatprep.subr.bf16.mxu0 0
  %790 = vmatpush1.bf16.msra.mxu0 %v781
  %791 = vmatprep.subr.bf16.mxu0 0
  %792 = vmatpush1.bf16.msra.mxu0 %v782
  %793 = vmatprep.subr.bf16.mxu0 0
  %794 = vmatpush1.bf16.msra.mxu0 0
  %795 = vmatprep.subr.bf16.mxu0 0
  %796 = vmatpush1.bf16.msra.mxu0 0
  %797 = vmatprep.subr.bf16.mxu0 0
  %798 = vmatpush1.bf16.msra.mxu0 0
  %799 = vmatprep.subr.bf16.mxu0 0
  %800 = vmatpush1.bf16.msra.mxu0 0
  %801 = vmatprep.subr.bf16.mxu0 0
  %802 = vmatpush1.bf16.msra.mxu0 0
  %803 = vmatprep.subr.bf16.mxu0 0
  %804 = vmatpush1.bf16.msra.mxu0 0
  %805 = vmatprep.subr.bf16.mxu0 0
  %806 = vmatpush1.bf16.msra.mxu0 0
  %807 = vmatprep.subr.bf16.mxu0 0
  %808 = vmatpush1.bf16.msra.mxu0 0
  %809 = vmatprep.subr.bf16.mxu0 0
  %810 = vmatpush1.bf16.msra.mxu0 0
  %811 = vmatprep.subr.bf16.mxu0 0
  %812 = vmatpush1.bf16.msra.mxu0 0
  %813 = vmatprep.subr.bf16.mxu0 0
  %814 = vmatpush1.bf16.msra.mxu0 0
  %815 = vmatprep.subr.bf16.mxu0 0
  %816 = vmatpush1.bf16.msra.mxu0 0
  %817 = vmatprep.subr.bf16.mxu0 0
  %818 = vmatpush1.bf16.msra.mxu0 0
  %819 = vmatprep.subr.bf16.mxu0 0
  %820 = vmatpush1.bf16.msra.mxu0 0
  %821 = vmatprep.mubr.bf16.mxu0 0
  %822 = vmatmul.mubr.bf16.gmra.mrb[0].mxu0 %v787
  %v823 = vpop.f32.mrb[0].mxu0
  %v824 = vadd.f32 %v771, %v823
  %v825 = vpop.f32.mrb[0].mxu0
  %v826 = vpop.f32.mrb[0].mxu0
  %v827 = vadd.f32 %v771, %v826
  %v828 = vpop.f32.mrb[0].mxu0
  %829 = vdwg.mxu0
  %v830 = vld [vmem:[%s9] sm:$0xff]
  %v831 = vld [vmem:[%s9 + $0x8] sm:$0xff]
  %v832 = vadd.f32 %v824, %v830
  %v833 = vadd.f32 %v827, %v831
  %v834 = vld [vmem:[%s3] sm:$0xf]
  %v835 = vld [vmem:[%s3 + $0x4] sm:$0xf]
  %v836 = vld [vmem:[%s29] sm:$0xff]
  %v837 = vld [vmem:[%s29 + $0x8] sm:$0xff]
  %v838 = vld [vmem:[%s29 + $0x10] sm:$0xff]
  %v839 = vld [vmem:[%s29 + $0x18] sm:$0xff]
  %v840 = vld [vmem:[%s29 + $0x20] sm:$0xff]
  %v841 = vld [vmem:[%s29 + $0x28] sm:$0xff]
  %v842 = vld [vmem:[%s29 + $0x30] sm:$0xff]
  %v843 = vld [vmem:[%s29 + $0x38] sm:$0xff]
  %v844 = vld [vmem:[%s29 + $0x40] sm:$0xff]
  %v845 = vld [vmem:[%s29 + $0x48] sm:$0xff]
  %v846 = vld [vmem:[%s29 + $0x50] sm:$0xff]
  %v847 = vld [vmem:[%s29 + $0x58] sm:$0xff]
  %v848 = vld [vmem:[%s31] sm:$0xf]
  %v850 = vlaneseq
  %v851 = vshrl.u32 %v850, 7
  %v852 = vsub.s32 0, %v851
  %v853 = vrot.slane %v848, %v852
  %v854 = vlaneseq
  %v855 = vshrl.u32 %v854, 7
  %v856 = vsub.s32 1, %v855
  %v857 = vrot.slane %v848, %v856
  %v858 = vlaneseq
  %v859 = vshrl.u32 %v858, 7
  %v860 = vsub.s32 2, %v859
  %v861 = vrot.slane %v848, %v860
  %v862 = vlaneseq
  %v863 = vshrl.u32 %v862, 7
  %v864 = vsub.s32 3, %v863
  %v865 = vrot.slane %v848, %v864
  %v872 = vunpack.c.l.b16 %v834
  %v873 = vunpack.c.l.b16 %v835
  %v874 = vpack.c.b16 %v873, %v872
  %v887 = vunpack.c.l.b16 %v836
  %v888 = vunpack.c.h.b16 %v836
  %v889 = vunpack.c.l.b16 %v837
  %v890 = vunpack.c.h.b16 %v837
  %v891 = vunpack.c.l.b16 %v838
  %v892 = vunpack.c.h.b16 %v838
  %v893 = vunpack.c.l.b16 %v839
  %v894 = vunpack.c.h.b16 %v839
  %v895 = vunpack.c.l.b16 %v840
  %v896 = vunpack.c.h.b16 %v840
  %v897 = vunpack.c.l.b16 %v841
  %v898 = vunpack.c.h.b16 %v841
  %v899 = vunpack.c.l.b16 %v842
  %v900 = vunpack.c.h.b16 %v842
  %v901 = vunpack.c.l.b16 %v843
  %v902 = vunpack.c.h.b16 %v843
  %v903 = vunpack.c.l.b16 %v844
  %v904 = vunpack.c.h.b16 %v844
  %v905 = vunpack.c.l.b16 %v845
  %v906 = vunpack.c.h.b16 %v845
  %v907 = vunpack.c.l.b16 %v846
  %v908 = vunpack.c.h.b16 %v846
  %v909 = vunpack.c.l.b16 %v847
  %v910 = vunpack.c.h.b16 %v847
  %v911 = vpack.c.b16 %v891, %v887
  %v912 = vpack.c.b16 %v892, %v888
  %v913 = vpack.c.b16 %v893, %v889
  %v914 = vpack.c.b16 %v894, %v890
  %v915 = vpack.c.b16 %v899, %v895
  %v916 = vpack.c.b16 %v900, %v896
  %v917 = vpack.c.b16 %v901, %v897
  %v918 = vpack.c.b16 %v902, %v898
  %v919 = vpack.c.b16 %v907, %v903
  %v920 = vpack.c.b16 %v908, %v904
  %v921 = vpack.c.b16 %v909, %v905
  %v922 = vpack.c.b16 %v910, %v906
  %vm935 = vcmask 392192
  %v937 = vsel %vm935, %v874, 0
  %939 = vmatprep.subr.bf16.mxu0 %v912
  %940 = vmatpush1.bf16.msra.mxu0 %v911
  %941 = vmatprep.subr.bf16.mxu0 %v916
  %942 = vmatpush1.bf16.msra.mxu0 %v915
  %943 = vmatprep.subr.bf16.mxu0 %v920
  %944 = vmatpush1.bf16.msra.mxu0 %v919
  %945 = vmatprep.subr.bf16.mxu0 0
  %946 = vmatpush1.bf16.msra.mxu0 0
  %947 = vmatprep.subr.bf16.mxu0 0
  %948 = vmatpush1.bf16.msra.mxu0 0
  %949 = vmatprep.subr.bf16.mxu0 0
  %950 = vmatpush1.bf16.msra.mxu0 0
  %951 = vmatprep.subr.bf16.mxu0 0
  %952 = vmatpush1.bf16.msra.mxu0 0
  %953 = vmatprep.subr.bf16.mxu0 0
  %954 = vmatpush1.bf16.msra.mxu0 0
  %955 = vmatprep.subr.bf16.mxu0 0
  %956 = vmatpush1.bf16.msra.mxu0 0
  %957 = vmatprep.subr.bf16.mxu0 0
  %958 = vmatpush1.bf16.msra.mxu0 0
  %959 = vmatprep.subr.bf16.mxu0 0
  %960 = vmatpush1.bf16.msra.mxu0 0
  %961 = vmatprep.subr.bf16.mxu0 0
  %962 = vmatpush1.bf16.msra.mxu0 0
  %963 = vmatprep.subr.bf16.mxu0 0
  %964 = vmatpush1.bf16.msra.mxu0 0
  %965 = vmatprep.subr.bf16.mxu0 0
  %966 = vmatpush1.bf16.msra.mxu0 0
  %967 = vmatprep.subr.bf16.mxu0 0
  %968 = vmatpush1.bf16.msra.mxu0 0
  %969 = vmatprep.subr.bf16.mxu0 0
  %970 = vmatpush1.bf16.msra.mxu0 0
  %971 = vmatprep.mubr.bf16.mxu0 0
  %972 = vmatmul.mubr.bf16.gmra.mrb[0].mxu0 %v937
  %v973 = vpop.f32.mrb[0].mxu0
  %v974 = vadd.f32 %v853, %v973
  %v975 = vpop.f32.mrb[0].mxu0
  %v976 = vadd.f32 %v857, %v975
  %v977 = vpop.f32.mrb[0].mxu0
  %v978 = vadd.f32 %v853, %v977
  %v979 = vpop.f32.mrb[0].mxu0
  %v980 = vadd.f32 %v857, %v979
  %981 = vdwg.mxu0
  %982 = vmatprep.subr.bf16.mxu0 %v914
  %983 = vmatpush1.bf16.msra.mxu0 %v913
  %984 = vmatprep.subr.bf16.mxu0 %v918
  %985 = vmatpush1.bf16.msra.mxu0 %v917
  %986 = vmatprep.subr.bf16.mxu0 %v922
  %987 = vmatpush1.bf16.msra.mxu0 %v921
  %988 = vmatprep.subr.bf16.mxu0 0
  %989 = vmatpush1.bf16.msra.mxu0 0
  %990 = vmatprep.subr.bf16.mxu0 0
  %991 = vmatpush1.bf16.msra.mxu0 0
  %992 = vmatprep.subr.bf16.mxu0 0
  %993 = vmatpush1.bf16.msra.mxu0 0
  %994 = vmatprep.subr.bf16.mxu0 0
  %995 = vmatpush1.bf16.msra.mxu0 0
  %996 = vmatprep.subr.bf16.mxu0 0
  %997 = vmatpush1.bf16.msra.mxu0 0
  %998 = vmatprep.subr.bf16.mxu0 0
  %999 = vmatpush1.bf16.msra.mxu0 0
  %1000 = vmatprep.subr.bf16.mxu0 0
  %1001 = vmatpush1.bf16.msra.mxu0 0
  %1002 = vmatprep.subr.bf16.mxu0 0
  %1003 = vmatpush1.bf16.msra.mxu0 0
  %1004 = vmatprep.subr.bf16.mxu0 0
  %1005 = vmatpush1.bf16.msra.mxu0 0
  %1006 = vmatprep.subr.bf16.mxu0 0
  %1007 = vmatpush1.bf16.msra.mxu0 0
  %1008 = vmatprep.subr.bf16.mxu0 0
  %1009 = vmatpush1.bf16.msra.mxu0 0
  %1010 = vmatprep.subr.bf16.mxu0 0
  %1011 = vmatpush1.bf16.msra.mxu0 0
  %1012 = vmatprep.subr.bf16.mxu0 0
  %1013 = vmatpush1.bf16.msra.mxu0 0
  %1014 = vmatprep.mubr.bf16.mxu0 0
  %1015 = vmatmul.mubr.bf16.gmra.mrb[0].mxu0 %v937
  %v1016 = vpop.f32.mrb[0].mxu0
  %v1017 = vadd.f32 %v861, %v1016
  %v1018 = vpop.f32.mrb[0].mxu0
  %v1019 = vadd.f32 %v865, %v1018
  %v1020 = vpop.f32.mrb[0].mxu0
  %v1021 = vadd.f32 %v861, %v1020
  %v1022 = vpop.f32.mrb[0].mxu0
  %v1023 = vadd.f32 %v865, %v1022
  %1024 = vdwg.mxu0
  %v1025 = vmax.f32 %v974, 0.0
  %v1026 = vmax.f32 %v976, 0.0
  %v1027 = vmax.f32 %v1017, 0.0
  %v1028 = vmax.f32 %v1019, 0.0
  %v1029 = vmax.f32 %v978, 0.0
  %v1030 = vmax.f32 %v980, 0.0
  %v1031 = vmax.f32 %v1021, 0.0
  %v1032 = vmax.f32 %v1023, 0.0
  %v1033 = vpack.c.bf16 %v1029, %v1025
  %v1034 = vpack.c.bf16 %v1030, %v1026
  %v1035 = vpack.c.bf16 %v1031, %v1027
  %v1036 = vpack.c.bf16 %v1032, %v1028
  %v1037 = vld [vmem:[%s33] sm:$0xf]
  %v1038 = vld [vmem:[%s33 + $0x4] sm:$0xf]
  %v1039 = vld [vmem:[%s33 + $0x8] sm:$0xf]
  %v1040 = vld [vmem:[%s33 + $0xc] sm:$0xf]
  %v1041 = vld [vmem:[%s33 + $0x10] sm:$0xf]
  %v1042 = vld [vmem:[%s33 + $0x14] sm:$0xf]
  %v1043 = vld [vmem:[%s33 + $0x18] sm:$0xf]
  %v1044 = vld [vmem:[%s33 + $0x1c] sm:$0xf]
  %v1045 = vld [vmem:[%s33 + $0x20] sm:$0xf]
  %v1046 = vld [vmem:[%s33 + $0x24] sm:$0xf]
  %v1047 = vld [vmem:[%s33 + $0x28] sm:$0xf]
  %v1048 = vld [vmem:[%s33 + $0x2c] sm:$0xf]
  %v1049 = vld [vmem:[%s33 + $0x30] sm:$0xf]
  %v1050 = vld [vmem:[%s33 + $0x34] sm:$0xf]
  %v1051 = vld [vmem:[%s33 + $0x38] sm:$0xf]
  %v1052 = vld [vmem:[%s33 + $0x3c] sm:$0xf]
  %v1053 = vld [vmem:[%s33 + $0x40] sm:$0xf]
  %v1054 = vld [vmem:[%s33 + $0x44] sm:$0xf]
  %v1055 = vld [vmem:[%s33 + $0x48] sm:$0xf]
  %v1056 = vld [vmem:[%s33 + $0x4c] sm:$0xf]
  %v1057 = vld [vmem:[%s33 + $0x50] sm:$0xf]
  %v1058 = vld [vmem:[%s33 + $0x54] sm:$0xf]
  %v1059 = vld [vmem:[%s33 + $0x58] sm:$0xf]
  %v1060 = vld [vmem:[%s33 + $0x5c] sm:$0xf]
  %v1061 = vld [vmem:[%s33 + $0x60] sm:$0xf]
  %v1062 = vld [vmem:[%s33 + $0x64] sm:$0xf]
  %v1063 = vld [vmem:[%s33 + $0x68] sm:$0xf]
  %v1064 = vld [vmem:[%s33 + $0x6c] sm:$0xf]
  %v1065 = vld [vmem:[%s33 + $0x70] sm:$0xf]
  %v1066 = vld [vmem:[%s33 + $0x74] sm:$0xf]
  %v1067 = vld [vmem:[%s33 + $0x78] sm:$0xf]
  %v1068 = vld [vmem:[%s33 + $0x7c] sm:$0xf]
  %v1069 = vld [vmem:[%s33 + $0x80] sm:$0xf]
  %v1070 = vld [vmem:[%s33 + $0x84] sm:$0xf]
  %v1071 = vld [vmem:[%s33 + $0x88] sm:$0xf]
  %v1072 = vld [vmem:[%s33 + $0x8c] sm:$0xf]
  %v1073 = vld [vmem:[%s33 + $0x90] sm:$0xf]
  %v1074 = vld [vmem:[%s33 + $0x94] sm:$0xf]
  %v1075 = vld [vmem:[%s33 + $0x98] sm:$0xf]
  %v1076 = vld [vmem:[%s33 + $0x9c] sm:$0xf]
  %v1077 = vld [vmem:[%s33 + $0xa0] sm:$0xf]
  %v1078 = vld [vmem:[%s33 + $0xa4] sm:$0xf]
  %v1079 = vld [vmem:[%s33 + $0xa8] sm:$0xf]
  %v1080 = vld [vmem:[%s33 + $0xac] sm:$0xf]
  %v1081 = vld [vmem:[%s33 + $0xb0] sm:$0xf]
  %v1082 = vld [vmem:[%s33 + $0xb4] sm:$0xf]
  %v1083 = vld [vmem:[%s33 + $0xb8] sm:$0xf]
  %v1084 = vld [vmem:[%s33 + $0xbc] sm:$0xf]
  %v1085 = vld [vmem:[%s33 + $0xc0] sm:$0xf]
  %v1086 = vld [vmem:[%s33 + $0xc4] sm:$0xf]
  %v1087 = vld [vmem:[%s33 + $0xc8] sm:$0xf]
  %v1088 = vld [vmem:[%s33 + $0xcc] sm:$0xf]
  %v1089 = vld [vmem:[%s33 + $0xd0] sm:$0xf]
  %v1090 = vld [vmem:[%s33 + $0xd4] sm:$0xf]
  %v1091 = vld [vmem:[%s33 + $0xd8] sm:$0xf]
  %v1092 = vld [vmem:[%s33 + $0xdc] sm:$0xf]
  %v1093 = vld [vmem:[%s33 + $0xe0] sm:$0xf]
  %v1094 = vld [vmem:[%s33 + $0xe4] sm:$0xf]
  %v1095 = vld [vmem:[%s33 + $0xe8] sm:$0xf]
  %v1096 = vld [vmem:[%s33 + $0xec] sm:$0xf]
  %v1097 = vld [vmem:[%s33 + $0xf0] sm:$0xf]
  %v1098 = vld [vmem:[%s33 + $0xf4] sm:$0xf]
  %v1099 = vld [vmem:[%s33 + $0xf8] sm:$0xf]
  %v1100 = vld [vmem:[%s33 + $0xfc] sm:$0xf]
  %v1101 = vld [vmem:[%s35] sm:$0x1]
  %v1103 = vlaneseq
  %v1104 = vshrl.u32 %v1103, 7
  %v1105 = vsub.s32 0, %v1104
  %v1106 = vrot.slane %v1101, %v1105
  %v1172 = vunpack.c.l.b16 %v1037
  %v1173 = vunpack.c.l.b16 %v1038
  %v1174 = vunpack.c.l.b16 %v1039
  %v1175 = vunpack.c.l.b16 %v1040
  %v1176 = vunpack.c.l.b16 %v1041
  %v1177 = vunpack.c.l.b16 %v1042
  %v1178 = vunpack.c.l.b16 %v1043
  %v1179 = vunpack.c.l.b16 %v1044
  %v1180 = vunpack.c.l.b16 %v1045
  %v1181 = vunpack.c.l.b16 %v1046
  %v1182 = vunpack.c.l.b16 %v1047
  %v1183 = vunpack.c.l.b16 %v1048
  %v1184 = vunpack.c.l.b16 %v1049
  %v1185 = vunpack.c.l.b16 %v1050
  %v1186 = vunpack.c.l.b16 %v1051
  %v1187 = vunpack.c.l.b16 %v1052
  %v1188 = vunpack.c.l.b16 %v1053
  %v1189 = vunpack.c.l.b16 %v1054
  %v1190 = vunpack.c.l.b16 %v1055
  %v1191 = vunpack.c.l.b16 %v1056
  %v1192 = vunpack.c.l.b16 %v1057
  %v1193 = vunpack.c.l.b16 %v1058
  %v1194 = vunpack.c.l.b16 %v1059
  %v1195 = vunpack.c.l.b16 %v1060
  %v1196 = vunpack.c.l.b16 %v1061
  %v1197 = vunpack.c.l.b16 %v1062
  %v1198 = vunpack.c.l.b16 %v1063
  %v1199 = vunpack.c.l.b16 %v1064
  %v1200 = vunpack.c.l.b16 %v1065
  %v1201 = vunpack.c.l.b16 %v1066
  %v1202 = vunpack.c.l.b16 %v1067
  %v1203 = vunpack.c.l.b16 %v1068
  %v1204 = vunpack.c.l.b16 %v1069
  %v1205 = vunpack.c.l.b16 %v1070
  %v1206 = vunpack.c.l.b16 %v1071
  %v1207 = vunpack.c.l.b16 %v1072
  %v1208 = vunpack.c.l.b16 %v1073
  %v1209 = vunpack.c.l.b16 %v1074
  %v1210 = vunpack.c.l.b16 %v1075
  %v1211 = vunpack.c.l.b16 %v1076
  %v1212 = vunpack.c.l.b16 %v1077
  %v1213 = vunpack.c.l.b16 %v1078
  %v1214 = vunpack.c.l.b16 %v1079
  %v1215 = vunpack.c.l.b16 %v1080
  %v1216 = vunpack.c.l.b16 %v1081
  %v1217 = vunpack.c.l.b16 %v1082
  %v1218 = vunpack.c.l.b16 %v1083
  %v1219 = vunpack.c.l.b16 %v1084
  %v1220 = vunpack.c.l.b16 %v1085
  %v1221 = vunpack.c.l.b16 %v1086
  %v1222 = vunpack.c.l.b16 %v1087
  %v1223 = vunpack.c.l.b16 %v1088
  %v1224 = vunpack.c.l.b16 %v1089
  %v1225 = vunpack.c.l.b16 %v1090
  %v1226 = vunpack.c.l.b16 %v1091
  %v1227 = vunpack.c.l.b16 %v1092
  %v1228 = vunpack.c.l.b16 %v1093
  %v1229 = vunpack.c.l.b16 %v1094
  %v1230 = vunpack.c.l.b16 %v1095
  %v1231 = vunpack.c.l.b16 %v1096
  %v1232 = vunpack.c.l.b16 %v1097
  %v1233 = vunpack.c.l.b16 %v1098
  %v1234 = vunpack.c.l.b16 %v1099
  %v1235 = vunpack.c.l.b16 %v1100
  %v1236 = vpack.c.b16 %v1173, %v1172
  %v1237 = vpack.c.b16 %v1175, %v1174
  %v1238 = vpack.c.b16 %v1177, %v1176
  %v1239 = vpack.c.b16 %v1179, %v1178
  %v1240 = vpack.c.b16 %v1181, %v1180
  %v1241 = vpack.c.b16 %v1183, %v1182
  %v1242 = vpack.c.b16 %v1185, %v1184
  %v1243 = vpack.c.b16 %v1187, %v1186
  %v1244 = vpack.c.b16 %v1189, %v1188
  %v1245 = vpack.c.b16 %v1191, %v1190
  %v1246 = vpack.c.b16 %v1193, %v1192
  %v1247 = vpack.c.b16 %v1195, %v1194
  %v1248 = vpack.c.b16 %v1197, %v1196
  %v1249 = vpack.c.b16 %v1199, %v1198
  %v1250 = vpack.c.b16 %v1201, %v1200
  %v1251 = vpack.c.b16 %v1203, %v1202
  %v1252 = vpack.c.b16 %v1205, %v1204
  %v1253 = vpack.c.b16 %v1207, %v1206
  %v1254 = vpack.c.b16 %v1209, %v1208
  %v1255 = vpack.c.b16 %v1211, %v1210
  %v1256 = vpack.c.b16 %v1213, %v1212
  %v1257 = vpack.c.b16 %v1215, %v1214
  %v1258 = vpack.c.b16 %v1217, %v1216
  %v1259 = vpack.c.b16 %v1219, %v1218
  %v1260 = vpack.c.b16 %v1221, %v1220
  %v1261 = vpack.c.b16 %v1223, %v1222
  %v1262 = vpack.c.b16 %v1225, %v1224
  %v1263 = vpack.c.b16 %v1227, %v1226
  %v1264 = vpack.c.b16 %v1229, %v1228
  %v1265 = vpack.c.b16 %v1231, %v1230
  %v1266 = vpack.c.b16 %v1233, %v1232
  %v1267 = vpack.c.b16 %v1235, %v1234
  %1300 = vmatprep.subr.bf16.mxu0 0
  %1301 = vmatpush1.bf16.msra.mxu0 %v1236
  %1302 = vmatprep.subr.bf16.mxu0 0
  %1303 = vmatpush1.bf16.msra.mxu0 %v1237
  %1304 = vmatprep.subr.bf16.mxu0 0
  %1305 = vmatpush1.bf16.msra.mxu0 %v1238
  %1306 = vmatprep.subr.bf16.mxu0 0
  %1307 = vmatpush1.bf16.msra.mxu0 %v1239
  %1308 = vmatprep.subr.bf16.mxu0 0
  %1309 = vmatpush1.bf16.msra.mxu0 %v1240
  %1310 = vmatprep.subr.bf16.mxu0 0
  %1311 = vmatpush1.bf16.msra.mxu0 %v1241
  %1312 = vmatprep.subr.bf16.mxu0 0
  %1313 = vmatpush1.bf16.msra.mxu0 %v1242
  %1314 = vmatprep.subr.bf16.mxu0 0
  %1315 = vmatpush1.bf16.msra.mxu0 %v1243
  %1316 = vmatprep.subr.bf16.mxu0 0
  %1317 = vmatpush1.bf16.msra.mxu0 %v1244
  %1318 = vmatprep.subr.bf16.mxu0 0
  %1319 = vmatpush1.bf16.msra.mxu0 %v1245
  %1320 = vmatprep.subr.bf16.mxu0 0
  %1321 = vmatpush1.bf16.msra.mxu0 %v1246
  %1322 = vmatprep.subr.bf16.mxu0 0
  %1323 = vmatpush1.bf16.msra.mxu0 %v1247
  %1324 = vmatprep.subr.bf16.mxu0 0
  %1325 = vmatpush1.bf16.msra.mxu0 %v1248
  %1326 = vmatprep.subr.bf16.mxu0 0
  %1327 = vmatpush1.bf16.msra.mxu0 %v1249
  %1328 = vmatprep.subr.bf16.mxu0 0
  %1329 = vmatpush1.bf16.msra.mxu0 %v1250
  %1330 = vmatprep.subr.bf16.mxu0 0
  %1331 = vmatpush1.bf16.msra.mxu0 %v1251
  %1332 = vmatprep.mubr.bf16.mxu0 %v1034
  %1333 = vmatmul.mubr.bf16.gmra.mrb[0].mxu0 %v1033
  %v1334 = vpop.f32.mrb[0].mxu0
  %v1335 = vadd.f32 %v1106, %v1334
  %v1336 = vpop.f32.mrb[0].mxu0
  %v1337 = vpop.f32.mrb[0].mxu0
  %v1338 = vadd.f32 %v1106, %v1337
  %v1339 = vpop.f32.mrb[0].mxu0
  %1340 = vdwg.mxu0
  %1341 = vmatprep.subr.bf16.mxu0 0
  %1342 = vmatpush1.bf16.msra.mxu0 %v1252
  %1343 = vmatprep.subr.bf16.mxu0 0
  %1344 = vmatpush1.bf16.msra.mxu0 %v1253
  %1345 = vmatprep.subr.bf16.mxu0 0
  %1346 = vmatpush1.bf16.msra.mxu0 %v1254
  %1347 = vmatprep.subr.bf16.mxu0 0
  %1348 = vmatpush1.bf16.msra.mxu0 %v1255
  %1349 = vmatprep.subr.bf16.mxu0 0
  %1350 = vmatpush1.bf16.msra.mxu0 %v1256
  %1351 = vmatprep.subr.bf16.mxu0 0
  %1352 = vmatpush1.bf16.msra.mxu0 %v1257
  %1353 = vmatprep.subr.bf16.mxu0 0
  %1354 = vmatpush1.bf16.msra.mxu0 %v1258
  %1355 = vmatprep.subr.bf16.mxu0 0
  %1356 = vmatpush1.bf16.msra.mxu0 %v1259
  %1357 = vmatprep.subr.bf16.mxu0 0
  %1358 = vmatpush1.bf16.msra.mxu0 %v1260
  %1359 = vmatprep.subr.bf16.mxu0 0
  %1360 = vmatpush1.bf16.msra.mxu0 %v1261
  %1361 = vmatprep.subr.bf16.mxu0 0
  %1362 = vmatpush1.bf16.msra.mxu0 %v1262
  %1363 = vmatprep.subr.bf16.mxu0 0
  %1364 = vmatpush1.bf16.msra.mxu0 %v1263
  %1365 = vmatprep.subr.bf16.mxu0 0
  %1366 = vmatpush1.bf16.msra.mxu0 %v1264
  %1367 = vmatprep.subr.bf16.mxu0 0
  %1368 = vmatpush1.bf16.msra.mxu0 %v1265
  %1369 = vmatprep.subr.bf16.mxu0 0
  %1370 = vmatpush1.bf16.msra.mxu0 %v1266
  %1371 = vmatprep.subr.bf16.mxu0 0
  %1372 = vmatpush1.bf16.msra.mxu0 %v1267
  %1373 = vmatprep.mubr.bf16.mxu0 %v1036
  %1374 = vmatmul.mubr.bf16.gmra.mrb[0].mxu0 %v1035
  %v1375 = vpop.f32.mrb[0].mxu0
  %v1376 = vadd.f32 %v1335, %v1375
  %v1377 = vpop.f32.mrb[0].mxu0
  %v1378 = vpop.f32.mrb[0].mxu0
  %v1379 = vadd.f32 %v1338, %v1378
  %v1380 = vpop.f32.mrb[0].mxu0
  %1381 = vdwg.mxu0
  %v1382 = vmax.f32 %v1376, 0.0
  %v1383 = vmax.f32 %v1379, 0.0
  %v1384 = vpack.c.bf16 %v1383, %v1382
  %v1385 = vld [vmem:[%s37] sm:$0xf]
  %v1386 = vld [vmem:[%s37 + $0x4] sm:$0xf]
  %v1387 = vld [vmem:[%s37 + $0x8] sm:$0xf]
  %v1388 = vld [vmem:[%s37 + $0xc] sm:$0xf]
  %v1389 = vld [vmem:[%s39] sm:$0x1]
  %v1391 = vlaneseq
  %v1392 = vshrl.u32 %v1391, 7
  %v1393 = vsub.s32 0, %v1392
  %v1394 = vrot.slane %v1389, %v1393
  %v1400 = vunpack.c.l.b16 %v1385
  %v1401 = vunpack.c.l.b16 %v1386
  %v1402 = vunpack.c.l.b16 %v1387
  %v1403 = vunpack.c.l.b16 %v1388
  %v1404 = vpack.c.b16 %v1401, %v1400
  %v1405 = vpack.c.b16 %v1403, %v1402
  %v1409 = vsel %vm785, %v1384, 0
  %1411 = vmatprep.subr.bf16.mxu0 0
  %1412 = vmatpush1.bf16.msra.mxu0 %v1404
  %1413 = vmatprep.subr.bf16.mxu0 0
  %1414 = vmatpush1.bf16.msra.mxu0 %v1405
  %1415 = vmatprep.subr.bf16.mxu0 0
  %1416 = vmatpush1.bf16.msra.mxu0 0
  %1417 = vmatprep.subr.bf16.mxu0 0
  %1418 = vmatpush1.bf16.msra.mxu0 0
  %1419 = vmatprep.subr.bf16.mxu0 0
  %1420 = vmatpush1.bf16.msra.mxu0 0
  %1421 = vmatprep.subr.bf16.mxu0 0
  %1422 = vmatpush1.bf16.msra.mxu0 0
  %1423 = vmatprep.subr.bf16.mxu0 0
  %1424 = vmatpush1.bf16.msra.mxu0 0
  %1425 = vmatprep.subr.bf16.mxu0 0
  %1426 = vmatpush1.bf16.msra.mxu0 0
  %1427 = vmatprep.subr.bf16.mxu0 0
  %1428 = vmatpush1.bf16.msra.mxu0 0
  %1429 = vmatprep.subr.bf16.mxu0 0
  %1430 = vmatpush1.bf16.msra.mxu0 0
  %1431 = vmatprep.subr.bf16.mxu0 0
  %1432 = vmatpush1.bf16.msra.mxu0 0
  %1433 = vmatprep.subr.bf16.mxu0 0
  %1434 = vmatpush1.bf16.msra.mxu0 0
  %1435 = vmatprep.subr.bf16.mxu0 0
  %1436 = vmatpush1.bf16.msra.mxu0 0
  %1437 = vmatprep.subr.bf16.mxu0 0
  %1438 = vmatpush1.bf16.msra.mxu0 0
  %1439 = vmatprep.subr.bf16.mxu0 0
  %1440 = vmatpush1.bf16.msra.mxu0 0
  %1441 = vmatprep.subr.bf16.mxu0 0
  %1442 = vmatpush1.bf16.msra.mxu0 0
  %1443 = vmatprep.mubr.bf16.mxu0 0
  %1444 = vmatmul.mubr.bf16.gmra.mrb[0].mxu0 %v1409
  %v1445 = vpop.f32.mrb[0].mxu0
  %v1446 = vadd.f32 %v1394, %v1445
  %v1447 = vpop.f32.mrb[0].mxu0
  %v1448 = vpop.f32.mrb[0].mxu0
  %v1449 = vadd.f32 %v1394, %v1448
  %v1450 = vpop.f32.mrb[0].mxu0
  %1451 = vdwg.mxu0
  %v1452 = vld [vmem:[%s11] sm:$0xff]
  %v1453 = vld [vmem:[%s11 + $0x8] sm:$0xff]
  %v1454 = vadd.f32 %v1446, %v1452
  %v1455 = vadd.f32 %v1449, %v1453
  %v1456 = vld [vmem:[%s5] sm:$0xf]
  %v1457 = vld [vmem:[%s5 + $0x4] sm:$0xf]
  %v1458 = vld [vmem:[%s41] sm:$0xff]
  %v1459 = vld [vmem:[%s41 + $0x8] sm:$0xff]
  %v1460 = vld [vmem:[%s41 + $0x10] sm:$0xff]
  %v1461 = vld [vmem:[%s41 + $0x18] sm:$0xff]
  %v1462 = vld [vmem:[%s41 + $0x20] sm:$0xff]
  %v1463 = vld [vmem:[%s41 + $0x28] sm:$0xff]
  %v1464 = vld [vmem:[%s41 + $0x30] sm:$0xff]
  %v1465 = vld [vmem:[%s41 + $0x38] sm:$0xff]
  %v1466 = vld [vmem:[%s41 + $0x40] sm:$0xff]
  %v1467 = vld [vmem:[%s41 + $0x48] sm:$0xff]
  %v1468 = vld [vmem:[%s41 + $0x50] sm:$0xff]
  %v1469 = vld [vmem:[%s41 + $0x58] sm:$0xff]
  %v1470 = vld [vmem:[%s41 + $0x60] sm:$0xff]
  %v1471 = vld [vmem:[%s41 + $0x68] sm:$0xff]
  %v1472 = vld [vmem:[%s41 + $0x70] sm:$0xff]
  %v1473 = vld [vmem:[%s41 + $0x78] sm:$0xff]
  %v1474 = vld [vmem:[%s41 + $0x80] sm:$0xff]
  %v1475 = vld [vmem:[%s41 + $0x88] sm:$0xff]
  %v1476 = vld [vmem:[%s41 + $0x90] sm:$0xff]
  %v1477 = vld [vmem:[%s41 + $0x98] sm:$0xff]
  %v1478 = vld [vmem:[%s41 + $0xa0] sm:$0xff]
  %v1479 = vld [vmem:[%s41 + $0xa8] sm:$0xff]
  %v1480 = vld [vmem:[%s41 + $0xb0] sm:$0xff]
  %v1481 = vld [vmem:[%s41 + $0xb8] sm:$0xff]
  %v1482 = vld [vmem:[%s41 + $0xc0] sm:$0xff]
  %v1483 = vld [vmem:[%s41 + $0xc8] sm:$0xff]
  %v1484 = vld [vmem:[%s41 + $0xd0] sm:$0xff]
  %v1485 = vld [vmem:[%s41 + $0xd8] sm:$0xff]
  %v1486 = vld [vmem:[%s41 + $0xe0] sm:$0xff]
  %v1487 = vld [vmem:[%s41 + $0xe8] sm:$0xff]
  %v1488 = vld [vmem:[%s41 + $0xf0] sm:$0xff]
  %v1489 = vld [vmem:[%s41 + $0xf8] sm:$0xff]
  %v1490 = vld [vmem:[%s43] sm:$0xf]
  %v1492 = vlaneseq
  %v1493 = vshrl.u32 %v1492, 7
  %v1494 = vsub.s32 0, %v1493
  %v1495 = vrot.slane %v1490, %v1494
  %v1496 = vlaneseq
  %v1497 = vshrl.u32 %v1496, 7
  %v1498 = vsub.s32 1, %v1497
  %v1499 = vrot.slane %v1490, %v1498
  %v1500 = vlaneseq
  %v1501 = vshrl.u32 %v1500, 7
  %v1502 = vsub.s32 2, %v1501
  %v1503 = vrot.slane %v1490, %v1502
  %v1504 = vlaneseq
  %v1505 = vshrl.u32 %v1504, 7
  %v1506 = vsub.s32 3, %v1505
  %v1507 = vrot.slane %v1490, %v1506
  %v1514 = vunpack.c.l.b16 %v1456
  %v1515 = vunpack.c.l.b16 %v1457
  %v1516 = vpack.c.b16 %v1515, %v1514
  %v1550 = vunpack.c.l.b16 %v1458
  %v1551 = vunpack.c.h.b16 %v1458
  %v1552 = vunpack.c.l.b16 %v1459
  %v1553 = vunpack.c.h.b16 %v1459
  %v1554 = vunpack.c.l.b16 %v1460
  %v1555 = vunpack.c.h.b16 %v1460
  %v1556 = vunpack.c.l.b16 %v1461
  %v1557 = vunpack.c.h.b16 %v1461
  %v1558 = vunpack.c.l.b16 %v1462
  %v1559 = vunpack.c.h.b16 %v1462
  %v1560 = vunpack.c.l.b16 %v1463
  %v1561 = vunpack.c.h.b16 %v1463
  %v1562 = vunpack.c.l.b16 %v1464
  %v1563 = vunpack.c.h.b16 %v1464
  %v1564 = vunpack.c.l.b16 %v1465
  %v1565 = vunpack.c.h.b16 %v1465
  %v1566 = vunpack.c.l.b16 %v1466
  %v1567 = vunpack.c.h.b16 %v1466
  %v1568 = vunpack.c.l.b16 %v1467
  %v1569 = vunpack.c.h.b16 %v1467
  %v1570 = vunpack.c.l.b16 %v1468
  %v1571 = vunpack.c.h.b16 %v1468
  %v1572 = vunpack.c.l.b16 %v1469
  %v1573 = vunpack.c.h.b16 %v1469
  %v1574 = vunpack.c.l.b16 %v1470
  %v1575 = vunpack.c.h.b16 %v1470
  %v1576 = vunpack.c.l.b16 %v1471
  %v1577 = vunpack.c.h.b16 %v1471
  %v1578 = vunpack.c.l.b16 %v1472
  %v1579 = vunpack.c.h.b16 %v1472
  %v1580 = vunpack.c.l.b16 %v1473
  %v1581 = vunpack.c.h.b16 %v1473
  %v1582 = vunpack.c.l.b16 %v1474
  %v1583 = vunpack.c.h.b16 %v1474
  %v1584 = vunpack.c.l.b16 %v1475
  %v1585 = vunpack.c.h.b16 %v1475
  %v1586 = vunpack.c.l.b16 %v1476
  %v1587 = vunpack.c.h.b16 %v1476
  %v1588 = vunpack.c.l.b16 %v1477
  %v1589 = vunpack.c.h.b16 %v1477
  %v1590 = vunpack.c.l.b16 %v1478
  %v1591 = vunpack.c.h.b16 %v1478
  %v1592 = vunpack.c.l.b16 %v1479
  %v1593 = vunpack.c.h.b16 %v1479
  %v1594 = vunpack.c.l.b16 %v1480
  %v1595 = vunpack.c.h.b16 %v1480
  %v1596 = vunpack.c.l.b16 %v1481
  %v1597 = vunpack.c.h.b16 %v1481
  %v1598 = vunpack.c.l.b16 %v1482
  %v1599 = vunpack.c.h.b16 %v1482
  %v1600 = vunpack.c.l.b16 %v1483
  %v1601 = vunpack.c.h.b16 %v1483
  %v1602 = vunpack.c.l.b16 %v1484
  %v1603 = vunpack.c.h.b16 %v1484
  %v1604 = vunpack.c.l.b16 %v1485
  %v1605 = vunpack.c.h.b16 %v1485
  %v1606 = vunpack.c.l.b16 %v1486
  %v1607 = vunpack.c.h.b16 %v1486
  %v1608 = vunpack.c.l.b16 %v1487
  %v1609 = vunpack.c.h.b16 %v1487
  %v1610 = vunpack.c.l.b16 %v1488
  %v1611 = vunpack.c.h.b16 %v1488
  %v1612 = vunpack.c.l.b16 %v1489
  %v1613 = vunpack.c.h.b16 %v1489
  %v1614 = vpack.c.b16 %v1554, %v1550
  %v1615 = vpack.c.b16 %v1555, %v1551
  %v1616 = vpack.c.b16 %v1556, %v1552
  %v1617 = vpack.c.b16 %v1557, %v1553
  %v1618 = vpack.c.b16 %v1562, %v1558
  %v1619 = vpack.c.b16 %v1563, %v1559
  %v1620 = vpack.c.b16 %v1564, %v1560
  %v1621 = vpack.c.b16 %v1565, %v1561
  %v1622 = vpack.c.b16 %v1570, %v1566
  %v1623 = vpack.c.b16 %v1571, %v1567
  %v1624 = vpack.c.b16 %v1572, %v1568
  %v1625 = vpack.c.b16 %v1573, %v1569
  %v1626 = vpack.c.b16 %v1578, %v1574
  %v1627 = vpack.c.b16 %v1579, %v1575
  %v1628 = vpack.c.b16 %v1580, %v1576
  %v1629 = vpack.c.b16 %v1581, %v1577
  %v1630 = vpack.c.b16 %v1586, %v1582
  %v1631 = vpack.c.b16 %v1587, %v1583
  %v1632 = vpack.c.b16 %v1588, %v1584
  %v1633 = vpack.c.b16 %v1589, %v1585
  %v1634 = vpack.c.b16 %v1594, %v1590
  %v1635 = vpack.c.b16 %v1595, %v1591
  %v1636 = vpack.c.b16 %v1596, %v1592
  %v1637 = vpack.c.b16 %v1597, %v1593
  %v1638 = vpack.c.b16 %v1602, %v1598
  %v1639 = vpack.c.b16 %v1603, %v1599
  %v1640 = vpack.c.b16 %v1604, %v1600
  %v1641 = vpack.c.b16 %v1605, %v1601
  %v1642 = vpack.c.b16 %v1610, %v1606
  %v1643 = vpack.c.b16 %v1611, %v1607
  %v1644 = vpack.c.b16 %v1612, %v1608
  %v1645 = vpack.c.b16 %v1613, %v1609
  %1678 = vmatprep.subr.bf16.mxu0 %v1615
  %1679 = vmatpush1.bf16.msra.mxu0 %v1614
  %1680 = vmatprep.subr.bf16.mxu0 %v1619
  %1681 = vmatpush1.bf16.msra.mxu0 %v1618
  %1682 = vmatprep.subr.bf16.mxu0 %v1623
  %1683 = vmatpush1.bf16.msra.mxu0 %v1622
  %1684 = vmatprep.subr.bf16.mxu0 %v1627
  %1685 = vmatpush1.bf16.msra.mxu0 %v1626
  %1686 = vmatprep.subr.bf16.mxu0 %v1631
  %1687 = vmatpush1.bf16.msra.mxu0 %v1630
  %1688 = vmatprep.subr.bf16.mxu0 %v1635
  %1689 = vmatpush1.bf16.msra.mxu0 %v1634
  %1690 = vmatprep.subr.bf16.mxu0 %v1639
  %1691 = vmatpush1.bf16.msra.mxu0 %v1638
  %1692 = vmatprep.subr.bf16.mxu0 %v1643
  %1693 = vmatpush1.bf16.msra.mxu0 %v1642
  %1694 = vmatprep.subr.bf16.mxu0 0
  %1695 = vmatpush1.bf16.msra.mxu0 0
  %1696 = vmatprep.subr.bf16.mxu0 0
  %1697 = vmatpush1.bf16.msra.mxu0 0
  %1698 = vmatprep.subr.bf16.mxu0 0
  %1699 = vmatpush1.bf16.msra.mxu0 0
  %1700 = vmatprep.subr.bf16.mxu0 0
  %1701 = vmatpush1.bf16.msra.mxu0 0
  %1702 = vmatprep.subr.bf16.mxu0 0
  %1703 = vmatpush1.bf16.msra.mxu0 0
  %1704 = vmatprep.subr.bf16.mxu0 0
  %1705 = vmatpush1.bf16.msra.mxu0 0
  %1706 = vmatprep.subr.bf16.mxu0 0
  %1707 = vmatpush1.bf16.msra.mxu0 0
  %1708 = vmatprep.subr.bf16.mxu0 0
  %1709 = vmatpush1.bf16.msra.mxu0 0
  %1710 = vmatprep.mubr.bf16.mxu0 0
  %1711 = vmatmul.mubr.bf16.gmra.mrb[0].mxu0 %v1516
  %v1712 = vpop.f32.mrb[0].mxu0
  %v1713 = vadd.f32 %v1495, %v1712
  %v1714 = vpop.f32.mrb[0].mxu0
  %v1715 = vadd.f32 %v1499, %v1714
  %v1716 = vpop.f32.mrb[0].mxu0
  %v1717 = vadd.f32 %v1495, %v1716
  %v1718 = vpop.f32.mrb[0].mxu0
  %v1719 = vadd.f32 %v1499, %v1718
  %1720 = vdwg.mxu0
  %1721 = vmatprep.subr.bf16.mxu0 %v1617
  %1722 = vmatpush1.bf16.msra.mxu0 %v1616
  %1723 = vmatprep.subr.bf16.mxu0 %v1621
  %1724 = vmatpush1.bf16.msra.mxu0 %v1620
  %1725 = vmatprep.subr.bf16.mxu0 %v1625
  %1726 = vmatpush1.bf16.msra.mxu0 %v1624
  %1727 = vmatprep.subr.bf16.mxu0 %v1629
  %1728 = vmatpush1.bf16.msra.mxu0 %v1628
  %1729 = vmatprep.subr.bf16.mxu0 %v1633
  %1730 = vmatpush1.bf16.msra.mxu0 %v1632
  %1731 = vmatprep.subr.bf16.mxu0 %v1637
  %1732 = vmatpush1.bf16.msra.mxu0 %v1636
  %1733 = vmatprep.subr.bf16.mxu0 %v1641
  %1734 = vmatpush1.bf16.msra.mxu0 %v1640
  %1735 = vmatprep.subr.bf16.mxu0 %v1645
  %1736 = vmatpush1.bf16.msra.mxu0 %v1644
  %1737 = vmatprep.subr.bf16.mxu0 0
  %1738 = vmatpush1.bf16.msra.mxu0 0
  %1739 = vmatprep.subr.bf16.mxu0 0
  %1740 = vmatpush1.bf16.msra.mxu0 0
  %1741 = vmatprep.subr.bf16.mxu0 0
  %1742 = vmatpush1.bf16.msra.mxu0 0
  %1743 = vmatprep.subr.bf16.mxu0 0
  %1744 = vmatpush1.bf16.msra.mxu0 0
  %1745 = vmatprep.subr.bf16.mxu0 0
  %1746 = vmatpush1.bf16.msra.mxu0 0
  %1747 = vmatprep.subr.bf16.mxu0 0
  %1748 = vmatpush1.bf16.msra.mxu0 0
  %1749 = vmatprep.subr.bf16.mxu0 0
  %1750 = vmatpush1.bf16.msra.mxu0 0
  %1751 = vmatprep.subr.bf16.mxu0 0
  %1752 = vmatpush1.bf16.msra.mxu0 0
  %1753 = vmatprep.mubr.bf16.mxu0 0
  %1754 = vmatmul.mubr.bf16.gmra.mrb[0].mxu0 %v1516
  %v1755 = vpop.f32.mrb[0].mxu0
  %v1756 = vadd.f32 %v1503, %v1755
  %v1757 = vpop.f32.mrb[0].mxu0
  %v1758 = vadd.f32 %v1507, %v1757
  %v1759 = vpop.f32.mrb[0].mxu0
  %v1760 = vadd.f32 %v1503, %v1759
  %v1761 = vpop.f32.mrb[0].mxu0
  %v1762 = vadd.f32 %v1507, %v1761
  %1763 = vdwg.mxu0
  %v1764 = vmax.f32 %v1713, 0.0
  %v1765 = vmax.f32 %v1715, 0.0
  %v1766 = vmax.f32 %v1756, 0.0
  %v1767 = vmax.f32 %v1758, 0.0
  %v1768 = vmax.f32 %v1717, 0.0
  %v1769 = vmax.f32 %v1719, 0.0
  %v1770 = vmax.f32 %v1760, 0.0
  %v1771 = vmax.f32 %v1762, 0.0
  %v1772 = vpack.c.bf16 %v1768, %v1764
  %v1773 = vpack.c.bf16 %v1769, %v1765
  %v1774 = vpack.c.bf16 %v1770, %v1766
  %v1775 = vpack.c.bf16 %v1771, %v1767
  %v1776 = vld [vmem:[%s45] sm:$0xf]
  %v1777 = vld [vmem:[%s45 + $0x4] sm:$0xf]
  %v1778 = vld [vmem:[%s45 + $0x8] sm:$0xf]
  %v1779 = vld [vmem:[%s45 + $0xc] sm:$0xf]
  %v1780 = vld [vmem:[%s45 + $0x10] sm:$0xf]
  %v1781 = vld [vmem:[%s45 + $0x14] sm:$0xf]
  %v1782 = vld [vmem:[%s45 + $0x18] sm:$0xf]
  %v1783 = vld [vmem:[%s45 + $0x1c] sm:$0xf]
  %v1784 = vld [vmem:[%s45 + $0x20] sm:$0xf]
  %v1785 = vld [vmem:[%s45 + $0x24] sm:$0xf]
  %v1786 = vld [vmem:[%s45 + $0x28] sm:$0xf]
  %v1787 = vld [vmem:[%s45 + $0x2c] sm:$0xf]
  %v1788 = vld [vmem:[%s45 + $0x30] sm:$0xf]
  %v1789 = vld [vmem:[%s45 + $0x34] sm:$0xf]
  %v1790 = vld [vmem:[%s45 + $0x38] sm:$0xf]
  %v1791 = vld [vmem:[%s45 + $0x3c] sm:$0xf]
  %v1792 = vld [vmem:[%s45 + $0x40] sm:$0xf]
  %v1793 = vld [vmem:[%s45 + $0x44] sm:$0xf]
  %v1794 = vld [vmem:[%s45 + $0x48] sm:$0xf]
  %v1795 = vld [vmem:[%s45 + $0x4c] sm:$0xf]
  %v1796 = vld [vmem:[%s45 + $0x50] sm:$0xf]
  %v1797 = vld [vmem:[%s45 + $0x54] sm:$0xf]
  %v1798 = vld [vmem:[%s45 + $0x58] sm:$0xf]
  %v1799 = vld [vmem:[%s45 + $0x5c] sm:$0xf]
  %v1800 = vld [vmem:[%s45 + $0x60] sm:$0xf]
  %v1801 = vld [vmem:[%s45 + $0x64] sm:$0xf]
  %v1802 = vld [vmem:[%s45 + $0x68] sm:$0xf]
  %v1803 = vld [vmem:[%s45 + $0x6c] sm:$0xf]
  %v1804 = vld [vmem:[%s45 + $0x70] sm:$0xf]
  %v1805 = vld [vmem:[%s45 + $0x74] sm:$0xf]
  %v1806 = vld [vmem:[%s45 + $0x78] sm:$0xf]
  %v1807 = vld [vmem:[%s45 + $0x7c] sm:$0xf]
  %v1808 = vld [vmem:[%s45 + $0x80] sm:$0xf]
  %v1809 = vld [vmem:[%s45 + $0x84] sm:$0xf]
  %v1810 = vld [vmem:[%s45 + $0x88] sm:$0xf]
  %v1811 = vld [vmem:[%s45 + $0x8c] sm:$0xf]
  %v1812 = vld [vmem:[%s45 + $0x90] sm:$0xf]
  %v1813 = vld [vmem:[%s45 + $0x94] sm:$0xf]
  %v1814 = vld [vmem:[%s45 + $0x98] sm:$0xf]
  %v1815 = vld [vmem:[%s45 + $0x9c] sm:$0xf]
  %v1816 = vld [vmem:[%s45 + $0xa0] sm:$0xf]
  %v1817 = vld [vmem:[%s45 + $0xa4] sm:$0xf]
  %v1818 = vld [vmem:[%s45 + $0xa8] sm:$0xf]
  %v1819 = vld [vmem:[%s45 + $0xac] sm:$0xf]
  %v1820 = vld [vmem:[%s45 + $0xb0] sm:$0xf]
  %v1821 = vld [vmem:[%s45 + $0xb4] sm:$0xf]
  %v1822 = vld [vmem:[%s45 + $0xb8] sm:$0xf]
  %v1823 = vld [vmem:[%s45 + $0xbc] sm:$0xf]
  %v1824 = vld [vmem:[%s45 + $0xc0] sm:$0xf]
  %v1825 = vld [vmem:[%s45 + $0xc4] sm:$0xf]
  %v1826 = vld [vmem:[%s45 + $0xc8] sm:$0xf]
  %v1827 = vld [vmem:[%s45 + $0xcc] sm:$0xf]
  %v1828 = vld [vmem:[%s45 + $0xd0] sm:$0xf]
  %v1829 = vld [vmem:[%s45 + $0xd4] sm:$0xf]
  %v1830 = vld [vmem:[%s45 + $0xd8] sm:$0xf]
  %v1831 = vld [vmem:[%s45 + $0xdc] sm:$0xf]
  %v1832 = vld [vmem:[%s45 + $0xe0] sm:$0xf]
  %v1833 = vld [vmem:[%s45 + $0xe4] sm:$0xf]
  %v1834 = vld [vmem:[%s45 + $0xe8] sm:$0xf]
  %v1835 = vld [vmem:[%s45 + $0xec] sm:$0xf]
  %v1836 = vld [vmem:[%s45 + $0xf0] sm:$0xf]
  %v1837 = vld [vmem:[%s45 + $0xf4] sm:$0xf]
  %v1838 = vld [vmem:[%s45 + $0xf8] sm:$0xf]
  %v1839 = vld [vmem:[%s45 + $0xfc] sm:$0xf]
  %v1840 = vld [vmem:[%s47] sm:$0x1]
  %v1842 = vlaneseq
  %v1843 = vshrl.u32 %v1842, 7
  %v1844 = vsub.s32 0, %v1843
  %v1845 = vrot.slane %v1840, %v1844
  %v1911 = vunpack.c.l.b16 %v1776
  %v1912 = vunpack.c.l.b16 %v1777
  %v1913 = vunpack.c.l.b16 %v1778
  %v1914 = vunpack.c.l.b16 %v1779
  %v1915 = vunpack.c.l.b16 %v1780
  %v1916 = vunpack.c.l.b16 %v1781
  %v1917 = vunpack.c.l.b16 %v1782
  %v1918 = vunpack.c.l.b16 %v1783
  %v1919 = vunpack.c.l.b16 %v1784
  %v1920 = vunpack.c.l.b16 %v1785
  %v1921 = vunpack.c.l.b16 %v1786
  %v1922 = vunpack.c.l.b16 %v1787
  %v1923 = vunpack.c.l.b16 %v1788
  %v1924 = vunpack.c.l.b16 %v1789
  %v1925 = vunpack.c.l.b16 %v1790
  %v1926 = vunpack.c.l.b16 %v1791
  %v1927 = vunpack.c.l.b16 %v1792
  %v1928 = vunpack.c.l.b16 %v1793
  %v1929 = vunpack.c.l.b16 %v1794
  %v1930 = vunpack.c.l.b16 %v1795
  %v1931 = vunpack.c.l.b16 %v1796
  %v1932 = vunpack.c.l.b16 %v1797
  %v1933 = vunpack.c.l.b16 %v1798
  %v1934 = vunpack.c.l.b16 %v1799
  %v1935 = vunpack.c.l.b16 %v1800
  %v1936 = vunpack.c.l.b16 %v1801
  %v1937 = vunpack.c.l.b16 %v1802
  %v1938 = vunpack.c.l.b16 %v1803
  %v1939 = vunpack.c.l.b16 %v1804
  %v1940 = vunpack.c.l.b16 %v1805
  %v1941 = vunpack.c.l.b16 %v1806
  %v1942 = vunpack.c.l.b16 %v1807
  %v1943 = vunpack.c.l.b16 %v1808
  %v1944 = vunpack.c.l.b16 %v1809
  %v1945 = vunpack.c.l.b16 %v1810
  %v1946 = vunpack.c.l.b16 %v1811
  %v1947 = vunpack.c.l.b16 %v1812
  %v1948 = vunpack.c.l.b16 %v1813
  %v1949 = vunpack.c.l.b16 %v1814
  %v1950 = vunpack.c.l.b16 %v1815
  %v1951 = vunpack.c.l.b16 %v1816
  %v1952 = vunpack.c.l.b16 %v1817
  %v1953 = vunpack.c.l.b16 %v1818
  %v1954 = vunpack.c.l.b16 %v1819
  %v1955 = vunpack.c.l.b16 %v1820
  %v1956 = vunpack.c.l.b16 %v1821
  %v1957 = vunpack.c.l.b16 %v1822
  %v1958 = vunpack.c.l.b16 %v1823
  %v1959 = vunpack.c.l.b16 %v1824
  %v1960 = vunpack.c.l.b16 %v1825
  %v1961 = vunpack.c.l.b16 %v1826
  %v1962 = vunpack.c.l.b16 %v1827
  %v1963 = vunpack.c.l.b16 %v1828
  %v1964 = vunpack.c.l.b16 %v1829
  %v1965 = vunpack.c.l.b16 %v1830
  %v1966 = vunpack.c.l.b16 %v1831
  %v1967 = vunpack.c.l.b16 %v1832
  %v1968 = vunpack.c.l.b16 %v1833
  %v1969 = vunpack.c.l.b16 %v1834
  %v1970 = vunpack.c.l.b16 %v1835
  %v1971 = vunpack.c.l.b16 %v1836
  %v1972 = vunpack.c.l.b16 %v1837
  %v1973 = vunpack.c.l.b16 %v1838
  %v1974 = vunpack.c.l.b16 %v1839
  %v1975 = vpack.c.b16 %v1912, %v1911
  %v1976 = vpack.c.b16 %v1914, %v1913
  %v1977 = vpack.c.b16 %v1916, %v1915
  %v1978 = vpack.c.b16 %v1918, %v1917
  %v1979 = vpack.c.b16 %v1920, %v1919
  %v1980 = vpack.c.b16 %v1922, %v1921
  %v1981 = vpack.c.b16 %v1924, %v1923
  %v1982 = vpack.c.b16 %v1926, %v1925
  %v1983 = vpack.c.b16 %v1928, %v1927
  %v1984 = vpack.c.b16 %v1930, %v1929
  %v1985 = vpack.c.b16 %v1932, %v1931
  %v1986 = vpack.c.b16 %v1934, %v1933
  %v1987 = vpack.c.b16 %v1936, %v1935
  %v1988 = vpack.c.b16 %v1938, %v1937
  %v1989 = vpack.c.b16 %v1940, %v1939
  %v1990 = vpack.c.b16 %v1942, %v1941
  %v1991 = vpack.c.b16 %v1944, %v1943
  %v1992 = vpack.c.b16 %v1946, %v1945
  %v1993 = vpack.c.b16 %v1948, %v1947
  %v1994 = vpack.c.b16 %v1950, %v1949
  %v1995 = vpack.c.b16 %v1952, %v1951
  %v1996 = vpack.c.b16 %v1954, %v1953
  %v1997 = vpack.c.b16 %v1956, %v1955
  %v1998 = vpack.c.b16 %v1958, %v1957
  %v1999 = vpack.c.b16 %v1960, %v1959
  %v2000 = vpack.c.b16 %v1962, %v1961
  %v2001 = vpack.c.b16 %v1964, %v1963
  %v2002 = vpack.c.b16 %v1966, %v1965
  %v2003 = vpack.c.b16 %v1968, %v1967
  %v2004 = vpack.c.b16 %v1970, %v1969
  %v2005 = vpack.c.b16 %v1972, %v1971
  %v2006 = vpack.c.b16 %v1974, %v1973
  %2039 = vmatprep.subr.bf16.mxu0 0
  %2040 = vmatpush1.bf16.msra.mxu0 %v1975
  %2041 = vmatprep.subr.bf16.mxu0 0
  %2042 = vmatpush1.bf16.msra.mxu0 %v1976
  %2043 = vmatprep.subr.bf16.mxu0 0
  %2044 = vmatpush1.bf16.msra.mxu0 %v1977
  %2045 = vmatprep.subr.bf16.mxu0 0
  %2046 = vmatpush1.bf16.msra.mxu0 %v1978
  %2047 = vmatprep.subr.bf16.mxu0 0
  %2048 = vmatpush1.bf16.msra.mxu0 %v1979
  %2049 = vmatprep.subr.bf16.mxu0 0
  %2050 = vmatpush1.bf16.msra.mxu0 %v1980
  %2051 = vmatprep.subr.bf16.mxu0 0
  %2052 = vmatpush1.bf16.msra.mxu0 %v1981
  %2053 = vmatprep.subr.bf16.mxu0 0
  %2054 = vmatpush1.bf16.msra.mxu0 %v1982
  %2055 = vmatprep.subr.bf16.mxu0 0
  %2056 = vmatpush1.bf16.msra.mxu0 %v1983
  %2057 = vmatprep.subr.bf16.mxu0 0
  %2058 = vmatpush1.bf16.msra.mxu0 %v1984
  %2059 = vmatprep.subr.bf16.mxu0 0
  %2060 = vmatpush1.bf16.msra.mxu0 %v1985
  %2061 = vmatprep.subr.bf16.mxu0 0
  %2062 = vmatpush1.bf16.msra.mxu0 %v1986
  %2063 = vmatprep.subr.bf16.mxu0 0
  %2064 = vmatpush1.bf16.msra.mxu0 %v1987
  %2065 = vmatprep.subr.bf16.mxu0 0
  %2066 = vmatpush1.bf16.msra.mxu0 %v1988
  %2067 = vmatprep.subr.bf16.mxu0 0
  %2068 = vmatpush1.bf16.msra.mxu0 %v1989
  %2069 = vmatprep.subr.bf16.mxu0 0
  %2070 = vmatpush1.bf16.msra.mxu0 %v1990
  %2071 = vmatprep.mubr.bf16.mxu0 %v1773
  %2072 = vmatmul.mubr.bf16.gmra.mrb[0].mxu0 %v1772
  %v2073 = vpop.f32.mrb[0].mxu0
  %v2074 = vadd.f32 %v1845, %v2073
  %v2075 = vpop.f32.mrb[0].mxu0
  %v2076 = vpop.f32.mrb[0].mxu0
  %v2077 = vadd.f32 %v1845, %v2076
  %v2078 = vpop.f32.mrb[0].mxu0
  %2079 = vdwg.mxu0
  %2080 = vmatprep.subr.bf16.mxu0 0
  %2081 = vmatpush1.bf16.msra.mxu0 %v1991
  %2082 = vmatprep.subr.bf16.mxu0 0
  %2083 = vmatpush1.bf16.msra.mxu0 %v1992
  %2084 = vmatprep.subr.bf16.mxu0 0
  %2085 = vmatpush1.bf16.msra.mxu0 %v1993
  %2086 = vmatprep.subr.bf16.mxu0 0
  %2087 = vmatpush1.bf16.msra.mxu0 %v1994
  %2088 = vmatprep.subr.bf16.mxu0 0
  %2089 = vmatpush1.bf16.msra.mxu0 %v1995
  %2090 = vmatprep.subr.bf16.mxu0 0
  %2091 = vmatpush1.bf16.msra.mxu0 %v1996
  %2092 = vmatprep.subr.bf16.mxu0 0
  %2093 = vmatpush1.bf16.msra.mxu0 %v1997
  %2094 = vmatprep.subr.bf16.mxu0 0
  %2095 = vmatpush1.bf16.msra.mxu0 %v1998
  %2096 = vmatprep.subr.bf16.mxu0 0
  %2097 = vmatpush1.bf16.msra.mxu0 %v1999
  %2098 = vmatprep.subr.bf16.mxu0 0
  %2099 = vmatpush1.bf16.msra.mxu0 %v2000
  %2100 = vmatprep.subr.bf16.mxu0 0
  %2101 = vmatpush1.bf16.msra.mxu0 %v2001
  %2102 = vmatprep.subr.bf16.mxu0 0
  %2103 = vmatpush1.bf16.msra.mxu0 %v2002
  %2104 = vmatprep.subr.bf16.mxu0 0
  %2105 = vmatpush1.bf16.msra.mxu0 %v2003
  %2106 = vmatprep.subr.bf16.mxu0 0
  %2107 = vmatpush1.bf16.msra.mxu0 %v2004
  %2108 = vmatprep.subr.bf16.mxu0 0
  %2109 = vmatpush1.bf16.msra.mxu0 %v2005
  %2110 = vmatprep.subr.bf16.mxu0 0
  %2111 = vmatpush1.bf16.msra.mxu0 %v2006
  %2112 = vmatprep.mubr.bf16.mxu0 %v1775
  %2113 = vmatmul.mubr.bf16.gmra.mrb[0].mxu0 %v1774
  %v2114 = vpop.f32.mrb[0].mxu0
  %v2115 = vadd.f32 %v2074, %v2114
  %v2116 = vpop.f32.mrb[0].mxu0
  %v2117 = vpop.f32.mrb[0].mxu0
  %v2118 = vadd.f32 %v2077, %v2117
  %v2119 = vpop.f32.mrb[0].mxu0
  %2120 = vdwg.mxu0
  %v2121 = vmax.f32 %v2115, 0.0
  %v2122 = vmax.f32 %v2118, 0.0
  %v2123 = vpack.c.bf16 %v2122, %v2121
  %v2124 = vld [vmem:[%s49] sm:$0xf]
  %v2125 = vld [vmem:[%s49 + $0x4] sm:$0xf]
  %v2126 = vld [vmem:[%s49 + $0x8] sm:$0xf]
  %v2127 = vld [vmem:[%s49 + $0xc] sm:$0xf]
  %v2128 = vld [vmem:[%s51] sm:$0x1]
  %v2130 = vlaneseq
  %v2131 = vshrl.u32 %v2130, 7
  %v2132 = vsub.s32 0, %v2131
  %v2133 = vrot.slane %v2128, %v2132
  %v2139 = vunpack.c.l.b16 %v2124
  %v2140 = vunpack.c.l.b16 %v2125
  %v2141 = vunpack.c.l.b16 %v2126
  %v2142 = vunpack.c.l.b16 %v2127
  %v2143 = vpack.c.b16 %v2140, %v2139
  %v2144 = vpack.c.b16 %v2142, %v2141
  %v2148 = vsel %vm785, %v2123, 0
  %2150 = vmatprep.subr.bf16.mxu0 0
  %2151 = vmatpush1.bf16.msra.mxu0 %v2143
  %2152 = vmatprep.subr.bf16.mxu0 0
  %2153 = vmatpush1.bf16.msra.mxu0 %v2144
  %2154 = vmatprep.subr.bf16.mxu0 0
  %2155 = vmatpush1.bf16.msra.mxu0 0
  %2156 = vmatprep.subr.bf16.mxu0 0
  %2157 = vmatpush1.bf16.msra.mxu0 0
  %2158 = vmatprep.subr.bf16.mxu0 0
  %2159 = vmatpush1.bf16.msra.mxu0 0
  %2160 = vmatprep.subr.bf16.mxu0 0
  %2161 = vmatpush1.bf16.msra.mxu0 0
  %2162 = vmatprep.subr.bf16.mxu0 0
  %2163 = vmatpush1.bf16.msra.mxu0 0
  %2164 = vmatprep.subr.bf16.mxu0 0
  %2165 = vmatpush1.bf16.msra.mxu0 0
  %2166 = vmatprep.subr.bf16.mxu0 0
  %2167 = vmatpush1.bf16.msra.mxu0 0
  %2168 = vmatprep.subr.bf16.mxu0 0
  %2169 = vmatpush1.bf16.msra.mxu0 0
  %2170 = vmatprep.subr.bf16.mxu0 0
  %2171 = vmatpush1.bf16.msra.mxu0 0
  %2172 = vmatprep.subr.bf16.mxu0 0
  %2173 = vmatpush1.bf16.msra.mxu0 0
  %2174 = vmatprep.subr.bf16.mxu0 0
  %2175 = vmatpush1.bf16.msra.mxu0 0
  %2176 = vmatprep.subr.bf16.mxu0 0
  %2177 = vmatpush1.bf16.msra.mxu0 0
  %2178 = vmatprep.subr.bf16.mxu0 0
  %2179 = vmatpush1.bf16.msra.mxu0 0
  %2180 = vmatprep.subr.bf16.mxu0 0
  %2181 = vmatpush1.bf16.msra.mxu0 0
  %2182 = vmatprep.mubr.bf16.mxu0 0
  %2183 = vmatmul.mubr.bf16.gmra.mrb[0].mxu0 %v2148
  %v2184 = vpop.f32.mrb[0].mxu0
  %v2185 = vadd.f32 %v2133, %v2184
  %v2186 = vpop.f32.mrb[0].mxu0
  %v2187 = vpop.f32.mrb[0].mxu0
  %v2188 = vadd.f32 %v2133, %v2187
  %v2189 = vpop.f32.mrb[0].mxu0
  %2190 = vdwg.mxu0
  %v2191 = vld [vmem:[%s7] sm:$0xf]
  %v2192 = vld [vmem:[%s7 + $0x4] sm:$0xf]
  %v2193 = vld [vmem:[%s53] sm:$0xff]
  %v2194 = vld [vmem:[%s53 + $0x8] sm:$0xff]
  %v2195 = vld [vmem:[%s53 + $0x10] sm:$0xff]
  %v2196 = vld [vmem:[%s53 + $0x18] sm:$0xff]
  %v2197 = vld [vmem:[%s53 + $0x20] sm:$0xff]
  %v2198 = vld [vmem:[%s53 + $0x28] sm:$0xff]
  %v2199 = vld [vmem:[%s53 + $0x30] sm:$0xff]
  %v2200 = vld [vmem:[%s53 + $0x38] sm:$0xff]
  %v2201 = vld [vmem:[%s53 + $0x40] sm:$0xff]
  %v2202 = vld [vmem:[%s53 + $0x48] sm:$0xff]
  %v2203 = vld [vmem:[%s53 + $0x50] sm:$0xff]
  %v2204 = vld [vmem:[%s53 + $0x58] sm:$0xff]
  %v2205 = vld [vmem:[%s53 + $0x60] sm:$0xff]
  %v2206 = vld [vmem:[%s53 + $0x68] sm:$0xff]
  %v2207 = vld [vmem:[%s53 + $0x70] sm:$0xff]
  %v2208 = vld [vmem:[%s53 + $0x78] sm:$0xff]
  %v2209 = vld [vmem:[%s55] sm:$0xf]
  %v2211 = vlaneseq
  %v2212 = vshrl.u32 %v2211, 7
  %v2213 = vsub.s32 0, %v2212
  %v2214 = vrot.slane %v2209, %v2213
  %v2215 = vlaneseq
  %v2216 = vshrl.u32 %v2215, 7
  %v2217 = vsub.s32 1, %v2216
  %v2218 = vrot.slane %v2209, %v2217
  %v2219 = vlaneseq
  %v2220 = vshrl.u32 %v2219, 7
  %v2221 = vsub.s32 2, %v2220
  %v2222 = vrot.slane %v2209, %v2221
  %v2223 = vlaneseq
  %v2224 = vshrl.u32 %v2223, 7
  %v2225 = vsub.s32 3, %v2224
  %v2226 = vrot.slane %v2209, %v2225
  %v2233 = vunpack.c.l.b16 %v2191
  %v2234 = vunpack.c.l.b16 %v2192
  %v2235 = vpack.c.b16 %v2234, %v2233
  %v2252 = vunpack.c.l.b16 %v2193
  %v2253 = vunpack.c.h.b16 %v2193
  %v2254 = vunpack.c.l.b16 %v2194
  %v2255 = vunpack.c.h.b16 %v2194
  %v2256 = vunpack.c.l.b16 %v2195
  %v2257 = vunpack.c.h.b16 %v2195
  %v2258 = vunpack.c.l.b16 %v2196
  %v2259 = vunpack.c.h.b16 %v2196
  %v2260 = vunpack.c.l.b16 %v2197
  %v2261 = vunpack.c.h.b16 %v2197
  %v2262 = vunpack.c.l.b16 %v2198
  %v2263 = vunpack.c.h.b16 %v2198
  %v2264 = vunpack.c.l.b16 %v2199
  %v2265 = vunpack.c.h.b16 %v2199
  %v2266 = vunpack.c.l.b16 %v2200
  %v2267 = vunpack.c.h.b16 %v2200
  %v2268 = vunpack.c.l.b16 %v2201
  %v2269 = vunpack.c.h.b16 %v2201
  %v2270 = vunpack.c.l.b16 %v2202
  %v2271 = vunpack.c.h.b16 %v2202
  %v2272 = vunpack.c.l.b16 %v2203
  %v2273 = vunpack.c.h.b16 %v2203
  %v2274 = vunpack.c.l.b16 %v2204
  %v2275 = vunpack.c.h.b16 %v2204
  %v2276 = vunpack.c.l.b16 %v2205
  %v2277 = vunpack.c.h.b16 %v2205
  %v2278 = vunpack.c.l.b16 %v2206
  %v2279 = vunpack.c.h.b16 %v2206
  %v2280 = vunpack.c.l.b16 %v2207
  %v2281 = vunpack.c.h.b16 %v2207
  %v2282 = vunpack.c.l.b16 %v2208
  %v2283 = vunpack.c.h.b16 %v2208
  %v2284 = vpack.c.b16 %v2256, %v2252
  %v2285 = vpack.c.b16 %v2257, %v2253
  %v2286 = vpack.c.b16 %v2258, %v2254
  %v2287 = vpack.c.b16 %v2259, %v2255
  %v2288 = vpack.c.b16 %v2264, %v2260
  %v2289 = vpack.c.b16 %v2265, %v2261
  %v2290 = vpack.c.b16 %v2266, %v2262
  %v2291 = vpack.c.b16 %v2267, %v2263
  %v2292 = vpack.c.b16 %v2272, %v2268
  %v2293 = vpack.c.b16 %v2273, %v2269
  %v2294 = vpack.c.b16 %v2274, %v2270
  %v2295 = vpack.c.b16 %v2275, %v2271
  %v2296 = vpack.c.b16 %v2280, %v2276
  %v2297 = vpack.c.b16 %v2281, %v2277
  %v2298 = vpack.c.b16 %v2282, %v2278
  %v2299 = vpack.c.b16 %v2283, %v2279
  %v2317 = vsel %vm312, %v2235, 0
  %2319 = vmatprep.subr.bf16.mxu0 %v2285
  %2320 = vmatpush1.bf16.msra.mxu0 %v2284
  %2321 = vmatprep.subr.bf16.mxu0 %v2289
  %2322 = vmatpush1.bf16.msra.mxu0 %v2288
  %2323 = vmatprep.subr.bf16.mxu0 %v2293
  %2324 = vmatpush1.bf16.msra.mxu0 %v2292
  %2325 = vmatprep.subr.bf16.mxu0 %v2297
  %2326 = vmatpush1.bf16.msra.mxu0 %v2296
  %2327 = vmatprep.subr.bf16.mxu0 0
  %2328 = vmatpush1.bf16.msra.mxu0 0
  %2329 = vmatprep.subr.bf16.mxu0 0
  %2330 = vmatpush1.bf16.msra.mxu0 0
  %2331 = vmatprep.subr.bf16.mxu0 0
  %2332 = vmatpush1.bf16.msra.mxu0 0
  %2333 = vmatprep.subr.bf16.mxu0 0
  %2334 = vmatpush1.bf16.msra.mxu0 0
  %2335 = vmatprep.subr.bf16.mxu0 0
  %2336 = vmatpush1.bf16.msra.mxu0 0
  %2337 = vmatprep.subr.bf16.mxu0 0
  %2338 = vmatpush1.bf16.msra.mxu0 0
  %2339 = vmatprep.subr.bf16.mxu0 0
  %2340 = vmatpush1.bf16.msra.mxu0 0
  %2341 = vmatprep.subr.bf16.mxu0 0
  %2342 = vmatpush1.bf16.msra.mxu0 0
  %2343 = vmatprep.subr.bf16.mxu0 0
  %2344 = vmatpush1.bf16.msra.mxu0 0
  %2345 = vmatprep.subr.bf16.mxu0 0
  %2346 = vmatpush1.bf16.msra.mxu0 0
  %2347 = vmatprep.subr.bf16.mxu0 0
  %2348 = vmatpush1.bf16.msra.mxu0 0
  %2349 = vmatprep.subr.bf16.mxu0 0
  %2350 = vmatpush1.bf16.msra.mxu0 0
  %2351 = vmatprep.mubr.bf16.mxu0 0
  %2352 = vmatmul.mubr.bf16.gmra.mrb[0].mxu0 %v2317
  %v2353 = vpop.f32.mrb[0].mxu0
  %v2354 = vadd.f32 %v2214, %v2353
  %v2355 = vpop.f32.mrb[0].mxu0
  %v2356 = vadd.f32 %v2218, %v2355
  %v2357 = vpop.f32.mrb[0].mxu0
  %v2358 = vadd.f32 %v2214, %v2357
  %v2359 = vpop.f32.mrb[0].mxu0
  %v2360 = vadd.f32 %v2218, %v2359
  %2361 = vdwg.mxu0
  %2362 = vmatprep.subr.bf16.mxu0 %v2287
  %2363 = vmatpush1.bf16.msra.mxu0 %v2286
  %2364 = vmatprep.subr.bf16.mxu0 %v2291
  %2365 = vmatpush1.bf16.msra.mxu0 %v2290
  %2366 = vmatprep.subr.bf16.mxu0 %v2295
  %2367 = vmatpush1.bf16.msra.mxu0 %v2294
  %2368 = vmatprep.subr.bf16.mxu0 %v2299
  %2369 = vmatpush1.bf16.msra.mxu0 %v2298
  %2370 = vmatprep.subr.bf16.mxu0 0
  %2371 = vmatpush1.bf16.msra.mxu0 0
  %2372 = vmatprep.subr.bf16.mxu0 0
  %2373 = vmatpush1.bf16.msra.mxu0 0
  %2374 = vmatprep.subr.bf16.mxu0 0
  %2375 = vmatpush1.bf16.msra.mxu0 0
  %2376 = vmatprep.subr.bf16.mxu0 0
  %2377 = vmatpush1.bf16.msra.mxu0 0
  %2378 = vmatprep.subr.bf16.mxu0 0
  %2379 = vmatpush1.bf16.msra.mxu0 0
  %2380 = vmatprep.subr.bf16.mxu0 0
  %2381 = vmatpush1.bf16.msra.mxu0 0
  %2382 = vmatprep.subr.bf16.mxu0 0
  %2383 = vmatpush1.bf16.msra.mxu0 0
  %2384 = vmatprep.subr.bf16.mxu0 0
  %2385 = vmatpush1.bf16.msra.mxu0 0
  %2386 = vmatprep.subr.bf16.mxu0 0
  %2387 = vmatpush1.bf16.msra.mxu0 0
  %2388 = vmatprep.subr.bf16.mxu0 0
  %2389 = vmatpush1.bf16.msra.mxu0 0
  %2390 = vmatprep.subr.bf16.mxu0 0
  %2391 = vmatpush1.bf16.msra.mxu0 0
  %2392 = vmatprep.subr.bf16.mxu0 0
  %2393 = vmatpush1.bf16.msra.mxu0 0
  %2394 = vmatprep.mubr.bf16.mxu0 0
  %2395 = vmatmul.mubr.bf16.gmra.mrb[0].mxu0 %v2317
  %v2396 = vpop.f32.mrb[0].mxu0
  %v2397 = vadd.f32 %v2222, %v2396
  %v2398 = vpop.f32.mrb[0].mxu0
  %v2399 = vadd.f32 %v2226, %v2398
  %v2400 = vpop.f32.mrb[0].mxu0
  %v2401 = vadd.f32 %v2222, %v2400
  %v2402 = vpop.f32.mrb[0].mxu0
  %v2403 = vadd.f32 %v2226, %v2402
  %2404 = vdwg.mxu0
  %v2405 = vmax.f32 %v2354, 0.0
  %v2406 = vmax.f32 %v2356, 0.0
  %v2407 = vmax.f32 %v2397, 0.0
  %v2408 = vmax.f32 %v2399, 0.0
  %v2409 = vmax.f32 %v2358, 0.0
  %v2410 = vmax.f32 %v2360, 0.0
  %v2411 = vmax.f32 %v2401, 0.0
  %v2412 = vmax.f32 %v2403, 0.0
  %v2413 = vpack.c.bf16 %v2409, %v2405
  %v2414 = vpack.c.bf16 %v2410, %v2406
  %v2415 = vpack.c.bf16 %v2411, %v2407
  %v2416 = vpack.c.bf16 %v2412, %v2408
  %v2417 = vld [vmem:[%s57] sm:$0xf]
  %v2418 = vld [vmem:[%s57 + $0x4] sm:$0xf]
  %v2419 = vld [vmem:[%s57 + $0x8] sm:$0xf]
  %v2420 = vld [vmem:[%s57 + $0xc] sm:$0xf]
  %v2421 = vld [vmem:[%s57 + $0x10] sm:$0xf]
  %v2422 = vld [vmem:[%s57 + $0x14] sm:$0xf]
  %v2423 = vld [vmem:[%s57 + $0x18] sm:$0xf]
  %v2424 = vld [vmem:[%s57 + $0x1c] sm:$0xf]
  %v2425 = vld [vmem:[%s57 + $0x20] sm:$0xf]
  %v2426 = vld [vmem:[%s57 + $0x24] sm:$0xf]
  %v2427 = vld [vmem:[%s57 + $0x28] sm:$0xf]
  %v2428 = vld [vmem:[%s57 + $0x2c] sm:$0xf]
  %v2429 = vld [vmem:[%s57 + $0x30] sm:$0xf]
  %v2430 = vld [vmem:[%s57 + $0x34] sm:$0xf]
  %v2431 = vld [vmem:[%s57 + $0x38] sm:$0xf]
  %v2432 = vld [vmem:[%s57 + $0x3c] sm:$0xf]
  %v2433 = vld [vmem:[%s57 + $0x40] sm:$0xf]
  %v2434 = vld [vmem:[%s57 + $0x44] sm:$0xf]
  %v2435 = vld [vmem:[%s57 + $0x48] sm:$0xf]
  %v2436 = vld [vmem:[%s57 + $0x4c] sm:$0xf]
  %v2437 = vld [vmem:[%s57 + $0x50] sm:$0xf]
  %v2438 = vld [vmem:[%s57 + $0x54] sm:$0xf]
  %v2439 = vld [vmem:[%s57 + $0x58] sm:$0xf]
  %v2440 = vld [vmem:[%s57 + $0x5c] sm:$0xf]
  %v2441 = vld [vmem:[%s57 + $0x60] sm:$0xf]
  %v2442 = vld [vmem:[%s57 + $0x64] sm:$0xf]
  %v2443 = vld [vmem:[%s57 + $0x68] sm:$0xf]
  %v2444 = vld [vmem:[%s57 + $0x6c] sm:$0xf]
  %v2445 = vld [vmem:[%s57 + $0x70] sm:$0xf]
  %v2446 = vld [vmem:[%s57 + $0x74] sm:$0xf]
  %v2447 = vld [vmem:[%s57 + $0x78] sm:$0xf]
  %v2448 = vld [vmem:[%s57 + $0x7c] sm:$0xf]
  %v2449 = vld [vmem:[%s57 + $0x80] sm:$0xf]
  %v2450 = vld [vmem:[%s57 + $0x84] sm:$0xf]
  %v2451 = vld [vmem:[%s57 + $0x88] sm:$0xf]
  %v2452 = vld [vmem:[%s57 + $0x8c] sm:$0xf]
  %v2453 = vld [vmem:[%s57 + $0x90] sm:$0xf]
  %v2454 = vld [vmem:[%s57 + $0x94] sm:$0xf]
  %v2455 = vld [vmem:[%s57 + $0x98] sm:$0xf]
  %v2456 = vld [vmem:[%s57 + $0x9c] sm:$0xf]
  %v2457 = vld [vmem:[%s57 + $0xa0] sm:$0xf]
  %v2458 = vld [vmem:[%s57 + $0xa4] sm:$0xf]
  %v2459 = vld [vmem:[%s57 + $0xa8] sm:$0xf]
  %v2460 = vld [vmem:[%s57 + $0xac] sm:$0xf]
  %v2461 = vld [vmem:[%s57 + $0xb0] sm:$0xf]
  %v2462 = vld [vmem:[%s57 + $0xb4] sm:$0xf]
  %v2463 = vld [vmem:[%s57 + $0xb8] sm:$0xf]
  %v2464 = vld [vmem:[%s57 + $0xbc] sm:$0xf]
  %v2465 = vld [vmem:[%s57 + $0xc0] sm:$0xf]
  %v2466 = vld [vmem:[%s57 + $0xc4] sm:$0xf]
  %v2467 = vld [vmem:[%s57 + $0xc8] sm:$0xf]
  %v2468 = vld [vmem:[%s57 + $0xcc] sm:$0xf]
  %v2469 = vld [vmem:[%s57 + $0xd0] sm:$0xf]
  %v2470 = vld [vmem:[%s57 + $0xd4] sm:$0xf]
  %v2471 = vld [vmem:[%s57 + $0xd8] sm:$0xf]
  %v2472 = vld [vmem:[%s57 + $0xdc] sm:$0xf]
  %v2473 = vld [vmem:[%s57 + $0xe0] sm:$0xf]
  %v2474 = vld [vmem:[%s57 + $0xe4] sm:$0xf]
  %v2475 = vld [vmem:[%s57 + $0xe8] sm:$0xf]
  %v2476 = vld [vmem:[%s57 + $0xec] sm:$0xf]
  %v2477 = vld [vmem:[%s57 + $0xf0] sm:$0xf]
  %v2478 = vld [vmem:[%s57 + $0xf4] sm:$0xf]
  %v2479 = vld [vmem:[%s57 + $0xf8] sm:$0xf]
  %v2480 = vld [vmem:[%s57 + $0xfc] sm:$0xf]
  %v2481 = vld [vmem:[%s59] sm:$0x1]
  %v2483 = vlaneseq
  %v2484 = vshrl.u32 %v2483, 7
  %v2485 = vsub.s32 0, %v2484
  %v2486 = vrot.slane %v2481, %v2485
  %v2552 = vunpack.c.l.b16 %v2417
  %v2553 = vunpack.c.l.b16 %v2418
  %v2554 = vunpack.c.l.b16 %v2419
  %v2555 = vunpack.c.l.b16 %v2420
  %v2556 = vunpack.c.l.b16 %v2421
  %v2557 = vunpack.c.l.b16 %v2422
  %v2558 = vunpack.c.l.b16 %v2423
  %v2559 = vunpack.c.l.b16 %v2424
  %v2560 = vunpack.c.l.b16 %v2425
  %v2561 = vunpack.c.l.b16 %v2426
  %v2562 = vunpack.c.l.b16 %v2427
  %v2563 = vunpack.c.l.b16 %v2428
  %v2564 = vunpack.c.l.b16 %v2429
  %v2565 = vunpack.c.l.b16 %v2430
  %v2566 = vunpack.c.l.b16 %v2431
  %v2567 = vunpack.c.l.b16 %v2432
  %v2568 = vunpack.c.l.b16 %v2433
  %v2569 = vunpack.c.l.b16 %v2434
  %v2570 = vunpack.c.l.b16 %v2435
  %v2571 = vunpack.c.l.b16 %v2436
  %v2572 = vunpack.c.l.b16 %v2437
  %v2573 = vunpack.c.l.b16 %v2438
  %v2574 = vunpack.c.l.b16 %v2439
  %v2575 = vunpack.c.l.b16 %v2440
  %v2576 = vunpack.c.l.b16 %v2441
  %v2577 = vunpack.c.l.b16 %v2442
  %v2578 = vunpack.c.l.b16 %v2443
  %v2579 = vunpack.c.l.b16 %v2444
  %v2580 = vunpack.c.l.b16 %v2445
  %v2581 = vunpack.c.l.b16 %v2446
  %v2582 = vunpack.c.l.b16 %v2447
  %v2583 = vunpack.c.l.b16 %v2448
  %v2584 = vunpack.c.l.b16 %v2449
  %v2585 = vunpack.c.l.b16 %v2450
  %v2586 = vunpack.c.l.b16 %v2451
  %v2587 = vunpack.c.l.b16 %v2452
  %v2588 = vunpack.c.l.b16 %v2453
  %v2589 = vunpack.c.l.b16 %v2454
  %v2590 = vunpack.c.l.b16 %v2455
  %v2591 = vunpack.c.l.b16 %v2456
  %v2592 = vunpack.c.l.b16 %v2457
  %v2593 = vunpack.c.l.b16 %v2458
  %v2594 = vunpack.c.l.b16 %v2459
  %v2595 = vunpack.c.l.b16 %v2460
  %v2596 = vunpack.c.l.b16 %v2461
  %v2597 = vunpack.c.l.b16 %v2462
  %v2598 = vunpack.c.l.b16 %v2463
  %v2599 = vunpack.c.l.b16 %v2464
  %v2600 = vunpack.c.l.b16 %v2465
  %v2601 = vunpack.c.l.b16 %v2466
  %v2602 = vunpack.c.l.b16 %v2467
  %v2603 = vunpack.c.l.b16 %v2468
  %v2604 = vunpack.c.l.b16 %v2469
  %v2605 = vunpack.c.l.b16 %v2470
  %v2606 = vunpack.c.l.b16 %v2471
  %v2607 = vunpack.c.l.b16 %v2472
  %v2608 = vunpack.c.l.b16 %v2473
  %v2609 = vunpack.c.l.b16 %v2474
  %v2610 = vunpack.c.l.b16 %v2475
  %v2611 = vunpack.c.l.b16 %v2476
  %v2612 = vunpack.c.l.b16 %v2477
  %v2613 = vunpack.c.l.b16 %v2478
  %v2614 = vunpack.c.l.b16 %v2479
  %v2615 = vunpack.c.l.b16 %v2480
  %v2616 = vpack.c.b16 %v2553, %v2552
  %v2617 = vpack.c.b16 %v2555, %v2554
  %v2618 = vpack.c.b16 %v2557, %v2556
  %v2619 = vpack.c.b16 %v2559, %v2558
  %v2620 = vpack.c.b16 %v2561, %v2560
  %v2621 = vpack.c.b16 %v2563, %v2562
  %v2622 = vpack.c.b16 %v2565, %v2564
  %v2623 = vpack.c.b16 %v2567, %v2566
  %v2624 = vpack.c.b16 %v2569, %v2568
  %v2625 = vpack.c.b16 %v2571, %v2570
  %v2626 = vpack.c.b16 %v2573, %v2572
  %v2627 = vpack.c.b16 %v2575, %v2574
  %v2628 = vpack.c.b16 %v2577, %v2576
  %v2629 = vpack.c.b16 %v2579, %v2578
  %v2630 = vpack.c.b16 %v2581, %v2580
  %v2631 = vpack.c.b16 %v2583, %v2582
  %v2632 = vpack.c.b16 %v2585, %v2584
  %v2633 = vpack.c.b16 %v2587, %v2586
  %v2634 = vpack.c.b16 %v2589, %v2588
  %v2635 = vpack.c.b16 %v2591, %v2590
  %v2636 = vpack.c.b16 %v2593, %v2592
  %v2637 = vpack.c.b16 %v2595, %v2594
  %v2638 = vpack.c.b16 %v2597, %v2596
  %v2639 = vpack.c.b16 %v2599, %v2598
  %v2640 = vpack.c.b16 %v2601, %v2600
  %v2641 = vpack.c.b16 %v2603, %v2602
  %v2642 = vpack.c.b16 %v2605, %v2604
  %v2643 = vpack.c.b16 %v2607, %v2606
  %v2644 = vpack.c.b16 %v2609, %v2608
  %v2645 = vpack.c.b16 %v2611, %v2610
  %v2646 = vpack.c.b16 %v2613, %v2612
  %v2647 = vpack.c.b16 %v2615, %v2614
  %2680 = vmatprep.subr.bf16.mxu0 0
  %2681 = vmatpush1.bf16.msra.mxu0 %v2616
  %2682 = vmatprep.subr.bf16.mxu0 0
  %2683 = vmatpush1.bf16.msra.mxu0 %v2617
  %2684 = vmatprep.subr.bf16.mxu0 0
  %2685 = vmatpush1.bf16.msra.mxu0 %v2618
  %2686 = vmatprep.subr.bf16.mxu0 0
  %2687 = vmatpush1.bf16.msra.mxu0 %v2619
  %2688 = vmatprep.subr.bf16.mxu0 0
  %2689 = vmatpush1.bf16.msra.mxu0 %v2620
  %2690 = vmatprep.subr.bf16.mxu0 0
  %2691 = vmatpush1.bf16.msra.mxu0 %v2621
  %2692 = vmatprep.subr.bf16.mxu0 0
  %2693 = vmatpush1.bf16.msra.mxu0 %v2622
  %2694 = vmatprep.subr.bf16.mxu0 0
  %2695 = vmatpush1.bf16.msra.mxu0 %v2623
  %2696 = vmatprep.subr.bf16.mxu0 0
  %2697 = vmatpush1.bf16.msra.mxu0 %v2624
  %2698 = vmatprep.subr.bf16.mxu0 0
  %2699 = vmatpush1.bf16.msra.mxu0 %v2625
  %2700 = vmatprep.subr.bf16.mxu0 0
  %2701 = vmatpush1.bf16.msra.mxu0 %v2626
  %2702 = vmatprep.subr.bf16.mxu0 0
  %2703 = vmatpush1.bf16.msra.mxu0 %v2627
  %2704 = vmatprep.subr.bf16.mxu0 0
  %2705 = vmatpush1.bf16.msra.mxu0 %v2628
  %2706 = vmatprep.subr.bf16.mxu0 0
  %2707 = vmatpush1.bf16.msra.mxu0 %v2629
  %2708 = vmatprep.subr.bf16.mxu0 0
  %2709 = vmatpush1.bf16.msra.mxu0 %v2630
  %2710 = vmatprep.subr.bf16.mxu0 0
  %2711 = vmatpush1.bf16.msra.mxu0 %v2631
  %2712 = vmatprep.mubr.bf16.mxu0 %v2414
  %2713 = vmatmul.mubr.bf16.gmra.mrb[0].mxu0 %v2413
  %v2714 = vpop.f32.mrb[0].mxu0
  %v2715 = vadd.f32 %v2486, %v2714
  %v2716 = vpop.f32.mrb[0].mxu0
  %v2717 = vpop.f32.mrb[0].mxu0
  %v2718 = vadd.f32 %v2486, %v2717
  %v2719 = vpop.f32.mrb[0].mxu0
  %2720 = vdwg.mxu0
  %2721 = vmatprep.subr.bf16.mxu0 0
  %2722 = vmatpush1.bf16.msra.mxu0 %v2632
  %2723 = vmatprep.subr.bf16.mxu0 0
  %2724 = vmatpush1.bf16.msra.mxu0 %v2633
  %2725 = vmatprep.subr.bf16.mxu0 0
  %2726 = vmatpush1.bf16.msra.mxu0 %v2634
  %2727 = vmatprep.subr.bf16.mxu0 0
  %2728 = vmatpush1.bf16.msra.mxu0 %v2635
  %2729 = vmatprep.subr.bf16.mxu0 0
  %2730 = vmatpush1.bf16.msra.mxu0 %v2636
  %2731 = vmatprep.subr.bf16.mxu0 0
  %2732 = vmatpush1.bf16.msra.mxu0 %v2637
  %2733 = vmatprep.subr.bf16.mxu0 0
  %2734 = vmatpush1.bf16.msra.mxu0 %v2638
  %2735 = vmatprep.subr.bf16.mxu0 0
  %2736 = vmatpush1.bf16.msra.mxu0 %v2639
  %2737 = vmatprep.subr.bf16.mxu0 0
  %2738 = vmatpush1.bf16.msra.mxu0 %v2640
  %2739 = vmatprep.subr.bf16.mxu0 0
  %2740 = vmatpush1.bf16.msra.mxu0 %v2641
  %2741 = vmatprep.subr.bf16.mxu0 0
  %2742 = vmatpush1.bf16.msra.mxu0 %v2642
  %2743 = vmatprep.subr.bf16.mxu0 0
  %2744 = vmatpush1.bf16.msra.mxu0 %v2643
  %2745 = vmatprep.subr.bf16.mxu0 0
  %2746 = vmatpush1.bf16.msra.mxu0 %v2644
  %2747 = vmatprep.subr.bf16.mxu0 0
  %2748 = vmatpush1.bf16.msra.mxu0 %v2645
  %2749 = vmatprep.subr.bf16.mxu0 0
  %2750 = vmatpush1.bf16.msra.mxu0 %v2646
  %2751 = vmatprep.subr.bf16.mxu0 0
  %2752 = vmatpush1.bf16.msra.mxu0 %v2647
  %2753 = vmatprep.mubr.bf16.mxu0 %v2416
  %2754 = vmatmul.mubr.bf16.gmra.mrb[0].mxu0 %v2415
  %v2755 = vpop.f32.mrb[0].mxu0
  %v2756 = vadd.f32 %v2715, %v2755
  %v2757 = vpop.f32.mrb[0].mxu0
  %v2758 = vpop.f32.mrb[0].mxu0
  %v2759 = vadd.f32 %v2718, %v2758
  %v2760 = vpop.f32.mrb[0].mxu0
  %2761 = vdwg.mxu0
  %v2762 = vmax.f32 %v2756, 0.0
  %v2763 = vmax.f32 %v2759, 0.0
  %v2764 = vpack.c.bf16 %v2763, %v2762
  %v2765 = vld [vmem:[%s61] sm:$0xf]
  %v2766 = vld [vmem:[%s61 + $0x4] sm:$0xf]
  %v2767 = vld [vmem:[%s61 + $0x8] sm:$0xf]
  %v2768 = vld [vmem:[%s61 + $0xc] sm:$0xf]
  %v2769 = vld [vmem:[%s63] sm:$0x1]
  %v2771 = vlaneseq
  %v2772 = vshrl.u32 %v2771, 7
  %v2773 = vsub.s32 0, %v2772
  %v2774 = vrot.slane %v2769, %v2773
  %v2780 = vunpack.c.l.b16 %v2765
  %v2781 = vunpack.c.l.b16 %v2766
  %v2782 = vunpack.c.l.b16 %v2767
  %v2783 = vunpack.c.l.b16 %v2768
  %v2784 = vpack.c.b16 %v2781, %v2780
  %v2785 = vpack.c.b16 %v2783, %v2782
  %v2789 = vsel %vm785, %v2764, 0
  %2791 = vmatprep.subr.bf16.mxu0 0
  %2792 = vmatpush1.bf16.msra.mxu0 %v2784
  %2793 = vmatprep.subr.bf16.mxu0 0
  %2794 = vmatpush1.bf16.msra.mxu0 %v2785
  %2795 = vmatprep.subr.bf16.mxu0 0
  %2796 = vmatpush1.bf16.msra.mxu0 0
  %2797 = vmatprep.subr.bf16.mxu0 0
  %2798 = vmatpush1.bf16.msra.mxu0 0
  %2799 = vmatprep.subr.bf16.mxu0 0
  %2800 = vmatpush1.bf16.msra.mxu0 0
  %2801 = vmatprep.subr.bf16.mxu0 0
  %2802 = vmatpush1.bf16.msra.mxu0 0
  %2803 = vmatprep.subr.bf16.mxu0 0
  %2804 = vmatpush1.bf16.msra.mxu0 0
  %2805 = vmatprep.subr.bf16.mxu0 0
  %2806 = vmatpush1.bf16.msra.mxu0 0
  %2807 = vmatprep.subr.bf16.mxu0 0
  %2808 = vmatpush1.bf16.msra.mxu0 0
  %2809 = vmatprep.subr.bf16.mxu0 0
  %2810 = vmatpush1.bf16.msra.mxu0 0
  %2811 = vmatprep.subr.bf16.mxu0 0
  %2812 = vmatpush1.bf16.msra.mxu0 0
  %2813 = vmatprep.subr.bf16.mxu0 0
  %2814 = vmatpush1.bf16.msra.mxu0 0
  %2815 = vmatprep.subr.bf16.mxu0 0
  %2816 = vmatpush1.bf16.msra.mxu0 0
  %2817 = vmatprep.subr.bf16.mxu0 0
  %2818 = vmatpush1.bf16.msra.mxu0 0
  %2819 = vmatprep.subr.bf16.mxu0 0
  %2820 = vmatpush1.bf16.msra.mxu0 0
  %2821 = vmatprep.subr.bf16.mxu0 0
  %2822 = vmatpush1.bf16.msra.mxu0 0
  %2823 = vmatprep.mubr.bf16.mxu0 0
  %2824 = vmatmul.mubr.bf16.gmra.mrb[0].mxu0 %v2789
  %v2825 = vpop.f32.mrb[0].mxu0
  %v2826 = vadd.f32 %v2774, %v2825
  %v2827 = vpop.f32.mrb[0].mxu0
  %v2828 = vpop.f32.mrb[0].mxu0
  %v2829 = vadd.f32 %v2774, %v2828
  %v2830 = vpop.f32.mrb[0].mxu0
  %2831 = vdwg.mxu0
  %v2832 = vld [vmem:[%s13] sm:$0xff]
  %v2833 = vld [vmem:[%s13 + $0x8] sm:$0xff]
  %v2834 = vld [vmem:[%s65] sm:$0x1]
  %v2835 = vunpack.c.l.bf16 %v2834
  %2837 = vset.pattern.permute.xlu0 0
  %2838 = vperm.xlu0 %2837, %v2832
  %v2839 = vpop.permute.xlu0 %2838
  %2842 = vset.pattern.permute.xlu0 0
  %2843 = vperm.xlu0 %2842, %v2833
  %v2844 = vpop.permute.xlu0 %2843
  %v2846 = vlaneseq
  %v2847 = vshrl.u32 %v2846, 7
  %v2848 = vsub.s32 0, %v2847
  %v2849 = vrot.slane %v2835, %v2848
  %v2850 = vmul.f32 %v2839, %v2849
  %v2851 = vmul.f32 %v2844, %v2849
  %v2852 = vld [vmem:[%s67] sm:$0x1]
  %v2854 = vlaneseq
  %v2855 = vshrl.u32 %v2854, 7
  %v2856 = vsub.s32 0, %v2855
  %v2857 = vrot.slane %v2852, %v2856
  %v2859 = vadd.f32 %v2850, %v2857
  %v2860 = vadd.f32 %v2851, %v2857
  %v2861 = vmax.f32 %v2859, 0.0
  %v2862 = vmax.f32 %v2860, 0.0
  %v2863 = vpack.c.bf16 %v2862, %v2861
  %v2864 = vld [vmem:[%s69] sm:$0xf]
  %v2865 = vld [vmem:[%s69 + $0x4] sm:$0xf]
  %v2866 = vld [vmem:[%s69 + $0x8] sm:$0xf]
  %v2867 = vld [vmem:[%s69 + $0xc] sm:$0xf]
  %v2868 = vld [vmem:[%s69 + $0x10] sm:$0xf]
  %v2869 = vld [vmem:[%s69 + $0x14] sm:$0xf]
  %v2870 = vld [vmem:[%s69 + $0x18] sm:$0xf]
  %v2871 = vld [vmem:[%s69 + $0x1c] sm:$0xf]
  %v2872 = vld [vmem:[%s69 + $0x20] sm:$0xf]
  %v2873 = vld [vmem:[%s69 + $0x24] sm:$0xf]
  %v2874 = vld [vmem:[%s69 + $0x28] sm:$0xf]
  %v2875 = vld [vmem:[%s69 + $0x2c] sm:$0xf]
  %v2876 = vld [vmem:[%s69 + $0x30] sm:$0xf]
  %v2877 = vld [vmem:[%s69 + $0x34] sm:$0xf]
  %v2878 = vld [vmem:[%s69 + $0x38] sm:$0xf]
  %v2879 = vld [vmem:[%s69 + $0x3c] sm:$0xf]
  %v2880 = vld [vmem:[%s71] sm:$0x1]
  %v2882 = vlaneseq
  %v2883 = vshrl.u32 %v2882, 7
  %v2884 = vsub.s32 0, %v2883
  %v2885 = vrot.slane %v2880, %v2884
  %v2903 = vunpack.c.l.b16 %v2864
  %v2904 = vunpack.c.l.b16 %v2865
  %v2905 = vunpack.c.l.b16 %v2866
  %v2906 = vunpack.c.l.b16 %v2867
  %v2907 = vunpack.c.l.b16 %v2868
  %v2908 = vunpack.c.l.b16 %v2869
  %v2909 = vunpack.c.l.b16 %v2870
  %v2910 = vunpack.c.l.b16 %v2871
  %v2911 = vunpack.c.l.b16 %v2872
  %v2912 = vunpack.c.l.b16 %v2873
  %v2913 = vunpack.c.l.b16 %v2874
  %v2914 = vunpack.c.l.b16 %v2875
  %v2915 = vunpack.c.l.b16 %v2876
  %v2916 = vunpack.c.l.b16 %v2877
  %v2917 = vunpack.c.l.b16 %v2878
  %v2918 = vunpack.c.l.b16 %v2879
  %v2919 = vpack.c.b16 %v2904, %v2903
  %v2920 = vpack.c.b16 %v2906, %v2905
  %v2921 = vpack.c.b16 %v2908, %v2907
  %v2922 = vpack.c.b16 %v2910, %v2909
  %v2923 = vpack.c.b16 %v2912, %v2911
  %v2924 = vpack.c.b16 %v2914, %v2913
  %v2925 = vpack.c.b16 %v2916, %v2915
  %v2926 = vpack.c.b16 %v2918, %v2917
  %2935 = vmatprep.subr.bf16.mxu0 0
  %2936 = vmatpush1.bf16.msra.mxu0 %v2919
  %2937 = vmatprep.subr.bf16.mxu0 0
  %2938 = vmatpush1.bf16.msra.mxu0 %v2920
  %2939 = vmatprep.subr.bf16.mxu0 0
  %2940 = vmatpush1.bf16.msra.mxu0 %v2921
  %2941 = vmatprep.subr.bf16.mxu0 0
  %2942 = vmatpush1.bf16.msra.mxu0 %v2922
  %2943 = vmatprep.subr.bf16.mxu0 0
  %2944 = vmatpush1.bf16.msra.mxu0 %v2923
  %2945 = vmatprep.subr.bf16.mxu0 0
  %2946 = vmatpush1.bf16.msra.mxu0 %v2924
  %2947 = vmatprep.subr.bf16.mxu0 0
  %2948 = vmatpush1.bf16.msra.mxu0 %v2925
  %2949 = vmatprep.subr.bf16.mxu0 0
  %2950 = vmatpush1.bf16.msra.mxu0 %v2926
  %2951 = vmatprep.subr.bf16.mxu0 0
  %2952 = vmatpush1.bf16.msra.mxu0 0
  %2953 = vmatprep.subr.bf16.mxu0 0
  %2954 = vmatpush1.bf16.msra.mxu0 0
  %2955 = vmatprep.subr.bf16.mxu0 0
  %2956 = vmatpush1.bf16.msra.mxu0 0
  %2957 = vmatprep.subr.bf16.mxu0 0
  %2958 = vmatpush1.bf16.msra.mxu0 0
  %2959 = vmatprep.subr.bf16.mxu0 0
  %2960 = vmatpush1.bf16.msra.mxu0 0
  %2961 = vmatprep.subr.bf16.mxu0 0
  %2962 = vmatpush1.bf16.msra.mxu0 0
  %2963 = vmatprep.subr.bf16.mxu0 0
  %2964 = vmatpush1.bf16.msra.mxu0 0
  %2965 = vmatprep.subr.bf16.mxu0 0
  %2966 = vmatpush1.bf16.msra.mxu0 0
  %2967 = vmatprep.mubr.bf16.mxu0 0
  %2968 = vmatmul.mubr.bf16.gmra.mrb[0].mxu0 %v2863
  %v2969 = vpop.f32.mrb[0].mxu0
  %v2970 = vadd.f32 %v2885, %v2969
  %v2971 = vpop.f32.mrb[0].mxu0
  %v2972 = vpop.f32.mrb[0].mxu0
  %v2973 = vadd.f32 %v2885, %v2972
  %v2974 = vpop.f32.mrb[0].mxu0
  %2975 = vdwg.mxu0
  %v2976 = vmax.f32 %v2970, 0.0
  %v2977 = vmax.f32 %v2973, 0.0
  %v2978 = vpack.c.bf16 %v2977, %v2976
  %v2979 = vld [vmem:[%s73] sm:$0xf]
  %v2980 = vld [vmem:[%s73 + $0x4] sm:$0xf]
  %v2981 = vld [vmem:[%s73 + $0x8] sm:$0xf]
  %v2982 = vld [vmem:[%s73 + $0xc] sm:$0xf]
  %v2983 = vld [vmem:[%s73 + $0x10] sm:$0xf]
  %v2984 = vld [vmem:[%s73 + $0x14] sm:$0xf]
  %v2985 = vld [vmem:[%s73 + $0x18] sm:$0xf]
  %v2986 = vld [vmem:[%s73 + $0x1c] sm:$0xf]
  %v2987 = vld [vmem:[%s73 + $0x20] sm:$0xf]
  %v2988 = vld [vmem:[%s73 + $0x24] sm:$0xf]
  %v2989 = vld [vmem:[%s73 + $0x28] sm:$0xf]
  %v2990 = vld [vmem:[%s73 + $0x2c] sm:$0xf]
  %v2991 = vld [vmem:[%s73 + $0x30] sm:$0xf]
  %v2992 = vld [vmem:[%s73 + $0x34] sm:$0xf]
  %v2993 = vld [vmem:[%s73 + $0x38] sm:$0xf]
  %v2994 = vld [vmem:[%s73 + $0x3c] sm:$0xf]
  %v2995 = vld [vmem:[#allocation2] sm:$0x1]
  %v2997 = vlaneseq
  %v2998 = vshrl.u32 %v2997, 7
  %v2999 = vsub.s32 0, %v2998
  %v3000 = vrot.slane %v2995, %v2999
  %v3018 = vunpack.c.l.b16 %v2979
  %v3019 = vunpack.c.l.b16 %v2980
  %v3020 = vunpack.c.l.b16 %v2981
  %v3021 = vunpack.c.l.b16 %v2982
  %v3022 = vunpack.c.l.b16 %v2983
  %v3023 = vunpack.c.l.b16 %v2984
  %v3024 = vunpack.c.l.b16 %v2985
  %v3025 = vunpack.c.l.b16 %v2986
  %v3026 = vunpack.c.l.b16 %v2987
  %v3027 = vunpack.c.l.b16 %v2988
  %v3028 = vunpack.c.l.b16 %v2989
  %v3029 = vunpack.c.l.b16 %v2990
  %v3030 = vunpack.c.l.b16 %v2991
  %v3031 = vunpack.c.l.b16 %v2992
  %v3032 = vunpack.c.l.b16 %v2993
  %v3033 = vunpack.c.l.b16 %v2994
  %v3034 = vpack.c.b16 %v3019, %v3018
  %v3035 = vpack.c.b16 %v3021, %v3020
  %v3036 = vpack.c.b16 %v3023, %v3022
  %v3037 = vpack.c.b16 %v3025, %v3024
  %v3038 = vpack.c.b16 %v3027, %v3026
  %v3039 = vpack.c.b16 %v3029, %v3028
  %v3040 = vpack.c.b16 %v3031, %v3030
  %v3041 = vpack.c.b16 %v3033, %v3032
  %3050 = vmatprep.subr.bf16.mxu0 0
  %3051 = vmatpush1.bf16.msra.mxu0 %v3034
  %3052 = vmatprep.subr.bf16.mxu0 0
  %3053 = vmatpush1.bf16.msra.mxu0 %v3035
  %3054 = vmatprep.subr.bf16.mxu0 0
  %3055 = vmatpush1.bf16.msra.mxu0 %v3036
  %3056 = vmatprep.subr.bf16.mxu0 0
  %3057 = vmatpush1.bf16.msra.mxu0 %v3037
  %3058 = vmatprep.subr.bf16.mxu0 0
  %3059 = vmatpush1.bf16.msra.mxu0 %v3038
  %3060 = vmatprep.subr.bf16.mxu0 0
  %3061 = vmatpush1.bf16.msra.mxu0 %v3039
  %3062 = vmatprep.subr.bf16.mxu0 0
  %3063 = vmatpush1.bf16.msra.mxu0 %v3040
  %3064 = vmatprep.subr.bf16.mxu0 0
  %3065 = vmatpush1.bf16.msra.mxu0 %v3041
  %3066 = vmatprep.subr.bf16.mxu0 0
  %3067 = vmatpush1.bf16.msra.mxu0 0
  %3068 = vmatprep.subr.bf16.mxu0 0
  %3069 = vmatpush1.bf16.msra.mxu0 0
  %3070 = vmatprep.subr.bf16.mxu0 0
  %3071 = vmatpush1.bf16.msra.mxu0 0
  %3072 = vmatprep.subr.bf16.mxu0 0
  %3073 = vmatpush1.bf16.msra.mxu0 0
  %3074 = vmatprep.subr.bf16.mxu0 0
  %3075 = vmatpush1.bf16.msra.mxu0 0
  %3076 = vmatprep.subr.bf16.mxu0 0
  %3077 = vmatpush1.bf16.msra.mxu0 0
  %3078 = vmatprep.subr.bf16.mxu0 0
  %3079 = vmatpush1.bf16.msra.mxu0 0
  %3080 = vmatprep.subr.bf16.mxu0 0
  %3081 = vmatpush1.bf16.msra.mxu0 0
  %3082 = vmatprep.mubr.bf16.mxu0 0
  %3083 = vmatmul.mubr.bf16.gmra.mrb[0].mxu0 %v2978
  %v3084 = vpop.f32.mrb[0].mxu0
  %v3085 = vadd.f32 %v3000, %v3084
  %v3086 = vpop.f32.mrb[0].mxu0
  %v3087 = vpop.f32.mrb[0].mxu0
  %v3088 = vadd.f32 %v3000, %v3087
  %v3089 = vpop.f32.mrb[0].mxu0
  %3090 = vdwg.mxu0
  %v3091 = vsub.f32 0.0, %v3085
  %v3092 = vsub.f32 0.0, %v3088
  %v3093 = vmul.f32 %v3091, 1.442695
  %v3094 = vpow.pop %v3093
  %v3095 = vmul.f32 %v3092, 1.442695
  %v3096 = vpow.pop %v3095
  %v3097 = vadd.f32 %v3094, 1.0
  %v3098 = vadd.f32 %v3096, 1.0
  %v3099 = vrcp.pop %v3097
  %v3100 = vmul.f32 1.0, %v3099
  %v3101 = vrcp.pop %v3098
  %v3102 = vmul.f32 1.0, %v3101
  %v3103 = vld [vmem:[%s15] sm:$0xff]
  %v3104 = vld [vmem:[%s15 + $0x8] sm:$0xff]
  %v3105 = vld [vmem:[%s77] sm:$0x1]
  %v3106 = vunpack.c.l.bf16 %v3105
  %3108 = vset.pattern.permute.xlu0 0
  %3109 = vperm.xlu0 %3108, %v3103
  %v3110 = vpop.permute.xlu0 %3109
  %3113 = vset.pattern.permute.xlu0 0
  %3114 = vperm.xlu0 %3113, %v3104
  %v3115 = vpop.permute.xlu0 %3114
  %v3117 = vlaneseq
  %v3118 = vshrl.u32 %v3117, 7
  %v3119 = vsub.s32 0, %v3118
  %v3120 = vrot.slane %v3106, %v3119
  %v3121 = vmul.f32 %v3110, %v3120
  %v3122 = vmul.f32 %v3115, %v3120
  %v3123 = vld [vmem:[%s79] sm:$0x1]
  %v3125 = vlaneseq
  %v3126 = vshrl.u32 %v3125, 7
  %v3127 = vsub.s32 0, %v3126
  %v3128 = vrot.slane %v3123, %v3127
  %v3130 = vadd.f32 %v3121, %v3128
  %v3131 = vadd.f32 %v3122, %v3128
  %v3132 = vmax.f32 %v3130, 0.0
  %v3133 = vmax.f32 %v3131, 0.0
  %v3134 = vpack.c.bf16 %v3133, %v3132
  %v3135 = vld [vmem:[%s81] sm:$0xf]
  %v3136 = vld [vmem:[%s81 + $0x4] sm:$0xf]
  %v3137 = vld [vmem:[%s81 + $0x8] sm:$0xf]
  %v3138 = vld [vmem:[%s81 + $0xc] sm:$0xf]
  %v3139 = vld [vmem:[%s81 + $0x10] sm:$0xf]
  %v3140 = vld [vmem:[%s81 + $0x14] sm:$0xf]
  %v3141 = vld [vmem:[%s81 + $0x18] sm:$0xf]
  %v3142 = vld [vmem:[%s81 + $0x1c] sm:$0xf]
  %v3143 = vld [vmem:[%s81 + $0x20] sm:$0xf]
  %v3144 = vld [vmem:[%s81 + $0x24] sm:$0xf]
  %v3145 = vld [vmem:[%s81 + $0x28] sm:$0xf]
  %v3146 = vld [vmem:[%s81 + $0x2c] sm:$0xf]
  %v3147 = vld [vmem:[%s81 + $0x30] sm:$0xf]
  %v3148 = vld [vmem:[%s81 + $0x34] sm:$0xf]
  %v3149 = vld [vmem:[%s81 + $0x38] sm:$0xf]
  %v3150 = vld [vmem:[%s81 + $0x3c] sm:$0xf]
  %v3151 = vld [vmem:[%s83] sm:$0x1]
  %v3153 = vlaneseq
  %v3154 = vshrl.u32 %v3153, 7
  %v3155 = vsub.s32 0, %v3154
  %v3156 = vrot.slane %v3151, %v3155
  %v3174 = vunpack.c.l.b16 %v3135
  %v3175 = vunpack.c.l.b16 %v3136
  %v3176 = vunpack.c.l.b16 %v3137
  %v3177 = vunpack.c.l.b16 %v3138
  %v3178 = vunpack.c.l.b16 %v3139
  %v3179 = vunpack.c.l.b16 %v3140
  %v3180 = vunpack.c.l.b16 %v3141
  %v3181 = vunpack.c.l.b16 %v3142
  %v3182 = vunpack.c.l.b16 %v3143
  %v3183 = vunpack.c.l.b16 %v3144
  %v3184 = vunpack.c.l.b16 %v3145
  %v3185 = vunpack.c.l.b16 %v3146
  %v3186 = vunpack.c.l.b16 %v3147
  %v3187 = vunpack.c.l.b16 %v3148
  %v3188 = vunpack.c.l.b16 %v3149
  %v3189 = vunpack.c.l.b16 %v3150
  %v3190 = vpack.c.b16 %v3175, %v3174
  %v3191 = vpack.c.b16 %v3177, %v3176
  %v3192 = vpack.c.b16 %v3179, %v3178
  %v3193 = vpack.c.b16 %v3181, %v3180
  %v3194 = vpack.c.b16 %v3183, %v3182
  %v3195 = vpack.c.b16 %v3185, %v3184
  %v3196 = vpack.c.b16 %v3187, %v3186
  %v3197 = vpack.c.b16 %v3189, %v3188
  %3206 = vmatprep.subr.bf16.mxu0 0
  %3207 = vmatpush1.bf16.msra.mxu0 %v3190
  %3208 = vmatprep.subr.bf16.mxu0 0
  %3209 = vmatpush1.bf16.msra.mxu0 %v3191
  %3210 = vmatprep.subr.bf16.mxu0 0
  %3211 = vmatpush1.bf16.msra.mxu0 %v3192
  %3212 = vmatprep.subr.bf16.mxu0 0
  %3213 = vmatpush1.bf16.msra.mxu0 %v3193
  %3214 = vmatprep.subr.bf16.mxu0 0
  %3215 = vmatpush1.bf16.msra.mxu0 %v3194
  %3216 = vmatprep.subr.bf16.mxu0 0
  %3217 = vmatpush1.bf16.msra.mxu0 %v3195
  %3218 = vmatprep.subr.bf16.mxu0 0
  %3219 = vmatpush1.bf16.msra.mxu0 %v3196
  %3220 = vmatprep.subr.bf16.mxu0 0
  %3221 = vmatpush1.bf16.msra.mxu0 %v3197
  %3222 = vmatprep.subr.bf16.mxu0 0
  %3223 = vmatpush1.bf16.msra.mxu0 0
  %3224 = vmatprep.subr.bf16.mxu0 0
  %3225 = vmatpush1.bf16.msra.mxu0 0
  %3226 = vmatprep.subr.bf16.mxu0 0
  %3227 = vmatpush1.bf16.msra.mxu0 0
  %3228 = vmatprep.subr.bf16.mxu0 0
  %3229 = vmatpush1.bf16.msra.mxu0 0
  %3230 = vmatprep.subr.bf16.mxu0 0
  %3231 = vmatpush1.bf16.msra.mxu0 0
  %3232 = vmatprep.subr.bf16.mxu0 0
  %3233 = vmatpush1.bf16.msra.mxu0 0
  %3234 = vmatprep.subr.bf16.mxu0 0
  %3235 = vmatpush1.bf16.msra.mxu0 0
  %3236 = vmatprep.subr.bf16.mxu0 0
  %3237 = vmatpush1.bf16.msra.mxu0 0
  %3238 = vmatprep.mubr.bf16.mxu0 0
  %3239 = vmatmul.mubr.bf16.gmra.mrb[0].mxu0 %v3134
  %v3240 = vpop.f32.mrb[0].mxu0
  %v3241 = vadd.f32 %v3156, %v3240
  %v3242 = vpop.f32.mrb[0].mxu0
  %v3243 = vpop.f32.mrb[0].mxu0
  %v3244 = vadd.f32 %v3156, %v3243
  %v3245 = vpop.f32.mrb[0].mxu0
  %3246 = vdwg.mxu0
  %v3247 = vmax.f32 %v3241, 0.0
  %v3248 = vmax.f32 %v3244, 0.0
  %v3249 = vpack.c.bf16 %v3248, %v3247
  %v3250 = vld [vmem:[%s85] sm:$0xf]
  %v3251 = vld [vmem:[%s85 + $0x4] sm:$0xf]
  %v3252 = vld [vmem:[%s85 + $0x8] sm:$0xf]
  %v3253 = vld [vmem:[%s85 + $0xc] sm:$0xf]
  %v3254 = vld [vmem:[%s85 + $0x10] sm:$0xf]
  %v3255 = vld [vmem:[%s85 + $0x14] sm:$0xf]
  %v3256 = vld [vmem:[%s85 + $0x18] sm:$0xf]
  %v3257 = vld [vmem:[%s85 + $0x1c] sm:$0xf]
  %v3258 = vld [vmem:[%s85 + $0x20] sm:$0xf]
  %v3259 = vld [vmem:[%s85 + $0x24] sm:$0xf]
  %v3260 = vld [vmem:[%s85 + $0x28] sm:$0xf]
  %v3261 = vld [vmem:[%s85 + $0x2c] sm:$0xf]
  %v3262 = vld [vmem:[%s85 + $0x30] sm:$0xf]
  %v3263 = vld [vmem:[%s85 + $0x34] sm:$0xf]
  %v3264 = vld [vmem:[%s85 + $0x38] sm:$0xf]
  %v3265 = vld [vmem:[%s85 + $0x3c] sm:$0xf]
  %v3266 = vld [vmem:[#allocation3] sm:$0x1]
  %v3268 = vlaneseq
  %v3269 = vshrl.u32 %v3268, 7
  %v3270 = vsub.s32 0, %v3269
  %v3271 = vrot.slane %v3266, %v3270
  %v3289 = vunpack.c.l.b16 %v3250
  %v3290 = vunpack.c.l.b16 %v3251
  %v3291 = vunpack.c.l.b16 %v3252
  %v3292 = vunpack.c.l.b16 %v3253
  %v3293 = vunpack.c.l.b16 %v3254
  %v3294 = vunpack.c.l.b16 %v3255
  %v3295 = vunpack.c.l.b16 %v3256
  %v3296 = vunpack.c.l.b16 %v3257
  %v3297 = vunpack.c.l.b16 %v3258
  %v3298 = vunpack.c.l.b16 %v3259
  %v3299 = vunpack.c.l.b16 %v3260
  %v3300 = vunpack.c.l.b16 %v3261
  %v3301 = vunpack.c.l.b16 %v3262
  %v3302 = vunpack.c.l.b16 %v3263
  %v3303 = vunpack.c.l.b16 %v3264
  %v3304 = vunpack.c.l.b16 %v3265
  %v3305 = vpack.c.b16 %v3290, %v3289
  %v3306 = vpack.c.b16 %v3292, %v3291
  %v3307 = vpack.c.b16 %v3294, %v3293
  %v3308 = vpack.c.b16 %v3296, %v3295
  %v3309 = vpack.c.b16 %v3298, %v3297
  %v3310 = vpack.c.b16 %v3300, %v3299
  %v3311 = vpack.c.b16 %v3302, %v3301
  %v3312 = vpack.c.b16 %v3304, %v3303
  %3321 = vmatprep.subr.bf16.mxu0 0
  %3322 = vmatpush1.bf16.msra.mxu0 %v3305
  %3323 = vmatprep.subr.bf16.mxu0 0
  %3324 = vmatpush1.bf16.msra.mxu0 %v3306
  %3325 = vmatprep.subr.bf16.mxu0 0
  %3326 = vmatpush1.bf16.msra.mxu0 %v3307
  %3327 = vmatprep.subr.bf16.mxu0 0
  %3328 = vmatpush1.bf16.msra.mxu0 %v3308
  %3329 = vmatprep.subr.bf16.mxu0 0
  %3330 = vmatpush1.bf16.msra.mxu0 %v3309
  %3331 = vmatprep.subr.bf16.mxu0 0
  %3332 = vmatpush1.bf16.msra.mxu0 %v3310
  %3333 = vmatprep.subr.bf16.mxu0 0
  %3334 = vmatpush1.bf16.msra.mxu0 %v3311
  %3335 = vmatprep.subr.bf16.mxu0 0
  %3336 = vmatpush1.bf16.msra.mxu0 %v3312
  %3337 = vmatprep.subr.bf16.mxu0 0
  %3338 = vmatpush1.bf16.msra.mxu0 0
  %3339 = vmatprep.subr.bf16.mxu0 0
  %3340 = vmatpush1.bf16.msra.mxu0 0
  %3341 = vmatprep.subr.bf16.mxu0 0
  %3342 = vmatpush1.bf16.msra.mxu0 0
  %3343 = vmatprep.subr.bf16.mxu0 0
  %3344 = vmatpush1.bf16.msra.mxu0 0
  %3345 = vmatprep.subr.bf16.mxu0 0
  %3346 = vmatpush1.bf16.msra.mxu0 0
  %3347 = vmatprep.subr.bf16.mxu0 0
  %3348 = vmatpush1.bf16.msra.mxu0 0
  %3349 = vmatprep.subr.bf16.mxu0 0
  %3350 = vmatpush1.bf16.msra.mxu0 0
  %3351 = vmatprep.subr.bf16.mxu0 0
  %3352 = vmatpush1.bf16.msra.mxu0 0
  %3353 = vmatprep.mubr.bf16.mxu0 0
  %3354 = vmatmul.mubr.bf16.gmra.mrb[0].mxu0 %v3249
  %v3355 = vpop.f32.mrb[0].mxu0
  %v3356 = vadd.f32 %v3271, %v3355
  %v3357 = vpop.f32.mrb[0].mxu0
  %v3358 = vpop.f32.mrb[0].mxu0
  %v3359 = vadd.f32 %v3271, %v3358
  %v3360 = vpop.f32.mrb[0].mxu0
  %3361 = vdwg.mxu0
  %3363 = vset.pattern.permute.xlu0 0
  %3364 = vperm.xlu0 %3363, %v3100
  %v3365 = vpop.permute.xlu0 %3364
  %3368 = vset.pattern.permute.xlu0 0
  %3369 = vperm.xlu0 %3368, %v3102
  %v3370 = vpop.permute.xlu0 %3369
  %v3372 = vmul.f32 %v832, %v3365
  %v3373 = vmul.f32 %v833, %v3370
  %3375 = vset.pattern.permute.xlu0 0
  %3376 = vperm.xlu0 %3375, %v3356
  %v3377 = vpop.permute.xlu0 %3376
  %3380 = vset.pattern.permute.xlu0 0
  %3381 = vperm.xlu0 %3380, %v3359
  %v3382 = vpop.permute.xlu0 %3381
  %v3384 = vmul.f32 %v1454, %v3377
  %v3385 = vmul.f32 %v1455, %v3382
  %v3386 = vadd.f32 %v3372, %v3384
  %v3387 = vadd.f32 %v3373, %v3385
  %v3388 = vadd.f32 %v3386, %v2185
  %v3389 = vadd.f32 %v3387, %v2188
  %v3390 = vadd.f32 %v3388, %v2826
  %v3391 = vadd.f32 %v3389, %v2829
  %3392 = vst.msk [vmem:[%s89] sm:$0xff] %vm785, %v3390
  %3393 = vst.msk [vmem:[%s89 + $0x8] sm:$0xff] %vm785, %v3391
  // Predicated region
  $region178: #{_forward_core.6} parent=0 // pred_check
    _
  $region179: #{_forward_core.6} parent=0 // pred_check_branch
    %3395 = sbr.rel (0) target = $region181
  $region180: #{_forward_core.6} parent=0 // pred_region
    _
  $region181: #{_forward_core.6} parent=0 // pred_fallthru
    _
  // Predicated region
  $region182: #{_forward_core.6} parent=0 // pred_check
    _
  $region183: #{_forward_core.6} parent=0 // pred_check_branch
    %3397 = sbr.rel (0) target = $region185
  $region184: #{_forward_core.6} parent=0 // pred_region
    _
  $region185: #{_forward_core.6} parent=0 // pred_fallthru
    _

// kernel: _forward_core.9
$region0: #{_forward_core.9}
  #allocation0 [shape = 'u32[]', space=smem, size = 0x4, offset = 0x4, fixed_abs, tag = 'smem constant byte address 0x4 - core index']
  #allocation1 [shape = 'u32[144,128]{1,0:T(1,128)}', space=vmem, size = 0x12000, scoped, tag = 'internal scratch']
  %s0 = inlined_call_operand.vmem [shape: f32[56,32], index: 0, kind: input, shape index: {}]
  %s1 = inlined_call_operand.vmem [shape: f32[56,32], index: 1, kind: input, shape index: {}]
  %s2 = inlined_call_operand.vmem [shape: f32[56,32], index: 2, kind: input, shape index: {}]
  %s3 = inlined_call_operand.vmem [shape: bf16[96,32], index: 3, kind: input, shape index: {}]
  %s4 = inlined_call_operand.vmem [shape: f32[1,32], index: 4, kind: input, shape index: {}]
  %s5 = inlined_call_operand.vmem [shape: bf16[32,32], index: 5, kind: input, shape index: {}]
  %s6 = inlined_call_operand.vmem [shape: f32[1,32], index: 6, kind: input, shape index: {}]
  %s7 = inlined_call_operand.vmem [shape: bf16[32,32], index: 7, kind: input, shape index: {}]
  %s8 = inlined_call_operand.vmem [shape: f32[1,32], index: 8, kind: input, shape index: {}]
  %s9 = inlined_call_operand.vmem [shape: f32[1,32], index: 9, kind: input, shape index: {}]
  %s10 = inlined_call_operand.vmem [shape: f32[1,32], index: 10, kind: input, shape index: {}]
  %s11 = inlined_call_operand.vmem [shape: f32[56,32], index: 11, kind: output, shape index: {}]
  %s12 = sld [smem:[#allocation0]]
  $region54: #{_forward_core.9} parent=0
    _
  %s14 = ssub.s32 1, %s12
  %s15 = scalar_select 0, %s14, %s12
  // Predicated region
  $region2: #{_forward_core.9} parent=0 // pred_check
    _
  $region3: #{_forward_core.9} parent=0 // pred_check_branch
    %17 = sbr.rel (0) target = $region5
  $region4: #{_forward_core.9} parent=0 // pred_region
    _
  $region5: #{_forward_core.9} parent=0 // pred_fallthru
    _
  // Predicated region
  $region6: #{_forward_core.9} parent=0 // pred_check
    _
  $region7: #{_forward_core.9} parent=0 // pred_check_branch
    %19 = sbr.rel (0) target = $region9
  $region8: #{_forward_core.9} parent=0 // pred_region
    _
  $region9: #{_forward_core.9} parent=0 // pred_fallthru
    _
  // Predicated region
  $region10: #{_forward_core.9} parent=0 // pred_check
    _
  $region11: #{_forward_core.9} parent=0 // pred_check_branch
    %21 = sbr.rel (0) target = $region13
  $region12: #{_forward_core.9} parent=0 // pred_region
    _
  $region13: #{_forward_core.9} parent=0 // pred_fallthru
    _
  // Predicated region
  $region14: #{_forward_core.9} parent=0 // pred_check
    _
  $region15: #{_forward_core.9} parent=0 // pred_check_branch
    %23 = sbr.rel (0) target = $region17
  $region16: #{_forward_core.9} parent=0 // pred_region
    _
  $region17: #{_forward_core.9} parent=0 // pred_fallthru
    _
  // Predicated region
  $region18: #{_forward_core.9} parent=0 // pred_check
    _
  $region19: #{_forward_core.9} parent=0 // pred_check_branch
    %25 = sbr.rel (0) target = $region21
  $region20: #{_forward_core.9} parent=0 // pred_region
    _
  $region21: #{_forward_core.9} parent=0 // pred_fallthru
    _
  // Predicated region
  $region22: #{_forward_core.9} parent=0 // pred_check
    _
  $region23: #{_forward_core.9} parent=0 // pred_check_branch
    %27 = sbr.rel (0) target = $region25
  $region24: #{_forward_core.9} parent=0 // pred_region
    _
  $region25: #{_forward_core.9} parent=0 // pred_fallthru
    _
  // Predicated region
  $region26: #{_forward_core.9} parent=0 // pred_check
    _
  $region27: #{_forward_core.9} parent=0 // pred_check_branch
    %29 = sbr.rel (0) target = $region29
  $region28: #{_forward_core.9} parent=0 // pred_region
    _
  $region29: #{_forward_core.9} parent=0 // pred_fallthru
    _
  // Predicated region
  $region30: #{_forward_core.9} parent=0 // pred_check
    _
  $region31: #{_forward_core.9} parent=0 // pred_check_branch
    %31 = sbr.rel (0) target = $region33
  $region32: #{_forward_core.9} parent=0 // pred_region
    _
  $region33: #{_forward_core.9} parent=0 // pred_fallthru
    _
  // Predicated region
  $region34: #{_forward_core.9} parent=0 // pred_check
    _
  $region35: #{_forward_core.9} parent=0 // pred_check_branch
    %33 = sbr.rel (0) target = $region37
  $region36: #{_forward_core.9} parent=0 // pred_region
    _
  $region37: #{_forward_core.9} parent=0 // pred_fallthru
    _
  // Predicated region
  $region38: #{_forward_core.9} parent=0 // pred_check
    _
  $region39: #{_forward_core.9} parent=0 // pred_check_branch
    %35 = sbr.rel (0) target = $region41
  $region40: #{_forward_core.9} parent=0 // pred_region
    _
  $region41: #{_forward_core.9} parent=0 // pred_fallthru
    _
  // Predicated region
  $region42: #{_forward_core.9} parent=0 // pred_check
    _
  $region43: #{_forward_core.9} parent=0 // pred_check_branch
    %37 = sbr.rel (0) target = $region45
  $region44: #{_forward_core.9} parent=0 // pred_region
    _
  $region45: #{_forward_core.9} parent=0 // pred_fallthru
    _
  %v39 = vld [vmem:[%s1] sm:$0xff]
  %v40 = vld [vmem:[%s1 + $0x8] sm:$0xff]
  %v41 = vld [vmem:[%s1 + $0x10] sm:$0xff]
  %v42 = vld [vmem:[%s1 + $0x18] sm:$0xff]
  %v43 = vld [vmem:[%s1 + $0x20] sm:$0xff]
  %v44 = vld [vmem:[%s1 + $0x28] sm:$0xff]
  %v45 = vld [vmem:[%s1 + $0x30] sm:$0xff]
  %v46 = vld [vmem:[%s0] sm:$0xff]
  %v47 = vld [vmem:[%s0 + $0x8] sm:$0xff]
  %v48 = vld [vmem:[%s0 + $0x10] sm:$0xff]
  %v49 = vld [vmem:[%s0 + $0x18] sm:$0xff]
  %v50 = vld [vmem:[%s0 + $0x20] sm:$0xff]
  %v51 = vld [vmem:[%s0 + $0x28] sm:$0xff]
  %v52 = vld [vmem:[%s0 + $0x30] sm:$0xff]
  %v53 = vld [vmem:[%s2] sm:$0xff]
  %v54 = vld [vmem:[%s2 + $0x8] sm:$0xff]
  %v55 = vld [vmem:[%s2 + $0x10] sm:$0xff]
  %v56 = vld [vmem:[%s2 + $0x18] sm:$0xff]
  %v57 = vld [vmem:[%s2 + $0x20] sm:$0xff]
  %v58 = vld [vmem:[%s2 + $0x28] sm:$0xff]
  %v59 = vld [vmem:[%s2 + $0x30] sm:$0xff]
  %67 = vrot.lane.b32.xlu0 %v39, 32
  %v68 = vpop.permute.xlu0 %67
  %69 = vrot.lane.b32.xlu0 %v40, 32
  %v70 = vpop.permute.xlu0 %69
  %71 = vrot.lane.b32.xlu0 %v41, 32
  %v72 = vpop.permute.xlu0 %71
  %73 = vrot.lane.b32.xlu0 %v42, 32
  %v74 = vpop.permute.xlu0 %73
  %75 = vrot.lane.b32.xlu0 %v43, 32
  %v76 = vpop.permute.xlu0 %75
  %77 = vrot.lane.b32.xlu0 %v44, 32
  %v78 = vpop.permute.xlu0 %77
  %79 = vrot.lane.b32.xlu0 %v45, 32
  %v80 = vpop.permute.xlu0 %79
  %95 = vrot.lane.b32.xlu0 %v53, 64
  %v96 = vpop.permute.xlu0 %95
  %97 = vrot.lane.b32.xlu0 %v54, 64
  %v98 = vpop.permute.xlu0 %97
  %99 = vrot.lane.b32.xlu0 %v55, 64
  %v100 = vpop.permute.xlu0 %99
  %101 = vrot.lane.b32.xlu0 %v56, 64
  %v102 = vpop.permute.xlu0 %101
  %103 = vrot.lane.b32.xlu0 %v57, 64
  %v104 = vpop.permute.xlu0 %103
  %105 = vrot.lane.b32.xlu0 %v58, 64
  %v106 = vpop.permute.xlu0 %105
  %107 = vrot.lane.b32.xlu0 %v59, 64
  %v108 = vpop.permute.xlu0 %107
  %vm116 = vcmask 261120
  %v117 = vsel %vm116, %v46, %v68
  %v118 = vsel %vm116, %v47, %v70
  %v119 = vsel %vm116, %v48, %v72
  %v120 = vsel %vm116, %v49, %v74
  %v121 = vsel %vm116, %v50, %v76
  %v122 = vsel %vm116, %v51, %v78
  %v123 = vsel %vm116, %v52, %v80
  %vm124 = vcmask 523264
  %v125 = vsel %vm124, %v117, %v96
  %v126 = vsel %vm124, %v118, %v98
  %v127 = vsel %vm124, %v119, %v100
  %v128 = vsel %vm124, %v120, %v102
  %v129 = vsel %vm124, %v121, %v104
  %v130 = vsel %vm124, %v122, %v106
  %v131 = vsel %vm124, %v123, %v108
  %v132 = vpack.c.bf16 %v126, %v125
  %v133 = vpack.c.bf16 %v128, %v127
  %v134 = vpack.c.bf16 %v130, %v129
  %v135 = vpack.c.bf16 %v131, %v131
  %v136 = vld [vmem:[%s3] sm:$0xf]
  %v137 = vld [vmem:[%s3 + $0x4] sm:$0xf]
  %v138 = vld [vmem:[%s3 + $0x8] sm:$0xf]
  %v139 = vld [vmem:[%s3 + $0xc] sm:$0xf]
  %v140 = vld [vmem:[%s3 + $0x10] sm:$0xf]
  %v141 = vld [vmem:[%s3 + $0x14] sm:$0xf]
  %v142 = vld [vmem:[%s3 + $0x18] sm:$0xf]
  %v143 = vld [vmem:[%s3 + $0x1c] sm:$0xf]
  %v144 = vld [vmem:[%s3 + $0x20] sm:$0xf]
  %v145 = vld [vmem:[%s3 + $0x24] sm:$0xf]
  %v146 = vld [vmem:[%s3 + $0x28] sm:$0xf]
  %v147 = vld [vmem:[%s3 + $0x2c] sm:$0xf]
  %v148 = vld [vmem:[%s4] sm:$0x1]
  %v150 = vlaneseq
  %v151 = vshrl.u32 %v150, 7
  %v152 = vsub.s32 0, %v151
  %v153 = vrot.slane %v148, %v152
  %v167 = vunpack.c.l.b16 %v136
  %v168 = vunpack.c.l.b16 %v137
  %v169 = vunpack.c.l.b16 %v138
  %v170 = vunpack.c.l.b16 %v139
  %v171 = vunpack.c.l.b16 %v140
  %v172 = vunpack.c.l.b16 %v141
  %v173 = vunpack.c.l.b16 %v142
  %v174 = vunpack.c.l.b16 %v143
  %v175 = vunpack.c.l.b16 %v144
  %v176 = vunpack.c.l.b16 %v145
  %v177 = vunpack.c.l.b16 %v146
  %v178 = vunpack.c.l.b16 %v147
  %v179 = vpack.c.b16 %v168, %v167
  %v180 = vpack.c.b16 %v170, %v169
  %v181 = vpack.c.b16 %v172, %v171
  %v182 = vpack.c.b16 %v174, %v173
  %v183 = vpack.c.b16 %v176, %v175
  %v184 = vpack.c.b16 %v178, %v177
  %vm191 = vcmask 785408
  %v193 = vsel %vm191, %v132, 0
  %v196 = vsel %vm191, %v133, 0
  %v199 = vsel %vm191, %v134, 0
  %v202 = vsel %vm191, %v135, 0
  %204 = vmatprep.subr.bf16.mxu0 0
  %205 = vmatpush1.bf16.msra.mxu0 %v179
  %206 = vmatprep.subr.bf16.mxu0 0
  %207 = vmatpush1.bf16.msra.mxu0 %v180
  %208 = vmatprep.subr.bf16.mxu0 0
  %209 = vmatpush1.bf16.msra.mxu0 %v181
  %210 = vmatprep.subr.bf16.mxu0 0
  %211 = vmatpush1.bf16.msra.mxu0 %v182
  %212 = vmatprep.subr.bf16.mxu0 0
  %213 = vmatpush1.bf16.msra.mxu0 %v183
  %214 = vmatprep.subr.bf16.mxu0 0
  %215 = vmatpush1.bf16.msra.mxu0 %v184
  %216 = vmatprep.subr.bf16.mxu0 0
  %217 = vmatpush1.bf16.msra.mxu0 0
  %218 = vmatprep.subr.bf16.mxu0 0
  %219 = vmatpush1.bf16.msra.mxu0 0
  %220 = vmatprep.subr.bf16.mxu0 0
  %221 = vmatpush1.bf16.msra.mxu0 0
  %222 = vmatprep.subr.bf16.mxu0 0
  %223 = vmatpush1.bf16.msra.mxu0 0
  %224 = vmatprep.subr.bf16.mxu0 0
  %225 = vmatpush1.bf16.msra.mxu0 0
  %226 = vmatprep.subr.bf16.mxu0 0
  %227 = vmatpush1.bf16.msra.mxu0 0
  %228 = vmatprep.subr.bf16.mxu0 0
  %229 = vmatpush1.bf16.msra.mxu0 0
  %230 = vmatprep.subr.bf16.mxu0 0
  %231 = vmatpush1.bf16.msra.mxu0 0
  %232 = vmatprep.subr.bf16.mxu0 0
  %233 = vmatpush1.bf16.msra.mxu0 0
  %234 = vmatprep.subr.bf16.mxu0 0
  %235 = vmatpush1.bf16.msra.mxu0 0
  %236 = vmatprep.mubr.bf16.mxu0 0
  %237 = vmatmul.mubr.bf16.gmra.mrb[0].mxu0 %v193
  %v238 = vpop.f32.mrb[0].mxu0
  %v239 = vadd.f32 %v153, %v238
  %v240 = vpop.f32.mrb[0].mxu0
  %v241 = vpop.f32.mrb[0].mxu0
  %v242 = vadd.f32 %v153, %v241
  %v243 = vpop.f32.mrb[0].mxu0
  %244 = vmatprep.mubr.bf16.mxu0 0
  %245 = vmatmul.mubr.bf16.gmra.mrb[0].mxu0 %v196
  %v246 = vpop.f32.mrb[0].mxu0
  %v247 = vadd.f32 %v153, %v246
  %v248 = vpop.f32.mrb[0].mxu0
  %v249 = vpop.f32.mrb[0].mxu0
  %v250 = vadd.f32 %v153, %v249
  %v251 = vpop.f32.mrb[0].mxu0
  %252 = vmatprep.mubr.bf16.mxu0 0
  %253 = vmatmul.mubr.bf16.gmra.mrb[0].mxu0 %v199
  %v254 = vpop.f32.mrb[0].mxu0
  %v255 = vadd.f32 %v153, %v254
  %v256 = vpop.f32.mrb[0].mxu0
  %v257 = vpop.f32.mrb[0].mxu0
  %v258 = vadd.f32 %v153, %v257
  %v259 = vpop.f32.mrb[0].mxu0
  %260 = vmatprep.mubr.bf16.mxu0 0
  %261 = vmatmul.mubr.bf16.gmra.mrb[0].mxu0 %v202
  %v262 = vpop.f32.mrb[0].mxu0
  %v263 = vadd.f32 %v153, %v262
  %v264 = vpop.f32.mrb[0].mxu0
  %v265 = vpop.f32.mrb[0].mxu0
  %v266 = vpop.f32.mrb[0].mxu0
  %267 = vdwg.mxu0
  %v268 = vmax.f32 %v239, 0.0
  %v269 = vmax.f32 %v242, 0.0
  %v270 = vmax.f32 %v247, 0.0
  %v271 = vmax.f32 %v250, 0.0
  %v272 = vmax.f32 %v255, 0.0
  %v273 = vmax.f32 %v258, 0.0
  %v274 = vmax.f32 %v263, 0.0
  %v275 = vpack.c.bf16 %v269, %v268
  %v276 = vpack.c.bf16 %v271, %v270
  %v277 = vpack.c.bf16 %v273, %v272
  %v278 = vpack.c.bf16 %v274, %v274
  %v279 = vld [vmem:[%s5] sm:$0xf]
  %v280 = vld [vmem:[%s5 + $0x4] sm:$0xf]
  %v281 = vld [vmem:[%s5 + $0x8] sm:$0xf]
  %v282 = vld [vmem:[%s5 + $0xc] sm:$0xf]
  %v283 = vld [vmem:[%s6] sm:$0x1]
  %v285 = vlaneseq
  %v286 = vshrl.u32 %v285, 7
  %v287 = vsub.s32 0, %v286
  %v288 = vrot.slane %v283, %v287
  %v294 = vunpack.c.l.b16 %v279
  %v295 = vunpack.c.l.b16 %v280
  %v296 = vunpack.c.l.b16 %v281
  %v297 = vunpack.c.l.b16 %v282
  %v298 = vpack.c.b16 %v295, %v294
  %v299 = vpack.c.b16 %v297, %v296
  %v303 = vsel %vm116, %v275, 0
  %v306 = vsel %vm116, %v276, 0
  %v309 = vsel %vm116, %v277, 0
  %v312 = vsel %vm116, %v278, 0
  %314 = vmatprep.subr.bf16.mxu0 0
  %315 = vmatpush1.bf16.msra.mxu0 %v298
  %316 = vmatprep.subr.bf16.mxu0 0
  %317 = vmatpush1.bf16.msra.mxu0 %v299
  %318 = vmatprep.subr.bf16.mxu0 0
  %319 = vmatpush1.bf16.msra.mxu0 0
  %320 = vmatprep.subr.bf16.mxu0 0
  %321 = vmatpush1.bf16.msra.mxu0 0
  %322 = vmatprep.subr.bf16.mxu0 0
  %323 = vmatpush1.bf16.msra.mxu0 0
  %324 = vmatprep.subr.bf16.mxu0 0
  %325 = vmatpush1.bf16.msra.mxu0 0
  %326 = vmatprep.subr.bf16.mxu0 0
  %327 = vmatpush1.bf16.msra.mxu0 0
  %328 = vmatprep.subr.bf16.mxu0 0
  %329 = vmatpush1.bf16.msra.mxu0 0
  %330 = vmatprep.subr.bf16.mxu0 0
  %331 = vmatpush1.bf16.msra.mxu0 0
  %332 = vmatprep.subr.bf16.mxu0 0
  %333 = vmatpush1.bf16.msra.mxu0 0
  %334 = vmatprep.subr.bf16.mxu0 0
  %335 = vmatpush1.bf16.msra.mxu0 0
  %336 = vmatprep.subr.bf16.mxu0 0
  %337 = vmatpush1.bf16.msra.mxu0 0
  %338 = vmatprep.subr.bf16.mxu0 0
  %339 = vmatpush1.bf16.msra.mxu0 0
  %340 = vmatprep.subr.bf16.mxu0 0
  %341 = vmatpush1.bf16.msra.mxu0 0
  %342 = vmatprep.subr.bf16.mxu0 0
  %343 = vmatpush1.bf16.msra.mxu0 0
  %344 = vmatprep.subr.bf16.mxu0 0
  %345 = vmatpush1.bf16.msra.mxu0 0
  %346 = vmatprep.mubr.bf16.mxu0 0
  %347 = vmatmul.mubr.bf16.gmra.mrb[0].mxu0 %v303
  %v348 = vpop.f32.mrb[0].mxu0
  %v349 = vadd.f32 %v288, %v348
  %v350 = vpop.f32.mrb[0].mxu0
  %v351 = vpop.f32.mrb[0].mxu0
  %v352 = vadd.f32 %v288, %v351
  %v353 = vpop.f32.mrb[0].mxu0
  %354 = vmatprep.mubr.bf16.mxu0 0
  %355 = vmatmul.mubr.bf16.gmra.mrb[0].mxu0 %v306
  %v356 = vpop.f32.mrb[0].mxu0
  %v357 = vadd.f32 %v288, %v356
  %v358 = vpop.f32.mrb[0].mxu0
  %v359 = vpop.f32.mrb[0].mxu0
  %v360 = vadd.f32 %v288, %v359
  %v361 = vpop.f32.mrb[0].mxu0
  %362 = vmatprep.mubr.bf16.mxu0 0
  %363 = vmatmul.mubr.bf16.gmra.mrb[0].mxu0 %v309
  %v364 = vpop.f32.mrb[0].mxu0
  %v365 = vadd.f32 %v288, %v364
  %v366 = vpop.f32.mrb[0].mxu0
  %v367 = vpop.f32.mrb[0].mxu0
  %v368 = vadd.f32 %v288, %v367
  %v369 = vpop.f32.mrb[0].mxu0
  %370 = vmatprep.mubr.bf16.mxu0 0
  %371 = vmatmul.mubr.bf16.gmra.mrb[0].mxu0 %v312
  %v372 = vpop.f32.mrb[0].mxu0
  %v373 = vadd.f32 %v288, %v372
  %v374 = vpop.f32.mrb[0].mxu0
  %v375 = vpop.f32.mrb[0].mxu0
  %v376 = vpop.f32.mrb[0].mxu0
  %377 = vdwg.mxu0
  %v378 = vmax.f32 %v349, 0.0
  %v379 = vmax.f32 %v352, 0.0
  %v380 = vmax.f32 %v357, 0.0
  %v381 = vmax.f32 %v360, 0.0
  %v382 = vmax.f32 %v365, 0.0
  %v383 = vmax.f32 %v368, 0.0
  %v384 = vmax.f32 %v373, 0.0
  %v385 = vpack.c.bf16 %v379, %v378
  %v386 = vpack.c.bf16 %v381, %v380
  %v387 = vpack.c.bf16 %v383, %v382
  %v388 = vpack.c.bf16 %v384, %v384
  %v389 = vld [vmem:[%s7] sm:$0xf]
  %v390 = vld [vmem:[%s7 + $0x4] sm:$0xf]
  %v391 = vld [vmem:[%s7 + $0x8] sm:$0xf]
  %v392 = vld [vmem:[%s7 + $0xc] sm:$0xf]
  %v393 = vld [vmem:[%s8] sm:$0x1]
  %v395 = vlaneseq
  %v396 = vshrl.u32 %v395, 7
  %v397 = vsub.s32 0, %v396
  %v398 = vrot.slane %v393, %v397
  %v404 = vunpack.c.l.b16 %v389
  %v405 = vunpack.c.l.b16 %v390
  %v406 = vunpack.c.l.b16 %v391
  %v407 = vunpack.c.l.b16 %v392
  %v408 = vpack.c.b16 %v405, %v404
  %v409 = vpack.c.b16 %v407, %v406
  %v413 = vsel %vm116, %v385, 0
  %v416 = vsel %vm116, %v386, 0
  %v419 = vsel %vm116, %v387, 0
  %v422 = vsel %vm116, %v388, 0
  %424 = vmatprep.subr.bf16.mxu0 0
  %425 = vmatpush1.bf16.msra.mxu0 %v408
  %426 = vmatprep.subr.bf16.mxu0 0
  %427 = vmatpush1.bf16.msra.mxu0 %v409
  %428 = vmatprep.subr.bf16.mxu0 0
  %429 = vmatpush1.bf16.msra.mxu0 0
  %430 = vmatprep.subr.bf16.mxu0 0
  %431 = vmatpush1.bf16.msra.mxu0 0
  %432 = vmatprep.subr.bf16.mxu0 0
  %433 = vmatpush1.bf16.msra.mxu0 0
  %434 = vmatprep.subr.bf16.mxu0 0
  %435 = vmatpush1.bf16.msra.mxu0 0
  %436 = vmatprep.subr.bf16.mxu0 0
  %437 = vmatpush1.bf16.msra.mxu0 0
  %438 = vmatprep.subr.bf16.mxu0 0
  %439 = vmatpush1.bf16.msra.mxu0 0
  %440 = vmatprep.subr.bf16.mxu0 0
  %441 = vmatpush1.bf16.msra.mxu0 0
  %442 = vmatprep.subr.bf16.mxu0 0
  %443 = vmatpush1.bf16.msra.mxu0 0
  %444 = vmatprep.subr.bf16.mxu0 0
  %445 = vmatpush1.bf16.msra.mxu0 0
  %446 = vmatprep.subr.bf16.mxu0 0
  %447 = vmatpush1.bf16.msra.mxu0 0
  %448 = vmatprep.subr.bf16.mxu0 0
  %449 = vmatpush1.bf16.msra.mxu0 0
  %450 = vmatprep.subr.bf16.mxu0 0
  %451 = vmatpush1.bf16.msra.mxu0 0
  %452 = vmatprep.subr.bf16.mxu0 0
  %453 = vmatpush1.bf16.msra.mxu0 0
  %454 = vmatprep.subr.bf16.mxu0 0
  %455 = vmatpush1.bf16.msra.mxu0 0
  %456 = vmatprep.mubr.bf16.mxu0 0
  %457 = vmatmul.mubr.bf16.gmra.mrb[0].mxu0 %v413
  %v458 = vpop.f32.mrb[0].mxu0
  %v459 = vadd.f32 %v398, %v458
  %v460 = vpop.f32.mrb[0].mxu0
  %v461 = vpop.f32.mrb[0].mxu0
  %v462 = vadd.f32 %v398, %v461
  %v463 = vpop.f32.mrb[0].mxu0
  %464 = vmatprep.mubr.bf16.mxu0 0
  %465 = vmatmul.mubr.bf16.gmra.mrb[0].mxu0 %v416
  %v466 = vpop.f32.mrb[0].mxu0
  %v467 = vadd.f32 %v398, %v466
  %v468 = vpop.f32.mrb[0].mxu0
  %v469 = vpop.f32.mrb[0].mxu0
  %v470 = vadd.f32 %v398, %v469
  %v471 = vpop.f32.mrb[0].mxu0
  %472 = vmatprep.mubr.bf16.mxu0 0
  %473 = vmatmul.mubr.bf16.gmra.mrb[0].mxu0 %v419
  %v474 = vpop.f32.mrb[0].mxu0
  %v475 = vadd.f32 %v398, %v474
  %v476 = vpop.f32.mrb[0].mxu0
  %v477 = vpop.f32.mrb[0].mxu0
  %v478 = vadd.f32 %v398, %v477
  %v479 = vpop.f32.mrb[0].mxu0
  %480 = vmatprep.mubr.bf16.mxu0 0
  %481 = vmatmul.mubr.bf16.gmra.mrb[0].mxu0 %v422
  %v482 = vpop.f32.mrb[0].mxu0
  %v483 = vadd.f32 %v398, %v482
  %v484 = vpop.f32.mrb[0].mxu0
  %v485 = vpop.f32.mrb[0].mxu0
  %v486 = vpop.f32.mrb[0].mxu0
  %487 = vdwg.mxu0
  %v488 = vadd.f32 %v39, %v459
  %v489 = vadd.f32 %v40, %v462
  %v490 = vadd.f32 %v41, %v467
  %v491 = vadd.f32 %v42, %v470
  %v492 = vadd.f32 %v43, %v475
  %v493 = vadd.f32 %v44, %v478
  %v494 = vadd.f32 %v45, %v483
  %v495 = vsel %vm116, %v488, 0.0
  %496 = vadd.xlane.f32.xlu0 %v495
  %v497 = vpop.xlane.xlu0 %496
  %v498 = vsel %vm116, %v489, 0.0
  %499 = vadd.xlane.f32.xlu0 %v498
  %v500 = vpop.xlane.xlu0 %499
  %v501 = vsel %vm116, %v490, 0.0
  %502 = vadd.xlane.f32.xlu0 %v501
  %v503 = vpop.xlane.xlu0 %502
  %v504 = vsel %vm116, %v491, 0.0
  %505 = vadd.xlane.f32.xlu0 %v504
  %v506 = vpop.xlane.xlu0 %505
  %v507 = vsel %vm116, %v492, 0.0
  %508 = vadd.xlane.f32.xlu0 %v507
  %v509 = vpop.xlane.xlu0 %508
  %v510 = vsel %vm116, %v493, 0.0
  %511 = vadd.xlane.f32.xlu0 %v510
  %v512 = vpop.xlane.xlu0 %511
  %v513 = vsel %vm116, %v494, 0.0
  %514 = vadd.xlane.f32.xlu0 %v513
  %v515 = vpop.xlane.xlu0 %514
  %v516 = vrcp.pop 32.0
  %v517 = vmul.f32 %v497, %v516
  %v518 = vmul.f32 %v500, %v516
  %v519 = vmul.f32 %v503, %v516
  %v520 = vmul.f32 %v506, %v516
  %v521 = vmul.f32 %v509, %v516
  %v522 = vmul.f32 %v512, %v516
  %v523 = vmul.f32 %v515, %v516
  %v524 = vsub.f32 %v488, %v517
  %v525 = vsub.f32 %v489, %v518
  %v526 = vsub.f32 %v490, %v519
  %v527 = vsub.f32 %v491, %v520
  %v528 = vsub.f32 %v492, %v521
  %v529 = vsub.f32 %v493, %v522
  %v530 = vsub.f32 %v494, %v523
  %v531 = vmul.f32 %v524, %v524
  %v532 = vmul.f32 %v525, %v525
  %v533 = vmul.f32 %v526, %v526
  %v534 = vmul.f32 %v527, %v527
  %v535 = vmul.f32 %v528, %v528
  %v536 = vmul.f32 %v529, %v529
  %v537 = vmul.f32 %v530, %v530
  %v538 = vsel %vm116, %v531, 0.0
  %539 = vadd.xlane.f32.xlu0 %v538
  %v540 = vpop.xlane.xlu0 %539
  %v541 = vsel %vm116, %v532, 0.0
  %542 = vadd.xlane.f32.xlu0 %v541
  %v543 = vpop.xlane.xlu0 %542
  %v544 = vsel %vm116, %v533, 0.0
  %545 = vadd.xlane.f32.xlu0 %v544
  %v546 = vpop.xlane.xlu0 %545
  %v547 = vsel %vm116, %v534, 0.0
  %548 = vadd.xlane.f32.xlu0 %v547
  %v549 = vpop.xlane.xlu0 %548
  %v550 = vsel %vm116, %v535, 0.0
  %551 = vadd.xlane.f32.xlu0 %v550
  %v552 = vpop.xlane.xlu0 %551
  %v553 = vsel %vm116, %v536, 0.0
  %554 = vadd.xlane.f32.xlu0 %v553
  %v555 = vpop.xlane.xlu0 %554
  %v556 = vsel %vm116, %v537, 0.0
  %557 = vadd.xlane.f32.xlu0 %v556
  %v558 = vpop.xlane.xlu0 %557
  %v559 = vmul.f32 %v540, %v516
  %v560 = vmul.f32 %v543, %v516
  %v561 = vmul.f32 %v546, %v516
  %v562 = vmul.f32 %v549, %v516
  %v563 = vmul.f32 %v552, %v516
  %v564 = vmul.f32 %v555, %v516
  %v565 = vmul.f32 %v558, %v516
  %v566 = vadd.f32 %v559, 1e-05
  %v567 = vadd.f32 %v560, 1e-05
  %v568 = vadd.f32 %v561, 1e-05
  %v569 = vadd.f32 %v562, 1e-05
  %v570 = vadd.f32 %v563, 1e-05
  %v571 = vadd.f32 %v564, 1e-05
  %v572 = vadd.f32 %v565, 1e-05
  %v573 = vrsqrt.pop %v566
  %v574 = vmul.f32 %v566, %v573
  %vm575 = vcmp.eq.f32.partialorder %v566, inf
  %v576 = vsel %vm575, %v566, %v574
  %vm577 = vcmp.eq.f32.partialorder %v566, 0.0
  %v578 = vand.u32 %v566, 2147483648
  %v579 = vsel %vm577, %v578, %v576
  %v580 = vrsqrt.pop %v567
  %v581 = vmul.f32 %v567, %v580
  %vm582 = vcmp.eq.f32.partialorder %v567, inf
  %v583 = vsel %vm582, %v567, %v581
  %vm584 = vcmp.eq.f32.partialorder %v567, 0.0
  %v585 = vand.u32 %v567, 2147483648
  %v586 = vsel %vm584, %v585, %v583
  %v587 = vrsqrt.pop %v568
  %v588 = vmul.f32 %v568, %v587
  %vm589 = vcmp.eq.f32.partialorder %v568, inf
  %v590 = vsel %vm589, %v568, %v588
  %vm591 = vcmp.eq.f32.partialorder %v568, 0.0
  %v592 = vand.u32 %v568, 2147483648
  %v593 = vsel %vm591, %v592, %v590
  %v594 = vrsqrt.pop %v569
  %v595 = vmul.f32 %v569, %v594
  %vm596 = vcmp.eq.f32.partialorder %v569, inf
  %v597 = vsel %vm596, %v569, %v595
  %vm598 = vcmp.eq.f32.partialorder %v569, 0.0
  %v599 = vand.u32 %v569, 2147483648
  %v600 = vsel %vm598, %v599, %v597
  %v601 = vrsqrt.pop %v570
  %v602 = vmul.f32 %v570, %v601
  %vm603 = vcmp.eq.f32.partialorder %v570, inf
  %v604 = vsel %vm603, %v570, %v602
  %vm605 = vcmp.eq.f32.partialorder %v570, 0.0
  %v606 = vand.u32 %v570, 2147483648
  %v607 = vsel %vm605, %v606, %v604
  %v608 = vrsqrt.pop %v571
  %v609 = vmul.f32 %v571, %v608
  %vm610 = vcmp.eq.f32.partialorder %v571, inf
  %v611 = vsel %vm610, %v571, %v609
  %vm612 = vcmp.eq.f32.partialorder %v571, 0.0
  %v613 = vand.u32 %v571, 2147483648
  %v614 = vsel %vm612, %v613, %v611
  %v615 = vrsqrt.pop %v572
  %v616 = vmul.f32 %v572, %v615
  %vm617 = vcmp.eq.f32.partialorder %v572, inf
  %v618 = vsel %vm617, %v572, %v616
  %vm619 = vcmp.eq.f32.partialorder %v572, 0.0
  %v620 = vand.u32 %v572, 2147483648
  %v621 = vsel %vm619, %v620, %v618
  %v622 = vrcp.pop %v579
  %v623 = vmul.f32 %v524, %v622
  %v624 = vrcp.pop %v586
  %v625 = vmul.f32 %v525, %v624
  %v626 = vrcp.pop %v593
  %v627 = vmul.f32 %v526, %v626
  %v628 = vrcp.pop %v600
  %v629 = vmul.f32 %v527, %v628
  %v630 = vrcp.pop %v607
  %v631 = vmul.f32 %v528, %v630
  %v632 = vrcp.pop %v614
  %v633 = vmul.f32 %v529, %v632
  %v634 = vrcp.pop %v621
  %v635 = vmul.f32 %v530, %v634
  %v636 = vld [vmem:[%s9] sm:$0x1]
  %v638 = vlaneseq
  %v639 = vshrl.u32 %v638, 7
  %v640 = vsub.s32 0, %v639
  %v641 = vrot.slane %v636, %v640
  %v643 = vmul.f32 %v623, %v641
  %v644 = vmul.f32 %v625, %v641
  %v645 = vmul.f32 %v627, %v641
  %v646 = vmul.f32 %v629, %v641
  %v647 = vmul.f32 %v631, %v641
  %v648 = vmul.f32 %v633, %v641
  %v649 = vmul.f32 %v635, %v641
  %v650 = vld [vmem:[%s10] sm:$0x1]
  %v652 = vlaneseq
  %v653 = vshrl.u32 %v652, 7
  %v654 = vsub.s32 0, %v653
  %v655 = vrot.slane %v650, %v654
  %v657 = vadd.f32 %v643, %v655
  %v658 = vadd.f32 %v644, %v655
  %v659 = vadd.f32 %v645, %v655
  %v660 = vadd.f32 %v646, %v655
  %v661 = vadd.f32 %v647, %v655
  %v662 = vadd.f32 %v648, %v655
  %v663 = vadd.f32 %v649, %v655
  %664 = vst.msk [vmem:[%s11] sm:$0xff] %vm116, %v657
  %665 = vst.msk [vmem:[%s11 + $0x8] sm:$0xff] %vm116, %v658
  %666 = vst.msk [vmem:[%s11 + $0x10] sm:$0xff] %vm116, %v659
  %667 = vst.msk [vmem:[%s11 + $0x18] sm:$0xff] %vm116, %v660
  %668 = vst.msk [vmem:[%s11 + $0x20] sm:$0xff] %vm116, %v661
  %669 = vst.msk [vmem:[%s11 + $0x28] sm:$0xff] %vm116, %v662
  %670 = vst.msk [vmem:[%s11 + $0x30] sm:$0xff] %vm116, %v663
  // Predicated region
  $region46: #{_forward_core.9} parent=0 // pred_check
    _
  $region47: #{_forward_core.9} parent=0 // pred_check_branch
    %672 = sbr.rel (0) target = $region49
  $region48: #{_forward_core.9} parent=0 // pred_region
    _
  $region49: #{_forward_core.9} parent=0 // pred_fallthru
    _
  // Predicated region
  $region50: #{_forward_core.9} parent=0 // pred_check
    _
  $region51: #{_forward_core.9} parent=0 // pred_check_branch
    %674 = sbr.rel (0) target = $region53
  $region52: #{_forward_core.9} parent=0 // pred_region
    _
  $region53: #{_forward_core.9} parent=0 // pred_fallthru
    _

// kernel: _forward_core.11
$region0: #{_forward_core.11}
  #allocation0 [shape = 'u32[]', space=smem, size = 0x4, offset = 0x4, fixed_abs, tag = 'smem constant byte address 0x4 - core index']
  #allocation1 [shape = 'u32[144,128]{1,0:T(1,128)}', space=vmem, size = 0x12000, scoped, tag = 'internal scratch']
  #allocation2 [shape = 'f32[1,1]{1,0:T(1,128)S(1)}', space=vmem, size = 0x200, scoped, tag = 'scoped memory for _forward_core.11']
  #allocation3 [shape = 'f32[1,1]{1,0:T(1,128)S(1)}', space=vmem, size = 0x200, scoped, tag = 'scoped memory for _forward_core.11']
  %s0 = inlined_call_operand.vmem [shape: f32[16,32], index: 0, kind: input, shape index: {}]
  %s1 = inlined_call_operand.vmem [shape: f32[16,32], index: 1, kind: input, shape index: {}]
  %s2 = inlined_call_operand.vmem [shape: f32[16,1], index: 2, kind: input, shape index: {}]
  %s3 = inlined_call_operand.vmem [shape: bf16[32,33], index: 3, kind: input, shape index: {}]
  %s4 = inlined_call_operand.vmem [shape: f32[1,33], index: 4, kind: input, shape index: {}]
  %s5 = inlined_call_operand.vmem [shape: bf16[1,512], index: 5, kind: input, shape index: {}]
  %s6 = inlined_call_operand.vmem [shape: f32[1,512], index: 6, kind: input, shape index: {}]
  %s7 = inlined_call_operand.vmem [shape: bf16[512,32], index: 7, kind: input, shape index: {}]
  %s8 = inlined_call_operand.vmem [shape: f32[1,32], index: 8, kind: input, shape index: {}]
  %s9 = inlined_call_operand.vmem [shape: bf16[32,1], index: 9, kind: input, shape index: {}]
  %s10 = inlined_call_operand.<no memory space> [shape: f32[1,1], index: 10, kind: input, shape index: {}]
  %s11 = inlined_call_operand.vmem [shape: bf16[1,512], index: 11, kind: input, shape index: {}]
  %s12 = inlined_call_operand.vmem [shape: f32[1,512], index: 12, kind: input, shape index: {}]
  %s13 = inlined_call_operand.vmem [shape: bf16[512,32], index: 13, kind: input, shape index: {}]
  %s14 = inlined_call_operand.vmem [shape: f32[1,32], index: 14, kind: input, shape index: {}]
  %s15 = inlined_call_operand.vmem [shape: bf16[32,1], index: 15, kind: input, shape index: {}]
  %s16 = inlined_call_operand.<no memory space> [shape: f32[1,1], index: 16, kind: input, shape index: {}]
  %s17 = inlined_call_operand.vmem [shape: f32[16,128], index: 17, kind: output, shape index: {}]
  %s18 = sld [smem:[#allocation0]]
  $region78: #{_forward_core.11} parent=0
    _
  %s20 = ssub.s32 1, %s18
  %s21 = scalar_select 0, %s20, %s18
  %v22 = vstv %s10
  %23 = vst [vmem:[#allocation2] sm:$0x1] %v22
  %v24 = vstv %s16
  %25 = vst [vmem:[#allocation3] sm:$0x1] %v24
  // Predicated region
  $region2: #{_forward_core.11} parent=0 // pred_check
    _
  $region3: #{_forward_core.11} parent=0 // pred_check_branch
    %27 = sbr.rel (0) target = $region5
  $region4: #{_forward_core.11} parent=0 // pred_region
    _
  $region5: #{_forward_core.11} parent=0 // pred_fallthru
    _
  // Predicated region
  $region6: #{_forward_core.11} parent=0 // pred_check
    _
  $region7: #{_forward_core.11} parent=0 // pred_check_branch
    %29 = sbr.rel (0) target = $region9
  $region8: #{_forward_core.11} parent=0 // pred_region
    _
  $region9: #{_forward_core.11} parent=0 // pred_fallthru
    _
  // Predicated region
  $region10: #{_forward_core.11} parent=0 // pred_check
    _
  $region11: #{_forward_core.11} parent=0 // pred_check_branch
    %31 = sbr.rel (0) target = $region13
  $region12: #{_forward_core.11} parent=0 // pred_region
    _
  $region13: #{_forward_core.11} parent=0 // pred_fallthru
    _
  // Predicated region
  $region14: #{_forward_core.11} parent=0 // pred_check
    _
  $region15: #{_forward_core.11} parent=0 // pred_check_branch
    %33 = sbr.rel (0) target = $region17
  $region16: #{_forward_core.11} parent=0 // pred_region
    _
  $region17: #{_forward_core.11} parent=0 // pred_fallthru
    _
  // Predicated region
  $region18: #{_forward_core.11} parent=0 // pred_check
    _
  $region19: #{_forward_core.11} parent=0 // pred_check_branch
    %35 = sbr.rel (0) target = $region21
  $region20: #{_forward_core.11} parent=0 // pred_region
    _
  $region21: #{_forward_core.11} parent=0 // pred_fallthru
    _
  // Predicated region
  $region22: #{_forward_core.11} parent=0 // pred_check
    _
  $region23: #{_forward_core.11} parent=0 // pred_check_branch
    %37 = sbr.rel (0) target = $region25
  $region24: #{_forward_core.11} parent=0 // pred_region
    _
  $region25: #{_forward_core.11} parent=0 // pred_fallthru
    _
  // Predicated region
  $region26: #{_forward_core.11} parent=0 // pred_check
    _
  $region27: #{_forward_core.11} parent=0 // pred_check_branch
    %39 = sbr.rel (0) target = $region29
  $region28: #{_forward_core.11} parent=0 // pred_region
    _
  $region29: #{_forward_core.11} parent=0 // pred_fallthru
    _
  // Predicated region
  $region30: #{_forward_core.11} parent=0 // pred_check
    _
  $region31: #{_forward_core.11} parent=0 // pred_check_branch
    %41 = sbr.rel (0) target = $region33
  $region32: #{_forward_core.11} parent=0 // pred_region
    _
  $region33: #{_forward_core.11} parent=0 // pred_fallthru
    _
  // Predicated region
  $region34: #{_forward_core.11} parent=0 // pred_check
    _
  $region35: #{_forward_core.11} parent=0 // pred_check_branch
    %43 = sbr.rel (0) target = $region37
  $region36: #{_forward_core.11} parent=0 // pred_region
    _
  $region37: #{_forward_core.11} parent=0 // pred_fallthru
    _
  // Predicated region
  $region38: #{_forward_core.11} parent=0 // pred_check
    _
  $region39: #{_forward_core.11} parent=0 // pred_check_branch
    %45 = sbr.rel (0) target = $region41
  $region40: #{_forward_core.11} parent=0 // pred_region
    _
  $region41: #{_forward_core.11} parent=0 // pred_fallthru
    _
  // Predicated region
  $region42: #{_forward_core.11} parent=0 // pred_check
    _
  $region43: #{_forward_core.11} parent=0 // pred_check_branch
    %47 = sbr.rel (0) target = $region45
  $region44: #{_forward_core.11} parent=0 // pred_region
    _
  $region45: #{_forward_core.11} parent=0 // pred_fallthru
    _
  // Predicated region
  $region46: #{_forward_core.11} parent=0 // pred_check
    _
  $region47: #{_forward_core.11} parent=0 // pred_check_branch
    %49 = sbr.rel (0) target = $region49
  $region48: #{_forward_core.11} parent=0 // pred_region
    _
  $region49: #{_forward_core.11} parent=0 // pred_fallthru
    _
  // Predicated region
  $region50: #{_forward_core.11} parent=0 // pred_check
    _
  $region51: #{_forward_core.11} parent=0 // pred_check_branch
    %51 = sbr.rel (0) target = $region53
  $region52: #{_forward_core.11} parent=0 // pred_region
    _
  $region53: #{_forward_core.11} parent=0 // pred_fallthru
    _
  // Predicated region
  $region54: #{_forward_core.11} parent=0 // pred_check
    _
  $region55: #{_forward_core.11} parent=0 // pred_check_branch
    %53 = sbr.rel (0) target = $region57
  $region56: #{_forward_core.11} parent=0 // pred_region
    _
  $region57: #{_forward_core.11} parent=0 // pred_fallthru
    _
  // Predicated region
  $region58: #{_forward_core.11} parent=0 // pred_check
    _
  $region59: #{_forward_core.11} parent=0 // pred_check_branch
    %55 = sbr.rel (0) target = $region61
  $region60: #{_forward_core.11} parent=0 // pred_region
    _
  $region61: #{_forward_core.11} parent=0 // pred_fallthru
    _
  // Predicated region
  $region62: #{_forward_core.11} parent=0 // pred_check
    _
  $region63: #{_forward_core.11} parent=0 // pred_check_branch
    %57 = sbr.rel (0) target = $region65
  $region64: #{_forward_core.11} parent=0 // pred_region
    _
  $region65: #{_forward_core.11} parent=0 // pred_fallthru
    _
  // Predicated region
  $region66: #{_forward_core.11} parent=0 // pred_check
    _
  $region67: #{_forward_core.11} parent=0 // pred_check_branch
    %59 = sbr.rel (0) target = $region69
  $region68: #{_forward_core.11} parent=0 // pred_region
    _
  $region69: #{_forward_core.11} parent=0 // pred_fallthru
    _
  %v61 = vld [vmem:[%s0] sm:$0xff]
  %v62 = vld [vmem:[%s0 + $0x8] sm:$0xff]
  %v63 = vld [vmem:[%s1] sm:$0xff]
  %v64 = vld [vmem:[%s1 + $0x8] sm:$0xff]
  %v65 = vld [vmem:[%s2] sm:$0xff]
  %v66 = vld [vmem:[%s2 + $0x8] sm:$0xff]
  %v67 = vpack.c.bf16 %v62, %v61
  %v68 = vld [vmem:[%s3] sm:$0xf]
  %v69 = vld [vmem:[%s3 + $0x4] sm:$0xf]
  %v70 = vld [vmem:[%s3 + $0x8] sm:$0xf]
  %v71 = vld [vmem:[%s3 + $0xc] sm:$0xf]
  %v72 = vld [vmem:[%s4] sm:$0x1]
  %v74 = vlaneseq
  %v75 = vshrl.u32 %v74, 7
  %v76 = vsub.s32 0, %v75
  %v77 = vrot.slane %v72, %v76
  %v83 = vunpack.c.l.b16 %v68
  %v84 = vunpack.c.l.b16 %v69
  %v85 = vunpack.c.l.b16 %v70
  %v86 = vunpack.c.l.b16 %v71
  %v87 = vpack.c.b16 %v84, %v83
  %v88 = vpack.c.b16 %v86, %v85
  %vm91 = vcmask 261120
  %v93 = vsel %vm91, %v67, 0
  %95 = vmatprep.subr.bf16.mxu0 0
  %96 = vmatpush1.bf16.msra.mxu0 %v87
  %97 = vmatprep.subr.bf16.mxu0 0
  %98 = vmatpush1.bf16.msra.mxu0 %v88
  %99 = vmatprep.subr.bf16.mxu0 0
  %100 = vmatpush1.bf16.msra.mxu0 0
  %101 = vmatprep.subr.bf16.mxu0 0
  %102 = vmatpush1.bf16.msra.mxu0 0
  %103 = vmatprep.subr.bf16.mxu0 0
  %104 = vmatpush1.bf16.msra.mxu0 0
  %105 = vmatprep.subr.bf16.mxu0 0
  %106 = vmatpush1.bf16.msra.mxu0 0
  %107 = vmatprep.subr.bf16.mxu0 0
  %108 = vmatpush1.bf16.msra.mxu0 0
  %109 = vmatprep.subr.bf16.mxu0 0
  %110 = vmatpush1.bf16.msra.mxu0 0
  %111 = vmatprep.subr.bf16.mxu0 0
  %112 = vmatpush1.bf16.msra.mxu0 0
  %113 = vmatprep.subr.bf16.mxu0 0
  %114 = vmatpush1.bf16.msra.mxu0 0
  %115 = vmatprep.subr.bf16.mxu0 0
  %116 = vmatpush1.bf16.msra.mxu0 0
  %117 = vmatprep.subr.bf16.mxu0 0
  %118 = vmatpush1.bf16.msra.mxu0 0
  %119 = vmatprep.subr.bf16.mxu0 0
  %120 = vmatpush1.bf16.msra.mxu0 0
  %121 = vmatprep.subr.bf16.mxu0 0
  %122 = vmatpush1.bf16.msra.mxu0 0
  %123 = vmatprep.subr.bf16.mxu0 0
  %124 = vmatpush1.bf16.msra.mxu0 0
  %125 = vmatprep.subr.bf16.mxu0 0
  %126 = vmatpush1.bf16.msra.mxu0 0
  %127 = vmatprep.mubr.bf16.mxu0 0
  %128 = vmatmul.mubr.bf16.gmra.mrb[0].mxu0 %v93
  %v129 = vpop.f32.mrb[0].mxu0
  %v130 = vadd.f32 %v77, %v129
  %v131 = vpop.f32.mrb[0].mxu0
  %v132 = vpop.f32.mrb[0].mxu0
  %v133 = vadd.f32 %v77, %v132
  %v134 = vpop.f32.mrb[0].mxu0
  %135 = vdwg.mxu0
  %vm136 = vcmask 269312
  %v137 = vsel %vm136, %v130, -inf
  %138 = vmax.xlane.f32.xlu0 %v137
  %v139 = vpop.xlane.xlu0 %138
  %v140 = vsel %vm136, %v133, -inf
  %141 = vmax.xlane.f32.xlu0 %v140
  %v142 = vpop.xlane.xlu0 %141
  %v143 = vsub.f32 %v130, %v139
  %v144 = vsub.f32 %v133, %v142
  %v145 = vmul.f32 %v143, 1.442695
  %v146 = vpow.pop %v145
  %v147 = vmul.f32 %v144, 1.442695
  %v148 = vpow.pop %v147
  %v149 = vsel %vm136, %v146, 0.0
  %150 = vadd.xlane.f32.xlu0 %v149
  %v151 = vpop.xlane.xlu0 %150
  %v152 = vsel %vm136, %v148, 0.0
  %153 = vadd.xlane.f32.xlu0 %v152
  %v154 = vpop.xlane.xlu0 %153
  %v155 = vrcp.pop %v151
  %v156 = vmul.f32 %v146, %v155
  %v157 = vrcp.pop %v154
  %v158 = vmul.f32 %v148, %v157
  %v159 = vsel %vm136, %v156, -inf
  %160 = vmax.xlane.f32.xlu0 %v159
  %v161 = vpop.xlane.xlu0 %160
  %v162 = vsel %vm136, %v158, -inf
  %163 = vmax.xlane.f32.xlu0 %v162
  %v164 = vpop.xlane.xlu0 %163
  %v165 = vsub.f32 %v161, %v65
  %v166 = vsub.f32 %v164, %v66
  %v167 = vld [vmem:[%s5] sm:$0xf]
  %v168 = vunpack.c.l.bf16 %v167
  %170 = vset.pattern.permute.xlu0 0
  %171 = vperm.xlu0 %170, %v165
  %v172 = vpop.permute.xlu0 %171
  %175 = vset.pattern.permute.xlu0 0
  %176 = vperm.xlu0 %175, %v166
  %v177 = vpop.permute.xlu0 %176
  %v180 = vlaneseq
  %v181 = vshrl.u32 %v180, 7
  %v182 = vsub.s32 0, %v181
  %v183 = vrot.slane %v168, %v182
  %v184 = vlaneseq
  %v185 = vshrl.u32 %v184, 7
  %v186 = vsub.s32 2, %v185
  %v187 = vrot.slane %v168, %v186
  %v188 = vlaneseq
  %v189 = vshrl.u32 %v188, 7
  %v190 = vsub.s32 4, %v189
  %v191 = vrot.slane %v168, %v190
  %v192 = vlaneseq
  %v193 = vshrl.u32 %v192, 7
  %v194 = vsub.s32 6, %v193
  %v195 = vrot.slane %v168, %v194
  %v200 = vlaneseq
  %v201 = vshrl.u32 %v200, 7
  %v202 = vsub.s32 0, %v201
  %v203 = vrot.slane %v183, %v202
  %v204 = vlaneseq
  %v205 = vshrl.u32 %v204, 7
  %v206 = vsub.s32 0, %v205
  %v207 = vrot.slane %v187, %v206
  %v208 = vlaneseq
  %v209 = vshrl.u32 %v208, 7
  %v210 = vsub.s32 0, %v209
  %v211 = vrot.slane %v191, %v210
  %v212 = vlaneseq
  %v213 = vshrl.u32 %v212, 7
  %v214 = vsub.s32 0, %v213
  %v215 = vrot.slane %v195, %v214
  %v216 = vmul.f32 %v172, %v203
  %v217 = vmul.f32 %v172, %v207
  %v218 = vmul.f32 %v172, %v211
  %v219 = vmul.f32 %v172, %v215
  %v220 = vmul.f32 %v177, %v203
  %v221 = vmul.f32 %v177, %v207
  %v222 = vmul.f32 %v177, %v211
  %v223 = vmul.f32 %v177, %v215
  %v224 = vld [vmem:[%s6] sm:$0xf]
  %v226 = vlaneseq
  %v227 = vshrl.u32 %v226, 7
  %v228 = vsub.s32 0, %v227
  %v229 = vrot.slane %v224, %v228
  %v230 = vlaneseq
  %v231 = vshrl.u32 %v230, 7
  %v232 = vsub.s32 1, %v231
  %v233 = vrot.slane %v224, %v232
  %v234 = vlaneseq
  %v235 = vshrl.u32 %v234, 7
  %v236 = vsub.s32 2, %v235
  %v237 = vrot.slane %v224, %v236
  %v238 = vlaneseq
  %v239 = vshrl.u32 %v238, 7
  %v240 = vsub.s32 3, %v239
  %v241 = vrot.slane %v224, %v240
  %v246 = vadd.f32 %v216, %v229
  %v247 = vadd.f32 %v217, %v233
  %v248 = vadd.f32 %v218, %v237
  %v249 = vadd.f32 %v219, %v241
  %v250 = vadd.f32 %v220, %v229
  %v251 = vadd.f32 %v221, %v233
  %v252 = vadd.f32 %v222, %v237
  %v253 = vadd.f32 %v223, %v241
  %v254 = vmax.f32 %v246, 0.0
  %v255 = vmax.f32 %v247, 0.0
  %v256 = vmax.f32 %v248, 0.0
  %v257 = vmax.f32 %v249, 0.0
  %v258 = vmax.f32 %v250, 0.0
  %v259 = vmax.f32 %v251, 0.0
  %v260 = vmax.f32 %v252, 0.0
  %v261 = vmax.f32 %v253, 0.0
  %v262 = vpack.c.bf16 %v258, %v254
  %v263 = vpack.c.bf16 %v259, %v255
  %v264 = vpack.c.bf16 %v260, %v256
  %v265 = vpack.c.bf16 %v261, %v257
  %v266 = vld [vmem:[%s7] sm:$0xf]
  %v267 = vld [vmem:[%s7 + $0x4] sm:$0xf]
  %v268 = vld [vmem:[%s7 + $0x8] sm:$0xf]
  %v269 = vld [vmem:[%s7 + $0xc] sm:$0xf]
  %v270 = vld [vmem:[%s7 + $0x10] sm:$0xf]
  %v271 = vld [vmem:[%s7 + $0x14] sm:$0xf]
  %v272 = vld [vmem:[%s7 + $0x18] sm:$0xf]
  %v273 = vld [vmem:[%s7 + $0x1c] sm:$0xf]
  %v274 = vld [vmem:[%s7 + $0x20] sm:$0xf]
  %v275 = vld [vmem:[%s7 + $0x24] sm:$0xf]
  %v276 = vld [vmem:[%s7 + $0x28] sm:$0xf]
  %v277 = vld [vmem:[%s7 + $0x2c] sm:$0xf]
  %v278 = vld [vmem:[%s7 + $0x30] sm:$0xf]
  %v279 = vld [vmem:[%s7 + $0x34] sm:$0xf]
  %v280 = vld [vmem:[%s7 + $0x38] sm:$0xf]
  %v281 = vld [vmem:[%s7 + $0x3c] sm:$0xf]
  %v282 = vld [vmem:[%s7 + $0x40] sm:$0xf]
  %v283 = vld [vmem:[%s7 + $0x44] sm:$0xf]
  %v284 = vld [vmem:[%s7 + $0x48] sm:$0xf]
  %v285 = vld [vmem:[%s7 + $0x4c] sm:$0xf]
  %v286 = vld [vmem:[%s7 + $0x50] sm:$0xf]
  %v287 = vld [vmem:[%s7 + $0x54] sm:$0xf]
  %v288 = vld [vmem:[%s7 + $0x58] sm:$0xf]
  %v289 = vld [vmem:[%s7 + $0x5c] sm:$0xf]
  %v290 = vld [vmem:[%s7 + $0x60] sm:$0xf]
  %v291 = vld [vmem:[%s7 + $0x64] sm:$0xf]
  %v292 = vld [vmem:[%s7 + $0x68] sm:$0xf]
  %v293 = vld [vmem:[%s7 + $0x6c] sm:$0xf]
  %v294 = vld [vmem:[%s7 + $0x70] sm:$0xf]
  %v295 = vld [vmem:[%s7 + $0x74] sm:$0xf]
  %v296 = vld [vmem:[%s7 + $0x78] sm:$0xf]
  %v297 = vld [vmem:[%s7 + $0x7c] sm:$0xf]
  %v298 = vld [vmem:[%s7 + $0x80] sm:$0xf]
  %v299 = vld [vmem:[%s7 + $0x84] sm:$0xf]
  %v300 = vld [vmem:[%s7 + $0x88] sm:$0xf]
  %v301 = vld [vmem:[%s7 + $0x8c] sm:$0xf]
  %v302 = vld [vmem:[%s7 + $0x90] sm:$0xf]
  %v303 = vld [vmem:[%s7 + $0x94] sm:$0xf]
  %v304 = vld [vmem:[%s7 + $0x98] sm:$0xf]
  %v305 = vld [vmem:[%s7 + $0x9c] sm:$0xf]
  %v306 = vld [vmem:[%s7 + $0xa0] sm:$0xf]
  %v307 = vld [vmem:[%s7 + $0xa4] sm:$0xf]
  %v308 = vld [vmem:[%s7 + $0xa8] sm:$0xf]
  %v309 = vld [vmem:[%s7 + $0xac] sm:$0xf]
  %v310 = vld [vmem:[%s7 + $0xb0] sm:$0xf]
  %v311 = vld [vmem:[%s7 + $0xb4] sm:$0xf]
  %v312 = vld [vmem:[%s7 + $0xb8] sm:$0xf]
  %v313 = vld [vmem:[%s7 + $0xbc] sm:$0xf]
  %v314 = vld [vmem:[%s7 + $0xc0] sm:$0xf]
  %v315 = vld [vmem:[%s7 + $0xc4] sm:$0xf]
  %v316 = vld [vmem:[%s7 + $0xc8] sm:$0xf]
  %v317 = vld [vmem:[%s7 + $0xcc] sm:$0xf]
  %v318 = vld [vmem:[%s7 + $0xd0] sm:$0xf]
  %v319 = vld [vmem:[%s7 + $0xd4] sm:$0xf]
  %v320 = vld [vmem:[%s7 + $0xd8] sm:$0xf]
  %v321 = vld [vmem:[%s7 + $0xdc] sm:$0xf]
  %v322 = vld [vmem:[%s7 + $0xe0] sm:$0xf]
  %v323 = vld [vmem:[%s7 + $0xe4] sm:$0xf]
  %v324 = vld [vmem:[%s7 + $0xe8] sm:$0xf]
  %v325 = vld [vmem:[%s7 + $0xec] sm:$0xf]
  %v326 = vld [vmem:[%s7 + $0xf0] sm:$0xf]
  %v327 = vld [vmem:[%s7 + $0xf4] sm:$0xf]
  %v328 = vld [vmem:[%s7 + $0xf8] sm:$0xf]
  %v329 = vld [vmem:[%s7 + $0xfc] sm:$0xf]
  %v330 = vld [vmem:[%s8] sm:$0x1]
  %v332 = vlaneseq
  %v333 = vshrl.u32 %v332, 7
  %v334 = vsub.s32 0, %v333
  %v335 = vrot.slane %v330, %v334
  %v401 = vunpack.c.l.b16 %v266
  %v402 = vunpack.c.l.b16 %v267
  %v403 = vunpack.c.l.b16 %v268
  %v404 = vunpack.c.l.b16 %v269
  %v405 = vunpack.c.l.b16 %v270
  %v406 = vunpack.c.l.b16 %v271
  %v407 = vunpack.c.l.b16 %v272
  %v408 = vunpack.c.l.b16 %v273
  %v409 = vunpack.c.l.b16 %v274
  %v410 = vunpack.c.l.b16 %v275
  %v411 = vunpack.c.l.b16 %v276
  %v412 = vunpack.c.l.b16 %v277
  %v413 = vunpack.c.l.b16 %v278
  %v414 = vunpack.c.l.b16 %v279
  %v415 = vunpack.c.l.b16 %v280
  %v416 = vunpack.c.l.b16 %v281
  %v417 = vunpack.c.l.b16 %v282
  %v418 = vunpack.c.l.b16 %v283
  %v419 = vunpack.c.l.b16 %v284
  %v420 = vunpack.c.l.b16 %v285
  %v421 = vunpack.c.l.b16 %v286
  %v422 = vunpack.c.l.b16 %v287
  %v423 = vunpack.c.l.b16 %v288
  %v424 = vunpack.c.l.b16 %v289
  %v425 = vunpack.c.l.b16 %v290
  %v426 = vunpack.c.l.b16 %v291
  %v427 = vunpack.c.l.b16 %v292
  %v428 = vunpack.c.l.b16 %v293
  %v429 = vunpack.c.l.b16 %v294
  %v430 = vunpack.c.l.b16 %v295
  %v431 = vunpack.c.l.b16 %v296
  %v432 = vunpack.c.l.b16 %v297
  %v433 = vunpack.c.l.b16 %v298
  %v434 = vunpack.c.l.b16 %v299
  %v435 = vunpack.c.l.b16 %v300
  %v436 = vunpack.c.l.b16 %v301
  %v437 = vunpack.c.l.b16 %v302
  %v438 = vunpack.c.l.b16 %v303
  %v439 = vunpack.c.l.b16 %v304
  %v440 = vunpack.c.l.b16 %v305
  %v441 = vunpack.c.l.b16 %v306
  %v442 = vunpack.c.l.b16 %v307
  %v443 = vunpack.c.l.b16 %v308
  %v444 = vunpack.c.l.b16 %v309
  %v445 = vunpack.c.l.b16 %v310
  %v446 = vunpack.c.l.b16 %v311
  %v447 = vunpack.c.l.b16 %v312
  %v448 = vunpack.c.l.b16 %v313
  %v449 = vunpack.c.l.b16 %v314
  %v450 = vunpack.c.l.b16 %v315
  %v451 = vunpack.c.l.b16 %v316
  %v452 = vunpack.c.l.b16 %v317
  %v453 = vunpack.c.l.b16 %v318
  %v454 = vunpack.c.l.b16 %v319
  %v455 = vunpack.c.l.b16 %v320
  %v456 = vunpack.c.l.b16 %v321
  %v457 = vunpack.c.l.b16 %v322
  %v458 = vunpack.c.l.b16 %v323
  %v459 = vunpack.c.l.b16 %v324
  %v460 = vunpack.c.l.b16 %v325
  %v461 = vunpack.c.l.b16 %v326
  %v462 = vunpack.c.l.b16 %v327
  %v463 = vunpack.c.l.b16 %v328
  %v464 = vunpack.c.l.b16 %v329
  %v465 = vpack.c.b16 %v402, %v401
  %v466 = vpack.c.b16 %v404, %v403
  %v467 = vpack.c.b16 %v406, %v405
  %v468 = vpack.c.b16 %v408, %v407
  %v469 = vpack.c.b16 %v410, %v409
  %v470 = vpack.c.b16 %v412, %v411
  %v471 = vpack.c.b16 %v414, %v413
  %v472 = vpack.c.b16 %v416, %v415
  %v473 = vpack.c.b16 %v418, %v417
  %v474 = vpack.c.b16 %v420, %v419
  %v475 = vpack.c.b16 %v422, %v421
  %v476 = vpack.c.b16 %v424, %v423
  %v477 = vpack.c.b16 %v426, %v425
  %v478 = vpack.c.b16 %v428, %v427
  %v479 = vpack.c.b16 %v430, %v429
  %v480 = vpack.c.b16 %v432, %v431
  %v481 = vpack.c.b16 %v434, %v433
  %v482 = vpack.c.b16 %v436, %v435
  %v483 = vpack.c.b16 %v438, %v437
  %v484 = vpack.c.b16 %v440, %v439
  %v485 = vpack.c.b16 %v442, %v441
  %v486 = vpack.c.b16 %v444, %v443
  %v487 = vpack.c.b16 %v446, %v445
  %v488 = vpack.c.b16 %v448, %v447
  %v489 = vpack.c.b16 %v450, %v449
  %v490 = vpack.c.b16 %v452, %v451
  %v491 = vpack.c.b16 %v454, %v453
  %v492 = vpack.c.b16 %v456, %v455
  %v493 = vpack.c.b16 %v458, %v457
  %v494 = vpack.c.b16 %v460, %v459
  %v495 = vpack.c.b16 %v462, %v461
  %v496 = vpack.c.b16 %v464, %v463
  %529 = vmatprep.subr.bf16.mxu0 0
  %530 = vmatpush1.bf16.msra.mxu0 %v465
  %531 = vmatprep.subr.bf16.mxu0 0
  %532 = vmatpush1.bf16.msra.mxu0 %v466
  %533 = vmatprep.subr.bf16.mxu0 0
  %534 = vmatpush1.bf16.msra.mxu0 %v467
  %535 = vmatprep.subr.bf16.mxu0 0
  %536 = vmatpush1.bf16.msra.mxu0 %v468
  %537 = vmatprep.subr.bf16.mxu0 0
  %538 = vmatpush1.bf16.msra.mxu0 %v469
  %539 = vmatprep.subr.bf16.mxu0 0
  %540 = vmatpush1.bf16.msra.mxu0 %v470
  %541 = vmatprep.subr.bf16.mxu0 0
  %542 = vmatpush1.bf16.msra.mxu0 %v471
  %543 = vmatprep.subr.bf16.mxu0 0
  %544 = vmatpush1.bf16.msra.mxu0 %v472
  %545 = vmatprep.subr.bf16.mxu0 0
  %546 = vmatpush1.bf16.msra.mxu0 %v473
  %547 = vmatprep.subr.bf16.mxu0 0
  %548 = vmatpush1.bf16.msra.mxu0 %v474
  %549 = vmatprep.subr.bf16.mxu0 0
  %550 = vmatpush1.bf16.msra.mxu0 %v475
  %551 = vmatprep.subr.bf16.mxu0 0
  %552 = vmatpush1.bf16.msra.mxu0 %v476
  %553 = vmatprep.subr.bf16.mxu0 0
  %554 = vmatpush1.bf16.msra.mxu0 %v477
  %555 = vmatprep.subr.bf16.mxu0 0
  %556 = vmatpush1.bf16.msra.mxu0 %v478
  %557 = vmatprep.subr.bf16.mxu0 0
  %558 = vmatpush1.bf16.msra.mxu0 %v479
  %559 = vmatprep.subr.bf16.mxu0 0
  %560 = vmatpush1.bf16.msra.mxu0 %v480
  %561 = vmatprep.mubr.bf16.mxu0 %v263
  %562 = vmatmul.mubr.bf16.gmra.mrb[0].mxu0 %v262
  %v563 = vpop.f32.mrb[0].mxu0
  %v564 = vadd.f32 %v335, %v563
  %v565 = vpop.f32.mrb[0].mxu0
  %v566 = vpop.f32.mrb[0].mxu0
  %v567 = vadd.f32 %v335, %v566
  %v568 = vpop.f32.mrb[0].mxu0
  %569 = vdwg.mxu0
  %570 = vmatprep.subr.bf16.mxu0 0
  %571 = vmatpush1.bf16.msra.mxu0 %v481
  %572 = vmatprep.subr.bf16.mxu0 0
  %573 = vmatpush1.bf16.msra.mxu0 %v482
  %574 = vmatprep.subr.bf16.mxu0 0
  %575 = vmatpush1.bf16.msra.mxu0 %v483
  %576 = vmatprep.subr.bf16.mxu0 0
  %577 = vmatpush1.bf16.msra.mxu0 %v484
  %578 = vmatprep.subr.bf16.mxu0 0
  %579 = vmatpush1.bf16.msra.mxu0 %v485
  %580 = vmatprep.subr.bf16.mxu0 0
  %581 = vmatpush1.bf16.msra.mxu0 %v486
  %582 = vmatprep.subr.bf16.mxu0 0
  %583 = vmatpush1.bf16.msra.mxu0 %v487
  %584 = vmatprep.subr.bf16.mxu0 0
  %585 = vmatpush1.bf16.msra.mxu0 %v488
  %586 = vmatprep.subr.bf16.mxu0 0
  %587 = vmatpush1.bf16.msra.mxu0 %v489
  %588 = vmatprep.subr.bf16.mxu0 0
  %589 = vmatpush1.bf16.msra.mxu0 %v490
  %590 = vmatprep.subr.bf16.mxu0 0
  %591 = vmatpush1.bf16.msra.mxu0 %v491
  %592 = vmatprep.subr.bf16.mxu0 0
  %593 = vmatpush1.bf16.msra.mxu0 %v492
  %594 = vmatprep.subr.bf16.mxu0 0
  %595 = vmatpush1.bf16.msra.mxu0 %v493
  %596 = vmatprep.subr.bf16.mxu0 0
  %597 = vmatpush1.bf16.msra.mxu0 %v494
  %598 = vmatprep.subr.bf16.mxu0 0
  %599 = vmatpush1.bf16.msra.mxu0 %v495
  %600 = vmatprep.subr.bf16.mxu0 0
  %601 = vmatpush1.bf16.msra.mxu0 %v496
  %602 = vmatprep.mubr.bf16.mxu0 %v265
  %603 = vmatmul.mubr.bf16.gmra.mrb[0].mxu0 %v264
  %v604 = vpop.f32.mrb[0].mxu0
  %v605 = vadd.f32 %v564, %v604
  %v606 = vpop.f32.mrb[0].mxu0
  %v607 = vpop.f32.mrb[0].mxu0
  %v608 = vadd.f32 %v567, %v607
  %v609 = vpop.f32.mrb[0].mxu0
  %610 = vdwg.mxu0
  %v611 = vmax.f32 %v605, 0.0
  %v612 = vmax.f32 %v608, 0.0
  %v613 = vpack.c.bf16 %v612, %v611
  %v614 = vld [vmem:[%s9] sm:$0xf]
  %v615 = vld [vmem:[%s9 + $0x4] sm:$0xf]
  %v616 = vld [vmem:[%s9 + $0x8] sm:$0xf]
  %v617 = vld [vmem:[%s9 + $0xc] sm:$0xf]
  %v618 = vld [vmem:[#allocation2] sm:$0x1]
  %v620 = vlaneseq
  %v621 = vshrl.u32 %v620, 7
  %v622 = vsub.s32 0, %v621
  %v623 = vrot.slane %v618, %v622
  %v629 = vunpack.c.l.b16 %v614
  %v630 = vunpack.c.l.b16 %v615
  %v631 = vunpack.c.l.b16 %v616
  %v632 = vunpack.c.l.b16 %v617
  %v633 = vpack.c.b16 %v630, %v629
  %v634 = vpack.c.b16 %v632, %v631
  %v638 = vsel %vm91, %v613, 0
  %640 = vmatprep.subr.bf16.mxu0 0
  %641 = vmatpush1.bf16.msra.mxu0 %v633
  %642 = vmatprep.subr.bf16.mxu0 0
  %643 = vmatpush1.bf16.msra.mxu0 %v634
  %644 = vmatprep.subr.bf16.mxu0 0
  %645 = vmatpush1.bf16.msra.mxu0 0
  %646 = vmatprep.subr.bf16.mxu0 0
  %647 = vmatpush1.bf16.msra.mxu0 0
  %648 = vmatprep.subr.bf16.mxu0 0
  %649 = vmatpush1.bf16.msra.mxu0 0
  %650 = vmatprep.subr.bf16.mxu0 0
  %651 = vmatpush1.bf16.msra.mxu0 0
  %652 = vmatprep.subr.bf16.mxu0 0
  %653 = vmatpush1.bf16.msra.mxu0 0
  %654 = vmatprep.subr.bf16.mxu0 0
  %655 = vmatpush1.bf16.msra.mxu0 0
  %656 = vmatprep.subr.bf16.mxu0 0
  %657 = vmatpush1.bf16.msra.mxu0 0
  %658 = vmatprep.subr.bf16.mxu0 0
  %659 = vmatpush1.bf16.msra.mxu0 0
  %660 = vmatprep.subr.bf16.mxu0 0
  %661 = vmatpush1.bf16.msra.mxu0 0
  %662 = vmatprep.subr.bf16.mxu0 0
  %663 = vmatpush1.bf16.msra.mxu0 0
  %664 = vmatprep.subr.bf16.mxu0 0
  %665 = vmatpush1.bf16.msra.mxu0 0
  %666 = vmatprep.subr.bf16.mxu0 0
  %667 = vmatpush1.bf16.msra.mxu0 0
  %668 = vmatprep.subr.bf16.mxu0 0
  %669 = vmatpush1.bf16.msra.mxu0 0
  %670 = vmatprep.subr.bf16.mxu0 0
  %671 = vmatpush1.bf16.msra.mxu0 0
  %672 = vmatprep.mubr.bf16.mxu0 0
  %673 = vmatmul.mubr.bf16.gmra.mrb[0].mxu0 %v638
  %v674 = vpop.f32.mrb[0].mxu0
  %v675 = vadd.f32 %v623, %v674
  %v676 = vpop.f32.mrb[0].mxu0
  %v677 = vpop.f32.mrb[0].mxu0
  %v678 = vadd.f32 %v623, %v677
  %v679 = vpop.f32.mrb[0].mxu0
  %680 = vdwg.mxu0
  %v681 = vsub.f32 0.0, %v675
  %v682 = vsub.f32 0.0, %v678
  %v683 = vmul.f32 %v681, 1.442695
  %v684 = vpow.pop %v683
  %v685 = vmul.f32 %v682, 1.442695
  %v686 = vpow.pop %v685
  %v687 = vadd.f32 %v684, 1.0
  %v688 = vadd.f32 %v686, 1.0
  %v689 = vrcp.pop %v687
  %v690 = vmul.f32 1.0, %v689
  %v691 = vrcp.pop %v688
  %v692 = vmul.f32 1.0, %v691
  %v693 = vsub.f32 %v65, %v161
  %v694 = vsub.f32 %v66, %v164
  %v695 = vld [vmem:[%s11] sm:$0xf]
  %v696 = vunpack.c.l.bf16 %v695
  %698 = vset.pattern.permute.xlu0 0
  %699 = vperm.xlu0 %698, %v693
  %v700 = vpop.permute.xlu0 %699
  %703 = vset.pattern.permute.xlu0 0
  %704 = vperm.xlu0 %703, %v694
  %v705 = vpop.permute.xlu0 %704
  %v708 = vlaneseq
  %v709 = vshrl.u32 %v708, 7
  %v710 = vsub.s32 0, %v709
  %v711 = vrot.slane %v696, %v710
  %v712 = vlaneseq
  %v713 = vshrl.u32 %v712, 7
  %v714 = vsub.s32 2, %v713
  %v715 = vrot.slane %v696, %v714
  %v716 = vlaneseq
  %v717 = vshrl.u32 %v716, 7
  %v718 = vsub.s32 4, %v717
  %v719 = vrot.slane %v696, %v718
  %v720 = vlaneseq
  %v721 = vshrl.u32 %v720, 7
  %v722 = vsub.s32 6, %v721
  %v723 = vrot.slane %v696, %v722
  %v728 = vlaneseq
  %v729 = vshrl.u32 %v728, 7
  %v730 = vsub.s32 0, %v729
  %v731 = vrot.slane %v711, %v730
  %v732 = vlaneseq
  %v733 = vshrl.u32 %v732, 7
  %v734 = vsub.s32 0, %v733
  %v735 = vrot.slane %v715, %v734
  %v736 = vlaneseq
  %v737 = vshrl.u32 %v736, 7
  %v738 = vsub.s32 0, %v737
  %v739 = vrot.slane %v719, %v738
  %v740 = vlaneseq
  %v741 = vshrl.u32 %v740, 7
  %v742 = vsub.s32 0, %v741
  %v743 = vrot.slane %v723, %v742
  %v744 = vmul.f32 %v700, %v731
  %v745 = vmul.f32 %v700, %v735
  %v746 = vmul.f32 %v700, %v739
  %v747 = vmul.f32 %v700, %v743
  %v748 = vmul.f32 %v705, %v731
  %v749 = vmul.f32 %v705, %v735
  %v750 = vmul.f32 %v705, %v739
  %v751 = vmul.f32 %v705, %v743
  %v752 = vld [vmem:[%s12] sm:$0xf]
  %v754 = vlaneseq
  %v755 = vshrl.u32 %v754, 7
  %v756 = vsub.s32 0, %v755
  %v757 = vrot.slane %v752, %v756
  %v758 = vlaneseq
  %v759 = vshrl.u32 %v758, 7
  %v760 = vsub.s32 1, %v759
  %v761 = vrot.slane %v752, %v760
  %v762 = vlaneseq
  %v763 = vshrl.u32 %v762, 7
  %v764 = vsub.s32 2, %v763
  %v765 = vrot.slane %v752, %v764
  %v766 = vlaneseq
  %v767 = vshrl.u32 %v766, 7
  %v768 = vsub.s32 3, %v767
  %v769 = vrot.slane %v752, %v768
  %v774 = vadd.f32 %v744, %v757
  %v775 = vadd.f32 %v745, %v761
  %v776 = vadd.f32 %v746, %v765
  %v777 = vadd.f32 %v747, %v769
  %v778 = vadd.f32 %v748, %v757
  %v779 = vadd.f32 %v749, %v761
  %v780 = vadd.f32 %v750, %v765
  %v781 = vadd.f32 %v751, %v769
  %v782 = vmax.f32 %v774, 0.0
  %v783 = vmax.f32 %v775, 0.0
  %v784 = vmax.f32 %v776, 0.0
  %v785 = vmax.f32 %v777, 0.0
  %v786 = vmax.f32 %v778, 0.0
  %v787 = vmax.f32 %v779, 0.0
  %v788 = vmax.f32 %v780, 0.0
  %v789 = vmax.f32 %v781, 0.0
  %v790 = vpack.c.bf16 %v786, %v782
  %v791 = vpack.c.bf16 %v787, %v783
  %v792 = vpack.c.bf16 %v788, %v784
  %v793 = vpack.c.bf16 %v789, %v785
  %v794 = vld [vmem:[%s13] sm:$0xf]
  %v795 = vld [vmem:[%s13 + $0x4] sm:$0xf]
  %v796 = vld [vmem:[%s13 + $0x8] sm:$0xf]
  %v797 = vld [vmem:[%s13 + $0xc] sm:$0xf]
  %v798 = vld [vmem:[%s13 + $0x10] sm:$0xf]
  %v799 = vld [vmem:[%s13 + $0x14] sm:$0xf]
  %v800 = vld [vmem:[%s13 + $0x18] sm:$0xf]
  %v801 = vld [vmem:[%s13 + $0x1c] sm:$0xf]
  %v802 = vld [vmem:[%s13 + $0x20] sm:$0xf]
  %v803 = vld [vmem:[%s13 + $0x24] sm:$0xf]
  %v804 = vld [vmem:[%s13 + $0x28] sm:$0xf]
  %v805 = vld [vmem:[%s13 + $0x2c] sm:$0xf]
  %v806 = vld [vmem:[%s13 + $0x30] sm:$0xf]
  %v807 = vld [vmem:[%s13 + $0x34] sm:$0xf]
  %v808 = vld [vmem:[%s13 + $0x38] sm:$0xf]
  %v809 = vld [vmem:[%s13 + $0x3c] sm:$0xf]
  %v810 = vld [vmem:[%s13 + $0x40] sm:$0xf]
  %v811 = vld [vmem:[%s13 + $0x44] sm:$0xf]
  %v812 = vld [vmem:[%s13 + $0x48] sm:$0xf]
  %v813 = vld [vmem:[%s13 + $0x4c] sm:$0xf]
  %v814 = vld [vmem:[%s13 + $0x50] sm:$0xf]
  %v815 = vld [vmem:[%s13 + $0x54] sm:$0xf]
  %v816 = vld [vmem:[%s13 + $0x58] sm:$0xf]
  %v817 = vld [vmem:[%s13 + $0x5c] sm:$0xf]
  %v818 = vld [vmem:[%s13 + $0x60] sm:$0xf]
  %v819 = vld [vmem:[%s13 + $0x64] sm:$0xf]
  %v820 = vld [vmem:[%s13 + $0x68] sm:$0xf]
  %v821 = vld [vmem:[%s13 + $0x6c] sm:$0xf]
  %v822 = vld [vmem:[%s13 + $0x70] sm:$0xf]
  %v823 = vld [vmem:[%s13 + $0x74] sm:$0xf]
  %v824 = vld [vmem:[%s13 + $0x78] sm:$0xf]
  %v825 = vld [vmem:[%s13 + $0x7c] sm:$0xf]
  %v826 = vld [vmem:[%s13 + $0x80] sm:$0xf]
  %v827 = vld [vmem:[%s13 + $0x84] sm:$0xf]
  %v828 = vld [vmem:[%s13 + $0x88] sm:$0xf]
  %v829 = vld [vmem:[%s13 + $0x8c] sm:$0xf]
  %v830 = vld [vmem:[%s13 + $0x90] sm:$0xf]
  %v831 = vld [vmem:[%s13 + $0x94] sm:$0xf]
  %v832 = vld [vmem:[%s13 + $0x98] sm:$0xf]
  %v833 = vld [vmem:[%s13 + $0x9c] sm:$0xf]
  %v834 = vld [vmem:[%s13 + $0xa0] sm:$0xf]
  %v835 = vld [vmem:[%s13 + $0xa4] sm:$0xf]
  %v836 = vld [vmem:[%s13 + $0xa8] sm:$0xf]
  %v837 = vld [vmem:[%s13 + $0xac] sm:$0xf]
  %v838 = vld [vmem:[%s13 + $0xb0] sm:$0xf]
  %v839 = vld [vmem:[%s13 + $0xb4] sm:$0xf]
  %v840 = vld [vmem:[%s13 + $0xb8] sm:$0xf]
  %v841 = vld [vmem:[%s13 + $0xbc] sm:$0xf]
  %v842 = vld [vmem:[%s13 + $0xc0] sm:$0xf]
  %v843 = vld [vmem:[%s13 + $0xc4] sm:$0xf]
  %v844 = vld [vmem:[%s13 + $0xc8] sm:$0xf]
  %v845 = vld [vmem:[%s13 + $0xcc] sm:$0xf]
  %v846 = vld [vmem:[%s13 + $0xd0] sm:$0xf]
  %v847 = vld [vmem:[%s13 + $0xd4] sm:$0xf]
  %v848 = vld [vmem:[%s13 + $0xd8] sm:$0xf]
  %v849 = vld [vmem:[%s13 + $0xdc] sm:$0xf]
  %v850 = vld [vmem:[%s13 + $0xe0] sm:$0xf]
  %v851 = vld [vmem:[%s13 + $0xe4] sm:$0xf]
  %v852 = vld [vmem:[%s13 + $0xe8] sm:$0xf]
  %v853 = vld [vmem:[%s13 + $0xec] sm:$0xf]
  %v854 = vld [vmem:[%s13 + $0xf0] sm:$0xf]
  %v855 = vld [vmem:[%s13 + $0xf4] sm:$0xf]
  %v856 = vld [vmem:[%s13 + $0xf8] sm:$0xf]
  %v857 = vld [vmem:[%s13 + $0xfc] sm:$0xf]
  %v858 = vld [vmem:[%s14] sm:$0x1]
  %v860 = vlaneseq
  %v861 = vshrl.u32 %v860, 7
  %v862 = vsub.s32 0, %v861
  %v863 = vrot.slane %v858, %v862
  %v929 = vunpack.c.l.b16 %v794
  %v930 = vunpack.c.l.b16 %v795
  %v931 = vunpack.c.l.b16 %v796
  %v932 = vunpack.c.l.b16 %v797
  %v933 = vunpack.c.l.b16 %v798
  %v934 = vunpack.c.l.b16 %v799
  %v935 = vunpack.c.l.b16 %v800
  %v936 = vunpack.c.l.b16 %v801
  %v937 = vunpack.c.l.b16 %v802
  %v938 = vunpack.c.l.b16 %v803
  %v939 = vunpack.c.l.b16 %v804
  %v940 = vunpack.c.l.b16 %v805
  %v941 = vunpack.c.l.b16 %v806
  %v942 = vunpack.c.l.b16 %v807
  %v943 = vunpack.c.l.b16 %v808
  %v944 = vunpack.c.l.b16 %v809
  %v945 = vunpack.c.l.b16 %v810
  %v946 = vunpack.c.l.b16 %v811
  %v947 = vunpack.c.l.b16 %v812
  %v948 = vunpack.c.l.b16 %v813
  %v949 = vunpack.c.l.b16 %v814
  %v950 = vunpack.c.l.b16 %v815
  %v951 = vunpack.c.l.b16 %v816
  %v952 = vunpack.c.l.b16 %v817
  %v953 = vunpack.c.l.b16 %v818
  %v954 = vunpack.c.l.b16 %v819
  %v955 = vunpack.c.l.b16 %v820
  %v956 = vunpack.c.l.b16 %v821
  %v957 = vunpack.c.l.b16 %v822
  %v958 = vunpack.c.l.b16 %v823
  %v959 = vunpack.c.l.b16 %v824
  %v960 = vunpack.c.l.b16 %v825
  %v961 = vunpack.c.l.b16 %v826
  %v962 = vunpack.c.l.b16 %v827
  %v963 = vunpack.c.l.b16 %v828
  %v964 = vunpack.c.l.b16 %v829
  %v965 = vunpack.c.l.b16 %v830
  %v966 = vunpack.c.l.b16 %v831
  %v967 = vunpack.c.l.b16 %v832
  %v968 = vunpack.c.l.b16 %v833
  %v969 = vunpack.c.l.b16 %v834
  %v970 = vunpack.c.l.b16 %v835
  %v971 = vunpack.c.l.b16 %v836
  %v972 = vunpack.c.l.b16 %v837
  %v973 = vunpack.c.l.b16 %v838
  %v974 = vunpack.c.l.b16 %v839
  %v975 = vunpack.c.l.b16 %v840
  %v976 = vunpack.c.l.b16 %v841
  %v977 = vunpack.c.l.b16 %v842
  %v978 = vunpack.c.l.b16 %v843
  %v979 = vunpack.c.l.b16 %v844
  %v980 = vunpack.c.l.b16 %v845
  %v981 = vunpack.c.l.b16 %v846
  %v982 = vunpack.c.l.b16 %v847
  %v983 = vunpack.c.l.b16 %v848
  %v984 = vunpack.c.l.b16 %v849
  %v985 = vunpack.c.l.b16 %v850
  %v986 = vunpack.c.l.b16 %v851
  %v987 = vunpack.c.l.b16 %v852
  %v988 = vunpack.c.l.b16 %v853
  %v989 = vunpack.c.l.b16 %v854
  %v990 = vunpack.c.l.b16 %v855
  %v991 = vunpack.c.l.b16 %v856
  %v992 = vunpack.c.l.b16 %v857
  %v993 = vpack.c.b16 %v930, %v929
  %v994 = vpack.c.b16 %v932, %v931
  %v995 = vpack.c.b16 %v934, %v933
  %v996 = vpack.c.b16 %v936, %v935
  %v997 = vpack.c.b16 %v938, %v937
  %v998 = vpack.c.b16 %v940, %v939
  %v999 = vpack.c.b16 %v942, %v941
  %v1000 = vpack.c.b16 %v944, %v943
  %v1001 = vpack.c.b16 %v946, %v945
  %v1002 = vpack.c.b16 %v948, %v947
  %v1003 = vpack.c.b16 %v950, %v949
  %v1004 = vpack.c.b16 %v952, %v951
  %v1005 = vpack.c.b16 %v954, %v953
  %v1006 = vpack.c.b16 %v956, %v955
  %v1007 = vpack.c.b16 %v958, %v957
  %v1008 = vpack.c.b16 %v960, %v959
  %v1009 = vpack.c.b16 %v962, %v961
  %v1010 = vpack.c.b16 %v964, %v963
  %v1011 = vpack.c.b16 %v966, %v965
  %v1012 = vpack.c.b16 %v968, %v967
  %v1013 = vpack.c.b16 %v970, %v969
  %v1014 = vpack.c.b16 %v972, %v971
  %v1015 = vpack.c.b16 %v974, %v973
  %v1016 = vpack.c.b16 %v976, %v975
  %v1017 = vpack.c.b16 %v978, %v977
  %v1018 = vpack.c.b16 %v980, %v979
  %v1019 = vpack.c.b16 %v982, %v981
  %v1020 = vpack.c.b16 %v984, %v983
  %v1021 = vpack.c.b16 %v986, %v985
  %v1022 = vpack.c.b16 %v988, %v987
  %v1023 = vpack.c.b16 %v990, %v989
  %v1024 = vpack.c.b16 %v992, %v991
  %1057 = vmatprep.subr.bf16.mxu0 0
  %1058 = vmatpush1.bf16.msra.mxu0 %v993
  %1059 = vmatprep.subr.bf16.mxu0 0
  %1060 = vmatpush1.bf16.msra.mxu0 %v994
  %1061 = vmatprep.subr.bf16.mxu0 0
  %1062 = vmatpush1.bf16.msra.mxu0 %v995
  %1063 = vmatprep.subr.bf16.mxu0 0
  %1064 = vmatpush1.bf16.msra.mxu0 %v996
  %1065 = vmatprep.subr.bf16.mxu0 0
  %1066 = vmatpush1.bf16.msra.mxu0 %v997
  %1067 = vmatprep.subr.bf16.mxu0 0
  %1068 = vmatpush1.bf16.msra.mxu0 %v998
  %1069 = vmatprep.subr.bf16.mxu0 0
  %1070 = vmatpush1.bf16.msra.mxu0 %v999
  %1071 = vmatprep.subr.bf16.mxu0 0
  %1072 = vmatpush1.bf16.msra.mxu0 %v1000
  %1073 = vmatprep.subr.bf16.mxu0 0
  %1074 = vmatpush1.bf16.msra.mxu0 %v1001
  %1075 = vmatprep.subr.bf16.mxu0 0
  %1076 = vmatpush1.bf16.msra.mxu0 %v1002
  %1077 = vmatprep.subr.bf16.mxu0 0
  %1078 = vmatpush1.bf16.msra.mxu0 %v1003
  %1079 = vmatprep.subr.bf16.mxu0 0
  %1080 = vmatpush1.bf16.msra.mxu0 %v1004
  %1081 = vmatprep.subr.bf16.mxu0 0
  %1082 = vmatpush1.bf16.msra.mxu0 %v1005
  %1083 = vmatprep.subr.bf16.mxu0 0
  %1084 = vmatpush1.bf16.msra.mxu0 %v1006
  %1085 = vmatprep.subr.bf16.mxu0 0
  %1086 = vmatpush1.bf16.msra.mxu0 %v1007
  %1087 = vmatprep.subr.bf16.mxu0 0
  %1088 = vmatpush1.bf16.msra.mxu0 %v1008
  %1089 = vmatprep.mubr.bf16.mxu0 %v791
  %1090 = vmatmul.mubr.bf16.gmra.mrb[0].mxu0 %v790
  %v1091 = vpop.f32.mrb[0].mxu0
  %v1092 = vadd.f32 %v863, %v1091
  %v1093 = vpop.f32.mrb[0].mxu0
  %v1094 = vpop.f32.mrb[0].mxu0
  %v1095 = vadd.f32 %v863, %v1094
  %v1096 = vpop.f32.mrb[0].mxu0
  %1097 = vdwg.mxu0
  %1098 = vmatprep.subr.bf16.mxu0 0
  %1099 = vmatpush1.bf16.msra.mxu0 %v1009
  %1100 = vmatprep.subr.bf16.mxu0 0
  %1101 = vmatpush1.bf16.msra.mxu0 %v1010
  %1102 = vmatprep.subr.bf16.mxu0 0
  %1103 = vmatpush1.bf16.msra.mxu0 %v1011
  %1104 = vmatprep.subr.bf16.mxu0 0
  %1105 = vmatpush1.bf16.msra.mxu0 %v1012
  %1106 = vmatprep.subr.bf16.mxu0 0
  %1107 = vmatpush1.bf16.msra.mxu0 %v1013
  %1108 = vmatprep.subr.bf16.mxu0 0
  %1109 = vmatpush1.bf16.msra.mxu0 %v1014
  %1110 = vmatprep.subr.bf16.mxu0 0
  %1111 = vmatpush1.bf16.msra.mxu0 %v1015
  %1112 = vmatprep.subr.bf16.mxu0 0
  %1113 = vmatpush1.bf16.msra.mxu0 %v1016
  %1114 = vmatprep.subr.bf16.mxu0 0
  %1115 = vmatpush1.bf16.msra.mxu0 %v1017
  %1116 = vmatprep.subr.bf16.mxu0 0
  %1117 = vmatpush1.bf16.msra.mxu0 %v1018
  %1118 = vmatprep.subr.bf16.mxu0 0
  %1119 = vmatpush1.bf16.msra.mxu0 %v1019
  %1120 = vmatprep.subr.bf16.mxu0 0
  %1121 = vmatpush1.bf16.msra.mxu0 %v1020
  %1122 = vmatprep.subr.bf16.mxu0 0
  %1123 = vmatpush1.bf16.msra.mxu0 %v1021
  %1124 = vmatprep.subr.bf16.mxu0 0
  %1125 = vmatpush1.bf16.msra.mxu0 %v1022
  %1126 = vmatprep.subr.bf16.mxu0 0
  %1127 = vmatpush1.bf16.msra.mxu0 %v1023
  %1128 = vmatprep.subr.bf16.mxu0 0
  %1129 = vmatpush1.bf16.msra.mxu0 %v1024
  %1130 = vmatprep.mubr.bf16.mxu0 %v793
  %1131 = vmatmul.mubr.bf16.gmra.mrb[0].mxu0 %v792
  %v1132 = vpop.f32.mrb[0].mxu0
  %v1133 = vadd.f32 %v1092, %v1132
  %v1134 = vpop.f32.mrb[0].mxu0
  %v1135 = vpop.f32.mrb[0].mxu0
  %v1136 = vadd.f32 %v1095, %v1135
  %v1137 = vpop.f32.mrb[0].mxu0
  %1138 = vdwg.mxu0
  %v1139 = vmax.f32 %v1133, 0.0
  %v1140 = vmax.f32 %v1136, 0.0
  %v1141 = vpack.c.bf16 %v1140, %v1139
  %v1142 = vld [vmem:[%s15] sm:$0xf]
  %v1143 = vld [vmem:[%s15 + $0x4] sm:$0xf]
  %v1144 = vld [vmem:[%s15 + $0x8] sm:$0xf]
  %v1145 = vld [vmem:[%s15 + $0xc] sm:$0xf]
  %v1146 = vld [vmem:[#allocation3] sm:$0x1]
  %v1148 = vlaneseq
  %v1149 = vshrl.u32 %v1148, 7
  %v1150 = vsub.s32 0, %v1149
  %v1151 = vrot.slane %v1146, %v1150
  %v1157 = vunpack.c.l.b16 %v1142
  %v1158 = vunpack.c.l.b16 %v1143
  %v1159 = vunpack.c.l.b16 %v1144
  %v1160 = vunpack.c.l.b16 %v1145
  %v1161 = vpack.c.b16 %v1158, %v1157
  %v1162 = vpack.c.b16 %v1160, %v1159
  %v1166 = vsel %vm91, %v1141, 0
  %1168 = vmatprep.subr.bf16.mxu0 0
  %1169 = vmatpush1.bf16.msra.mxu0 %v1161
  %1170 = vmatprep.subr.bf16.mxu0 0
  %1171 = vmatpush1.bf16.msra.mxu0 %v1162
  %1172 = vmatprep.subr.bf16.mxu0 0
  %1173 = vmatpush1.bf16.msra.mxu0 0
  %1174 = vmatprep.subr.bf16.mxu0 0
  %1175 = vmatpush1.bf16.msra.mxu0 0
  %1176 = vmatprep.subr.bf16.mxu0 0
  %1177 = vmatpush1.bf16.msra.mxu0 0
  %1178 = vmatprep.subr.bf16.mxu0 0
  %1179 = vmatpush1.bf16.msra.mxu0 0
  %1180 = vmatprep.subr.bf16.mxu0 0
  %1181 = vmatpush1.bf16.msra.mxu0 0
  %1182 = vmatprep.subr.bf16.mxu0 0
  %1183 = vmatpush1.bf16.msra.mxu0 0
  %1184 = vmatprep.subr.bf16.mxu0 0
  %1185 = vmatpush1.bf16.msra.mxu0 0
  %1186 = vmatprep.subr.bf16.mxu0 0
  %1187 = vmatpush1.bf16.msra.mxu0 0
  %1188 = vmatprep.subr.bf16.mxu0 0
  %1189 = vmatpush1.bf16.msra.mxu0 0
  %1190 = vmatprep.subr.bf16.mxu0 0
  %1191 = vmatpush1.bf16.msra.mxu0 0
  %1192 = vmatprep.subr.bf16.mxu0 0
  %1193 = vmatpush1.bf16.msra.mxu0 0
  %1194 = vmatprep.subr.bf16.mxu0 0
  %1195 = vmatpush1.bf16.msra.mxu0 0
  %1196 = vmatprep.subr.bf16.mxu0 0
  %1197 = vmatpush1.bf16.msra.mxu0 0
  %1198 = vmatprep.subr.bf16.mxu0 0
  %1199 = vmatpush1.bf16.msra.mxu0 0
  %1200 = vmatprep.mubr.bf16.mxu0 0
  %1201 = vmatmul.mubr.bf16.gmra.mrb[0].mxu0 %v1166
  %v1202 = vpop.f32.mrb[0].mxu0
  %v1203 = vadd.f32 %v1151, %v1202
  %v1204 = vpop.f32.mrb[0].mxu0
  %v1205 = vpop.f32.mrb[0].mxu0
  %v1206 = vadd.f32 %v1151, %v1205
  %v1207 = vpop.f32.mrb[0].mxu0
  %1208 = vdwg.mxu0
  %v1209 = vsub.f32 0.0, %v1203
  %v1210 = vsub.f32 0.0, %v1206
  %v1211 = vmul.f32 %v1209, 1.442695
  %v1212 = vpow.pop %v1211
  %v1213 = vmul.f32 %v1210, 1.442695
  %v1214 = vpow.pop %v1213
  %v1215 = vadd.f32 %v1212, 1.0
  %v1216 = vadd.f32 %v1214, 1.0
  %v1217 = vrcp.pop %v1215
  %v1218 = vmul.f32 1.0, %v1217
  %v1219 = vrcp.pop %v1216
  %v1220 = vmul.f32 1.0, %v1219
  %1222 = vset.pattern.permute.xlu0 0
  %1223 = vperm.xlu0 %1222, %v690
  %v1224 = vpop.permute.xlu0 %1223
  %1227 = vset.pattern.permute.xlu0 0
  %1228 = vperm.xlu0 %1227, %v692
  %v1229 = vpop.permute.xlu0 %1228
  %v1231 = vmul.f32 %v61, %v1224
  %v1232 = vmul.f32 %v62, %v1229
  %1234 = vset.pattern.permute.xlu0 0
  %1235 = vperm.xlu0 %1234, %v1218
  %v1236 = vpop.permute.xlu0 %1235
  %1239 = vset.pattern.permute.xlu0 0
  %1240 = vperm.xlu0 %1239, %v1220
  %v1241 = vpop.permute.xlu0 %1240
  %v1243 = vmul.f32 %v63, %v1236
  %v1244 = vmul.f32 %v64, %v1241
  %v1245 = vadd.f32 %v1231, %v1243
  %v1246 = vadd.f32 %v1232, %v1244
  %v1247 = vpack.c.bf16 %v1246, %v1245
  %v1249 = vsel %vm91, %v1247, 0
  %1251 = vmatprep.subr.bf16.mxu0 0
  %1252 = vmatpush1.bf16.msra.mxu0 %v87
  %1253 = vmatprep.subr.bf16.mxu0 0
  %1254 = vmatpush1.bf16.msra.mxu0 %v88
  %1255 = vmatprep.subr.bf16.mxu0 0
  %1256 = vmatpush1.bf16.msra.mxu0 0
  %1257 = vmatprep.subr.bf16.mxu0 0
  %1258 = vmatpush1.bf16.msra.mxu0 0
  %1259 = vmatprep.subr.bf16.mxu0 0
  %1260 = vmatpush1.bf16.msra.mxu0 0
  %1261 = vmatprep.subr.bf16.mxu0 0
  %1262 = vmatpush1.bf16.msra.mxu0 0
  %1263 = vmatprep.subr.bf16.mxu0 0
  %1264 = vmatpush1.bf16.msra.mxu0 0
  %1265 = vmatprep.subr.bf16.mxu0 0
  %1266 = vmatpush1.bf16.msra.mxu0 0
  %1267 = vmatprep.subr.bf16.mxu0 0
  %1268 = vmatpush1.bf16.msra.mxu0 0
  %1269 = vmatprep.subr.bf16.mxu0 0
  %1270 = vmatpush1.bf16.msra.mxu0 0
  %1271 = vmatprep.subr.bf16.mxu0 0
  %1272 = vmatpush1.bf16.msra.mxu0 0
  %1273 = vmatprep.subr.bf16.mxu0 0
  %1274 = vmatpush1.bf16.msra.mxu0 0
  %1275 = vmatprep.subr.bf16.mxu0 0
  %1276 = vmatpush1.bf16.msra.mxu0 0
  %1277 = vmatprep.subr.bf16.mxu0 0
  %1278 = vmatpush1.bf16.msra.mxu0 0
  %1279 = vmatprep.subr.bf16.mxu0 0
  %1280 = vmatpush1.bf16.msra.mxu0 0
  %1281 = vmatprep.subr.bf16.mxu0 0
  %1282 = vmatpush1.bf16.msra.mxu0 0
  %1283 = vmatprep.mubr.bf16.mxu0 0
  %1284 = vmatmul.mubr.bf16.gmra.mrb[0].mxu0 %v1249
  %v1285 = vpop.f32.mrb[0].mxu0
  %v1286 = vadd.f32 %v77, %v1285
  %v1287 = vpop.f32.mrb[0].mxu0
  %v1288 = vpop.f32.mrb[0].mxu0
  %v1289 = vadd.f32 %v77, %v1288
  %v1290 = vpop.f32.mrb[0].mxu0
  %1291 = vdwg.mxu0
  %v1292 = vsel %vm136, %v1286, -inf
  %1293 = vmax.xlane.f32.xlu0 %v1292
  %v1294 = vpop.xlane.xlu0 %1293
  %v1295 = vsel %vm136, %v1289, -inf
  %1296 = vmax.xlane.f32.xlu0 %v1295
  %v1297 = vpop.xlane.xlu0 %1296
  %v1298 = vsub.f32 %v1286, %v1294
  %v1299 = vsub.f32 %v1289, %v1297
  %v1300 = vmul.f32 %v1298, 1.442695
  %v1301 = vpow.pop %v1300
  %v1302 = vmul.f32 %v1299, 1.442695
  %v1303 = vpow.pop %v1302
  %v1304 = vsel %vm136, %v1301, 0.0
  %1305 = vadd.xlane.f32.xlu0 %v1304
  %v1306 = vpop.xlane.xlu0 %1305
  %v1307 = vsel %vm136, %v1303, 0.0
  %1308 = vadd.xlane.f32.xlu0 %v1307
  %v1309 = vpop.xlane.xlu0 %1308
  %v1310 = vrcp.pop %v1306
  %v1311 = vmul.f32 %v1301, %v1310
  %v1312 = vrcp.pop %v1309
  %v1313 = vmul.f32 %v1303, %v1312
  %v1314 = vsel %vm136, %v1311, -inf
  %1315 = vmax.xlane.f32.xlu0 %v1314
  %v1316 = vpop.xlane.xlu0 %1315
  %v1317 = vsel %vm136, %v1313, -inf
  %1318 = vmax.xlane.f32.xlu0 %v1317
  %v1319 = vpop.xlane.xlu0 %1318
  %1322 = vrot.lane.b32.xlu0 %v1311, 33
  %v1323 = vpop.permute.xlu0 %1322
  %1324 = vrot.lane.b32.xlu0 %v1313, 33
  %v1325 = vpop.permute.xlu0 %1324
  %1330 = vrot.lane.b32.xlu0 %v1245, 66
  %v1331 = vpop.permute.xlu0 %1330
  %1332 = vrot.lane.b32.xlu0 %v1246, 66
  %v1333 = vpop.permute.xlu0 %1332
  %v1336 = vsel %vm136, %v1286, %v1323
  %v1337 = vsel %vm136, %v1289, %v1325
  %vm1338 = vcmask 539648
  %v1339 = vsel %vm1338, %v1336, %v1331
  %v1340 = vsel %vm1338, %v1337, %v1333
  %vm1341 = vcmask 801792
  %v1342 = vsel %vm1341, %v1339, %v1316
  %v1343 = vsel %vm1341, %v1340, %v1319
  %vm1344 = vcmask 809984
  %v1345 = vsel %vm1344, %v1342, 0.0
  %v1346 = vsel %vm1344, %v1343, 0.0
  %1347 = vst [vmem:[%s17] sm:$0xff] %v1345
  %1348 = vst [vmem:[%s17 + $0x8] sm:$0xff] %v1346
  // Predicated region
  $region70: #{_forward_core.11} parent=0 // pred_check
    _
  $region71: #{_forward_core.11} parent=0 // pred_check_branch
    %1350 = sbr.rel (0) target = $region73
  $region72: #{_forward_core.11} parent=0 // pred_region
    _
  $region73: #{_forward_core.11} parent=0 // pred_fallthru
    _
  // Predicated region
  $region74: #{_forward_core.11} parent=0 // pred_check
    _
  $region75: #{_forward_core.11} parent=0 // pred_check_branch
    %1352 = sbr.rel (0) target = $region77
  $region76: #{_forward_core.11} parent=0 // pred_region
    _
  $region77: #{_forward_core.11} parent=0 // pred_fallthru
    _

</llo_original>
